<compile_context>
chip_gen: v6e
topology: v6e:2x2x1
jax: 0.10.0
libtpu: 0.0.40
codegen_flags: <defaults>
</compile_context>

<pallas_src>
import functools

import jax
import jax.numpy as jnp
from jax import lax
from jax.experimental import pallas as pl
from jax.experimental.pallas import tpu as pltpu

# ----------------------------- configuration --------------------------------
B = 2                 # batch
T_IMG = 1             # media time steps
FRAMES = 1            # frames per media
C_IN, H_IN, W_IN = 3, 16, 16
PATCH = 8
MEDIA_DIM = 32        # vision / perceiver dim
N_LATENTS = 8
X_DIM = 32            # lang hidden size
VOCAB = 64
SEQ = 8
N_LANG_LAYERS = 2
CROSS_EVERY = 1
HEADS = 4             # vision, perceiver and lang attention heads
FF_MULT = 2
MEDIA_TOKEN_ID = 63
EOC_TOKEN_ID = 62     # unused in forward (generation only)

_NEG_INF = -1e9
_PARALLEL = pltpu.CompilerParams(dimension_semantics=("parallel",))


# --------------------------- in-kernel helpers -------------------------------
def _ln(x, g, b, eps=1e-5):
    mu = jnp.mean(x, axis=-1, keepdims=True)
    var = jnp.mean(jnp.square(x - mu), axis=-1, keepdims=True)
    return (x - mu) * lax.rsqrt(var + eps) * g + b


def _dot(a, b):
    # bf16 MXU operands, f32 accumulation.
    return jnp.dot(a.astype(jnp.bfloat16), b.astype(jnp.bfloat16),
                   preferred_element_type=jnp.float32)


def _dot_nt(a, b):
    # (M, K) x (N, K) -> (M, N): contract the last dims, no explicit transpose.
    return lax.dot_general(a.astype(jnp.bfloat16), b.astype(jnp.bfloat16),
                           (((1,), (1,)), ((), ())),
                           preferred_element_type=jnp.float32)


def _mha(q, k, v, mask, heads):
    """q: (Sq, inner); k, v: (Sk, inner); mask: additive (Sq, Sk) or 0.0.

    Heads live on the lane dim and are selected with 0/1 column masks, so
    per-head outputs land directly in concatenated-head layout (no lane
    slices, no concat/transpose). Returns (Sq, inner) before the out proj.
    """
    sq, inner = q.shape
    dh = inner // heads
    sm_scale = 1.0 / float(dh) ** 0.5
    col = lax.broadcasted_iota(jnp.int32, (1, inner), 1)
    out = jnp.zeros((sq, inner), jnp.float32)
    for h_i in range(heads):
        sel = (col >= h_i * dh) & (col < (h_i + 1) * dh)       # (1, inner)
        qh = jnp.where(sel, q, 0.0)                            # (Sq, inner)
        s = _dot_nt(qh, k) * sm_scale + mask                   # (Sq, Sk)
        s = s - jnp.max(s, axis=-1, keepdims=True)
        p = jnp.exp(s)
        p = p * pl.reciprocal(jnp.sum(p, axis=-1, keepdims=True), approx=True)
        vh = jnp.where(sel, v, 0.0)                            # (Sk, inner)
        out = out + _dot(p, vh)
    return out


# ------------------------------ Pallas kernels -------------------------------
def _vision_block_kernel(patches_ref, pw_ref, pb_ref, pos_ref,
                         ln1_g, ln1_b, wq, bq, wk, bk, wv, bv, wo, bo,
                         ln2_g, ln2_b, w1, b1, w2, b2, lnf_g, lnf_b,
                         o_ref, *, heads):
    # Fused: patch proj + pos emb -> LN -> MHA -> residual -> LN -> FFN ->
    #        residual -> final LN, all in VMEM.
    x = _dot(patches_ref[...].astype(jnp.float32), pw_ref[...]) \
        + pb_ref[...] + pos_ref[...]
    h = _ln(x, ln1_g[...], ln1_b[...])
    q = _dot(h, wq[...]) + bq[...]
    k = _dot(h, wk[...]) + bk[...]
    v = _dot(h, wv[...]) + bv[...]
    attn = _mha(q, k, v, 0.0, heads)
    x = x + _dot(attn, wo[...]) + bo[...]
    h = _ln(x, ln2_g[...], ln2_b[...])
    h = jax.nn.gelu(_dot(h, w1[...]) + b1[...], approximate=True)
    x = x + _dot(h, w2[...]) + b2[...]
    x = _ln(x, lnf_g[...], lnf_b[...])
    o_ref[...] = x.astype(o_ref.dtype)


def _decoder_block_kernel(x_ref, mask_ref, ln1_g, ln1_b,
                          wq, bq, wk, bk, wv, bv, wo, bo,
                          ln2_g, ln2_b, w1, b1, w2, b2, o_ref, *, heads):
    # Fused: LN -> self-MHA -> residual -> LN -> FFN -> residual.
    x = x_ref[...].astype(jnp.float32)                          # (S, D)
    h = _ln(x, ln1_g[...], ln1_b[...])
    q = _dot(h, wq[...]) + bq[...]
    k = _dot(h, wk[...]) + bk[...]
    v = _dot(h, wv[...]) + bv[...]
    attn = _mha(q, k, v, mask_ref[...], heads)
    x = x + _dot(attn, wo[...]) + bo[...]
    h = _ln(x, ln2_g[...], ln2_b[...])
    h = jax.nn.gelu(_dot(h, w1[...]) + b1[...], approximate=True)
    x = x + _dot(h, w2[...]) + b2[...]
    o_ref[...] = x.astype(o_ref.dtype)


def _cross_block_kernel(x_ref, kv_ref, mask_ref, ascale_ref, fscale_ref,
                        lnq_g, lnq_b, lnkv_g, lnkv_b,
                        wq, bq, wk, bk, wv, bv, wo, bo,
                        lnff_g, lnff_b, w1, b1, w2, b2, post_g, post_b,
                        o_ref, *, heads, kv_ln, post_ln):
    # Fused: LN(q) [+ LN(kv)] -> cross-MHA -> gated residual -> LN -> FFN ->
    #        gated residual [-> final LN].
    x = x_ref[...].astype(jnp.float32)                          # (Sq, D)
    hq = _ln(x, lnq_g[...], lnq_b[...])
    kv = kv_ref[...].astype(jnp.float32)                        # (Sk, Dk)
    if kv_ln:
        kv = _ln(kv, lnkv_g[...], lnkv_b[...])
    q = _dot(hq, wq[...]) + bq[...]
    k = _dot(kv, wk[...]) + bk[...]
    v = _dot(kv, wv[...]) + bv[...]
    attn = _mha(q, k, v, mask_ref[...], heads)
    x = x + ascale_ref[...] * (_dot(attn, wo[...]) + bo[...])
    h = _ln(x, lnff_g[...], lnff_b[...])
    h = jax.nn.gelu(_dot(h, w1[...]) + b1[...], approximate=True)
    x = x + fscale_ref[...] * (_dot(h, w2[...]) + b2[...])
    if post_ln:
        x = _ln(x, post_g[...], post_b[...])
    o_ref[...] = x.astype(o_ref.dtype)


def _ln_head_kernel(x_ref, g_ref, b_ref, w_ref, hb_ref, o_ref):
    h = _ln(x_ref[...].astype(jnp.float32), g_ref[...], b_ref[...])
    o_ref[...] = (_dot(h, w_ref[...]) + hb_ref[...]).astype(o_ref.dtype)


# ------------------------------ kernel wrappers -------------------------------
def _row(v):
    return v.reshape(1, -1)


def vision_block(patches, p, heads=HEADS):
    """patches: (N, S, C*P*P). Returns post-LN vision tokens (N, S, D)."""
    N, S, Pd = patches.shape
    D = p["patch_w"].shape[1]
    inner = p["attn"]["wq"].shape[1]
    Hd = p["ff"]["w1"].shape[1]
    kern = functools.partial(_vision_block_kernel, heads=heads)
    full = lambda b: (0, 0)
    per_b = lambda b: (b, 0, 0)
    return pl.pallas_call(
        kern,
        out_shape=jax.ShapeDtypeStruct((N, S, D), jnp.float32),
        grid=(N,),
        in_specs=[
            pl.BlockSpec((None, S, Pd), per_b),
            pl.BlockSpec((Pd, D), full), pl.BlockSpec((1, D), full),
            pl.BlockSpec((S, D), full),
            pl.BlockSpec((1, D), full), pl.BlockSpec((1, D), full),
            pl.BlockSpec((D, inner), full), pl.BlockSpec((1, inner), full),
            pl.BlockSpec((D, inner), full), pl.BlockSpec((1, inner), full),
            pl.BlockSpec((D, inner), full), pl.BlockSpec((1, inner), full),
            pl.BlockSpec((inner, D), full), pl.BlockSpec((1, D), full),
            pl.BlockSpec((1, D), full), pl.BlockSpec((1, D), full),
            pl.BlockSpec((D, Hd), full), pl.BlockSpec((1, Hd), full),
            pl.BlockSpec((Hd, D), full), pl.BlockSpec((1, D), full),
            pl.BlockSpec((1, D), full), pl.BlockSpec((1, D), full),
        ],
        out_specs=pl.BlockSpec((None, S, D), per_b),
        compiler_params=_PARALLEL,
    )(patches, p["patch_w"], _row(p["patch_b"]), p["pos_emb"],
      _row(p["ln1_g"]), _row(p["ln1_b"]),
      p["attn"]["wq"], _row(p["attn"]["bq"]),
      p["attn"]["wk"], _row(p["attn"]["bk"]),
      p["attn"]["wv"], _row(p["attn"]["bv"]),
      p["attn"]["wo"], _row(p["attn"]["bo"]),
      _row(p["ln2_g"]), _row(p["ln2_b"]),
      p["ff"]["w1"], _row(p["ff"]["b1"]),
      p["ff"]["w2"], _row(p["ff"]["b2"]),
      _row(p["lnf_g"]), _row(p["lnf_b"]))


def decoder_block(x, mask, p, heads=HEADS):
    """x: (Bn, S, D); mask: additive (Bn, S, S). Fused self-attn + FFN layer."""
    Bn, S, D = x.shape
    inner = p["attn"]["wq"].shape[1]
    Hd = p["ff"]["w1"].shape[1]
    kern = functools.partial(_decoder_block_kernel, heads=heads)
    full = lambda b: (0, 0)
    per_b = lambda b: (b, 0, 0)
    return pl.pallas_call(
        kern,
        out_shape=jax.ShapeDtypeStruct((Bn, S, D), jnp.float32),
        grid=(Bn,),
        in_specs=[
            pl.BlockSpec((None, S, D), per_b),
            pl.BlockSpec((None, S, S), per_b),
            pl.BlockSpec((1, D), full), pl.BlockSpec((1, D), full),
            pl.BlockSpec((D, inner), full), pl.BlockSpec((1, inner), full),
            pl.BlockSpec((D, inner), full), pl.BlockSpec((1, inner), full),
            pl.BlockSpec((D, inner), full), pl.BlockSpec((1, inner), full),
            pl.BlockSpec((inner, D), full), pl.BlockSpec((1, D), full),
            pl.BlockSpec((1, D), full), pl.BlockSpec((1, D), full),
            pl.BlockSpec((D, Hd), full), pl.BlockSpec((1, Hd), full),
            pl.BlockSpec((Hd, D), full), pl.BlockSpec((1, D), full),
        ],
        out_specs=pl.BlockSpec((None, S, D), per_b),
        compiler_params=_PARALLEL,
    )(x, mask, _row(p["ln1_g"]), _row(p["ln1_b"]),
      p["attn"]["wq"], _row(p["attn"]["bq"]),
      p["attn"]["wk"], _row(p["attn"]["bk"]),
      p["attn"]["wv"], _row(p["attn"]["bv"]),
      p["attn"]["wo"], _row(p["attn"]["bo"]),
      _row(p["ln2_g"]), _row(p["ln2_b"]),
      p["ff"]["w1"], _row(p["ff"]["b1"]),
      p["ff"]["w2"], _row(p["ff"]["b2"]))


def cross_block(x, kv, mask, attn_scale, ffn_scale, ln_q, ln_kv, attn_p,
                ln_ff, ff_p, post_ln, heads=HEADS):
    """x: (Bn, Sq, D) residual + query source; kv: (Bn, Sk, Dk);
    mask: additive (Bn, Sq, Sk); attn_scale: (Bn, Sq, D) gate*keep multiplier on
    the attention branch; ffn_scale: scalar multiplier on the FFN branch.
    ln_kv=None skips the kv LayerNorm; post_ln=(g, b) fuses a final LayerNorm."""
    Bn, Sq, D = x.shape
    Sk, Dk = kv.shape[1], kv.shape[2]
    inner = attn_p["wq"].shape[1]
    Hd = ff_p["w1"].shape[1]
    kv_ln = ln_kv is not None
    if kv_ln:
        gkv, bkv = ln_kv
    else:
        gkv = jnp.ones((Dk,), jnp.float32)
        bkv = jnp.zeros((Dk,), jnp.float32)
    if post_ln is None:
        pg = jnp.ones((D,), jnp.float32)
        pb = jnp.zeros((D,), jnp.float32)
    else:
        pg, pb = post_ln
    fscale = jnp.broadcast_to(jnp.asarray(ffn_scale, jnp.float32), (1, D))
    kern = functools.partial(_cross_block_kernel, heads=heads,
                             kv_ln=kv_ln, post_ln=post_ln is not None)
    full = lambda b: (0, 0)
    per_b = lambda b: (b, 0, 0)
    return pl.pallas_call(
        kern,
        out_shape=jax.ShapeDtypeStruct((Bn, Sq, D), jnp.float32),
        grid=(Bn,),
        in_specs=[
            pl.BlockSpec((None, Sq, D), per_b),
            pl.BlockSpec((None, Sk, Dk), per_b),
            pl.BlockSpec((None, Sq, Sk), per_b),
            pl.BlockSpec((None, Sq, D), per_b),
            pl.BlockSpec((1, D), full),
            pl.BlockSpec((1, D), full), pl.BlockSpec((1, D), full),
            pl.BlockSpec((1, Dk), full), pl.BlockSpec((1, Dk), full),
            pl.BlockSpec((D, inner), full), pl.BlockSpec((1, inner), full),
            pl.BlockSpec((Dk, inner), full), pl.BlockSpec((1, inner), full),
            pl.BlockSpec((Dk, inner), full), pl.BlockSpec((1, inner), full),
            pl.BlockSpec((inner, D), full), pl.BlockSpec((1, D), full),
            pl.BlockSpec((1, D), full), pl.BlockSpec((1, D), full),
            pl.BlockSpec((D, Hd), full), pl.BlockSpec((1, Hd), full),
            pl.BlockSpec((Hd, D), full), pl.BlockSpec((1, D), full),
            pl.BlockSpec((1, D), full), pl.BlockSpec((1, D), full),
        ],
        out_specs=pl.BlockSpec((None, Sq, D), per_b),
        compiler_params=_PARALLEL,
    )(x, kv, mask, attn_scale.astype(jnp.float32), fscale,
      _row(ln_q[0]), _row(ln_q[1]), _row(gkv), _row(bkv),
      attn_p["wq"], _row(attn_p["bq"]), attn_p["wk"], _row(attn_p["bk"]),
      attn_p["wv"], _row(attn_p["bv"]), attn_p["wo"], _row(attn_p["bo"]),
      _row(ln_ff[0]), _row(ln_ff[1]),
      ff_p["w1"], _row(ff_p["b1"]), ff_p["w2"], _row(ff_p["b2"]),
      _row(pg), _row(pb))


def ln_head(x, g, b, w, hb):
    """Final LayerNorm fused with the LM head; vocab padded to a 128-lane
    multiple so the largest output tensor is stored lane-dense."""
    Bx, S, D = x.shape
    V = w.shape[1]
    Vp = ((V + 127) // 128) * 128
    w_p = jnp.pad(w, ((0, 0), (0, Vp - V)))
    hb_p = jnp.pad(hb, (0, Vp - V))
    x2 = x.reshape(-1, D)
    M = x2.shape[0]
    full = lambda i: (0, 0)
    out = pl.pallas_call(
        _ln_head_kernel,
        out_shape=jax.ShapeDtypeStruct((M, Vp), jnp.float32),
        grid=(1,),
        in_specs=[pl.BlockSpec((M, D), full), pl.BlockSpec((1, D), full),
                  pl.BlockSpec((1, D), full), pl.BlockSpec((D, Vp), full),
                  pl.BlockSpec((1, Vp), full)],
        out_specs=pl.BlockSpec((M, Vp), full),
    )(x2, _row(g), _row(b), w_p, _row(hb_p))
    return out[:, :V].reshape(Bx, S, V)


# ------------------------------- model pieces --------------------------------
def vision_encoder(p, images):
    # images: (N, C, H, W) NCHW -> one fused Pallas call per grid over N.
    N, C, H, W = images.shape
    ph, pw = H // PATCH, W // PATCH
    x = images.reshape(N, C, ph, PATCH, pw, PATCH)
    x = x.transpose(0, 2, 4, 1, 3, 5).reshape(N, ph * pw, C * PATCH * PATCH)
    tokens = vision_block(x, p)
    pooled = jnp.mean(tokens, axis=1)
    return pooled, tokens      # forward uses index [1] -> patch tokens


def perceiver_sampler(p, media):
    # media: (B, T, F, v, D) -> latents (B, T, n_latents, D)
    Bm, T, Fr, v, D = media.shape
    x = media.reshape(Bm * T, Fr * v, D)
    lat = jnp.broadcast_to(p["latents"][None], (Bm * T, N_LATENTS, D))
    kv = jnp.concatenate([x, lat], axis=1)
    zero_mask = jnp.zeros((Bm * T, N_LATENTS, kv.shape[1]), jnp.float32)
    ones_scale = jnp.ones((Bm * T, N_LATENTS, D), jnp.float32)
    lat = cross_block(lat, kv, zero_mask, ones_scale, 1.0,
                      (p["ln_lat_g"], p["ln_lat_b"]),
                      (p["ln_med_g"], p["ln_med_b"]),
                      p["attn"], (p["ln_ff_g"], p["ln_ff_b"]), p["ff"],
                      post_ln=(p["lnf_g"], p["lnf_b"]))
    return lat.reshape(Bm, T, N_LATENTS, D)


def gated_cross_attn_block(p, x, media_latents, media_locations):
    # x: (B, S, X_DIM); media_latents: (B, T, n, D); media_locations: (B, S) bool
    Bx, S, Dx = x.shape
    T, n = media_latents.shape[1], media_latents.shape[2]
    media = media_latents.reshape(Bx, T * n, media_latents.shape[-1])
    text_time = jnp.cumsum(media_locations.astype(jnp.int32), axis=1)      # (B, S)
    media_time = jnp.repeat(jnp.arange(1, T + 1, dtype=jnp.int32), n)      # (T*n,)
    attend = text_time[:, :, None] == media_time[None, None, :]            # immediate media only
    mask = jnp.where(attend, 0.0, _NEG_INF).astype(jnp.float32)            # (B, S, T*n)
    # tanh(gate) * (has-preceding-media) folded into one per-row multiplier.
    row_scale = (jnp.tanh(p["attn_gate"])
                 * (text_time > 0).astype(jnp.float32))[:, :, None]        # (B, S, 1)
    attn_scale = jnp.broadcast_to(row_scale, (Bx, S, Dx))
    return cross_block(x, media, mask, attn_scale, jnp.tanh(p["ff_gate"]),
                       (p["ln_g"], p["ln_b"]), None,
                       p["attn"], (p["ln_ff_g"], p["ln_ff_b"]), p["ff"],
                       post_ln=None)


def lang_encoder_forward(p, input_ids, attention_mask, media_latents, media_locations):
    Bx, S = input_ids.shape
    x = p["tok_emb"][input_ids] + p["pos_emb"][None, :S]
    causal = jnp.tril(jnp.ones((S, S), jnp.bool_))
    keep = causal[None] & attention_mask[:, None, :].astype(jnp.bool_)
    mask = jnp.where(keep, 0.0, _NEG_INF).astype(jnp.float32)              # (B, S, S)
    for layer in p["layers"]:
        if layer["xattn"] is not None:
            x = gated_cross_attn_block(layer["xattn"], x, media_latents, media_locations)
        x = decoder_block(x, mask, layer["dec"])
    return ln_head(x, p["lnf_g"], p["lnf_b"], p["head_w"], p["head_b"])     # (B, S, VOCAB)


def flamingo_forward(params, media, input_ids, attention_mask):
    # _encode_and_condition_media
    Bm, T, Fr, C, H, W = media.shape
    imgs = media.reshape(-1, C, H, W)
    tokens = vision_encoder(params["vision"], imgs)[1]
    v, D = tokens.shape[-2:]
    tokens = tokens.reshape(Bm, T, Fr, v, D)
    media_latents = perceiver_sampler(params["perceiver"], tokens)
    # _condition_media_locations
    media_locations = input_ids == MEDIA_TOKEN_ID
    # lang_encoder(input_ids=x, attention_mask=...); conditioning passed functionally
    return lang_encoder_forward(params["lang"], input_ids, attention_mask,
                                media_latents, media_locations)


# ------------------------------ parameter init --------------------------------
class KeyGen:
    def __init__(self, key):
        self._key = key

    def __call__(self):
        self._key, sub = jax.random.split(self._key)
        return sub


def _w(kg, shape, scale=0.02):
    return scale * jax.random.normal(kg(), shape, jnp.float32)


def init_mha(kg, q_dim, kv_dim, inner, out_dim):
    return dict(
        wq=_w(kg, (q_dim, inner)), bq=jnp.zeros((inner,), jnp.float32),
        wk=_w(kg, (kv_dim, inner)), bk=jnp.zeros((inner,), jnp.float32),
        wv=_w(kg, (kv_dim, inner)), bv=jnp.zeros((inner,), jnp.float32),
        wo=_w(kg, (inner, out_dim)), bo=jnp.zeros((out_dim,), jnp.float32),
    )


def init_ff(kg, dim):
    hid = dim * FF_MULT
    return dict(w1=_w(kg, (dim, hid)), b1=jnp.zeros((hid,), jnp.float32),
                w2=_w(kg, (hid, dim)), b2=jnp.zeros((dim,), jnp.float32))


def init_ln(dim):
    return jnp.ones((dim,), jnp.float32), jnp.zeros((dim,), jnp.float32)


def init_params(seed=0):
    kg = KeyGen(jax.random.PRNGKey(seed))
    D = MEDIA_DIM
    n_patches = (H_IN // PATCH) * (W_IN // PATCH)

    g, b = init_ln(D)
    vision = dict(
        patch_w=_w(kg, (C_IN * PATCH * PATCH, D)),
        patch_b=jnp.zeros((D,), jnp.float32),
        pos_emb=_w(kg, (n_patches, D)),
        ln1_g=g, ln1_b=b, ln2_g=g, ln2_b=b, lnf_g=g, lnf_b=b,
        attn=init_mha(kg, D, D, D, D),
        ff=init_ff(kg, D),
    )

    perceiver = dict(
        latents=_w(kg, (N_LATENTS, D)),
        ln_lat_g=g, ln_lat_b=b, ln_med_g=g, ln_med_b=b,
        ln_ff_g=g, ln_ff_b=b, lnf_g=g, lnf_b=b,
        attn=init_mha(kg, D, D, D, D),
        ff=init_ff(kg, D),
    )

    gl, bl = init_ln(X_DIM)
    layers = []
    for i in range(N_LANG_LAYERS):
        if i % CROSS_EVERY == 0:
            # Real Flamingo inits gates to 0 (tanh(0)=0); use a small nonzero
            # value so the cross-attention path is actually exercised.
            xattn = dict(
                ln_g=gl, ln_b=bl, ln_ff_g=gl, ln_ff_b=bl,
                attn=init_mha(kg, X_DIM, MEDIA_DIM, X_DIM, X_DIM),
                ff=init_ff(kg, X_DIM),
                attn_gate=jnp.float32(0.1), ff_gate=jnp.float32(0.1),
            )
        else:
            xattn = None
        dec = dict(ln1_g=gl, ln1_b=bl, ln2_g=gl, ln2_b=bl,
                   attn=init_mha(kg, X_DIM, X_DIM, X_DIM, X_DIM),
                   ff=init_ff(kg, X_DIM))
        layers.append(dict(xattn=xattn, dec=dec))

    lang = dict(
        tok_emb=_w(kg, (VOCAB, X_DIM)),
        pos_emb=_w(kg, (SEQ, X_DIM)),
        layers=layers,
        lnf_g=gl, lnf_b=bl,
        head_w=_w(kg, (X_DIM, VOCAB)),
        head_b=jnp.zeros((VOCAB,), jnp.float32),
    )
    return dict(vision=vision, perceiver=perceiver, lang=lang)


# ---------------------------------- main --------------------------------------
# TODO(synk): lang_encoder.generate / KV-cache decoding and the stateful
#             condition/clear_conditioned_layers mutation have no clean Pallas
#             equivalent; conditioning is passed functionally instead.
if __name__ == "__main__":
    params = init_params(0)

    key = jax.random.PRNGKey(0)
    k_media, k_ids = jax.random.split(key)
    media = jax.random.normal(k_media, (B, T_IMG, FRAMES, C_IN, H_IN, W_IN), jnp.float32)
    input_ids = jax.random.randint(k_ids, (B, SEQ), 0, VOCAB - 2, dtype=jnp.int32)
    input_ids = input_ids.at[:, 0].set(MEDIA_TOKEN_ID)   # one <media> token per sequence
    attention_mask = jnp.ones((B, SEQ), jnp.int32)

    fwd = jax.jit(flamingo_forward)
    logits = fwd(params, media, input_ids, attention_mask)
    jax.block_until_ready(logits)
    assert logits.shape == (B, SEQ, VOCAB), logits.shape
    print("KERNEL_OK")
</pallas_src>

<mosaic_0001>
module attributes {stable_mosaic.version = 11 : i64} {
  func.func @_vision_block_kernel(%arg0: i32, %arg1: memref<1x4x192xf32, #tpu.memory_space<vmem>>, %arg2: memref<192x32xf32, #tpu.memory_space<vmem>>, %arg3: memref<1x32xf32, #tpu.memory_space<vmem>>, %arg4: memref<4x32xf32, #tpu.memory_space<vmem>>, %arg5: memref<1x32xf32, #tpu.memory_space<vmem>>, %arg6: memref<1x32xf32, #tpu.memory_space<vmem>>, %arg7: memref<32x32xf32, #tpu.memory_space<vmem>>, %arg8: memref<1x32xf32, #tpu.memory_space<vmem>>, %arg9: memref<32x32xf32, #tpu.memory_space<vmem>>, %arg10: memref<1x32xf32, #tpu.memory_space<vmem>>, %arg11: memref<32x32xf32, #tpu.memory_space<vmem>>, %arg12: memref<1x32xf32, #tpu.memory_space<vmem>>, %arg13: memref<32x32xf32, #tpu.memory_space<vmem>>, %arg14: memref<1x32xf32, #tpu.memory_space<vmem>>, %arg15: memref<1x32xf32, #tpu.memory_space<vmem>>, %arg16: memref<1x32xf32, #tpu.memory_space<vmem>>, %arg17: memref<32x64xf32, #tpu.memory_space<vmem>>, %arg18: memref<1x64xf32, #tpu.memory_space<vmem>>, %arg19: memref<64x32xf32, #tpu.memory_space<vmem>>, %arg20: memref<1x32xf32, #tpu.memory_space<vmem>>, %arg21: memref<1x32xf32, #tpu.memory_space<vmem>>, %arg22: memref<1x32xf32, #tpu.memory_space<vmem>>, %arg23: memref<1x4x32xf32, #tpu.memory_space<vmem>>) attributes {dimension_semantics = [#tpu.dimension_semantics<parallel>], iteration_bounds = array<i64: 2>, scalar_prefetch = 0 : i64, scratch_operands = 0 : i64, tpu.core_type = #tpu.core_type<tc>, window_params = [{transform_indices = @transform_0, window_bounds = array<i64: 1, 4, 192>}, {pipeline_mode = #tpu.pipeline_mode<synchronous>, transform_indices = @transform_1, window_bounds = array<i64: 192, 32>}, {pipeline_mode = #tpu.pipeline_mode<synchronous>, transform_indices = @transform_2, window_bounds = array<i64: 1, 32>}, {pipeline_mode = #tpu.pipeline_mode<synchronous>, transform_indices = @transform_3, window_bounds = array<i64: 4, 32>}, {pipeline_mode = #tpu.pipeline_mode<synchronous>, transform_indices = @transform_4, window_bounds = array<i64: 1, 32>}, {pipeline_mode = #tpu.pipeline_mode<synchronous>, transform_indices = @transform_5, window_bounds = array<i64: 1, 32>}, {pipeline_mode = #tpu.pipeline_mode<synchronous>, transform_indices = @transform_6, window_bounds = array<i64: 32, 32>}, {pipeline_mode = #tpu.pipeline_mode<synchronous>, transform_indices = @transform_7, window_bounds = array<i64: 1, 32>}, {pipeline_mode = #tpu.pipeline_mode<synchronous>, transform_indices = @transform_8, window_bounds = array<i64: 32, 32>}, {pipeline_mode = #tpu.pipeline_mode<synchronous>, transform_indices = @transform_9, window_bounds = array<i64: 1, 32>}, {pipeline_mode = #tpu.pipeline_mode<synchronous>, transform_indices = @transform_10, window_bounds = array<i64: 32, 32>}, {pipeline_mode = #tpu.pipeline_mode<synchronous>, transform_indices = @transform_11, window_bounds = array<i64: 1, 32>}, {pipeline_mode = #tpu.pipeline_mode<synchronous>, transform_indices = @transform_12, window_bounds = array<i64: 32, 32>}, {pipeline_mode = #tpu.pipeline_mode<synchronous>, transform_indices = @transform_13, window_bounds = array<i64: 1, 32>}, {pipeline_mode = #tpu.pipeline_mode<synchronous>, transform_indices = @transform_14, window_bounds = array<i64: 1, 32>}, {pipeline_mode = #tpu.pipeline_mode<synchronous>, transform_indices = @transform_15, window_bounds = array<i64: 1, 32>}, {pipeline_mode = #tpu.pipeline_mode<synchronous>, transform_indices = @transform_16, window_bounds = array<i64: 32, 64>}, {pipeline_mode = #tpu.pipeline_mode<synchronous>, transform_indices = @transform_17, window_bounds = array<i64: 1, 64>}, {pipeline_mode = #tpu.pipeline_mode<synchronous>, transform_indices = @transform_18, window_bounds = array<i64: 64, 32>}, {pipeline_mode = #tpu.pipeline_mode<synchronous>, transform_indices = @transform_19, window_bounds = array<i64: 1, 32>}, {pipeline_mode = #tpu.pipeline_mode<synchronous>, transform_indices = @transform_20, window_bounds = array<i64: 1, 32>}, {pipeline_mode = #tpu.pipeline_mode<synchronous>, transform_indices = @transform_21, window_bounds = array<i64: 1, 32>}, {transform_indices = @transform_22, window_bounds = array<i64: 1, 4, 32>}]} {
    %c0 = arith.constant 0 : index
    %c0_0 = arith.constant 0 : index
    %c0_1 = arith.constant 0 : index
    %0 = vector.load %arg1[%c0, %c0_0, %c0_1] : memref<1x4x192xf32, #tpu.memory_space<vmem>>, vector<1x4x192xf32>
    %1 = vector.shape_cast %0 : vector<1x4x192xf32> to vector<4x192xf32>
    %c0_2 = arith.constant 0 : index
    %c0_3 = arith.constant 0 : index
    %2 = vector.load %arg2[%c0_2, %c0_3] : memref<192x32xf32, #tpu.memory_space<vmem>>, vector<192x32xf32>
    %3 = arith.truncf %1 : vector<4x192xf32> to vector<4x192xbf16>
    %4 = arith.truncf %2 : vector<192x32xf32> to vector<192x32xbf16>
    %cst = arith.constant dense<0.000000e+00> : vector<4x32xf32>
    %5 = tpu.matmul %3, %4, %cst {dimension_numbers = #tpu.dot_dimension_numbers<[1], [0], [0], [1], [0, 0, 1, 1], [], []>} : vector<4x192xbf16>, vector<192x32xbf16>, vector<4x32xf32> -> vector<4x32xf32>
    %c0_4 = arith.constant 0 : index
    %c0_5 = arith.constant 0 : index
    %6 = vector.load %arg3[%c0_4, %c0_5] : memref<1x32xf32, #tpu.memory_space<vmem>>, vector<1x32xf32>
    %7 = vector.broadcast %6 : vector<1x32xf32> to vector<4x32xf32>
    %8 = arith.addf %5, %7 : vector<4x32xf32>
    %c0_6 = arith.constant 0 : index
    %c0_7 = arith.constant 0 : index
    %9 = vector.load %arg4[%c0_6, %c0_7] : memref<4x32xf32, #tpu.memory_space<vmem>>, vector<4x32xf32>
    %10 = arith.addf %8, %9 : vector<4x32xf32>
    %c0_8 = arith.constant 0 : index
    %c0_9 = arith.constant 0 : index
    %11 = vector.load %arg5[%c0_8, %c0_9] : memref<1x32xf32, #tpu.memory_space<vmem>>, vector<1x32xf32>
    %c0_10 = arith.constant 0 : index
    %c0_11 = arith.constant 0 : index
    %12 = vector.load %arg6[%c0_10, %c0_11] : memref<1x32xf32, #tpu.memory_space<vmem>>, vector<1x32xf32>
    %cst_12 = arith.constant dense<0.000000e+00> : vector<4xf32>
    %13 = vector.multi_reduction <add>, %10, %cst_12 [1] : vector<4x32xf32> to vector<4xf32>
    %14 = vector.shape_cast %13 : vector<4xf32> to vector<4x1xf32>
    %cst_13 = arith.constant 3.200000e+01 : f32
    %15 = vector.broadcast %cst_13 : f32 to vector<4x1xf32>
    %16 = arith.divf %14, %15 : vector<4x1xf32>
    %17 = vector.broadcast %16 : vector<4x1xf32> to vector<4x32xf32>
    %18 = arith.subf %10, %17 : vector<4x32xf32>
    %19 = arith.mulf %18, %18 : vector<4x32xf32>
    %cst_14 = arith.constant dense<0.000000e+00> : vector<4xf32>
    %20 = vector.multi_reduction <add>, %19, %cst_14 [1] : vector<4x32xf32> to vector<4xf32>
    %21 = vector.shape_cast %20 : vector<4xf32> to vector<4x1xf32>
    %cst_15 = arith.constant 3.200000e+01 : f32
    %22 = vector.broadcast %cst_15 : f32 to vector<4x1xf32>
    %23 = arith.divf %21, %22 : vector<4x1xf32>
    %24 = vector.broadcast %16 : vector<4x1xf32> to vector<4x32xf32>
    %25 = arith.subf %10, %24 : vector<4x32xf32>
    %cst_16 = arith.constant 9.99999974E-6 : f32
    %26 = vector.broadcast %cst_16 : f32 to vector<4x1xf32>
    %27 = arith.addf %23, %26 : vector<4x1xf32>
    %28 = math.rsqrt %27 : vector<4x1xf32>
    %29 = vector.broadcast %28 : vector<4x1xf32> to vector<4x32xf32>
    %30 = arith.mulf %25, %29 : vector<4x32xf32>
    %31 = vector.broadcast %11 : vector<1x32xf32> to vector<4x32xf32>
    %32 = arith.mulf %30, %31 : vector<4x32xf32>
    %33 = vector.broadcast %12 : vector<1x32xf32> to vector<4x32xf32>
    %34 = arith.addf %32, %33 : vector<4x32xf32>
    %c0_17 = arith.constant 0 : index
    %c0_18 = arith.constant 0 : index
    %35 = vector.load %arg7[%c0_17, %c0_18] : memref<32x32xf32, #tpu.memory_space<vmem>>, vector<32x32xf32>
    %36 = arith.truncf %34 : vector<4x32xf32> to vector<4x32xbf16>
    %37 = arith.truncf %35 : vector<32x32xf32> to vector<32x32xbf16>
    %cst_19 = arith.constant dense<0.000000e+00> : vector<4x32xf32>
    %38 = tpu.matmul %36, %37, %cst_19 {dimension_numbers = #tpu.dot_dimension_numbers<[1], [0], [0], [1], [0, 0, 1, 1], [], []>} : vector<4x32xbf16>, vector<32x32xbf16>, vector<4x32xf32> -> vector<4x32xf32>
    %c0_20 = arith.constant 0 : index
    %c0_21 = arith.constant 0 : index
    %39 = vector.load %arg8[%c0_20, %c0_21] : memref<1x32xf32, #tpu.memory_space<vmem>>, vector<1x32xf32>
    %40 = vector.broadcast %39 : vector<1x32xf32> to vector<4x32xf32>
    %41 = arith.addf %38, %40 : vector<4x32xf32>
    %c0_22 = arith.constant 0 : index
    %c0_23 = arith.constant 0 : index
    %42 = vector.load %arg9[%c0_22, %c0_23] : memref<32x32xf32, #tpu.memory_space<vmem>>, vector<32x32xf32>
    %43 = arith.truncf %34 : vector<4x32xf32> to vector<4x32xbf16>
    %44 = arith.truncf %42 : vector<32x32xf32> to vector<32x32xbf16>
    %cst_24 = arith.constant dense<0.000000e+00> : vector<4x32xf32>
    %45 = tpu.matmul %43, %44, %cst_24 {dimension_numbers = #tpu.dot_dimension_numbers<[1], [0], [0], [1], [0, 0, 1, 1], [], []>} : vector<4x32xbf16>, vector<32x32xbf16>, vector<4x32xf32> -> vector<4x32xf32>
    %c0_25 = arith.constant 0 : index
    %c0_26 = arith.constant 0 : index
    %46 = vector.load %arg10[%c0_25, %c0_26] : memref<1x32xf32, #tpu.memory_space<vmem>>, vector<1x32xf32>
    %47 = vector.broadcast %46 : vector<1x32xf32> to vector<4x32xf32>
    %48 = arith.addf %45, %47 : vector<4x32xf32>
    %c0_27 = arith.constant 0 : index
    %c0_28 = arith.constant 0 : index
    %49 = vector.load %arg11[%c0_27, %c0_28] : memref<32x32xf32, #tpu.memory_space<vmem>>, vector<32x32xf32>
    %50 = arith.truncf %34 : vector<4x32xf32> to vector<4x32xbf16>
    %51 = arith.truncf %49 : vector<32x32xf32> to vector<32x32xbf16>
    %cst_29 = arith.constant dense<0.000000e+00> : vector<4x32xf32>
    %52 = tpu.matmul %50, %51, %cst_29 {dimension_numbers = #tpu.dot_dimension_numbers<[1], [0], [0], [1], [0, 0, 1, 1], [], []>} : vector<4x32xbf16>, vector<32x32xbf16>, vector<4x32xf32> -> vector<4x32xf32>
    %c0_30 = arith.constant 0 : index
    %c0_31 = arith.constant 0 : index
    %53 = vector.load %arg12[%c0_30, %c0_31] : memref<1x32xf32, #tpu.memory_space<vmem>>, vector<1x32xf32>
    %54 = vector.broadcast %53 : vector<1x32xf32> to vector<4x32xf32>
    %55 = arith.addf %52, %54 : vector<4x32xf32>
    %56 = tpu.iota {dimensions = array<i32: 1>} : vector<1x32xi32>
    %cst_32 = arith.constant 0.000000e+00 : f32
    %57 = vector.broadcast %cst_32 : f32 to vector<4x32xf32>
    %c0_i32 = arith.constant 0 : i32
    %58 = vector.broadcast %c0_i32 : i32 to vector<1x32xi32>
    %59 = arith.cmpi sge, %56, %58 : vector<1x32xi32>
    %c8_i32 = arith.constant 8 : i32
    %60 = vector.broadcast %c8_i32 : i32 to vector<1x32xi32>
    %61 = arith.cmpi slt, %56, %60 : vector<1x32xi32>
    %62 = arith.andi %59, %61 : vector<1x32xi1>
    %cst_33 = arith.constant 0.000000e+00 : f32
    %63 = vector.shape_cast %62 : vector<1x32xi1> to vector<1x32xi1>
    %64 = vector.broadcast %63 : vector<1x32xi1> to vector<4x32xi1>
    %65 = vector.broadcast %cst_33 : f32 to vector<4x32xf32>
    %66 = arith.select %64, %41, %65 : vector<4x32xi1>, vector<4x32xf32>
    %67 = arith.truncf %66 : vector<4x32xf32> to vector<4x32xbf16>
    %68 = arith.truncf %48 : vector<4x32xf32> to vector<4x32xbf16>
    %cst_34 = arith.constant dense<0.000000e+00> : vector<4x4xf32>
    %69 = tpu.matmul %67, %68, %cst_34 {dimension_numbers = #tpu.dot_dimension_numbers<[1], [1], [0], [0], [0, 0, 1, 0], [], []>} : vector<4x32xbf16>, vector<4x32xbf16>, vector<4x4xf32> -> vector<4x4xf32>
    %cst_35 = arith.constant 0.353553385 : f32
    %70 = vector.broadcast %cst_35 : f32 to vector<4x4xf32>
    %71 = arith.mulf %69, %70 : vector<4x4xf32>
    %cst_36 = arith.constant 0.000000e+00 : f32
    %72 = vector.broadcast %cst_36 : f32 to vector<4x4xf32>
    %73 = arith.addf %71, %72 : vector<4x4xf32>
    %cst_37 = arith.constant dense<0xFF800000> : vector<4xf32>
    %74 = vector.multi_reduction <maximumf>, %73, %cst_37 [1] : vector<4x4xf32> to vector<4xf32>
    %75 = vector.shape_cast %74 : vector<4xf32> to vector<4x1xf32>
    %76 = vector.broadcast %75 : vector<4x1xf32> to vector<4x4xf32>
    %77 = arith.subf %73, %76 : vector<4x4xf32>
    %78 = math.exp %77 : vector<4x4xf32>
    %cst_38 = arith.constant dense<0.000000e+00> : vector<4xf32>
    %79 = vector.multi_reduction <add>, %78, %cst_38 [1] : vector<4x4xf32> to vector<4xf32>
    %80 = vector.shape_cast %79 : vector<4xf32> to vector<4x1xf32>
    %81 = tpu.reciprocal %80 {approx = true} : vector<4x1xf32> -> vector<4x1xf32>
    %82 = vector.broadcast %81 : vector<4x1xf32> to vector<4x4xf32>
    %83 = arith.mulf %78, %82 : vector<4x4xf32>
    %cst_39 = arith.constant 0.000000e+00 : f32
    %84 = vector.shape_cast %62 : vector<1x32xi1> to vector<1x32xi1>
    %85 = vector.broadcast %84 : vector<1x32xi1> to vector<4x32xi1>
    %86 = vector.broadcast %cst_39 : f32 to vector<4x32xf32>
    %87 = arith.select %85, %55, %86 : vector<4x32xi1>, vector<4x32xf32>
    %88 = arith.truncf %83 : vector<4x4xf32> to vector<4x4xbf16>
    %89 = arith.truncf %87 : vector<4x32xf32> to vector<4x32xbf16>
    %cst_40 = arith.constant dense<0.000000e+00> : vector<4x32xf32>
    %90 = tpu.matmul %88, %89, %cst_40 {dimension_numbers = #tpu.dot_dimension_numbers<[1], [0], [0], [1], [0, 0, 1, 1], [], []>} : vector<4x4xbf16>, vector<4x32xbf16>, vector<4x32xf32> -> vector<4x32xf32>
    %91 = arith.addf %57, %90 : vector<4x32xf32>
    %c8_i32_41 = arith.constant 8 : i32
    %92 = vector.broadcast %c8_i32_41 : i32 to vector<1x32xi32>
    %93 = arith.cmpi sge, %56, %92 : vector<1x32xi32>
    %c16_i32 = arith.constant 16 : i32
    %94 = vector.broadcast %c16_i32 : i32 to vector<1x32xi32>
    %95 = arith.cmpi slt, %56, %94 : vector<1x32xi32>
    %96 = arith.andi %93, %95 : vector<1x32xi1>
    %cst_42 = arith.constant 0.000000e+00 : f32
    %97 = vector.shape_cast %96 : vector<1x32xi1> to vector<1x32xi1>
    %98 = vector.broadcast %97 : vector<1x32xi1> to vector<4x32xi1>
    %99 = vector.broadcast %cst_42 : f32 to vector<4x32xf32>
    %100 = arith.select %98, %41, %99 : vector<4x32xi1>, vector<4x32xf32>
    %101 = arith.truncf %100 : vector<4x32xf32> to vector<4x32xbf16>
    %102 = arith.truncf %48 : vector<4x32xf32> to vector<4x32xbf16>
    %cst_43 = arith.constant dense<0.000000e+00> : vector<4x4xf32>
    %103 = tpu.matmul %101, %102, %cst_43 {dimension_numbers = #tpu.dot_dimension_numbers<[1], [1], [0], [0], [0, 0, 1, 0], [], []>} : vector<4x32xbf16>, vector<4x32xbf16>, vector<4x4xf32> -> vector<4x4xf32>
    %cst_44 = arith.constant 0.353553385 : f32
    %104 = vector.broadcast %cst_44 : f32 to vector<4x4xf32>
    %105 = arith.mulf %103, %104 : vector<4x4xf32>
    %cst_45 = arith.constant 0.000000e+00 : f32
    %106 = vector.broadcast %cst_45 : f32 to vector<4x4xf32>
    %107 = arith.addf %105, %106 : vector<4x4xf32>
    %cst_46 = arith.constant dense<0xFF800000> : vector<4xf32>
    %108 = vector.multi_reduction <maximumf>, %107, %cst_46 [1] : vector<4x4xf32> to vector<4xf32>
    %109 = vector.shape_cast %108 : vector<4xf32> to vector<4x1xf32>
    %110 = vector.broadcast %109 : vector<4x1xf32> to vector<4x4xf32>
    %111 = arith.subf %107, %110 : vector<4x4xf32>
    %112 = math.exp %111 : vector<4x4xf32>
    %cst_47 = arith.constant dense<0.000000e+00> : vector<4xf32>
    %113 = vector.multi_reduction <add>, %112, %cst_47 [1] : vector<4x4xf32> to vector<4xf32>
    %114 = vector.shape_cast %113 : vector<4xf32> to vector<4x1xf32>
    %115 = tpu.reciprocal %114 {approx = true} : vector<4x1xf32> -> vector<4x1xf32>
    %116 = vector.broadcast %115 : vector<4x1xf32> to vector<4x4xf32>
    %117 = arith.mulf %112, %116 : vector<4x4xf32>
    %cst_48 = arith.constant 0.000000e+00 : f32
    %118 = vector.shape_cast %96 : vector<1x32xi1> to vector<1x32xi1>
    %119 = vector.broadcast %118 : vector<1x32xi1> to vector<4x32xi1>
    %120 = vector.broadcast %cst_48 : f32 to vector<4x32xf32>
    %121 = arith.select %119, %55, %120 : vector<4x32xi1>, vector<4x32xf32>
    %122 = arith.truncf %117 : vector<4x4xf32> to vector<4x4xbf16>
    %123 = arith.truncf %121 : vector<4x32xf32> to vector<4x32xbf16>
    %cst_49 = arith.constant dense<0.000000e+00> : vector<4x32xf32>
    %124 = tpu.matmul %122, %123, %cst_49 {dimension_numbers = #tpu.dot_dimension_numbers<[1], [0], [0], [1], [0, 0, 1, 1], [], []>} : vector<4x4xbf16>, vector<4x32xbf16>, vector<4x32xf32> -> vector<4x32xf32>
    %125 = arith.addf %91, %124 : vector<4x32xf32>
    %c16_i32_50 = arith.constant 16 : i32
    %126 = vector.broadcast %c16_i32_50 : i32 to vector<1x32xi32>
    %127 = arith.cmpi sge, %56, %126 : vector<1x32xi32>
    %c24_i32 = arith.constant 24 : i32
    %128 = vector.broadcast %c24_i32 : i32 to vector<1x32xi32>
    %129 = arith.cmpi slt, %56, %128 : vector<1x32xi32>
    %130 = arith.andi %127, %129 : vector<1x32xi1>
    %cst_51 = arith.constant 0.000000e+00 : f32
    %131 = vector.shape_cast %130 : vector<1x32xi1> to vector<1x32xi1>
    %132 = vector.broadcast %131 : vector<1x32xi1> to vector<4x32xi1>
    %133 = vector.broadcast %cst_51 : f32 to vector<4x32xf32>
    %134 = arith.select %132, %41, %133 : vector<4x32xi1>, vector<4x32xf32>
    %135 = arith.truncf %134 : vector<4x32xf32> to vector<4x32xbf16>
    %136 = arith.truncf %48 : vector<4x32xf32> to vector<4x32xbf16>
    %cst_52 = arith.constant dense<0.000000e+00> : vector<4x4xf32>
    %137 = tpu.matmul %135, %136, %cst_52 {dimension_numbers = #tpu.dot_dimension_numbers<[1], [1], [0], [0], [0, 0, 1, 0], [], []>} : vector<4x32xbf16>, vector<4x32xbf16>, vector<4x4xf32> -> vector<4x4xf32>
    %cst_53 = arith.constant 0.353553385 : f32
    %138 = vector.broadcast %cst_53 : f32 to vector<4x4xf32>
    %139 = arith.mulf %137, %138 : vector<4x4xf32>
    %cst_54 = arith.constant 0.000000e+00 : f32
    %140 = vector.broadcast %cst_54 : f32 to vector<4x4xf32>
    %141 = arith.addf %139, %140 : vector<4x4xf32>
    %cst_55 = arith.constant dense<0xFF800000> : vector<4xf32>
    %142 = vector.multi_reduction <maximumf>, %141, %cst_55 [1] : vector<4x4xf32> to vector<4xf32>
    %143 = vector.shape_cast %142 : vector<4xf32> to vector<4x1xf32>
    %144 = vector.broadcast %143 : vector<4x1xf32> to vector<4x4xf32>
    %145 = arith.subf %141, %144 : vector<4x4xf32>
    %146 = math.exp %145 : vector<4x4xf32>
    %cst_56 = arith.constant dense<0.000000e+00> : vector<4xf32>
    %147 = vector.multi_reduction <add>, %146, %cst_56 [1] : vector<4x4xf32> to vector<4xf32>
    %148 = vector.shape_cast %147 : vector<4xf32> to vector<4x1xf32>
    %149 = tpu.reciprocal %148 {approx = true} : vector<4x1xf32> -> vector<4x1xf32>
    %150 = vector.broadcast %149 : vector<4x1xf32> to vector<4x4xf32>
    %151 = arith.mulf %146, %150 : vector<4x4xf32>
    %cst_57 = arith.constant 0.000000e+00 : f32
    %152 = vector.shape_cast %130 : vector<1x32xi1> to vector<1x32xi1>
    %153 = vector.broadcast %152 : vector<1x32xi1> to vector<4x32xi1>
    %154 = vector.broadcast %cst_57 : f32 to vector<4x32xf32>
    %155 = arith.select %153, %55, %154 : vector<4x32xi1>, vector<4x32xf32>
    %156 = arith.truncf %151 : vector<4x4xf32> to vector<4x4xbf16>
    %157 = arith.truncf %155 : vector<4x32xf32> to vector<4x32xbf16>
    %cst_58 = arith.constant dense<0.000000e+00> : vector<4x32xf32>
    %158 = tpu.matmul %156, %157, %cst_58 {dimension_numbers = #tpu.dot_dimension_numbers<[1], [0], [0], [1], [0, 0, 1, 1], [], []>} : vector<4x4xbf16>, vector<4x32xbf16>, vector<4x32xf32> -> vector<4x32xf32>
    %159 = arith.addf %125, %158 : vector<4x32xf32>
    %c24_i32_59 = arith.constant 24 : i32
    %160 = vector.broadcast %c24_i32_59 : i32 to vector<1x32xi32>
    %161 = arith.cmpi sge, %56, %160 : vector<1x32xi32>
    %c32_i32 = arith.constant 32 : i32
    %162 = vector.broadcast %c32_i32 : i32 to vector<1x32xi32>
    %163 = arith.cmpi slt, %56, %162 : vector<1x32xi32>
    %164 = arith.andi %161, %163 : vector<1x32xi1>
    %cst_60 = arith.constant 0.000000e+00 : f32
    %165 = vector.shape_cast %164 : vector<1x32xi1> to vector<1x32xi1>
    %166 = vector.broadcast %165 : vector<1x32xi1> to vector<4x32xi1>
    %167 = vector.broadcast %cst_60 : f32 to vector<4x32xf32>
    %168 = arith.select %166, %41, %167 : vector<4x32xi1>, vector<4x32xf32>
    %169 = arith.truncf %168 : vector<4x32xf32> to vector<4x32xbf16>
    %170 = arith.truncf %48 : vector<4x32xf32> to vector<4x32xbf16>
    %cst_61 = arith.constant dense<0.000000e+00> : vector<4x4xf32>
    %171 = tpu.matmul %169, %170, %cst_61 {dimension_numbers = #tpu.dot_dimension_numbers<[1], [1], [0], [0], [0, 0, 1, 0], [], []>} : vector<4x32xbf16>, vector<4x32xbf16>, vector<4x4xf32> -> vector<4x4xf32>
    %cst_62 = arith.constant 0.353553385 : f32
    %172 = vector.broadcast %cst_62 : f32 to vector<4x4xf32>
    %173 = arith.mulf %171, %172 : vector<4x4xf32>
    %cst_63 = arith.constant 0.000000e+00 : f32
    %174 = vector.broadcast %cst_63 : f32 to vector<4x4xf32>
    %175 = arith.addf %173, %174 : vector<4x4xf32>
    %cst_64 = arith.constant dense<0xFF800000> : vector<4xf32>
    %176 = vector.multi_reduction <maximumf>, %175, %cst_64 [1] : vector<4x4xf32> to vector<4xf32>
    %177 = vector.shape_cast %176 : vector<4xf32> to vector<4x1xf32>
    %178 = vector.broadcast %177 : vector<4x1xf32> to vector<4x4xf32>
    %179 = arith.subf %175, %178 : vector<4x4xf32>
    %180 = math.exp %179 : vector<4x4xf32>
    %cst_65 = arith.constant dense<0.000000e+00> : vector<4xf32>
    %181 = vector.multi_reduction <add>, %180, %cst_65 [1] : vector<4x4xf32> to vector<4xf32>
    %182 = vector.shape_cast %181 : vector<4xf32> to vector<4x1xf32>
    %183 = tpu.reciprocal %182 {approx = true} : vector<4x1xf32> -> vector<4x1xf32>
    %184 = vector.broadcast %183 : vector<4x1xf32> to vector<4x4xf32>
    %185 = arith.mulf %180, %184 : vector<4x4xf32>
    %cst_66 = arith.constant 0.000000e+00 : f32
    %186 = vector.shape_cast %164 : vector<1x32xi1> to vector<1x32xi1>
    %187 = vector.broadcast %186 : vector<1x32xi1> to vector<4x32xi1>
    %188 = vector.broadcast %cst_66 : f32 to vector<4x32xf32>
    %189 = arith.select %187, %55, %188 : vector<4x32xi1>, vector<4x32xf32>
    %190 = arith.truncf %185 : vector<4x4xf32> to vector<4x4xbf16>
    %191 = arith.truncf %189 : vector<4x32xf32> to vector<4x32xbf16>
    %cst_67 = arith.constant dense<0.000000e+00> : vector<4x32xf32>
    %192 = tpu.matmul %190, %191, %cst_67 {dimension_numbers = #tpu.dot_dimension_numbers<[1], [0], [0], [1], [0, 0, 1, 1], [], []>} : vector<4x4xbf16>, vector<4x32xbf16>, vector<4x32xf32> -> vector<4x32xf32>
    %193 = arith.addf %159, %192 : vector<4x32xf32>
    %c0_68 = arith.constant 0 : index
    %c0_69 = arith.constant 0 : index
    %194 = vector.load %arg13[%c0_68, %c0_69] : memref<32x32xf32, #tpu.memory_space<vmem>>, vector<32x32xf32>
    %195 = arith.truncf %193 : vector<4x32xf32> to vector<4x32xbf16>
    %196 = arith.truncf %194 : vector<32x32xf32> to vector<32x32xbf16>
    %cst_70 = arith.constant dense<0.000000e+00> : vector<4x32xf32>
    %197 = tpu.matmul %195, %196, %cst_70 {dimension_numbers = #tpu.dot_dimension_numbers<[1], [0], [0], [1], [0, 0, 1, 1], [], []>} : vector<4x32xbf16>, vector<32x32xbf16>, vector<4x32xf32> -> vector<4x32xf32>
    %198 = arith.addf %10, %197 : vector<4x32xf32>
    %c0_71 = arith.constant 0 : index
    %c0_72 = arith.constant 0 : index
    %199 = vector.load %arg14[%c0_71, %c0_72] : memref<1x32xf32, #tpu.memory_space<vmem>>, vector<1x32xf32>
    %200 = vector.broadcast %199 : vector<1x32xf32> to vector<4x32xf32>
    %201 = arith.addf %198, %200 : vector<4x32xf32>
    %c0_73 = arith.constant 0 : index
    %c0_74 = arith.constant 0 : index
    %202 = vector.load %arg15[%c0_73, %c0_74] : memref<1x32xf32, #tpu.memory_space<vmem>>, vector<1x32xf32>
    %c0_75 = arith.constant 0 : index
    %c0_76 = arith.constant 0 : index
    %203 = vector.load %arg16[%c0_75, %c0_76] : memref<1x32xf32, #tpu.memory_space<vmem>>, vector<1x32xf32>
    %cst_77 = arith.constant dense<0.000000e+00> : vector<4xf32>
    %204 = vector.multi_reduction <add>, %201, %cst_77 [1] : vector<4x32xf32> to vector<4xf32>
    %205 = vector.shape_cast %204 : vector<4xf32> to vector<4x1xf32>
    %cst_78 = arith.constant 3.200000e+01 : f32
    %206 = vector.broadcast %cst_78 : f32 to vector<4x1xf32>
    %207 = arith.divf %205, %206 : vector<4x1xf32>
    %208 = vector.broadcast %207 : vector<4x1xf32> to vector<4x32xf32>
    %209 = arith.subf %201, %208 : vector<4x32xf32>
    %210 = arith.mulf %209, %209 : vector<4x32xf32>
    %cst_79 = arith.constant dense<0.000000e+00> : vector<4xf32>
    %211 = vector.multi_reduction <add>, %210, %cst_79 [1] : vector<4x32xf32> to vector<4xf32>
    %212 = vector.shape_cast %211 : vector<4xf32> to vector<4x1xf32>
    %cst_80 = arith.constant 3.200000e+01 : f32
    %213 = vector.broadcast %cst_80 : f32 to vector<4x1xf32>
    %214 = arith.divf %212, %213 : vector<4x1xf32>
    %215 = vector.broadcast %207 : vector<4x1xf32> to vector<4x32xf32>
    %216 = arith.subf %201, %215 : vector<4x32xf32>
    %cst_81 = arith.constant 9.99999974E-6 : f32
    %217 = vector.broadcast %cst_81 : f32 to vector<4x1xf32>
    %218 = arith.addf %214, %217 : vector<4x1xf32>
    %219 = math.rsqrt %218 : vector<4x1xf32>
    %220 = vector.broadcast %219 : vector<4x1xf32> to vector<4x32xf32>
    %221 = arith.mulf %216, %220 : vector<4x32xf32>
    %222 = vector.broadcast %202 : vector<1x32xf32> to vector<4x32xf32>
    %223 = arith.mulf %221, %222 : vector<4x32xf32>
    %224 = vector.broadcast %203 : vector<1x32xf32> to vector<4x32xf32>
    %225 = arith.addf %223, %224 : vector<4x32xf32>
    %c0_82 = arith.constant 0 : index
    %c0_83 = arith.constant 0 : index
    %226 = vector.load %arg17[%c0_82, %c0_83] : memref<32x64xf32, #tpu.memory_space<vmem>>, vector<32x64xf32>
    %227 = arith.truncf %225 : vector<4x32xf32> to vector<4x32xbf16>
    %228 = arith.truncf %226 : vector<32x64xf32> to vector<32x64xbf16>
    %cst_84 = arith.constant dense<0.000000e+00> : vector<4x64xf32>
    %229 = tpu.matmul %227, %228, %cst_84 {dimension_numbers = #tpu.dot_dimension_numbers<[1], [0], [0], [1], [0, 0, 1, 1], [], []>} : vector<4x32xbf16>, vector<32x64xbf16>, vector<4x64xf32> -> vector<4x64xf32>
    %c0_85 = arith.constant 0 : index
    %c0_86 = arith.constant 0 : index
    %230 = vector.load %arg18[%c0_85, %c0_86] : memref<1x64xf32, #tpu.memory_space<vmem>>, vector<1x64xf32>
    %231 = vector.broadcast %230 : vector<1x64xf32> to vector<4x64xf32>
    %232 = arith.addf %229, %231 : vector<4x64xf32>
    %233 = arith.mulf %232, %232 : vector<4x64xf32>
    %234 = arith.mulf %232, %233 : vector<4x64xf32>
    %cst_87 = arith.constant 4.471500e-02 : f32
    %235 = vector.broadcast %cst_87 : f32 to vector<4x64xf32>
    %236 = arith.mulf %235, %234 : vector<4x64xf32>
    %237 = arith.addf %232, %236 : vector<4x64xf32>
    %cst_88 = arith.constant 0.797884583 : f32
    %238 = vector.broadcast %cst_88 : f32 to vector<4x64xf32>
    %239 = arith.mulf %238, %237 : vector<4x64xf32>
    %240 = math.tanh %239 : vector<4x64xf32>
    %cst_89 = arith.constant 1.000000e+00 : f32
    %241 = vector.broadcast %cst_89 : f32 to vector<4x64xf32>
    %242 = arith.addf %241, %240 : vector<4x64xf32>
    %cst_90 = arith.constant 5.000000e-01 : f32
    %243 = vector.broadcast %cst_90 : f32 to vector<4x64xf32>
    %244 = arith.mulf %243, %242 : vector<4x64xf32>
    %245 = arith.mulf %232, %244 : vector<4x64xf32>
    %c0_91 = arith.constant 0 : index
    %c0_92 = arith.constant 0 : index
    %246 = vector.load %arg19[%c0_91, %c0_92] : memref<64x32xf32, #tpu.memory_space<vmem>>, vector<64x32xf32>
    %247 = arith.truncf %245 : vector<4x64xf32> to vector<4x64xbf16>
    %248 = arith.truncf %246 : vector<64x32xf32> to vector<64x32xbf16>
    %cst_93 = arith.constant dense<0.000000e+00> : vector<4x32xf32>
    %249 = tpu.matmul %247, %248, %cst_93 {dimension_numbers = #tpu.dot_dimension_numbers<[1], [0], [0], [1], [0, 0, 1, 1], [], []>} : vector<4x64xbf16>, vector<64x32xbf16>, vector<4x32xf32> -> vector<4x32xf32>
    %250 = arith.addf %201, %249 : vector<4x32xf32>
    %c0_94 = arith.constant 0 : index
    %c0_95 = arith.constant 0 : index
    %251 = vector.load %arg20[%c0_94, %c0_95] : memref<1x32xf32, #tpu.memory_space<vmem>>, vector<1x32xf32>
    %252 = vector.broadcast %251 : vector<1x32xf32> to vector<4x32xf32>
    %253 = arith.addf %250, %252 : vector<4x32xf32>
    %c0_96 = arith.constant 0 : index
    %c0_97 = arith.constant 0 : index
    %254 = vector.load %arg21[%c0_96, %c0_97] : memref<1x32xf32, #tpu.memory_space<vmem>>, vector<1x32xf32>
    %c0_98 = arith.constant 0 : index
    %c0_99 = arith.constant 0 : index
    %255 = vector.load %arg22[%c0_98, %c0_99] : memref<1x32xf32, #tpu.memory_space<vmem>>, vector<1x32xf32>
    %cst_100 = arith.constant dense<0.000000e+00> : vector<4xf32>
    %256 = vector.multi_reduction <add>, %253, %cst_100 [1] : vector<4x32xf32> to vector<4xf32>
    %257 = vector.shape_cast %256 : vector<4xf32> to vector<4x1xf32>
    %cst_101 = arith.constant 3.200000e+01 : f32
    %258 = vector.broadcast %cst_101 : f32 to vector<4x1xf32>
    %259 = arith.divf %257, %258 : vector<4x1xf32>
    %260 = vector.broadcast %259 : vector<4x1xf32> to vector<4x32xf32>
    %261 = arith.subf %253, %260 : vector<4x32xf32>
    %262 = arith.mulf %261, %261 : vector<4x32xf32>
    %cst_102 = arith.constant dense<0.000000e+00> : vector<4xf32>
    %263 = vector.multi_reduction <add>, %262, %cst_102 [1] : vector<4x32xf32> to vector<4xf32>
    %264 = vector.shape_cast %263 : vector<4xf32> to vector<4x1xf32>
    %cst_103 = arith.constant 3.200000e+01 : f32
    %265 = vector.broadcast %cst_103 : f32 to vector<4x1xf32>
    %266 = arith.divf %264, %265 : vector<4x1xf32>
    %267 = vector.broadcast %259 : vector<4x1xf32> to vector<4x32xf32>
    %268 = arith.subf %253, %267 : vector<4x32xf32>
    %cst_104 = arith.constant 9.99999974E-6 : f32
    %269 = vector.broadcast %cst_104 : f32 to vector<4x1xf32>
    %270 = arith.addf %266, %269 : vector<4x1xf32>
    %271 = math.rsqrt %270 : vector<4x1xf32>
    %272 = vector.broadcast %271 : vector<4x1xf32> to vector<4x32xf32>
    %273 = arith.mulf %268, %272 : vector<4x32xf32>
    %274 = vector.broadcast %254 : vector<1x32xf32> to vector<4x32xf32>
    %275 = arith.mulf %273, %274 : vector<4x32xf32>
    %276 = vector.broadcast %255 : vector<1x32xf32> to vector<4x32xf32>
    %277 = arith.addf %275, %276 : vector<4x32xf32>
    %c0_105 = arith.constant 0 : index
    %c0_106 = arith.constant 0 : index
    %c0_107 = arith.constant 0 : index
    %278 = vector.load %arg23[%c0_105, %c0_106, %c0_107] : memref<1x4x32xf32, #tpu.memory_space<vmem>>, vector<1x4x32xf32>
    %279 = vector.shape_cast %278 : vector<1x4x32xf32> to vector<4x32xf32>
    %280 = vector.shape_cast %277 : vector<4x32xf32> to vector<1x4x32xf32>
    tpu.vector_store %arg23[%c0_105, %c0_106, %c0_107], %280 {strides = array<i32>} : memref<1x4x32xf32, #tpu.memory_space<vmem>>, vector<1x4x32xf32>,
    return
  }
  func.func @transform_0(%arg0: i32) -> (i32, i32, i32) {
    %c0_i32 = arith.constant 0 : i32
    %c0_i32_0 = arith.constant 0 : i32
    %c0_i32_1 = arith.constant 0 : i32
    return %arg0, %c0_i32, %c0_i32_0 : i32, i32, i32
  }
  func.func @transform_1(%arg0: i32) -> (i32, i32) {
    %c0_i32 = arith.constant 0 : i32
    %c0_i32_0 = arith.constant 0 : i32
    %c0_i32_1 = arith.constant 0 : i32
    return %c0_i32, %c0_i32_0 : i32, i32
  }
  func.func @transform_2(%arg0: i32) -> (i32, i32) {
    %c0_i32 = arith.constant 0 : i32
    %c0_i32_0 = arith.constant 0 : i32
    %c0_i32_1 = arith.constant 0 : i32
    return %c0_i32, %c0_i32_0 : i32, i32
  }
  func.func @transform_3(%arg0: i32) -> (i32, i32) {
    %c0_i32 = arith.constant 0 : i32
    %c0_i32_0 = arith.constant 0 : i32
    %c0_i32_1 = arith.constant 0 : i32
    return %c0_i32, %c0_i32_0 : i32, i32
  }
  func.func @transform_4(%arg0: i32) -> (i32, i32) {
    %c0_i32 = arith.constant 0 : i32
    %c0_i32_0 = arith.constant 0 : i32
    %c0_i32_1 = arith.constant 0 : i32
    return %c0_i32, %c0_i32_0 : i32, i32
  }
  func.func @transform_5(%arg0: i32) -> (i32, i32) {
    %c0_i32 = arith.constant 0 : i32
    %c0_i32_0 = arith.constant 0 : i32
    %c0_i32_1 = arith.constant 0 : i32
    return %c0_i32, %c0_i32_0 : i32, i32
  }
  func.func @transform_6(%arg0: i32) -> (i32, i32) {
    %c0_i32 = arith.constant 0 : i32
    %c0_i32_0 = arith.constant 0 : i32
    %c0_i32_1 = arith.constant 0 : i32
    return %c0_i32, %c0_i32_0 : i32, i32
  }
  func.func @transform_7(%arg0: i32) -> (i32, i32) {
    %c0_i32 = arith.constant 0 : i32
    %c0_i32_0 = arith.constant 0 : i32
    %c0_i32_1 = arith.constant 0 : i32
    return %c0_i32, %c0_i32_0 : i32, i32
  }
  func.func @transform_8(%arg0: i32) -> (i32, i32) {
    %c0_i32 = arith.constant 0 : i32
    %c0_i32_0 = arith.constant 0 : i32
    %c0_i32_1 = arith.constant 0 : i32
    return %c0_i32, %c0_i32_0 : i32, i32
  }
  func.func @transform_9(%arg0: i32) -> (i32, i32) {
    %c0_i32 = arith.constant 0 : i32
    %c0_i32_0 = arith.constant 0 : i32
    %c0_i32_1 = arith.constant 0 : i32
    return %c0_i32, %c0_i32_0 : i32, i32
  }
  func.func @transform_10(%arg0: i32) -> (i32, i32) {
    %c0_i32 = arith.constant 0 : i32
    %c0_i32_0 = arith.constant 0 : i32
    %c0_i32_1 = arith.constant 0 : i32
    return %c0_i32, %c0_i32_0 : i32, i32
  }
  func.func @transform_11(%arg0: i32) -> (i32, i32) {
    %c0_i32 = arith.constant 0 : i32
    %c0_i32_0 = arith.constant 0 : i32
    %c0_i32_1 = arith.constant 0 : i32
    return %c0_i32, %c0_i32_0 : i32, i32
  }
  func.func @transform_12(%arg0: i32) -> (i32, i32) {
    %c0_i32 = arith.constant 0 : i32
    %c0_i32_0 = arith.constant 0 : i32
    %c0_i32_1 = arith.constant 0 : i32
    return %c0_i32, %c0_i32_0 : i32, i32
  }
  func.func @transform_13(%arg0: i32) -> (i32, i32) {
    %c0_i32 = arith.constant 0 : i32
    %c0_i32_0 = arith.constant 0 : i32
    %c0_i32_1 = arith.constant 0 : i32
    return %c0_i32, %c0_i32_0 : i32, i32
  }
  func.func @transform_14(%arg0: i32) -> (i32, i32) {
    %c0_i32 = arith.constant 0 : i32
    %c0_i32_0 = arith.constant 0 : i32
    %c0_i32_1 = arith.constant 0 : i32
    return %c0_i32, %c0_i32_0 : i32, i32
  }
  func.func @transform_15(%arg0: i32) -> (i32, i32) {
    %c0_i32 = arith.constant 0 : i32
    %c0_i32_0 = arith.constant 0 : i32
    %c0_i32_1 = arith.constant 0 : i32
    return %c0_i32, %c0_i32_0 : i32, i32
  }
  func.func @transform_16(%arg0: i32) -> (i32, i32) {
    %c0_i32 = arith.constant 0 : i32
    %c0_i32_0 = arith.constant 0 : i32
    %c0_i32_1 = arith.constant 0 : i32
    return %c0_i32, %c0_i32_0 : i32, i32
  }
  func.func @transform_17(%arg0: i32) -> (i32, i32) {
    %c0_i32 = arith.constant 0 : i32
    %c0_i32_0 = arith.constant 0 : i32
    %c0_i32_1 = arith.constant 0 : i32
    return %c0_i32, %c0_i32_0 : i32, i32
  }
  func.func @transform_18(%arg0: i32) -> (i32, i32) {
    %c0_i32 = arith.constant 0 : i32
    %c0_i32_0 = arith.constant 0 : i32
    %c0_i32_1 = arith.constant 0 : i32
    return %c0_i32, %c0_i32_0 : i32, i32
  }
  func.func @transform_19(%arg0: i32) -> (i32, i32) {
    %c0_i32 = arith.constant 0 : i32
    %c0_i32_0 = arith.constant 0 : i32
    %c0_i32_1 = arith.constant 0 : i32
    return %c0_i32, %c0_i32_0 : i32, i32
  }
  func.func @transform_20(%arg0: i32) -> (i32, i32) {
    %c0_i32 = arith.constant 0 : i32
    %c0_i32_0 = arith.constant 0 : i32
    %c0_i32_1 = arith.constant 0 : i32
    return %c0_i32, %c0_i32_0 : i32, i32
  }
  func.func @transform_21(%arg0: i32) -> (i32, i32) {
    %c0_i32 = arith.constant 0 : i32
    %c0_i32_0 = arith.constant 0 : i32
    %c0_i32_1 = arith.constant 0 : i32
    return %c0_i32, %c0_i32_0 : i32, i32
  }
  func.func @transform_22(%arg0: i32) -> (i32, i32, i32) {
    %c0_i32 = arith.constant 0 : i32
    %c0_i32_0 = arith.constant 0 : i32
    %c0_i32_1 = arith.constant 0 : i32
    return %arg0, %c0_i32, %c0_i32_0 : i32, i32, i32
  }
}

module attributes {stable_mosaic.version = 11 : i64} {
  func.func @_cross_block_kernel(%arg0: i32, %arg1: memref<1x8x32xf32, #tpu.memory_space<vmem>>, %arg2: memref<1x12x32xf32, #tpu.memory_space<vmem>>, %arg3: memref<1x8x12xf32, #tpu.memory_space<vmem>>, %arg4: memref<1x8x32xf32, #tpu.memory_space<vmem>>, %arg5: memref<1x32xf32, #tpu.memory_space<vmem>>, %arg6: memref<1x32xf32, #tpu.memory_space<vmem>>, %arg7: memref<1x32xf32, #tpu.memory_space<vmem>>, %arg8: memref<1x32xf32, #tpu.memory_space<vmem>>, %arg9: memref<1x32xf32, #tpu.memory_space<vmem>>, %arg10: memref<32x32xf32, #tpu.memory_space<vmem>>, %arg11: memref<1x32xf32, #tpu.memory_space<vmem>>, %arg12: memref<32x32xf32, #tpu.memory_space<vmem>>, %arg13: memref<1x32xf32, #tpu.memory_space<vmem>>, %arg14: memref<32x32xf32, #tpu.memory_space<vmem>>, %arg15: memref<1x32xf32, #tpu.memory_space<vmem>>, %arg16: memref<32x32xf32, #tpu.memory_space<vmem>>, %arg17: memref<1x32xf32, #tpu.memory_space<vmem>>, %arg18: memref<1x32xf32, #tpu.memory_space<vmem>>, %arg19: memref<1x32xf32, #tpu.memory_space<vmem>>, %arg20: memref<32x64xf32, #tpu.memory_space<vmem>>, %arg21: memref<1x64xf32, #tpu.memory_space<vmem>>, %arg22: memref<64x32xf32, #tpu.memory_space<vmem>>, %arg23: memref<1x32xf32, #tpu.memory_space<vmem>>, %arg24: memref<1x32xf32, #tpu.memory_space<vmem>>, %arg25: memref<1x32xf32, #tpu.memory_space<vmem>>, %arg26: memref<1x8x32xf32, #tpu.memory_space<vmem>>) attributes {dimension_semantics = [#tpu.dimension_semantics<parallel>], iteration_bounds = array<i64: 2>, scalar_prefetch = 0 : i64, scratch_operands = 0 : i64, tpu.core_type = #tpu.core_type<tc>, window_params = [{transform_indices = @transform_0, window_bounds = array<i64: 1, 8, 32>}, {transform_indices = @transform_1, window_bounds = array<i64: 1, 12, 32>}, {transform_indices = @transform_2, window_bounds = array<i64: 1, 8, 12>}, {transform_indices = @transform_3, window_bounds = array<i64: 1, 8, 32>}, {pipeline_mode = #tpu.pipeline_mode<synchronous>, transform_indices = @transform_4, window_bounds = array<i64: 1, 32>}, {pipeline_mode = #tpu.pipeline_mode<synchronous>, transform_indices = @transform_5, window_bounds = array<i64: 1, 32>}, {pipeline_mode = #tpu.pipeline_mode<synchronous>, transform_indices = @transform_6, window_bounds = array<i64: 1, 32>}, {pipeline_mode = #tpu.pipeline_mode<synchronous>, transform_indices = @transform_7, window_bounds = array<i64: 1, 32>}, {pipeline_mode = #tpu.pipeline_mode<synchronous>, transform_indices = @transform_8, window_bounds = array<i64: 1, 32>}, {pipeline_mode = #tpu.pipeline_mode<synchronous>, transform_indices = @transform_9, window_bounds = array<i64: 32, 32>}, {pipeline_mode = #tpu.pipeline_mode<synchronous>, transform_indices = @transform_10, window_bounds = array<i64: 1, 32>}, {pipeline_mode = #tpu.pipeline_mode<synchronous>, transform_indices = @transform_11, window_bounds = array<i64: 32, 32>}, {pipeline_mode = #tpu.pipeline_mode<synchronous>, transform_indices = @transform_12, window_bounds = array<i64: 1, 32>}, {pipeline_mode = #tpu.pipeline_mode<synchronous>, transform_indices = @transform_13, window_bounds = array<i64: 32, 32>}, {pipeline_mode = #tpu.pipeline_mode<synchronous>, transform_indices = @transform_14, window_bounds = array<i64: 1, 32>}, {pipeline_mode = #tpu.pipeline_mode<synchronous>, transform_indices = @transform_15, window_bounds = array<i64: 32, 32>}, {pipeline_mode = #tpu.pipeline_mode<synchronous>, transform_indices = @transform_16, window_bounds = array<i64: 1, 32>}, {pipeline_mode = #tpu.pipeline_mode<synchronous>, transform_indices = @transform_17, window_bounds = array<i64: 1, 32>}, {pipeline_mode = #tpu.pipeline_mode<synchronous>, transform_indices = @transform_18, window_bounds = array<i64: 1, 32>}, {pipeline_mode = #tpu.pipeline_mode<synchronous>, transform_indices = @transform_19, window_bounds = array<i64: 32, 64>}, {pipeline_mode = #tpu.pipeline_mode<synchronous>, transform_indices = @transform_20, window_bounds = array<i64: 1, 64>}, {pipeline_mode = #tpu.pipeline_mode<synchronous>, transform_indices = @transform_21, window_bounds = array<i64: 64, 32>}, {pipeline_mode = #tpu.pipeline_mode<synchronous>, transform_indices = @transform_22, window_bounds = array<i64: 1, 32>}, {pipeline_mode = #tpu.pipeline_mode<synchronous>, transform_indices = @transform_23, window_bounds = array<i64: 1, 32>}, {pipeline_mode = #tpu.pipeline_mode<synchronous>, transform_indices = @transform_24, window_bounds = array<i64: 1, 32>}, {transform_indices = @transform_25, window_bounds = array<i64: 1, 8, 32>}]} {
    %c0 = arith.constant 0 : index
    %c0_0 = arith.constant 0 : index
    %c0_1 = arith.constant 0 : index
    %0 = vector.load %arg1[%c0, %c0_0, %c0_1] : memref<1x8x32xf32, #tpu.memory_space<vmem>>, vector<1x8x32xf32>
    %1 = vector.shape_cast %0 : vector<1x8x32xf32> to vector<8x32xf32>
    %c0_2 = arith.constant 0 : index
    %c0_3 = arith.constant 0 : index
    %2 = vector.load %arg6[%c0_2, %c0_3] : memref<1x32xf32, #tpu.memory_space<vmem>>, vector<1x32xf32>
    %c0_4 = arith.constant 0 : index
    %c0_5 = arith.constant 0 : index
    %3 = vector.load %arg7[%c0_4, %c0_5] : memref<1x32xf32, #tpu.memory_space<vmem>>, vector<1x32xf32>
    %cst = arith.constant dense<0.000000e+00> : vector<8xf32>
    %4 = vector.multi_reduction <add>, %1, %cst [1] : vector<8x32xf32> to vector<8xf32>
    %5 = vector.shape_cast %4 : vector<8xf32> to vector<8x1xf32>
    %cst_6 = arith.constant 3.200000e+01 : f32
    %6 = vector.broadcast %cst_6 : f32 to vector<8x1xf32>
    %7 = arith.divf %5, %6 : vector<8x1xf32>
    %8 = vector.broadcast %7 : vector<8x1xf32> to vector<8x32xf32>
    %9 = arith.subf %1, %8 : vector<8x32xf32>
    %10 = arith.mulf %9, %9 : vector<8x32xf32>
    %cst_7 = arith.constant dense<0.000000e+00> : vector<8xf32>
    %11 = vector.multi_reduction <add>, %10, %cst_7 [1] : vector<8x32xf32> to vector<8xf32>
    %12 = vector.shape_cast %11 : vector<8xf32> to vector<8x1xf32>
    %cst_8 = arith.constant 3.200000e+01 : f32
    %13 = vector.broadcast %cst_8 : f32 to vector<8x1xf32>
    %14 = arith.divf %12, %13 : vector<8x1xf32>
    %15 = vector.broadcast %7 : vector<8x1xf32> to vector<8x32xf32>
    %16 = arith.subf %1, %15 : vector<8x32xf32>
    %cst_9 = arith.constant 9.99999974E-6 : f32
    %17 = vector.broadcast %cst_9 : f32 to vector<8x1xf32>
    %18 = arith.addf %14, %17 : vector<8x1xf32>
    %19 = math.rsqrt %18 : vector<8x1xf32>
    %20 = vector.broadcast %19 : vector<8x1xf32> to vector<8x32xf32>
    %21 = arith.mulf %16, %20 : vector<8x32xf32>
    %22 = vector.broadcast %2 : vector<1x32xf32> to vector<8x32xf32>
    %23 = arith.mulf %21, %22 : vector<8x32xf32>
    %24 = vector.broadcast %3 : vector<1x32xf32> to vector<8x32xf32>
    %25 = arith.addf %23, %24 : vector<8x32xf32>
    %c0_10 = arith.constant 0 : index
    %c0_11 = arith.constant 0 : index
    %c0_12 = arith.constant 0 : index
    %26 = vector.load %arg2[%c0_10, %c0_11, %c0_12] : memref<1x12x32xf32, #tpu.memory_space<vmem>>, vector<1x12x32xf32>
    %27 = vector.shape_cast %26 : vector<1x12x32xf32> to vector<12x32xf32>
    %c0_13 = arith.constant 0 : index
    %c0_14 = arith.constant 0 : index
    %28 = vector.load %arg8[%c0_13, %c0_14] : memref<1x32xf32, #tpu.memory_space<vmem>>, vector<1x32xf32>
    %c0_15 = arith.constant 0 : index
    %c0_16 = arith.constant 0 : index
    %29 = vector.load %arg9[%c0_15, %c0_16] : memref<1x32xf32, #tpu.memory_space<vmem>>, vector<1x32xf32>
    %cst_17 = arith.constant dense<0.000000e+00> : vector<12xf32>
    %30 = vector.multi_reduction <add>, %27, %cst_17 [1] : vector<12x32xf32> to vector<12xf32>
    %31 = vector.shape_cast %30 : vector<12xf32> to vector<12x1xf32>
    %cst_18 = arith.constant 3.200000e+01 : f32
    %32 = vector.broadcast %cst_18 : f32 to vector<12x1xf32>
    %33 = arith.divf %31, %32 : vector<12x1xf32>
    %34 = vector.broadcast %33 : vector<12x1xf32> to vector<12x32xf32>
    %35 = arith.subf %27, %34 : vector<12x32xf32>
    %36 = arith.mulf %35, %35 : vector<12x32xf32>
    %cst_19 = arith.constant dense<0.000000e+00> : vector<12xf32>
    %37 = vector.multi_reduction <add>, %36, %cst_19 [1] : vector<12x32xf32> to vector<12xf32>
    %38 = vector.shape_cast %37 : vector<12xf32> to vector<12x1xf32>
    %cst_20 = arith.constant 3.200000e+01 : f32
    %39 = vector.broadcast %cst_20 : f32 to vector<12x1xf32>
    %40 = arith.divf %38, %39 : vector<12x1xf32>
    %41 = vector.broadcast %33 : vector<12x1xf32> to vector<12x32xf32>
    %42 = arith.subf %27, %41 : vector<12x32xf32>
    %cst_21 = arith.constant 9.99999974E-6 : f32
    %43 = vector.broadcast %cst_21 : f32 to vector<12x1xf32>
    %44 = arith.addf %40, %43 : vector<12x1xf32>
    %45 = math.rsqrt %44 : vector<12x1xf32>
    %46 = vector.broadcast %45 : vector<12x1xf32> to vector<12x32xf32>
    %47 = arith.mulf %42, %46 : vector<12x32xf32>
    %48 = vector.broadcast %28 : vector<1x32xf32> to vector<12x32xf32>
    %49 = arith.mulf %47, %48 : vector<12x32xf32>
    %50 = vector.broadcast %29 : vector<1x32xf32> to vector<12x32xf32>
    %51 = arith.addf %49, %50 : vector<12x32xf32>
    %c0_22 = arith.constant 0 : index
    %c0_23 = arith.constant 0 : index
    %52 = vector.load %arg10[%c0_22, %c0_23] : memref<32x32xf32, #tpu.memory_space<vmem>>, vector<32x32xf32>
    %53 = arith.truncf %25 : vector<8x32xf32> to vector<8x32xbf16>
    %54 = arith.truncf %52 : vector<32x32xf32> to vector<32x32xbf16>
    %cst_24 = arith.constant dense<0.000000e+00> : vector<8x32xf32>
    %55 = tpu.matmul %53, %54, %cst_24 {dimension_numbers = #tpu.dot_dimension_numbers<[1], [0], [0], [1], [0, 0, 1, 1], [], []>} : vector<8x32xbf16>, vector<32x32xbf16>, vector<8x32xf32> -> vector<8x32xf32>
    %c0_25 = arith.constant 0 : index
    %c0_26 = arith.constant 0 : index
    %56 = vector.load %arg11[%c0_25, %c0_26] : memref<1x32xf32, #tpu.memory_space<vmem>>, vector<1x32xf32>
    %57 = vector.broadcast %56 : vector<1x32xf32> to vector<8x32xf32>
    %58 = arith.addf %55, %57 : vector<8x32xf32>
    %c0_27 = arith.constant 0 : index
    %c0_28 = arith.constant 0 : index
    %59 = vector.load %arg12[%c0_27, %c0_28] : memref<32x32xf32, #tpu.memory_space<vmem>>, vector<32x32xf32>
    %60 = arith.truncf %51 : vector<12x32xf32> to vector<12x32xbf16>
    %61 = arith.truncf %59 : vector<32x32xf32> to vector<32x32xbf16>
    %cst_29 = arith.constant dense<0.000000e+00> : vector<12x32xf32>
    %62 = tpu.matmul %60, %61, %cst_29 {dimension_numbers = #tpu.dot_dimension_numbers<[1], [0], [0], [1], [0, 0, 1, 1], [], []>} : vector<12x32xbf16>, vector<32x32xbf16>, vector<12x32xf32> -> vector<12x32xf32>
    %c0_30 = arith.constant 0 : index
    %c0_31 = arith.constant 0 : index
    %63 = vector.load %arg13[%c0_30, %c0_31] : memref<1x32xf32, #tpu.memory_space<vmem>>, vector<1x32xf32>
    %64 = vector.broadcast %63 : vector<1x32xf32> to vector<12x32xf32>
    %65 = arith.addf %62, %64 : vector<12x32xf32>
    %c0_32 = arith.constant 0 : index
    %c0_33 = arith.constant 0 : index
    %66 = vector.load %arg14[%c0_32, %c0_33] : memref<32x32xf32, #tpu.memory_space<vmem>>, vector<32x32xf32>
    %67 = arith.truncf %51 : vector<12x32xf32> to vector<12x32xbf16>
    %68 = arith.truncf %66 : vector<32x32xf32> to vector<32x32xbf16>
    %cst_34 = arith.constant dense<0.000000e+00> : vector<12x32xf32>
    %69 = tpu.matmul %67, %68, %cst_34 {dimension_numbers = #tpu.dot_dimension_numbers<[1], [0], [0], [1], [0, 0, 1, 1], [], []>} : vector<12x32xbf16>, vector<32x32xbf16>, vector<12x32xf32> -> vector<12x32xf32>
    %c0_35 = arith.constant 0 : index
    %c0_36 = arith.constant 0 : index
    %70 = vector.load %arg15[%c0_35, %c0_36] : memref<1x32xf32, #tpu.memory_space<vmem>>, vector<1x32xf32>
    %71 = vector.broadcast %70 : vector<1x32xf32> to vector<12x32xf32>
    %72 = arith.addf %69, %71 : vector<12x32xf32>
    %c0_37 = arith.constant 0 : index
    %c0_38 = arith.constant 0 : index
    %c0_39 = arith.constant 0 : index
    %73 = vector.load %arg3[%c0_37, %c0_38, %c0_39] : memref<1x8x12xf32, #tpu.memory_space<vmem>>, vector<1x8x12xf32>
    %74 = vector.shape_cast %73 : vector<1x8x12xf32> to vector<8x12xf32>
    %75 = tpu.iota {dimensions = array<i32: 1>} : vector<1x32xi32>
    %cst_40 = arith.constant 0.000000e+00 : f32
    %76 = vector.broadcast %cst_40 : f32 to vector<8x32xf32>
    %c0_i32 = arith.constant 0 : i32
    %77 = vector.broadcast %c0_i32 : i32 to vector<1x32xi32>
    %78 = arith.cmpi sge, %75, %77 : vector<1x32xi32>
    %c8_i32 = arith.constant 8 : i32
    %79 = vector.broadcast %c8_i32 : i32 to vector<1x32xi32>
    %80 = arith.cmpi slt, %75, %79 : vector<1x32xi32>
    %81 = arith.andi %78, %80 : vector<1x32xi1>
    %cst_41 = arith.constant 0.000000e+00 : f32
    %82 = vector.shape_cast %81 : vector<1x32xi1> to vector<1x32xi1>
    %83 = vector.broadcast %82 : vector<1x32xi1> to vector<8x32xi1>
    %84 = vector.broadcast %cst_41 : f32 to vector<8x32xf32>
    %85 = arith.select %83, %58, %84 : vector<8x32xi1>, vector<8x32xf32>
    %86 = arith.truncf %85 : vector<8x32xf32> to vector<8x32xbf16>
    %87 = arith.truncf %65 : vector<12x32xf32> to vector<12x32xbf16>
    %cst_42 = arith.constant dense<0.000000e+00> : vector<8x12xf32>
    %88 = tpu.matmul %86, %87, %cst_42 {dimension_numbers = #tpu.dot_dimension_numbers<[1], [1], [0], [0], [0, 0, 1, 0], [], []>} : vector<8x32xbf16>, vector<12x32xbf16>, vector<8x12xf32> -> vector<8x12xf32>
    %cst_43 = arith.constant 0.353553385 : f32
    %89 = vector.broadcast %cst_43 : f32 to vector<8x12xf32>
    %90 = arith.mulf %88, %89 : vector<8x12xf32>
    %91 = arith.addf %90, %74 : vector<8x12xf32>
    %cst_44 = arith.constant dense<0xFF800000> : vector<8xf32>
    %92 = vector.multi_reduction <maximumf>, %91, %cst_44 [1] : vector<8x12xf32> to vector<8xf32>
    %93 = vector.shape_cast %92 : vector<8xf32> to vector<8x1xf32>
    %94 = vector.broadcast %93 : vector<8x1xf32> to vector<8x12xf32>
    %95 = arith.subf %91, %94 : vector<8x12xf32>
    %96 = math.exp %95 : vector<8x12xf32>
    %cst_45 = arith.constant dense<0.000000e+00> : vector<8xf32>
    %97 = vector.multi_reduction <add>, %96, %cst_45 [1] : vector<8x12xf32> to vector<8xf32>
    %98 = vector.shape_cast %97 : vector<8xf32> to vector<8x1xf32>
    %99 = tpu.reciprocal %98 {approx = true} : vector<8x1xf32> -> vector<8x1xf32>
    %100 = vector.broadcast %99 : vector<8x1xf32> to vector<8x12xf32>
    %101 = arith.mulf %96, %100 : vector<8x12xf32>
    %cst_46 = arith.constant 0.000000e+00 : f32
    %102 = vector.shape_cast %81 : vector<1x32xi1> to vector<1x32xi1>
    %103 = vector.broadcast %102 : vector<1x32xi1> to vector<12x32xi1>
    %104 = vector.broadcast %cst_46 : f32 to vector<12x32xf32>
    %105 = arith.select %103, %72, %104 : vector<12x32xi1>, vector<12x32xf32>
    %106 = arith.truncf %101 : vector<8x12xf32> to vector<8x12xbf16>
    %107 = arith.truncf %105 : vector<12x32xf32> to vector<12x32xbf16>
    %cst_47 = arith.constant dense<0.000000e+00> : vector<8x32xf32>
    %108 = tpu.matmul %106, %107, %cst_47 {dimension_numbers = #tpu.dot_dimension_numbers<[1], [0], [0], [1], [0, 0, 1, 1], [], []>} : vector<8x12xbf16>, vector<12x32xbf16>, vector<8x32xf32> -> vector<8x32xf32>
    %109 = arith.addf %76, %108 : vector<8x32xf32>
    %c8_i32_48 = arith.constant 8 : i32
    %110 = vector.broadcast %c8_i32_48 : i32 to vector<1x32xi32>
    %111 = arith.cmpi sge, %75, %110 : vector<1x32xi32>
    %c16_i32 = arith.constant 16 : i32
    %112 = vector.broadcast %c16_i32 : i32 to vector<1x32xi32>
    %113 = arith.cmpi slt, %75, %112 : vector<1x32xi32>
    %114 = arith.andi %111, %113 : vector<1x32xi1>
    %cst_49 = arith.constant 0.000000e+00 : f32
    %115 = vector.shape_cast %114 : vector<1x32xi1> to vector<1x32xi1>
    %116 = vector.broadcast %115 : vector<1x32xi1> to vector<8x32xi1>
    %117 = vector.broadcast %cst_49 : f32 to vector<8x32xf32>
    %118 = arith.select %116, %58, %117 : vector<8x32xi1>, vector<8x32xf32>
    %119 = arith.truncf %118 : vector<8x32xf32> to vector<8x32xbf16>
    %120 = arith.truncf %65 : vector<12x32xf32> to vector<12x32xbf16>
    %cst_50 = arith.constant dense<0.000000e+00> : vector<8x12xf32>
    %121 = tpu.matmul %119, %120, %cst_50 {dimension_numbers = #tpu.dot_dimension_numbers<[1], [1], [0], [0], [0, 0, 1, 0], [], []>} : vector<8x32xbf16>, vector<12x32xbf16>, vector<8x12xf32> -> vector<8x12xf32>
    %cst_51 = arith.constant 0.353553385 : f32
    %122 = vector.broadcast %cst_51 : f32 to vector<8x12xf32>
    %123 = arith.mulf %121, %122 : vector<8x12xf32>
    %124 = arith.addf %123, %74 : vector<8x12xf32>
    %cst_52 = arith.constant dense<0xFF800000> : vector<8xf32>
    %125 = vector.multi_reduction <maximumf>, %124, %cst_52 [1] : vector<8x12xf32> to vector<8xf32>
    %126 = vector.shape_cast %125 : vector<8xf32> to vector<8x1xf32>
    %127 = vector.broadcast %126 : vector<8x1xf32> to vector<8x12xf32>
    %128 = arith.subf %124, %127 : vector<8x12xf32>
    %129 = math.exp %128 : vector<8x12xf32>
    %cst_53 = arith.constant dense<0.000000e+00> : vector<8xf32>
    %130 = vector.multi_reduction <add>, %129, %cst_53 [1] : vector<8x12xf32> to vector<8xf32>
    %131 = vector.shape_cast %130 : vector<8xf32> to vector<8x1xf32>
    %132 = tpu.reciprocal %131 {approx = true} : vector<8x1xf32> -> vector<8x1xf32>
    %133 = vector.broadcast %132 : vector<8x1xf32> to vector<8x12xf32>
    %134 = arith.mulf %129, %133 : vector<8x12xf32>
    %cst_54 = arith.constant 0.000000e+00 : f32
    %135 = vector.shape_cast %114 : vector<1x32xi1> to vector<1x32xi1>
    %136 = vector.broadcast %135 : vector<1x32xi1> to vector<12x32xi1>
    %137 = vector.broadcast %cst_54 : f32 to vector<12x32xf32>
    %138 = arith.select %136, %72, %137 : vector<12x32xi1>, vector<12x32xf32>
    %139 = arith.truncf %134 : vector<8x12xf32> to vector<8x12xbf16>
    %140 = arith.truncf %138 : vector<12x32xf32> to vector<12x32xbf16>
    %cst_55 = arith.constant dense<0.000000e+00> : vector<8x32xf32>
    %141 = tpu.matmul %139, %140, %cst_55 {dimension_numbers = #tpu.dot_dimension_numbers<[1], [0], [0], [1], [0, 0, 1, 1], [], []>} : vector<8x12xbf16>, vector<12x32xbf16>, vector<8x32xf32> -> vector<8x32xf32>
    %142 = arith.addf %109, %141 : vector<8x32xf32>
    %c16_i32_56 = arith.constant 16 : i32
    %143 = vector.broadcast %c16_i32_56 : i32 to vector<1x32xi32>
    %144 = arith.cmpi sge, %75, %143 : vector<1x32xi32>
    %c24_i32 = arith.constant 24 : i32
    %145 = vector.broadcast %c24_i32 : i32 to vector<1x32xi32>
    %146 = arith.cmpi slt, %75, %145 : vector<1x32xi32>
    %147 = arith.andi %144, %146 : vector<1x32xi1>
    %cst_57 = arith.constant 0.000000e+00 : f32
    %148 = vector.shape_cast %147 : vector<1x32xi1> to vector<1x32xi1>
    %149 = vector.broadcast %148 : vector<1x32xi1> to vector<8x32xi1>
    %150 = vector.broadcast %cst_57 : f32 to vector<8x32xf32>
    %151 = arith.select %149, %58, %150 : vector<8x32xi1>, vector<8x32xf32>
    %152 = arith.truncf %151 : vector<8x32xf32> to vector<8x32xbf16>
    %153 = arith.truncf %65 : vector<12x32xf32> to vector<12x32xbf16>
    %cst_58 = arith.constant dense<0.000000e+00> : vector<8x12xf32>
    %154 = tpu.matmul %152, %153, %cst_58 {dimension_numbers = #tpu.dot_dimension_numbers<[1], [1], [0], [0], [0, 0, 1, 0], [], []>} : vector<8x32xbf16>, vector<12x32xbf16>, vector<8x12xf32> -> vector<8x12xf32>
    %cst_59 = arith.constant 0.353553385 : f32
    %155 = vector.broadcast %cst_59 : f32 to vector<8x12xf32>
    %156 = arith.mulf %154, %155 : vector<8x12xf32>
    %157 = arith.addf %156, %74 : vector<8x12xf32>
    %cst_60 = arith.constant dense<0xFF800000> : vector<8xf32>
    %158 = vector.multi_reduction <maximumf>, %157, %cst_60 [1] : vector<8x12xf32> to vector<8xf32>
    %159 = vector.shape_cast %158 : vector<8xf32> to vector<8x1xf32>
    %160 = vector.broadcast %159 : vector<8x1xf32> to vector<8x12xf32>
    %161 = arith.subf %157, %160 : vector<8x12xf32>
    %162 = math.exp %161 : vector<8x12xf32>
    %cst_61 = arith.constant dense<0.000000e+00> : vector<8xf32>
    %163 = vector.multi_reduction <add>, %162, %cst_61 [1] : vector<8x12xf32> to vector<8xf32>
    %164 = vector.shape_cast %163 : vector<8xf32> to vector<8x1xf32>
    %165 = tpu.reciprocal %164 {approx = true} : vector<8x1xf32> -> vector<8x1xf32>
    %166 = vector.broadcast %165 : vector<8x1xf32> to vector<8x12xf32>
    %167 = arith.mulf %162, %166 : vector<8x12xf32>
    %cst_62 = arith.constant 0.000000e+00 : f32
    %168 = vector.shape_cast %147 : vector<1x32xi1> to vector<1x32xi1>
    %169 = vector.broadcast %168 : vector<1x32xi1> to vector<12x32xi1>
    %170 = vector.broadcast %cst_62 : f32 to vector<12x32xf32>
    %171 = arith.select %169, %72, %170 : vector<12x32xi1>, vector<12x32xf32>
    %172 = arith.truncf %167 : vector<8x12xf32> to vector<8x12xbf16>
    %173 = arith.truncf %171 : vector<12x32xf32> to vector<12x32xbf16>
    %cst_63 = arith.constant dense<0.000000e+00> : vector<8x32xf32>
    %174 = tpu.matmul %172, %173, %cst_63 {dimension_numbers = #tpu.dot_dimension_numbers<[1], [0], [0], [1], [0, 0, 1, 1], [], []>} : vector<8x12xbf16>, vector<12x32xbf16>, vector<8x32xf32> -> vector<8x32xf32>
    %175 = arith.addf %142, %174 : vector<8x32xf32>
    %c24_i32_64 = arith.constant 24 : i32
    %176 = vector.broadcast %c24_i32_64 : i32 to vector<1x32xi32>
    %177 = arith.cmpi sge, %75, %176 : vector<1x32xi32>
    %c32_i32 = arith.constant 32 : i32
    %178 = vector.broadcast %c32_i32 : i32 to vector<1x32xi32>
    %179 = arith.cmpi slt, %75, %178 : vector<1x32xi32>
    %180 = arith.andi %177, %179 : vector<1x32xi1>
    %cst_65 = arith.constant 0.000000e+00 : f32
    %181 = vector.shape_cast %180 : vector<1x32xi1> to vector<1x32xi1>
    %182 = vector.broadcast %181 : vector<1x32xi1> to vector<8x32xi1>
    %183 = vector.broadcast %cst_65 : f32 to vector<8x32xf32>
    %184 = arith.select %182, %58, %183 : vector<8x32xi1>, vector<8x32xf32>
    %185 = arith.truncf %184 : vector<8x32xf32> to vector<8x32xbf16>
    %186 = arith.truncf %65 : vector<12x32xf32> to vector<12x32xbf16>
    %cst_66 = arith.constant dense<0.000000e+00> : vector<8x12xf32>
    %187 = tpu.matmul %185, %186, %cst_66 {dimension_numbers = #tpu.dot_dimension_numbers<[1], [1], [0], [0], [0, 0, 1, 0], [], []>} : vector<8x32xbf16>, vector<12x32xbf16>, vector<8x12xf32> -> vector<8x12xf32>
    %cst_67 = arith.constant 0.353553385 : f32
    %188 = vector.broadcast %cst_67 : f32 to vector<8x12xf32>
    %189 = arith.mulf %187, %188 : vector<8x12xf32>
    %190 = arith.addf %189, %74 : vector<8x12xf32>
    %cst_68 = arith.constant dense<0xFF800000> : vector<8xf32>
    %191 = vector.multi_reduction <maximumf>, %190, %cst_68 [1] : vector<8x12xf32> to vector<8xf32>
    %192 = vector.shape_cast %191 : vector<8xf32> to vector<8x1xf32>
    %193 = vector.broadcast %192 : vector<8x1xf32> to vector<8x12xf32>
    %194 = arith.subf %190, %193 : vector<8x12xf32>
    %195 = math.exp %194 : vector<8x12xf32>
    %cst_69 = arith.constant dense<0.000000e+00> : vector<8xf32>
    %196 = vector.multi_reduction <add>, %195, %cst_69 [1] : vector<8x12xf32> to vector<8xf32>
    %197 = vector.shape_cast %196 : vector<8xf32> to vector<8x1xf32>
    %198 = tpu.reciprocal %197 {approx = true} : vector<8x1xf32> -> vector<8x1xf32>
    %199 = vector.broadcast %198 : vector<8x1xf32> to vector<8x12xf32>
    %200 = arith.mulf %195, %199 : vector<8x12xf32>
    %cst_70 = arith.constant 0.000000e+00 : f32
    %201 = vector.shape_cast %180 : vector<1x32xi1> to vector<1x32xi1>
    %202 = vector.broadcast %201 : vector<1x32xi1> to vector<12x32xi1>
    %203 = vector.broadcast %cst_70 : f32 to vector<12x32xf32>
    %204 = arith.select %202, %72, %203 : vector<12x32xi1>, vector<12x32xf32>
    %205 = arith.truncf %200 : vector<8x12xf32> to vector<8x12xbf16>
    %206 = arith.truncf %204 : vector<12x32xf32> to vector<12x32xbf16>
    %cst_71 = arith.constant dense<0.000000e+00> : vector<8x32xf32>
    %207 = tpu.matmul %205, %206, %cst_71 {dimension_numbers = #tpu.dot_dimension_numbers<[1], [0], [0], [1], [0, 0, 1, 1], [], []>} : vector<8x12xbf16>, vector<12x32xbf16>, vector<8x32xf32> -> vector<8x32xf32>
    %208 = arith.addf %175, %207 : vector<8x32xf32>
    %c0_72 = arith.constant 0 : index
    %c0_73 = arith.constant 0 : index
    %c0_74 = arith.constant 0 : index
    %209 = vector.load %arg4[%c0_72, %c0_73, %c0_74] : memref<1x8x32xf32, #tpu.memory_space<vmem>>, vector<1x8x32xf32>
    %210 = vector.shape_cast %209 : vector<1x8x32xf32> to vector<8x32xf32>
    %c0_75 = arith.constant 0 : index
    %c0_76 = arith.constant 0 : index
    %211 = vector.load %arg16[%c0_75, %c0_76] : memref<32x32xf32, #tpu.memory_space<vmem>>, vector<32x32xf32>
    %212 = arith.truncf %208 : vector<8x32xf32> to vector<8x32xbf16>
    %213 = arith.truncf %211 : vector<32x32xf32> to vector<32x32xbf16>
    %cst_77 = arith.constant dense<0.000000e+00> : vector<8x32xf32>
    %214 = tpu.matmul %212, %213, %cst_77 {dimension_numbers = #tpu.dot_dimension_numbers<[1], [0], [0], [1], [0, 0, 1, 1], [], []>} : vector<8x32xbf16>, vector<32x32xbf16>, vector<8x32xf32> -> vector<8x32xf32>
    %c0_78 = arith.constant 0 : index
    %c0_79 = arith.constant 0 : index
    %215 = vector.load %arg17[%c0_78, %c0_79] : memref<1x32xf32, #tpu.memory_space<vmem>>, vector<1x32xf32>
    %216 = vector.broadcast %215 : vector<1x32xf32> to vector<8x32xf32>
    %217 = arith.addf %214, %216 : vector<8x32xf32>
    %218 = arith.mulf %210, %217 : vector<8x32xf32>
    %219 = arith.addf %1, %218 : vector<8x32xf32>
    %c0_80 = arith.constant 0 : index
    %c0_81 = arith.constant 0 : index
    %220 = vector.load %arg18[%c0_80, %c0_81] : memref<1x32xf32, #tpu.memory_space<vmem>>, vector<1x32xf32>
    %c0_82 = arith.constant 0 : index
    %c0_83 = arith.constant 0 : index
    %221 = vector.load %arg19[%c0_82, %c0_83] : memref<1x32xf32, #tpu.memory_space<vmem>>, vector<1x32xf32>
    %cst_84 = arith.constant dense<0.000000e+00> : vector<8xf32>
    %222 = vector.multi_reduction <add>, %219, %cst_84 [1] : vector<8x32xf32> to vector<8xf32>
    %223 = vector.shape_cast %222 : vector<8xf32> to vector<8x1xf32>
    %cst_85 = arith.constant 3.200000e+01 : f32
    %224 = vector.broadcast %cst_85 : f32 to vector<8x1xf32>
    %225 = arith.divf %223, %224 : vector<8x1xf32>
    %226 = vector.broadcast %225 : vector<8x1xf32> to vector<8x32xf32>
    %227 = arith.subf %219, %226 : vector<8x32xf32>
    %228 = arith.mulf %227, %227 : vector<8x32xf32>
    %cst_86 = arith.constant dense<0.000000e+00> : vector<8xf32>
    %229 = vector.multi_reduction <add>, %228, %cst_86 [1] : vector<8x32xf32> to vector<8xf32>
    %230 = vector.shape_cast %229 : vector<8xf32> to vector<8x1xf32>
    %cst_87 = arith.constant 3.200000e+01 : f32
    %231 = vector.broadcast %cst_87 : f32 to vector<8x1xf32>
    %232 = arith.divf %230, %231 : vector<8x1xf32>
    %233 = vector.broadcast %225 : vector<8x1xf32> to vector<8x32xf32>
    %234 = arith.subf %219, %233 : vector<8x32xf32>
    %cst_88 = arith.constant 9.99999974E-6 : f32
    %235 = vector.broadcast %cst_88 : f32 to vector<8x1xf32>
    %236 = arith.addf %232, %235 : vector<8x1xf32>
    %237 = math.rsqrt %236 : vector<8x1xf32>
    %238 = vector.broadcast %237 : vector<8x1xf32> to vector<8x32xf32>
    %239 = arith.mulf %234, %238 : vector<8x32xf32>
    %240 = vector.broadcast %220 : vector<1x32xf32> to vector<8x32xf32>
    %241 = arith.mulf %239, %240 : vector<8x32xf32>
    %242 = vector.broadcast %221 : vector<1x32xf32> to vector<8x32xf32>
    %243 = arith.addf %241, %242 : vector<8x32xf32>
    %c0_89 = arith.constant 0 : index
    %c0_90 = arith.constant 0 : index
    %244 = vector.load %arg20[%c0_89, %c0_90] : memref<32x64xf32, #tpu.memory_space<vmem>>, vector<32x64xf32>
    %245 = arith.truncf %243 : vector<8x32xf32> to vector<8x32xbf16>
    %246 = arith.truncf %244 : vector<32x64xf32> to vector<32x64xbf16>
    %cst_91 = arith.constant dense<0.000000e+00> : vector<8x64xf32>
    %247 = tpu.matmul %245, %246, %cst_91 {dimension_numbers = #tpu.dot_dimension_numbers<[1], [0], [0], [1], [0, 0, 1, 1], [], []>} : vector<8x32xbf16>, vector<32x64xbf16>, vector<8x64xf32> -> vector<8x64xf32>
    %c0_92 = arith.constant 0 : index
    %c0_93 = arith.constant 0 : index
    %248 = vector.load %arg21[%c0_92, %c0_93] : memref<1x64xf32, #tpu.memory_space<vmem>>, vector<1x64xf32>
    %249 = vector.broadcast %248 : vector<1x64xf32> to vector<8x64xf32>
    %250 = arith.addf %247, %249 : vector<8x64xf32>
    %251 = arith.mulf %250, %250 : vector<8x64xf32>
    %252 = arith.mulf %250, %251 : vector<8x64xf32>
    %cst_94 = arith.constant 4.471500e-02 : f32
    %253 = vector.broadcast %cst_94 : f32 to vector<8x64xf32>
    %254 = arith.mulf %253, %252 : vector<8x64xf32>
    %255 = arith.addf %250, %254 : vector<8x64xf32>
    %cst_95 = arith.constant 0.797884583 : f32
    %256 = vector.broadcast %cst_95 : f32 to vector<8x64xf32>
    %257 = arith.mulf %256, %255 : vector<8x64xf32>
    %258 = math.tanh %257 : vector<8x64xf32>
    %cst_96 = arith.constant 1.000000e+00 : f32
    %259 = vector.broadcast %cst_96 : f32 to vector<8x64xf32>
    %260 = arith.addf %259, %258 : vector<8x64xf32>
    %cst_97 = arith.constant 5.000000e-01 : f32
    %261 = vector.broadcast %cst_97 : f32 to vector<8x64xf32>
    %262 = arith.mulf %261, %260 : vector<8x64xf32>
    %263 = arith.mulf %250, %262 : vector<8x64xf32>
    %c0_98 = arith.constant 0 : index
    %c0_99 = arith.constant 0 : index
    %264 = vector.load %arg5[%c0_98, %c0_99] : memref<1x32xf32, #tpu.memory_space<vmem>>, vector<1x32xf32>
    %c0_100 = arith.constant 0 : index
    %c0_101 = arith.constant 0 : index
    %265 = vector.load %arg22[%c0_100, %c0_101] : memref<64x32xf32, #tpu.memory_space<vmem>>, vector<64x32xf32>
    %266 = arith.truncf %263 : vector<8x64xf32> to vector<8x64xbf16>
    %267 = arith.truncf %265 : vector<64x32xf32> to vector<64x32xbf16>
    %cst_102 = arith.constant dense<0.000000e+00> : vector<8x32xf32>
    %268 = tpu.matmul %266, %267, %cst_102 {dimension_numbers = #tpu.dot_dimension_numbers<[1], [0], [0], [1], [0, 0, 1, 1], [], []>} : vector<8x64xbf16>, vector<64x32xbf16>, vector<8x32xf32> -> vector<8x32xf32>
    %c0_103 = arith.constant 0 : index
    %c0_104 = arith.constant 0 : index
    %269 = vector.load %arg23[%c0_103, %c0_104] : memref<1x32xf32, #tpu.memory_space<vmem>>, vector<1x32xf32>
    %270 = vector.broadcast %269 : vector<1x32xf32> to vector<8x32xf32>
    %271 = arith.addf %268, %270 : vector<8x32xf32>
    %272 = vector.broadcast %264 : vector<1x32xf32> to vector<8x32xf32>
    %273 = arith.mulf %272, %271 : vector<8x32xf32>
    %274 = arith.addf %219, %273 : vector<8x32xf32>
    %c0_105 = arith.constant 0 : index
    %c0_106 = arith.constant 0 : index
    %275 = vector.load %arg24[%c0_105, %c0_106] : memref<1x32xf32, #tpu.memory_space<vmem>>, vector<1x32xf32>
    %c0_107 = arith.constant 0 : index
    %c0_108 = arith.constant 0 : index
    %276 = vector.load %arg25[%c0_107, %c0_108] : memref<1x32xf32, #tpu.memory_space<vmem>>, vector<1x32xf32>
    %cst_109 = arith.constant dense<0.000000e+00> : vector<8xf32>
    %277 = vector.multi_reduction <add>, %274, %cst_109 [1] : vector<8x32xf32> to vector<8xf32>
    %278 = vector.shape_cast %277 : vector<8xf32> to vector<8x1xf32>
    %cst_110 = arith.constant 3.200000e+01 : f32
    %279 = vector.broadcast %cst_110 : f32 to vector<8x1xf32>
    %280 = arith.divf %278, %279 : vector<8x1xf32>
    %281 = vector.broadcast %280 : vector<8x1xf32> to vector<8x32xf32>
    %282 = arith.subf %274, %281 : vector<8x32xf32>
    %283 = arith.mulf %282, %282 : vector<8x32xf32>
    %cst_111 = arith.constant dense<0.000000e+00> : vector<8xf32>
    %284 = vector.multi_reduction <add>, %283, %cst_111 [1] : vector<8x32xf32> to vector<8xf32>
    %285 = vector.shape_cast %284 : vector<8xf32> to vector<8x1xf32>
    %cst_112 = arith.constant 3.200000e+01 : f32
    %286 = vector.broadcast %cst_112 : f32 to vector<8x1xf32>
    %287 = arith.divf %285, %286 : vector<8x1xf32>
    %288 = vector.broadcast %280 : vector<8x1xf32> to vector<8x32xf32>
    %289 = arith.subf %274, %288 : vector<8x32xf32>
    %cst_113 = arith.constant 9.99999974E-6 : f32
    %290 = vector.broadcast %cst_113 : f32 to vector<8x1xf32>
    %291 = arith.addf %287, %290 : vector<8x1xf32>
    %292 = math.rsqrt %291 : vector<8x1xf32>
    %293 = vector.broadcast %292 : vector<8x1xf32> to vector<8x32xf32>
    %294 = arith.mulf %289, %293 : vector<8x32xf32>
    %295 = vector.broadcast %275 : vector<1x32xf32> to vector<8x32xf32>
    %296 = arith.mulf %294, %295 : vector<8x32xf32>
    %297 = vector.broadcast %276 : vector<1x32xf32> to vector<8x32xf32>
    %298 = arith.addf %296, %297 : vector<8x32xf32>
    %c0_114 = arith.constant 0 : index
    %c0_115 = arith.constant 0 : index
    %c0_116 = arith.constant 0 : index
    %299 = vector.load %arg26[%c0_114, %c0_115, %c0_116] : memref<1x8x32xf32, #tpu.memory_space<vmem>>, vector<1x8x32xf32>
    %300 = vector.shape_cast %299 : vector<1x8x32xf32> to vector<8x32xf32>
    %301 = vector.shape_cast %298 : vector<8x32xf32> to vector<1x8x32xf32>
    tpu.vector_store %arg26[%c0_114, %c0_115, %c0_116], %301 {strides = array<i32>} : memref<1x8x32xf32, #tpu.memory_space<vmem>>, vector<1x8x32xf32>,
    return
  }
  func.func @transform_0(%arg0: i32) -> (i32, i32, i32) {
    %c0_i32 = arith.constant 0 : i32
    %c0_i32_0 = arith.constant 0 : i32
    %c0_i32_1 = arith.constant 0 : i32
    return %arg0, %c0_i32, %c0_i32_0 : i32, i32, i32
  }
  func.func @transform_1(%arg0: i32) -> (i32, i32, i32) {
    %c0_i32 = arith.constant 0 : i32
    %c0_i32_0 = arith.constant 0 : i32
    %c0_i32_1 = arith.constant 0 : i32
    return %arg0, %c0_i32, %c0_i32_0 : i32, i32, i32
  }
  func.func @transform_2(%arg0: i32) -> (i32, i32, i32) {
    %c0_i32 = arith.constant 0 : i32
    %c0_i32_0 = arith.constant 0 : i32
    %c0_i32_1 = arith.constant 0 : i32
    return %arg0, %c0_i32, %c0_i32_0 : i32, i32, i32
  }
  func.func @transform_3(%arg0: i32) -> (i32, i32, i32) {
    %c0_i32 = arith.constant 0 : i32
    %c0_i32_0 = arith.constant 0 : i32
    %c0_i32_1 = arith.constant 0 : i32
    return %arg0, %c0_i32, %c0_i32_0 : i32, i32, i32
  }
  func.func @transform_4(%arg0: i32) -> (i32, i32) {
    %c0_i32 = arith.constant 0 : i32
    %c0_i32_0 = arith.constant 0 : i32
    %c0_i32_1 = arith.constant 0 : i32
    return %c0_i32, %c0_i32_0 : i32, i32
  }
  func.func @transform_5(%arg0: i32) -> (i32, i32) {
    %c0_i32 = arith.constant 0 : i32
    %c0_i32_0 = arith.constant 0 : i32
    %c0_i32_1 = arith.constant 0 : i32
    return %c0_i32, %c0_i32_0 : i32, i32
  }
  func.func @transform_6(%arg0: i32) -> (i32, i32) {
    %c0_i32 = arith.constant 0 : i32
    %c0_i32_0 = arith.constant 0 : i32
    %c0_i32_1 = arith.constant 0 : i32
    return %c0_i32, %c0_i32_0 : i32, i32
  }
  func.func @transform_7(%arg0: i32) -> (i32, i32) {
    %c0_i32 = arith.constant 0 : i32
    %c0_i32_0 = arith.constant 0 : i32
    %c0_i32_1 = arith.constant 0 : i32
    return %c0_i32, %c0_i32_0 : i32, i32
  }
  func.func @transform_8(%arg0: i32) -> (i32, i32) {
    %c0_i32 = arith.constant 0 : i32
    %c0_i32_0 = arith.constant 0 : i32
    %c0_i32_1 = arith.constant 0 : i32
    return %c0_i32, %c0_i32_0 : i32, i32
  }
  func.func @transform_9(%arg0: i32) -> (i32, i32) {
    %c0_i32 = arith.constant 0 : i32
    %c0_i32_0 = arith.constant 0 : i32
    %c0_i32_1 = arith.constant 0 : i32
    return %c0_i32, %c0_i32_0 : i32, i32
  }
  func.func @transform_10(%arg0: i32) -> (i32, i32) {
    %c0_i32 = arith.constant 0 : i32
    %c0_i32_0 = arith.constant 0 : i32
    %c0_i32_1 = arith.constant 0 : i32
    return %c0_i32, %c0_i32_0 : i32, i32
  }
  func.func @transform_11(%arg0: i32) -> (i32, i32) {
    %c0_i32 = arith.constant 0 : i32
    %c0_i32_0 = arith.constant 0 : i32
    %c0_i32_1 = arith.constant 0 : i32
    return %c0_i32, %c0_i32_0 : i32, i32
  }
  func.func @transform_12(%arg0: i32) -> (i32, i32) {
    %c0_i32 = arith.constant 0 : i32
    %c0_i32_0 = arith.constant 0 : i32
    %c0_i32_1 = arith.constant 0 : i32
    return %c0_i32, %c0_i32_0 : i32, i32
  }
  func.func @transform_13(%arg0: i32) -> (i32, i32) {
    %c0_i32 = arith.constant 0 : i32
    %c0_i32_0 = arith.constant 0 : i32
    %c0_i32_1 = arith.constant 0 : i32
    return %c0_i32, %c0_i32_0 : i32, i32
  }
  func.func @transform_14(%arg0: i32) -> (i32, i32) {
    %c0_i32 = arith.constant 0 : i32
    %c0_i32_0 = arith.constant 0 : i32
    %c0_i32_1 = arith.constant 0 : i32
    return %c0_i32, %c0_i32_0 : i32, i32
  }
  func.func @transform_15(%arg0: i32) -> (i32, i32) {
    %c0_i32 = arith.constant 0 : i32
    %c0_i32_0 = arith.constant 0 : i32
    %c0_i32_1 = arith.constant 0 : i32
    return %c0_i32, %c0_i32_0 : i32, i32
  }
  func.func @transform_16(%arg0: i32) -> (i32, i32) {
    %c0_i32 = arith.constant 0 : i32
    %c0_i32_0 = arith.constant 0 : i32
    %c0_i32_1 = arith.constant 0 : i32
    return %c0_i32, %c0_i32_0 : i32, i32
  }
  func.func @transform_17(%arg0: i32) -> (i32, i32) {
    %c0_i32 = arith.constant 0 : i32
    %c0_i32_0 = arith.constant 0 : i32
    %c0_i32_1 = arith.constant 0 : i32
    return %c0_i32, %c0_i32_0 : i32, i32
  }
  func.func @transform_18(%arg0: i32) -> (i32, i32) {
    %c0_i32 = arith.constant 0 : i32
    %c0_i32_0 = arith.constant 0 : i32
    %c0_i32_1 = arith.constant 0 : i32
    return %c0_i32, %c0_i32_0 : i32, i32
  }
  func.func @transform_19(%arg0: i32) -> (i32, i32) {
    %c0_i32 = arith.constant 0 : i32
    %c0_i32_0 = arith.constant 0 : i32
    %c0_i32_1 = arith.constant 0 : i32
    return %c0_i32, %c0_i32_0 : i32, i32
  }
  func.func @transform_20(%arg0: i32) -> (i32, i32) {
    %c0_i32 = arith.constant 0 : i32
    %c0_i32_0 = arith.constant 0 : i32
    %c0_i32_1 = arith.constant 0 : i32
    return %c0_i32, %c0_i32_0 : i32, i32
  }
  func.func @transform_21(%arg0: i32) -> (i32, i32) {
    %c0_i32 = arith.constant 0 : i32
    %c0_i32_0 = arith.constant 0 : i32
    %c0_i32_1 = arith.constant 0 : i32
    return %c0_i32, %c0_i32_0 : i32, i32
  }
  func.func @transform_22(%arg0: i32) -> (i32, i32) {
    %c0_i32 = arith.constant 0 : i32
    %c0_i32_0 = arith.constant 0 : i32
    %c0_i32_1 = arith.constant 0 : i32
    return %c0_i32, %c0_i32_0 : i32, i32
  }
  func.func @transform_23(%arg0: i32) -> (i32, i32) {
    %c0_i32 = arith.constant 0 : i32
    %c0_i32_0 = arith.constant 0 : i32
    %c0_i32_1 = arith.constant 0 : i32
    return %c0_i32, %c0_i32_0 : i32, i32
  }
  func.func @transform_24(%arg0: i32) -> (i32, i32) {
    %c0_i32 = arith.constant 0 : i32
    %c0_i32_0 = arith.constant 0 : i32
    %c0_i32_1 = arith.constant 0 : i32
    return %c0_i32, %c0_i32_0 : i32, i32
  }
  func.func @transform_25(%arg0: i32) -> (i32, i32, i32) {
    %c0_i32 = arith.constant 0 : i32
    %c0_i32_0 = arith.constant 0 : i32
    %c0_i32_1 = arith.constant 0 : i32
    return %arg0, %c0_i32, %c0_i32_0 : i32, i32, i32
  }
}

module attributes {stable_mosaic.version = 11 : i64} {
  func.func @_cross_block_kernel(%arg0: i32, %arg1: memref<1x8x32xf32, #tpu.memory_space<vmem>>, %arg2: memref<1x8x32xf32, #tpu.memory_space<vmem>>, %arg3: memref<1x8x8xf32, #tpu.memory_space<vmem>>, %arg4: memref<1x8x32xf32, #tpu.memory_space<vmem>>, %arg5: memref<1x32xf32, #tpu.memory_space<vmem>>, %arg6: memref<1x32xf32, #tpu.memory_space<vmem>>, %arg7: memref<1x32xf32, #tpu.memory_space<vmem>>, %arg8: memref<1x32xf32, #tpu.memory_space<vmem>>, %arg9: memref<1x32xf32, #tpu.memory_space<vmem>>, %arg10: memref<32x32xf32, #tpu.memory_space<vmem>>, %arg11: memref<1x32xf32, #tpu.memory_space<vmem>>, %arg12: memref<32x32xf32, #tpu.memory_space<vmem>>, %arg13: memref<1x32xf32, #tpu.memory_space<vmem>>, %arg14: memref<32x32xf32, #tpu.memory_space<vmem>>, %arg15: memref<1x32xf32, #tpu.memory_space<vmem>>, %arg16: memref<32x32xf32, #tpu.memory_space<vmem>>, %arg17: memref<1x32xf32, #tpu.memory_space<vmem>>, %arg18: memref<1x32xf32, #tpu.memory_space<vmem>>, %arg19: memref<1x32xf32, #tpu.memory_space<vmem>>, %arg20: memref<32x64xf32, #tpu.memory_space<vmem>>, %arg21: memref<1x64xf32, #tpu.memory_space<vmem>>, %arg22: memref<64x32xf32, #tpu.memory_space<vmem>>, %arg23: memref<1x32xf32, #tpu.memory_space<vmem>>, %arg24: memref<1x32xf32, #tpu.memory_space<vmem>>, %arg25: memref<1x32xf32, #tpu.memory_space<vmem>>, %arg26: memref<1x8x32xf32, #tpu.memory_space<vmem>>) attributes {dimension_semantics = [#tpu.dimension_semantics<parallel>], iteration_bounds = array<i64: 2>, scalar_prefetch = 0 : i64, scratch_operands = 0 : i64, tpu.core_type = #tpu.core_type<tc>, window_params = [{transform_indices = @transform_0, window_bounds = array<i64: 1, 8, 32>}, {transform_indices = @transform_1, window_bounds = array<i64: 1, 8, 32>}, {transform_indices = @transform_2, window_bounds = array<i64: 1, 8, 8>}, {transform_indices = @transform_3, window_bounds = array<i64: 1, 8, 32>}, {pipeline_mode = #tpu.pipeline_mode<synchronous>, transform_indices = @transform_4, window_bounds = array<i64: 1, 32>}, {pipeline_mode = #tpu.pipeline_mode<synchronous>, transform_indices = @transform_5, window_bounds = array<i64: 1, 32>}, {pipeline_mode = #tpu.pipeline_mode<synchronous>, transform_indices = @transform_6, window_bounds = array<i64: 1, 32>}, {pipeline_mode = #tpu.pipeline_mode<synchronous>, transform_indices = @transform_7, window_bounds = array<i64: 1, 32>}, {pipeline_mode = #tpu.pipeline_mode<synchronous>, transform_indices = @transform_8, window_bounds = array<i64: 1, 32>}, {pipeline_mode = #tpu.pipeline_mode<synchronous>, transform_indices = @transform_9, window_bounds = array<i64: 32, 32>}, {pipeline_mode = #tpu.pipeline_mode<synchronous>, transform_indices = @transform_10, window_bounds = array<i64: 1, 32>}, {pipeline_mode = #tpu.pipeline_mode<synchronous>, transform_indices = @transform_11, window_bounds = array<i64: 32, 32>}, {pipeline_mode = #tpu.pipeline_mode<synchronous>, transform_indices = @transform_12, window_bounds = array<i64: 1, 32>}, {pipeline_mode = #tpu.pipeline_mode<synchronous>, transform_indices = @transform_13, window_bounds = array<i64: 32, 32>}, {pipeline_mode = #tpu.pipeline_mode<synchronous>, transform_indices = @transform_14, window_bounds = array<i64: 1, 32>}, {pipeline_mode = #tpu.pipeline_mode<synchronous>, transform_indices = @transform_15, window_bounds = array<i64: 32, 32>}, {pipeline_mode = #tpu.pipeline_mode<synchronous>, transform_indices = @transform_16, window_bounds = array<i64: 1, 32>}, {pipeline_mode = #tpu.pipeline_mode<synchronous>, transform_indices = @transform_17, window_bounds = array<i64: 1, 32>}, {pipeline_mode = #tpu.pipeline_mode<synchronous>, transform_indices = @transform_18, window_bounds = array<i64: 1, 32>}, {pipeline_mode = #tpu.pipeline_mode<synchronous>, transform_indices = @transform_19, window_bounds = array<i64: 32, 64>}, {pipeline_mode = #tpu.pipeline_mode<synchronous>, transform_indices = @transform_20, window_bounds = array<i64: 1, 64>}, {pipeline_mode = #tpu.pipeline_mode<synchronous>, transform_indices = @transform_21, window_bounds = array<i64: 64, 32>}, {pipeline_mode = #tpu.pipeline_mode<synchronous>, transform_indices = @transform_22, window_bounds = array<i64: 1, 32>}, {pipeline_mode = #tpu.pipeline_mode<synchronous>, transform_indices = @transform_23, window_bounds = array<i64: 1, 32>}, {pipeline_mode = #tpu.pipeline_mode<synchronous>, transform_indices = @transform_24, window_bounds = array<i64: 1, 32>}, {transform_indices = @transform_25, window_bounds = array<i64: 1, 8, 32>}]} {
    %c0 = arith.constant 0 : index
    %c0_0 = arith.constant 0 : index
    %c0_1 = arith.constant 0 : index
    %0 = vector.load %arg1[%c0, %c0_0, %c0_1] : memref<1x8x32xf32, #tpu.memory_space<vmem>>, vector<1x8x32xf32>
    %1 = vector.shape_cast %0 : vector<1x8x32xf32> to vector<8x32xf32>
    %c0_2 = arith.constant 0 : index
    %c0_3 = arith.constant 0 : index
    %2 = vector.load %arg6[%c0_2, %c0_3] : memref<1x32xf32, #tpu.memory_space<vmem>>, vector<1x32xf32>
    %c0_4 = arith.constant 0 : index
    %c0_5 = arith.constant 0 : index
    %3 = vector.load %arg7[%c0_4, %c0_5] : memref<1x32xf32, #tpu.memory_space<vmem>>, vector<1x32xf32>
    %cst = arith.constant dense<0.000000e+00> : vector<8xf32>
    %4 = vector.multi_reduction <add>, %1, %cst [1] : vector<8x32xf32> to vector<8xf32>
    %5 = vector.shape_cast %4 : vector<8xf32> to vector<8x1xf32>
    %cst_6 = arith.constant 3.200000e+01 : f32
    %6 = vector.broadcast %cst_6 : f32 to vector<8x1xf32>
    %7 = arith.divf %5, %6 : vector<8x1xf32>
    %8 = vector.broadcast %7 : vector<8x1xf32> to vector<8x32xf32>
    %9 = arith.subf %1, %8 : vector<8x32xf32>
    %10 = arith.mulf %9, %9 : vector<8x32xf32>
    %cst_7 = arith.constant dense<0.000000e+00> : vector<8xf32>
    %11 = vector.multi_reduction <add>, %10, %cst_7 [1] : vector<8x32xf32> to vector<8xf32>
    %12 = vector.shape_cast %11 : vector<8xf32> to vector<8x1xf32>
    %cst_8 = arith.constant 3.200000e+01 : f32
    %13 = vector.broadcast %cst_8 : f32 to vector<8x1xf32>
    %14 = arith.divf %12, %13 : vector<8x1xf32>
    %15 = vector.broadcast %7 : vector<8x1xf32> to vector<8x32xf32>
    %16 = arith.subf %1, %15 : vector<8x32xf32>
    %cst_9 = arith.constant 9.99999974E-6 : f32
    %17 = vector.broadcast %cst_9 : f32 to vector<8x1xf32>
    %18 = arith.addf %14, %17 : vector<8x1xf32>
    %19 = math.rsqrt %18 : vector<8x1xf32>
    %20 = vector.broadcast %19 : vector<8x1xf32> to vector<8x32xf32>
    %21 = arith.mulf %16, %20 : vector<8x32xf32>
    %22 = vector.broadcast %2 : vector<1x32xf32> to vector<8x32xf32>
    %23 = arith.mulf %21, %22 : vector<8x32xf32>
    %24 = vector.broadcast %3 : vector<1x32xf32> to vector<8x32xf32>
    %25 = arith.addf %23, %24 : vector<8x32xf32>
    %c0_10 = arith.constant 0 : index
    %c0_11 = arith.constant 0 : index
    %c0_12 = arith.constant 0 : index
    %26 = vector.load %arg2[%c0_10, %c0_11, %c0_12] : memref<1x8x32xf32, #tpu.memory_space<vmem>>, vector<1x8x32xf32>
    %27 = vector.shape_cast %26 : vector<1x8x32xf32> to vector<8x32xf32>
    %c0_13 = arith.constant 0 : index
    %c0_14 = arith.constant 0 : index
    %28 = vector.load %arg10[%c0_13, %c0_14] : memref<32x32xf32, #tpu.memory_space<vmem>>, vector<32x32xf32>
    %29 = arith.truncf %25 : vector<8x32xf32> to vector<8x32xbf16>
    %30 = arith.truncf %28 : vector<32x32xf32> to vector<32x32xbf16>
    %cst_15 = arith.constant dense<0.000000e+00> : vector<8x32xf32>
    %31 = tpu.matmul %29, %30, %cst_15 {dimension_numbers = #tpu.dot_dimension_numbers<[1], [0], [0], [1], [0, 0, 1, 1], [], []>} : vector<8x32xbf16>, vector<32x32xbf16>, vector<8x32xf32> -> vector<8x32xf32>
    %c0_16 = arith.constant 0 : index
    %c0_17 = arith.constant 0 : index
    %32 = vector.load %arg11[%c0_16, %c0_17] : memref<1x32xf32, #tpu.memory_space<vmem>>, vector<1x32xf32>
    %33 = vector.broadcast %32 : vector<1x32xf32> to vector<8x32xf32>
    %34 = arith.addf %31, %33 : vector<8x32xf32>
    %c0_18 = arith.constant 0 : index
    %c0_19 = arith.constant 0 : index
    %35 = vector.load %arg12[%c0_18, %c0_19] : memref<32x32xf32, #tpu.memory_space<vmem>>, vector<32x32xf32>
    %36 = arith.truncf %27 : vector<8x32xf32> to vector<8x32xbf16>
    %37 = arith.truncf %35 : vector<32x32xf32> to vector<32x32xbf16>
    %cst_20 = arith.constant dense<0.000000e+00> : vector<8x32xf32>
    %38 = tpu.matmul %36, %37, %cst_20 {dimension_numbers = #tpu.dot_dimension_numbers<[1], [0], [0], [1], [0, 0, 1, 1], [], []>} : vector<8x32xbf16>, vector<32x32xbf16>, vector<8x32xf32> -> vector<8x32xf32>
    %c0_21 = arith.constant 0 : index
    %c0_22 = arith.constant 0 : index
    %39 = vector.load %arg13[%c0_21, %c0_22] : memref<1x32xf32, #tpu.memory_space<vmem>>, vector<1x32xf32>
    %40 = vector.broadcast %39 : vector<1x32xf32> to vector<8x32xf32>
    %41 = arith.addf %38, %40 : vector<8x32xf32>
    %c0_23 = arith.constant 0 : index
    %c0_24 = arith.constant 0 : index
    %42 = vector.load %arg14[%c0_23, %c0_24] : memref<32x32xf32, #tpu.memory_space<vmem>>, vector<32x32xf32>
    %43 = arith.truncf %27 : vector<8x32xf32> to vector<8x32xbf16>
    %44 = arith.truncf %42 : vector<32x32xf32> to vector<32x32xbf16>
    %cst_25 = arith.constant dense<0.000000e+00> : vector<8x32xf32>
    %45 = tpu.matmul %43, %44, %cst_25 {dimension_numbers = #tpu.dot_dimension_numbers<[1], [0], [0], [1], [0, 0, 1, 1], [], []>} : vector<8x32xbf16>, vector<32x32xbf16>, vector<8x32xf32> -> vector<8x32xf32>
    %c0_26 = arith.constant 0 : index
    %c0_27 = arith.constant 0 : index
    %46 = vector.load %arg15[%c0_26, %c0_27] : memref<1x32xf32, #tpu.memory_space<vmem>>, vector<1x32xf32>
    %47 = vector.broadcast %46 : vector<1x32xf32> to vector<8x32xf32>
    %48 = arith.addf %45, %47 : vector<8x32xf32>
    %c0_28 = arith.constant 0 : index
    %c0_29 = arith.constant 0 : index
    %c0_30 = arith.constant 0 : index
    %49 = vector.load %arg3[%c0_28, %c0_29, %c0_30] : memref<1x8x8xf32, #tpu.memory_space<vmem>>, vector<1x8x8xf32>
    %50 = vector.shape_cast %49 : vector<1x8x8xf32> to vector<8x8xf32>
    %51 = tpu.iota {dimensions = array<i32: 1>} : vector<1x32xi32>
    %cst_31 = arith.constant 0.000000e+00 : f32
    %52 = vector.broadcast %cst_31 : f32 to vector<8x32xf32>
    %c0_i32 = arith.constant 0 : i32
    %53 = vector.broadcast %c0_i32 : i32 to vector<1x32xi32>
    %54 = arith.cmpi sge, %51, %53 : vector<1x32xi32>
    %c8_i32 = arith.constant 8 : i32
    %55 = vector.broadcast %c8_i32 : i32 to vector<1x32xi32>
    %56 = arith.cmpi slt, %51, %55 : vector<1x32xi32>
    %57 = arith.andi %54, %56 : vector<1x32xi1>
    %cst_32 = arith.constant 0.000000e+00 : f32
    %58 = vector.shape_cast %57 : vector<1x32xi1> to vector<1x32xi1>
    %59 = vector.broadcast %58 : vector<1x32xi1> to vector<8x32xi1>
    %60 = vector.broadcast %cst_32 : f32 to vector<8x32xf32>
    %61 = arith.select %59, %34, %60 : vector<8x32xi1>, vector<8x32xf32>
    %62 = arith.truncf %61 : vector<8x32xf32> to vector<8x32xbf16>
    %63 = arith.truncf %41 : vector<8x32xf32> to vector<8x32xbf16>
    %cst_33 = arith.constant dense<0.000000e+00> : vector<8x8xf32>
    %64 = tpu.matmul %62, %63, %cst_33 {dimension_numbers = #tpu.dot_dimension_numbers<[1], [1], [0], [0], [0, 0, 1, 0], [], []>} : vector<8x32xbf16>, vector<8x32xbf16>, vector<8x8xf32> -> vector<8x8xf32>
    %cst_34 = arith.constant 0.353553385 : f32
    %65 = vector.broadcast %cst_34 : f32 to vector<8x8xf32>
    %66 = arith.mulf %64, %65 : vector<8x8xf32>
    %67 = arith.addf %66, %50 : vector<8x8xf32>
    %cst_35 = arith.constant dense<0xFF800000> : vector<8xf32>
    %68 = vector.multi_reduction <maximumf>, %67, %cst_35 [1] : vector<8x8xf32> to vector<8xf32>
    %69 = vector.shape_cast %68 : vector<8xf32> to vector<8x1xf32>
    %70 = vector.broadcast %69 : vector<8x1xf32> to vector<8x8xf32>
    %71 = arith.subf %67, %70 : vector<8x8xf32>
    %72 = math.exp %71 : vector<8x8xf32>
    %cst_36 = arith.constant dense<0.000000e+00> : vector<8xf32>
    %73 = vector.multi_reduction <add>, %72, %cst_36 [1] : vector<8x8xf32> to vector<8xf32>
    %74 = vector.shape_cast %73 : vector<8xf32> to vector<8x1xf32>
    %75 = tpu.reciprocal %74 {approx = true} : vector<8x1xf32> -> vector<8x1xf32>
    %76 = vector.broadcast %75 : vector<8x1xf32> to vector<8x8xf32>
    %77 = arith.mulf %72, %76 : vector<8x8xf32>
    %cst_37 = arith.constant 0.000000e+00 : f32
    %78 = vector.shape_cast %57 : vector<1x32xi1> to vector<1x32xi1>
    %79 = vector.broadcast %78 : vector<1x32xi1> to vector<8x32xi1>
    %80 = vector.broadcast %cst_37 : f32 to vector<8x32xf32>
    %81 = arith.select %79, %48, %80 : vector<8x32xi1>, vector<8x32xf32>
    %82 = arith.truncf %77 : vector<8x8xf32> to vector<8x8xbf16>
    %83 = arith.truncf %81 : vector<8x32xf32> to vector<8x32xbf16>
    %cst_38 = arith.constant dense<0.000000e+00> : vector<8x32xf32>
    %84 = tpu.matmul %82, %83, %cst_38 {dimension_numbers = #tpu.dot_dimension_numbers<[1], [0], [0], [1], [0, 0, 1, 1], [], []>} : vector<8x8xbf16>, vector<8x32xbf16>, vector<8x32xf32> -> vector<8x32xf32>
    %85 = arith.addf %52, %84 : vector<8x32xf32>
    %c8_i32_39 = arith.constant 8 : i32
    %86 = vector.broadcast %c8_i32_39 : i32 to vector<1x32xi32>
    %87 = arith.cmpi sge, %51, %86 : vector<1x32xi32>
    %c16_i32 = arith.constant 16 : i32
    %88 = vector.broadcast %c16_i32 : i32 to vector<1x32xi32>
    %89 = arith.cmpi slt, %51, %88 : vector<1x32xi32>
    %90 = arith.andi %87, %89 : vector<1x32xi1>
    %cst_40 = arith.constant 0.000000e+00 : f32
    %91 = vector.shape_cast %90 : vector<1x32xi1> to vector<1x32xi1>
    %92 = vector.broadcast %91 : vector<1x32xi1> to vector<8x32xi1>
    %93 = vector.broadcast %cst_40 : f32 to vector<8x32xf32>
    %94 = arith.select %92, %34, %93 : vector<8x32xi1>, vector<8x32xf32>
    %95 = arith.truncf %94 : vector<8x32xf32> to vector<8x32xbf16>
    %96 = arith.truncf %41 : vector<8x32xf32> to vector<8x32xbf16>
    %cst_41 = arith.constant dense<0.000000e+00> : vector<8x8xf32>
    %97 = tpu.matmul %95, %96, %cst_41 {dimension_numbers = #tpu.dot_dimension_numbers<[1], [1], [0], [0], [0, 0, 1, 0], [], []>} : vector<8x32xbf16>, vector<8x32xbf16>, vector<8x8xf32> -> vector<8x8xf32>
    %cst_42 = arith.constant 0.353553385 : f32
    %98 = vector.broadcast %cst_42 : f32 to vector<8x8xf32>
    %99 = arith.mulf %97, %98 : vector<8x8xf32>
    %100 = arith.addf %99, %50 : vector<8x8xf32>
    %cst_43 = arith.constant dense<0xFF800000> : vector<8xf32>
    %101 = vector.multi_reduction <maximumf>, %100, %cst_43 [1] : vector<8x8xf32> to vector<8xf32>
    %102 = vector.shape_cast %101 : vector<8xf32> to vector<8x1xf32>
    %103 = vector.broadcast %102 : vector<8x1xf32> to vector<8x8xf32>
    %104 = arith.subf %100, %103 : vector<8x8xf32>
    %105 = math.exp %104 : vector<8x8xf32>
    %cst_44 = arith.constant dense<0.000000e+00> : vector<8xf32>
    %106 = vector.multi_reduction <add>, %105, %cst_44 [1] : vector<8x8xf32> to vector<8xf32>
    %107 = vector.shape_cast %106 : vector<8xf32> to vector<8x1xf32>
    %108 = tpu.reciprocal %107 {approx = true} : vector<8x1xf32> -> vector<8x1xf32>
    %109 = vector.broadcast %108 : vector<8x1xf32> to vector<8x8xf32>
    %110 = arith.mulf %105, %109 : vector<8x8xf32>
    %cst_45 = arith.constant 0.000000e+00 : f32
    %111 = vector.shape_cast %90 : vector<1x32xi1> to vector<1x32xi1>
    %112 = vector.broadcast %111 : vector<1x32xi1> to vector<8x32xi1>
    %113 = vector.broadcast %cst_45 : f32 to vector<8x32xf32>
    %114 = arith.select %112, %48, %113 : vector<8x32xi1>, vector<8x32xf32>
    %115 = arith.truncf %110 : vector<8x8xf32> to vector<8x8xbf16>
    %116 = arith.truncf %114 : vector<8x32xf32> to vector<8x32xbf16>
    %cst_46 = arith.constant dense<0.000000e+00> : vector<8x32xf32>
    %117 = tpu.matmul %115, %116, %cst_46 {dimension_numbers = #tpu.dot_dimension_numbers<[1], [0], [0], [1], [0, 0, 1, 1], [], []>} : vector<8x8xbf16>, vector<8x32xbf16>, vector<8x32xf32> -> vector<8x32xf32>
    %118 = arith.addf %85, %117 : vector<8x32xf32>
    %c16_i32_47 = arith.constant 16 : i32
    %119 = vector.broadcast %c16_i32_47 : i32 to vector<1x32xi32>
    %120 = arith.cmpi sge, %51, %119 : vector<1x32xi32>
    %c24_i32 = arith.constant 24 : i32
    %121 = vector.broadcast %c24_i32 : i32 to vector<1x32xi32>
    %122 = arith.cmpi slt, %51, %121 : vector<1x32xi32>
    %123 = arith.andi %120, %122 : vector<1x32xi1>
    %cst_48 = arith.constant 0.000000e+00 : f32
    %124 = vector.shape_cast %123 : vector<1x32xi1> to vector<1x32xi1>
    %125 = vector.broadcast %124 : vector<1x32xi1> to vector<8x32xi1>
    %126 = vector.broadcast %cst_48 : f32 to vector<8x32xf32>
    %127 = arith.select %125, %34, %126 : vector<8x32xi1>, vector<8x32xf32>
    %128 = arith.truncf %127 : vector<8x32xf32> to vector<8x32xbf16>
    %129 = arith.truncf %41 : vector<8x32xf32> to vector<8x32xbf16>
    %cst_49 = arith.constant dense<0.000000e+00> : vector<8x8xf32>
    %130 = tpu.matmul %128, %129, %cst_49 {dimension_numbers = #tpu.dot_dimension_numbers<[1], [1], [0], [0], [0, 0, 1, 0], [], []>} : vector<8x32xbf16>, vector<8x32xbf16>, vector<8x8xf32> -> vector<8x8xf32>
    %cst_50 = arith.constant 0.353553385 : f32
    %131 = vector.broadcast %cst_50 : f32 to vector<8x8xf32>
    %132 = arith.mulf %130, %131 : vector<8x8xf32>
    %133 = arith.addf %132, %50 : vector<8x8xf32>
    %cst_51 = arith.constant dense<0xFF800000> : vector<8xf32>
    %134 = vector.multi_reduction <maximumf>, %133, %cst_51 [1] : vector<8x8xf32> to vector<8xf32>
    %135 = vector.shape_cast %134 : vector<8xf32> to vector<8x1xf32>
    %136 = vector.broadcast %135 : vector<8x1xf32> to vector<8x8xf32>
    %137 = arith.subf %133, %136 : vector<8x8xf32>
    %138 = math.exp %137 : vector<8x8xf32>
    %cst_52 = arith.constant dense<0.000000e+00> : vector<8xf32>
    %139 = vector.multi_reduction <add>, %138, %cst_52 [1] : vector<8x8xf32> to vector<8xf32>
    %140 = vector.shape_cast %139 : vector<8xf32> to vector<8x1xf32>
    %141 = tpu.reciprocal %140 {approx = true} : vector<8x1xf32> -> vector<8x1xf32>
    %142 = vector.broadcast %141 : vector<8x1xf32> to vector<8x8xf32>
    %143 = arith.mulf %138, %142 : vector<8x8xf32>
    %cst_53 = arith.constant 0.000000e+00 : f32
    %144 = vector.shape_cast %123 : vector<1x32xi1> to vector<1x32xi1>
    %145 = vector.broadcast %144 : vector<1x32xi1> to vector<8x32xi1>
    %146 = vector.broadcast %cst_53 : f32 to vector<8x32xf32>
    %147 = arith.select %145, %48, %146 : vector<8x32xi1>, vector<8x32xf32>
    %148 = arith.truncf %143 : vector<8x8xf32> to vector<8x8xbf16>
    %149 = arith.truncf %147 : vector<8x32xf32> to vector<8x32xbf16>
    %cst_54 = arith.constant dense<0.000000e+00> : vector<8x32xf32>
    %150 = tpu.matmul %148, %149, %cst_54 {dimension_numbers = #tpu.dot_dimension_numbers<[1], [0], [0], [1], [0, 0, 1, 1], [], []>} : vector<8x8xbf16>, vector<8x32xbf16>, vector<8x32xf32> -> vector<8x32xf32>
    %151 = arith.addf %118, %150 : vector<8x32xf32>
    %c24_i32_55 = arith.constant 24 : i32
    %152 = vector.broadcast %c24_i32_55 : i32 to vector<1x32xi32>
    %153 = arith.cmpi sge, %51, %152 : vector<1x32xi32>
    %c32_i32 = arith.constant 32 : i32
    %154 = vector.broadcast %c32_i32 : i32 to vector<1x32xi32>
    %155 = arith.cmpi slt, %51, %154 : vector<1x32xi32>
    %156 = arith.andi %153, %155 : vector<1x32xi1>
    %cst_56 = arith.constant 0.000000e+00 : f32
    %157 = vector.shape_cast %156 : vector<1x32xi1> to vector<1x32xi1>
    %158 = vector.broadcast %157 : vector<1x32xi1> to vector<8x32xi1>
    %159 = vector.broadcast %cst_56 : f32 to vector<8x32xf32>
    %160 = arith.select %158, %34, %159 : vector<8x32xi1>, vector<8x32xf32>
    %161 = arith.truncf %160 : vector<8x32xf32> to vector<8x32xbf16>
    %162 = arith.truncf %41 : vector<8x32xf32> to vector<8x32xbf16>
    %cst_57 = arith.constant dense<0.000000e+00> : vector<8x8xf32>
    %163 = tpu.matmul %161, %162, %cst_57 {dimension_numbers = #tpu.dot_dimension_numbers<[1], [1], [0], [0], [0, 0, 1, 0], [], []>} : vector<8x32xbf16>, vector<8x32xbf16>, vector<8x8xf32> -> vector<8x8xf32>
    %cst_58 = arith.constant 0.353553385 : f32
    %164 = vector.broadcast %cst_58 : f32 to vector<8x8xf32>
    %165 = arith.mulf %163, %164 : vector<8x8xf32>
    %166 = arith.addf %165, %50 : vector<8x8xf32>
    %cst_59 = arith.constant dense<0xFF800000> : vector<8xf32>
    %167 = vector.multi_reduction <maximumf>, %166, %cst_59 [1] : vector<8x8xf32> to vector<8xf32>
    %168 = vector.shape_cast %167 : vector<8xf32> to vector<8x1xf32>
    %169 = vector.broadcast %168 : vector<8x1xf32> to vector<8x8xf32>
    %170 = arith.subf %166, %169 : vector<8x8xf32>
    %171 = math.exp %170 : vector<8x8xf32>
    %cst_60 = arith.constant dense<0.000000e+00> : vector<8xf32>
    %172 = vector.multi_reduction <add>, %171, %cst_60 [1] : vector<8x8xf32> to vector<8xf32>
    %173 = vector.shape_cast %172 : vector<8xf32> to vector<8x1xf32>
    %174 = tpu.reciprocal %173 {approx = true} : vector<8x1xf32> -> vector<8x1xf32>
    %175 = vector.broadcast %174 : vector<8x1xf32> to vector<8x8xf32>
    %176 = arith.mulf %171, %175 : vector<8x8xf32>
    %cst_61 = arith.constant 0.000000e+00 : f32
    %177 = vector.shape_cast %156 : vector<1x32xi1> to vector<1x32xi1>
    %178 = vector.broadcast %177 : vector<1x32xi1> to vector<8x32xi1>
    %179 = vector.broadcast %cst_61 : f32 to vector<8x32xf32>
    %180 = arith.select %178, %48, %179 : vector<8x32xi1>, vector<8x32xf32>
    %181 = arith.truncf %176 : vector<8x8xf32> to vector<8x8xbf16>
    %182 = arith.truncf %180 : vector<8x32xf32> to vector<8x32xbf16>
    %cst_62 = arith.constant dense<0.000000e+00> : vector<8x32xf32>
    %183 = tpu.matmul %181, %182, %cst_62 {dimension_numbers = #tpu.dot_dimension_numbers<[1], [0], [0], [1], [0, 0, 1, 1], [], []>} : vector<8x8xbf16>, vector<8x32xbf16>, vector<8x32xf32> -> vector<8x32xf32>
    %184 = arith.addf %151, %183 : vector<8x32xf32>
    %c0_63 = arith.constant 0 : index
    %c0_64 = arith.constant 0 : index
    %c0_65 = arith.constant 0 : index
    %185 = vector.load %arg4[%c0_63, %c0_64, %c0_65] : memref<1x8x32xf32, #tpu.memory_space<vmem>>, vector<1x8x32xf32>
    %186 = vector.shape_cast %185 : vector<1x8x32xf32> to vector<8x32xf32>
    %c0_66 = arith.constant 0 : index
    %c0_67 = arith.constant 0 : index
    %187 = vector.load %arg16[%c0_66, %c0_67] : memref<32x32xf32, #tpu.memory_space<vmem>>, vector<32x32xf32>
    %188 = arith.truncf %184 : vector<8x32xf32> to vector<8x32xbf16>
    %189 = arith.truncf %187 : vector<32x32xf32> to vector<32x32xbf16>
    %cst_68 = arith.constant dense<0.000000e+00> : vector<8x32xf32>
    %190 = tpu.matmul %188, %189, %cst_68 {dimension_numbers = #tpu.dot_dimension_numbers<[1], [0], [0], [1], [0, 0, 1, 1], [], []>} : vector<8x32xbf16>, vector<32x32xbf16>, vector<8x32xf32> -> vector<8x32xf32>
    %c0_69 = arith.constant 0 : index
    %c0_70 = arith.constant 0 : index
    %191 = vector.load %arg17[%c0_69, %c0_70] : memref<1x32xf32, #tpu.memory_space<vmem>>, vector<1x32xf32>
    %192 = vector.broadcast %191 : vector<1x32xf32> to vector<8x32xf32>
    %193 = arith.addf %190, %192 : vector<8x32xf32>
    %194 = arith.mulf %186, %193 : vector<8x32xf32>
    %195 = arith.addf %1, %194 : vector<8x32xf32>
    %c0_71 = arith.constant 0 : index
    %c0_72 = arith.constant 0 : index
    %196 = vector.load %arg18[%c0_71, %c0_72] : memref<1x32xf32, #tpu.memory_space<vmem>>, vector<1x32xf32>
    %c0_73 = arith.constant 0 : index
    %c0_74 = arith.constant 0 : index
    %197 = vector.load %arg19[%c0_73, %c0_74] : memref<1x32xf32, #tpu.memory_space<vmem>>, vector<1x32xf32>
    %cst_75 = arith.constant dense<0.000000e+00> : vector<8xf32>
    %198 = vector.multi_reduction <add>, %195, %cst_75 [1] : vector<8x32xf32> to vector<8xf32>
    %199 = vector.shape_cast %198 : vector<8xf32> to vector<8x1xf32>
    %cst_76 = arith.constant 3.200000e+01 : f32
    %200 = vector.broadcast %cst_76 : f32 to vector<8x1xf32>
    %201 = arith.divf %199, %200 : vector<8x1xf32>
    %202 = vector.broadcast %201 : vector<8x1xf32> to vector<8x32xf32>
    %203 = arith.subf %195, %202 : vector<8x32xf32>
    %204 = arith.mulf %203, %203 : vector<8x32xf32>
    %cst_77 = arith.constant dense<0.000000e+00> : vector<8xf32>
    %205 = vector.multi_reduction <add>, %204, %cst_77 [1] : vector<8x32xf32> to vector<8xf32>
    %206 = vector.shape_cast %205 : vector<8xf32> to vector<8x1xf32>
    %cst_78 = arith.constant 3.200000e+01 : f32
    %207 = vector.broadcast %cst_78 : f32 to vector<8x1xf32>
    %208 = arith.divf %206, %207 : vector<8x1xf32>
    %209 = vector.broadcast %201 : vector<8x1xf32> to vector<8x32xf32>
    %210 = arith.subf %195, %209 : vector<8x32xf32>
    %cst_79 = arith.constant 9.99999974E-6 : f32
    %211 = vector.broadcast %cst_79 : f32 to vector<8x1xf32>
    %212 = arith.addf %208, %211 : vector<8x1xf32>
    %213 = math.rsqrt %212 : vector<8x1xf32>
    %214 = vector.broadcast %213 : vector<8x1xf32> to vector<8x32xf32>
    %215 = arith.mulf %210, %214 : vector<8x32xf32>
    %216 = vector.broadcast %196 : vector<1x32xf32> to vector<8x32xf32>
    %217 = arith.mulf %215, %216 : vector<8x32xf32>
    %218 = vector.broadcast %197 : vector<1x32xf32> to vector<8x32xf32>
    %219 = arith.addf %217, %218 : vector<8x32xf32>
    %c0_80 = arith.constant 0 : index
    %c0_81 = arith.constant 0 : index
    %220 = vector.load %arg20[%c0_80, %c0_81] : memref<32x64xf32, #tpu.memory_space<vmem>>, vector<32x64xf32>
    %221 = arith.truncf %219 : vector<8x32xf32> to vector<8x32xbf16>
    %222 = arith.truncf %220 : vector<32x64xf32> to vector<32x64xbf16>
    %cst_82 = arith.constant dense<0.000000e+00> : vector<8x64xf32>
    %223 = tpu.matmul %221, %222, %cst_82 {dimension_numbers = #tpu.dot_dimension_numbers<[1], [0], [0], [1], [0, 0, 1, 1], [], []>} : vector<8x32xbf16>, vector<32x64xbf16>, vector<8x64xf32> -> vector<8x64xf32>
    %c0_83 = arith.constant 0 : index
    %c0_84 = arith.constant 0 : index
    %224 = vector.load %arg21[%c0_83, %c0_84] : memref<1x64xf32, #tpu.memory_space<vmem>>, vector<1x64xf32>
    %225 = vector.broadcast %224 : vector<1x64xf32> to vector<8x64xf32>
    %226 = arith.addf %223, %225 : vector<8x64xf32>
    %227 = arith.mulf %226, %226 : vector<8x64xf32>
    %228 = arith.mulf %226, %227 : vector<8x64xf32>
    %cst_85 = arith.constant 4.471500e-02 : f32
    %229 = vector.broadcast %cst_85 : f32 to vector<8x64xf32>
    %230 = arith.mulf %229, %228 : vector<8x64xf32>
    %231 = arith.addf %226, %230 : vector<8x64xf32>
    %cst_86 = arith.constant 0.797884583 : f32
    %232 = vector.broadcast %cst_86 : f32 to vector<8x64xf32>
    %233 = arith.mulf %232, %231 : vector<8x64xf32>
    %234 = math.tanh %233 : vector<8x64xf32>
    %cst_87 = arith.constant 1.000000e+00 : f32
    %235 = vector.broadcast %cst_87 : f32 to vector<8x64xf32>
    %236 = arith.addf %235, %234 : vector<8x64xf32>
    %cst_88 = arith.constant 5.000000e-01 : f32
    %237 = vector.broadcast %cst_88 : f32 to vector<8x64xf32>
    %238 = arith.mulf %237, %236 : vector<8x64xf32>
    %239 = arith.mulf %226, %238 : vector<8x64xf32>
    %c0_89 = arith.constant 0 : index
    %c0_90 = arith.constant 0 : index
    %240 = vector.load %arg5[%c0_89, %c0_90] : memref<1x32xf32, #tpu.memory_space<vmem>>, vector<1x32xf32>
    %c0_91 = arith.constant 0 : index
    %c0_92 = arith.constant 0 : index
    %241 = vector.load %arg22[%c0_91, %c0_92] : memref<64x32xf32, #tpu.memory_space<vmem>>, vector<64x32xf32>
    %242 = arith.truncf %239 : vector<8x64xf32> to vector<8x64xbf16>
    %243 = arith.truncf %241 : vector<64x32xf32> to vector<64x32xbf16>
    %cst_93 = arith.constant dense<0.000000e+00> : vector<8x32xf32>
    %244 = tpu.matmul %242, %243, %cst_93 {dimension_numbers = #tpu.dot_dimension_numbers<[1], [0], [0], [1], [0, 0, 1, 1], [], []>} : vector<8x64xbf16>, vector<64x32xbf16>, vector<8x32xf32> -> vector<8x32xf32>
    %c0_94 = arith.constant 0 : index
    %c0_95 = arith.constant 0 : index
    %245 = vector.load %arg23[%c0_94, %c0_95] : memref<1x32xf32, #tpu.memory_space<vmem>>, vector<1x32xf32>
    %246 = vector.broadcast %245 : vector<1x32xf32> to vector<8x32xf32>
    %247 = arith.addf %244, %246 : vector<8x32xf32>
    %248 = vector.broadcast %240 : vector<1x32xf32> to vector<8x32xf32>
    %249 = arith.mulf %248, %247 : vector<8x32xf32>
    %250 = arith.addf %195, %249 : vector<8x32xf32>
    %c0_96 = arith.constant 0 : index
    %c0_97 = arith.constant 0 : index
    %c0_98 = arith.constant 0 : index
    %251 = vector.load %arg26[%c0_96, %c0_97, %c0_98] : memref<1x8x32xf32, #tpu.memory_space<vmem>>, vector<1x8x32xf32>
    %252 = vector.shape_cast %251 : vector<1x8x32xf32> to vector<8x32xf32>
    %253 = vector.shape_cast %250 : vector<8x32xf32> to vector<1x8x32xf32>
    tpu.vector_store %arg26[%c0_96, %c0_97, %c0_98], %253 {strides = array<i32>} : memref<1x8x32xf32, #tpu.memory_space<vmem>>, vector<1x8x32xf32>,
    return
  }
  func.func @transform_0(%arg0: i32) -> (i32, i32, i32) {
    %c0_i32 = arith.constant 0 : i32
    %c0_i32_0 = arith.constant 0 : i32
    %c0_i32_1 = arith.constant 0 : i32
    return %arg0, %c0_i32, %c0_i32_0 : i32, i32, i32
  }
  func.func @transform_1(%arg0: i32) -> (i32, i32, i32) {
    %c0_i32 = arith.constant 0 : i32
    %c0_i32_0 = arith.constant 0 : i32
    %c0_i32_1 = arith.constant 0 : i32
    return %arg0, %c0_i32, %c0_i32_0 : i32, i32, i32
  }
  func.func @transform_2(%arg0: i32) -> (i32, i32, i32) {
    %c0_i32 = arith.constant 0 : i32
    %c0_i32_0 = arith.constant 0 : i32
    %c0_i32_1 = arith.constant 0 : i32
    return %arg0, %c0_i32, %c0_i32_0 : i32, i32, i32
  }
  func.func @transform_3(%arg0: i32) -> (i32, i32, i32) {
    %c0_i32 = arith.constant 0 : i32
    %c0_i32_0 = arith.constant 0 : i32
    %c0_i32_1 = arith.constant 0 : i32
    return %arg0, %c0_i32, %c0_i32_0 : i32, i32, i32
  }
  func.func @transform_4(%arg0: i32) -> (i32, i32) {
    %c0_i32 = arith.constant 0 : i32
    %c0_i32_0 = arith.constant 0 : i32
    %c0_i32_1 = arith.constant 0 : i32
    return %c0_i32, %c0_i32_0 : i32, i32
  }
  func.func @transform_5(%arg0: i32) -> (i32, i32) {
    %c0_i32 = arith.constant 0 : i32
    %c0_i32_0 = arith.constant 0 : i32
    %c0_i32_1 = arith.constant 0 : i32
    return %c0_i32, %c0_i32_0 : i32, i32
  }
  func.func @transform_6(%arg0: i32) -> (i32, i32) {
    %c0_i32 = arith.constant 0 : i32
    %c0_i32_0 = arith.constant 0 : i32
    %c0_i32_1 = arith.constant 0 : i32
    return %c0_i32, %c0_i32_0 : i32, i32
  }
  func.func @transform_7(%arg0: i32) -> (i32, i32) {
    %c0_i32 = arith.constant 0 : i32
    %c0_i32_0 = arith.constant 0 : i32
    %c0_i32_1 = arith.constant 0 : i32
    return %c0_i32, %c0_i32_0 : i32, i32
  }
  func.func @transform_8(%arg0: i32) -> (i32, i32) {
    %c0_i32 = arith.constant 0 : i32
    %c0_i32_0 = arith.constant 0 : i32
    %c0_i32_1 = arith.constant 0 : i32
    return %c0_i32, %c0_i32_0 : i32, i32
  }
  func.func @transform_9(%arg0: i32) -> (i32, i32) {
    %c0_i32 = arith.constant 0 : i32
    %c0_i32_0 = arith.constant 0 : i32
    %c0_i32_1 = arith.constant 0 : i32
    return %c0_i32, %c0_i32_0 : i32, i32
  }
  func.func @transform_10(%arg0: i32) -> (i32, i32) {
    %c0_i32 = arith.constant 0 : i32
    %c0_i32_0 = arith.constant 0 : i32
    %c0_i32_1 = arith.constant 0 : i32
    return %c0_i32, %c0_i32_0 : i32, i32
  }
  func.func @transform_11(%arg0: i32) -> (i32, i32) {
    %c0_i32 = arith.constant 0 : i32
    %c0_i32_0 = arith.constant 0 : i32
    %c0_i32_1 = arith.constant 0 : i32
    return %c0_i32, %c0_i32_0 : i32, i32
  }
  func.func @transform_12(%arg0: i32) -> (i32, i32) {
    %c0_i32 = arith.constant 0 : i32
    %c0_i32_0 = arith.constant 0 : i32
    %c0_i32_1 = arith.constant 0 : i32
    return %c0_i32, %c0_i32_0 : i32, i32
  }
  func.func @transform_13(%arg0: i32) -> (i32, i32) {
    %c0_i32 = arith.constant 0 : i32
    %c0_i32_0 = arith.constant 0 : i32
    %c0_i32_1 = arith.constant 0 : i32
    return %c0_i32, %c0_i32_0 : i32, i32
  }
  func.func @transform_14(%arg0: i32) -> (i32, i32) {
    %c0_i32 = arith.constant 0 : i32
    %c0_i32_0 = arith.constant 0 : i32
    %c0_i32_1 = arith.constant 0 : i32
    return %c0_i32, %c0_i32_0 : i32, i32
  }
  func.func @transform_15(%arg0: i32) -> (i32, i32) {
    %c0_i32 = arith.constant 0 : i32
    %c0_i32_0 = arith.constant 0 : i32
    %c0_i32_1 = arith.constant 0 : i32
    return %c0_i32, %c0_i32_0 : i32, i32
  }
  func.func @transform_16(%arg0: i32) -> (i32, i32) {
    %c0_i32 = arith.constant 0 : i32
    %c0_i32_0 = arith.constant 0 : i32
    %c0_i32_1 = arith.constant 0 : i32
    return %c0_i32, %c0_i32_0 : i32, i32
  }
  func.func @transform_17(%arg0: i32) -> (i32, i32) {
    %c0_i32 = arith.constant 0 : i32
    %c0_i32_0 = arith.constant 0 : i32
    %c0_i32_1 = arith.constant 0 : i32
    return %c0_i32, %c0_i32_0 : i32, i32
  }
  func.func @transform_18(%arg0: i32) -> (i32, i32) {
    %c0_i32 = arith.constant 0 : i32
    %c0_i32_0 = arith.constant 0 : i32
    %c0_i32_1 = arith.constant 0 : i32
    return %c0_i32, %c0_i32_0 : i32, i32
  }
  func.func @transform_19(%arg0: i32) -> (i32, i32) {
    %c0_i32 = arith.constant 0 : i32
    %c0_i32_0 = arith.constant 0 : i32
    %c0_i32_1 = arith.constant 0 : i32
    return %c0_i32, %c0_i32_0 : i32, i32
  }
  func.func @transform_20(%arg0: i32) -> (i32, i32) {
    %c0_i32 = arith.constant 0 : i32
    %c0_i32_0 = arith.constant 0 : i32
    %c0_i32_1 = arith.constant 0 : i32
    return %c0_i32, %c0_i32_0 : i32, i32
  }
  func.func @transform_21(%arg0: i32) -> (i32, i32) {
    %c0_i32 = arith.constant 0 : i32
    %c0_i32_0 = arith.constant 0 : i32
    %c0_i32_1 = arith.constant 0 : i32
    return %c0_i32, %c0_i32_0 : i32, i32
  }
  func.func @transform_22(%arg0: i32) -> (i32, i32) {
    %c0_i32 = arith.constant 0 : i32
    %c0_i32_0 = arith.constant 0 : i32
    %c0_i32_1 = arith.constant 0 : i32
    return %c0_i32, %c0_i32_0 : i32, i32
  }
  func.func @transform_23(%arg0: i32) -> (i32, i32) {
    %c0_i32 = arith.constant 0 : i32
    %c0_i32_0 = arith.constant 0 : i32
    %c0_i32_1 = arith.constant 0 : i32
    return %c0_i32, %c0_i32_0 : i32, i32
  }
  func.func @transform_24(%arg0: i32) -> (i32, i32) {
    %c0_i32 = arith.constant 0 : i32
    %c0_i32_0 = arith.constant 0 : i32
    %c0_i32_1 = arith.constant 0 : i32
    return %c0_i32, %c0_i32_0 : i32, i32
  }
  func.func @transform_25(%arg0: i32) -> (i32, i32, i32) {
    %c0_i32 = arith.constant 0 : i32
    %c0_i32_0 = arith.constant 0 : i32
    %c0_i32_1 = arith.constant 0 : i32
    return %arg0, %c0_i32, %c0_i32_0 : i32, i32, i32
  }
}

module attributes {stable_mosaic.version = 11 : i64} {
  func.func @_decoder_block_kernel(%arg0: i32, %arg1: memref<1x8x32xf32, #tpu.memory_space<vmem>>, %arg2: memref<1x8x8xf32, #tpu.memory_space<vmem>>, %arg3: memref<1x32xf32, #tpu.memory_space<vmem>>, %arg4: memref<1x32xf32, #tpu.memory_space<vmem>>, %arg5: memref<32x32xf32, #tpu.memory_space<vmem>>, %arg6: memref<1x32xf32, #tpu.memory_space<vmem>>, %arg7: memref<32x32xf32, #tpu.memory_space<vmem>>, %arg8: memref<1x32xf32, #tpu.memory_space<vmem>>, %arg9: memref<32x32xf32, #tpu.memory_space<vmem>>, %arg10: memref<1x32xf32, #tpu.memory_space<vmem>>, %arg11: memref<32x32xf32, #tpu.memory_space<vmem>>, %arg12: memref<1x32xf32, #tpu.memory_space<vmem>>, %arg13: memref<1x32xf32, #tpu.memory_space<vmem>>, %arg14: memref<1x32xf32, #tpu.memory_space<vmem>>, %arg15: memref<32x64xf32, #tpu.memory_space<vmem>>, %arg16: memref<1x64xf32, #tpu.memory_space<vmem>>, %arg17: memref<64x32xf32, #tpu.memory_space<vmem>>, %arg18: memref<1x32xf32, #tpu.memory_space<vmem>>, %arg19: memref<1x8x32xf32, #tpu.memory_space<vmem>>) attributes {dimension_semantics = [#tpu.dimension_semantics<parallel>], iteration_bounds = array<i64: 2>, scalar_prefetch = 0 : i64, scratch_operands = 0 : i64, tpu.core_type = #tpu.core_type<tc>, window_params = [{transform_indices = @transform_0, window_bounds = array<i64: 1, 8, 32>}, {transform_indices = @transform_1, window_bounds = array<i64: 1, 8, 8>}, {pipeline_mode = #tpu.pipeline_mode<synchronous>, transform_indices = @transform_2, window_bounds = array<i64: 1, 32>}, {pipeline_mode = #tpu.pipeline_mode<synchronous>, transform_indices = @transform_3, window_bounds = array<i64: 1, 32>}, {pipeline_mode = #tpu.pipeline_mode<synchronous>, transform_indices = @transform_4, window_bounds = array<i64: 32, 32>}, {pipeline_mode = #tpu.pipeline_mode<synchronous>, transform_indices = @transform_5, window_bounds = array<i64: 1, 32>}, {pipeline_mode = #tpu.pipeline_mode<synchronous>, transform_indices = @transform_6, window_bounds = array<i64: 32, 32>}, {pipeline_mode = #tpu.pipeline_mode<synchronous>, transform_indices = @transform_7, window_bounds = array<i64: 1, 32>}, {pipeline_mode = #tpu.pipeline_mode<synchronous>, transform_indices = @transform_8, window_bounds = array<i64: 32, 32>}, {pipeline_mode = #tpu.pipeline_mode<synchronous>, transform_indices = @transform_9, window_bounds = array<i64: 1, 32>}, {pipeline_mode = #tpu.pipeline_mode<synchronous>, transform_indices = @transform_10, window_bounds = array<i64: 32, 32>}, {pipeline_mode = #tpu.pipeline_mode<synchronous>, transform_indices = @transform_11, window_bounds = array<i64: 1, 32>}, {pipeline_mode = #tpu.pipeline_mode<synchronous>, transform_indices = @transform_12, window_bounds = array<i64: 1, 32>}, {pipeline_mode = #tpu.pipeline_mode<synchronous>, transform_indices = @transform_13, window_bounds = array<i64: 1, 32>}, {pipeline_mode = #tpu.pipeline_mode<synchronous>, transform_indices = @transform_14, window_bounds = array<i64: 32, 64>}, {pipeline_mode = #tpu.pipeline_mode<synchronous>, transform_indices = @transform_15, window_bounds = array<i64: 1, 64>}, {pipeline_mode = #tpu.pipeline_mode<synchronous>, transform_indices = @transform_16, window_bounds = array<i64: 64, 32>}, {pipeline_mode = #tpu.pipeline_mode<synchronous>, transform_indices = @transform_17, window_bounds = array<i64: 1, 32>}, {transform_indices = @transform_18, window_bounds = array<i64: 1, 8, 32>}]} {
    %c0 = arith.constant 0 : index
    %c0_0 = arith.constant 0 : index
    %c0_1 = arith.constant 0 : index
    %0 = vector.load %arg1[%c0, %c0_0, %c0_1] : memref<1x8x32xf32, #tpu.memory_space<vmem>>, vector<1x8x32xf32>
    %1 = vector.shape_cast %0 : vector<1x8x32xf32> to vector<8x32xf32>
    %c0_2 = arith.constant 0 : index
    %c0_3 = arith.constant 0 : index
    %2 = vector.load %arg3[%c0_2, %c0_3] : memref<1x32xf32, #tpu.memory_space<vmem>>, vector<1x32xf32>
    %c0_4 = arith.constant 0 : index
    %c0_5 = arith.constant 0 : index
    %3 = vector.load %arg4[%c0_4, %c0_5] : memref<1x32xf32, #tpu.memory_space<vmem>>, vector<1x32xf32>
    %cst = arith.constant dense<0.000000e+00> : vector<8xf32>
    %4 = vector.multi_reduction <add>, %1, %cst [1] : vector<8x32xf32> to vector<8xf32>
    %5 = vector.shape_cast %4 : vector<8xf32> to vector<8x1xf32>
    %cst_6 = arith.constant 3.200000e+01 : f32
    %6 = vector.broadcast %cst_6 : f32 to vector<8x1xf32>
    %7 = arith.divf %5, %6 : vector<8x1xf32>
    %8 = vector.broadcast %7 : vector<8x1xf32> to vector<8x32xf32>
    %9 = arith.subf %1, %8 : vector<8x32xf32>
    %10 = arith.mulf %9, %9 : vector<8x32xf32>
    %cst_7 = arith.constant dense<0.000000e+00> : vector<8xf32>
    %11 = vector.multi_reduction <add>, %10, %cst_7 [1] : vector<8x32xf32> to vector<8xf32>
    %12 = vector.shape_cast %11 : vector<8xf32> to vector<8x1xf32>
    %cst_8 = arith.constant 3.200000e+01 : f32
    %13 = vector.broadcast %cst_8 : f32 to vector<8x1xf32>
    %14 = arith.divf %12, %13 : vector<8x1xf32>
    %15 = vector.broadcast %7 : vector<8x1xf32> to vector<8x32xf32>
    %16 = arith.subf %1, %15 : vector<8x32xf32>
    %cst_9 = arith.constant 9.99999974E-6 : f32
    %17 = vector.broadcast %cst_9 : f32 to vector<8x1xf32>
    %18 = arith.addf %14, %17 : vector<8x1xf32>
    %19 = math.rsqrt %18 : vector<8x1xf32>
    %20 = vector.broadcast %19 : vector<8x1xf32> to vector<8x32xf32>
    %21 = arith.mulf %16, %20 : vector<8x32xf32>
    %22 = vector.broadcast %2 : vector<1x32xf32> to vector<8x32xf32>
    %23 = arith.mulf %21, %22 : vector<8x32xf32>
    %24 = vector.broadcast %3 : vector<1x32xf32> to vector<8x32xf32>
    %25 = arith.addf %23, %24 : vector<8x32xf32>
    %c0_10 = arith.constant 0 : index
    %c0_11 = arith.constant 0 : index
    %26 = vector.load %arg5[%c0_10, %c0_11] : memref<32x32xf32, #tpu.memory_space<vmem>>, vector<32x32xf32>
    %27 = arith.truncf %25 : vector<8x32xf32> to vector<8x32xbf16>
    %28 = arith.truncf %26 : vector<32x32xf32> to vector<32x32xbf16>
    %cst_12 = arith.constant dense<0.000000e+00> : vector<8x32xf32>
    %29 = tpu.matmul %27, %28, %cst_12 {dimension_numbers = #tpu.dot_dimension_numbers<[1], [0], [0], [1], [0, 0, 1, 1], [], []>} : vector<8x32xbf16>, vector<32x32xbf16>, vector<8x32xf32> -> vector<8x32xf32>
    %c0_13 = arith.constant 0 : index
    %c0_14 = arith.constant 0 : index
    %30 = vector.load %arg6[%c0_13, %c0_14] : memref<1x32xf32, #tpu.memory_space<vmem>>, vector<1x32xf32>
    %31 = vector.broadcast %30 : vector<1x32xf32> to vector<8x32xf32>
    %32 = arith.addf %29, %31 : vector<8x32xf32>
    %c0_15 = arith.constant 0 : index
    %c0_16 = arith.constant 0 : index
    %33 = vector.load %arg7[%c0_15, %c0_16] : memref<32x32xf32, #tpu.memory_space<vmem>>, vector<32x32xf32>
    %34 = arith.truncf %25 : vector<8x32xf32> to vector<8x32xbf16>
    %35 = arith.truncf %33 : vector<32x32xf32> to vector<32x32xbf16>
    %cst_17 = arith.constant dense<0.000000e+00> : vector<8x32xf32>
    %36 = tpu.matmul %34, %35, %cst_17 {dimension_numbers = #tpu.dot_dimension_numbers<[1], [0], [0], [1], [0, 0, 1, 1], [], []>} : vector<8x32xbf16>, vector<32x32xbf16>, vector<8x32xf32> -> vector<8x32xf32>
    %c0_18 = arith.constant 0 : index
    %c0_19 = arith.constant 0 : index
    %37 = vector.load %arg8[%c0_18, %c0_19] : memref<1x32xf32, #tpu.memory_space<vmem>>, vector<1x32xf32>
    %38 = vector.broadcast %37 : vector<1x32xf32> to vector<8x32xf32>
    %39 = arith.addf %36, %38 : vector<8x32xf32>
    %c0_20 = arith.constant 0 : index
    %c0_21 = arith.constant 0 : index
    %40 = vector.load %arg9[%c0_20, %c0_21] : memref<32x32xf32, #tpu.memory_space<vmem>>, vector<32x32xf32>
    %41 = arith.truncf %25 : vector<8x32xf32> to vector<8x32xbf16>
    %42 = arith.truncf %40 : vector<32x32xf32> to vector<32x32xbf16>
    %cst_22 = arith.constant dense<0.000000e+00> : vector<8x32xf32>
    %43 = tpu.matmul %41, %42, %cst_22 {dimension_numbers = #tpu.dot_dimension_numbers<[1], [0], [0], [1], [0, 0, 1, 1], [], []>} : vector<8x32xbf16>, vector<32x32xbf16>, vector<8x32xf32> -> vector<8x32xf32>
    %c0_23 = arith.constant 0 : index
    %c0_24 = arith.constant 0 : index
    %44 = vector.load %arg10[%c0_23, %c0_24] : memref<1x32xf32, #tpu.memory_space<vmem>>, vector<1x32xf32>
    %45 = vector.broadcast %44 : vector<1x32xf32> to vector<8x32xf32>
    %46 = arith.addf %43, %45 : vector<8x32xf32>
    %c0_25 = arith.constant 0 : index
    %c0_26 = arith.constant 0 : index
    %c0_27 = arith.constant 0 : index
    %47 = vector.load %arg2[%c0_25, %c0_26, %c0_27] : memref<1x8x8xf32, #tpu.memory_space<vmem>>, vector<1x8x8xf32>
    %48 = vector.shape_cast %47 : vector<1x8x8xf32> to vector<8x8xf32>
    %49 = tpu.iota {dimensions = array<i32: 1>} : vector<1x32xi32>
    %cst_28 = arith.constant 0.000000e+00 : f32
    %50 = vector.broadcast %cst_28 : f32 to vector<8x32xf32>
    %c0_i32 = arith.constant 0 : i32
    %51 = vector.broadcast %c0_i32 : i32 to vector<1x32xi32>
    %52 = arith.cmpi sge, %49, %51 : vector<1x32xi32>
    %c8_i32 = arith.constant 8 : i32
    %53 = vector.broadcast %c8_i32 : i32 to vector<1x32xi32>
    %54 = arith.cmpi slt, %49, %53 : vector<1x32xi32>
    %55 = arith.andi %52, %54 : vector<1x32xi1>
    %cst_29 = arith.constant 0.000000e+00 : f32
    %56 = vector.shape_cast %55 : vector<1x32xi1> to vector<1x32xi1>
    %57 = vector.broadcast %56 : vector<1x32xi1> to vector<8x32xi1>
    %58 = vector.broadcast %cst_29 : f32 to vector<8x32xf32>
    %59 = arith.select %57, %32, %58 : vector<8x32xi1>, vector<8x32xf32>
    %60 = arith.truncf %59 : vector<8x32xf32> to vector<8x32xbf16>
    %61 = arith.truncf %39 : vector<8x32xf32> to vector<8x32xbf16>
    %cst_30 = arith.constant dense<0.000000e+00> : vector<8x8xf32>
    %62 = tpu.matmul %60, %61, %cst_30 {dimension_numbers = #tpu.dot_dimension_numbers<[1], [1], [0], [0], [0, 0, 1, 0], [], []>} : vector<8x32xbf16>, vector<8x32xbf16>, vector<8x8xf32> -> vector<8x8xf32>
    %cst_31 = arith.constant 0.353553385 : f32
    %63 = vector.broadcast %cst_31 : f32 to vector<8x8xf32>
    %64 = arith.mulf %62, %63 : vector<8x8xf32>
    %65 = arith.addf %64, %48 : vector<8x8xf32>
    %cst_32 = arith.constant dense<0xFF800000> : vector<8xf32>
    %66 = vector.multi_reduction <maximumf>, %65, %cst_32 [1] : vector<8x8xf32> to vector<8xf32>
    %67 = vector.shape_cast %66 : vector<8xf32> to vector<8x1xf32>
    %68 = vector.broadcast %67 : vector<8x1xf32> to vector<8x8xf32>
    %69 = arith.subf %65, %68 : vector<8x8xf32>
    %70 = math.exp %69 : vector<8x8xf32>
    %cst_33 = arith.constant dense<0.000000e+00> : vector<8xf32>
    %71 = vector.multi_reduction <add>, %70, %cst_33 [1] : vector<8x8xf32> to vector<8xf32>
    %72 = vector.shape_cast %71 : vector<8xf32> to vector<8x1xf32>
    %73 = tpu.reciprocal %72 {approx = true} : vector<8x1xf32> -> vector<8x1xf32>
    %74 = vector.broadcast %73 : vector<8x1xf32> to vector<8x8xf32>
    %75 = arith.mulf %70, %74 : vector<8x8xf32>
    %cst_34 = arith.constant 0.000000e+00 : f32
    %76 = vector.shape_cast %55 : vector<1x32xi1> to vector<1x32xi1>
    %77 = vector.broadcast %76 : vector<1x32xi1> to vector<8x32xi1>
    %78 = vector.broadcast %cst_34 : f32 to vector<8x32xf32>
    %79 = arith.select %77, %46, %78 : vector<8x32xi1>, vector<8x32xf32>
    %80 = arith.truncf %75 : vector<8x8xf32> to vector<8x8xbf16>
    %81 = arith.truncf %79 : vector<8x32xf32> to vector<8x32xbf16>
    %cst_35 = arith.constant dense<0.000000e+00> : vector<8x32xf32>
    %82 = tpu.matmul %80, %81, %cst_35 {dimension_numbers = #tpu.dot_dimension_numbers<[1], [0], [0], [1], [0, 0, 1, 1], [], []>} : vector<8x8xbf16>, vector<8x32xbf16>, vector<8x32xf32> -> vector<8x32xf32>
    %83 = arith.addf %50, %82 : vector<8x32xf32>
    %c8_i32_36 = arith.constant 8 : i32
    %84 = vector.broadcast %c8_i32_36 : i32 to vector<1x32xi32>
    %85 = arith.cmpi sge, %49, %84 : vector<1x32xi32>
    %c16_i32 = arith.constant 16 : i32
    %86 = vector.broadcast %c16_i32 : i32 to vector<1x32xi32>
    %87 = arith.cmpi slt, %49, %86 : vector<1x32xi32>
    %88 = arith.andi %85, %87 : vector<1x32xi1>
    %cst_37 = arith.constant 0.000000e+00 : f32
    %89 = vector.shape_cast %88 : vector<1x32xi1> to vector<1x32xi1>
    %90 = vector.broadcast %89 : vector<1x32xi1> to vector<8x32xi1>
    %91 = vector.broadcast %cst_37 : f32 to vector<8x32xf32>
    %92 = arith.select %90, %32, %91 : vector<8x32xi1>, vector<8x32xf32>
    %93 = arith.truncf %92 : vector<8x32xf32> to vector<8x32xbf16>
    %94 = arith.truncf %39 : vector<8x32xf32> to vector<8x32xbf16>
    %cst_38 = arith.constant dense<0.000000e+00> : vector<8x8xf32>
    %95 = tpu.matmul %93, %94, %cst_38 {dimension_numbers = #tpu.dot_dimension_numbers<[1], [1], [0], [0], [0, 0, 1, 0], [], []>} : vector<8x32xbf16>, vector<8x32xbf16>, vector<8x8xf32> -> vector<8x8xf32>
    %cst_39 = arith.constant 0.353553385 : f32
    %96 = vector.broadcast %cst_39 : f32 to vector<8x8xf32>
    %97 = arith.mulf %95, %96 : vector<8x8xf32>
    %98 = arith.addf %97, %48 : vector<8x8xf32>
    %cst_40 = arith.constant dense<0xFF800000> : vector<8xf32>
    %99 = vector.multi_reduction <maximumf>, %98, %cst_40 [1] : vector<8x8xf32> to vector<8xf32>
    %100 = vector.shape_cast %99 : vector<8xf32> to vector<8x1xf32>
    %101 = vector.broadcast %100 : vector<8x1xf32> to vector<8x8xf32>
    %102 = arith.subf %98, %101 : vector<8x8xf32>
    %103 = math.exp %102 : vector<8x8xf32>
    %cst_41 = arith.constant dense<0.000000e+00> : vector<8xf32>
    %104 = vector.multi_reduction <add>, %103, %cst_41 [1] : vector<8x8xf32> to vector<8xf32>
    %105 = vector.shape_cast %104 : vector<8xf32> to vector<8x1xf32>
    %106 = tpu.reciprocal %105 {approx = true} : vector<8x1xf32> -> vector<8x1xf32>
    %107 = vector.broadcast %106 : vector<8x1xf32> to vector<8x8xf32>
    %108 = arith.mulf %103, %107 : vector<8x8xf32>
    %cst_42 = arith.constant 0.000000e+00 : f32
    %109 = vector.shape_cast %88 : vector<1x32xi1> to vector<1x32xi1>
    %110 = vector.broadcast %109 : vector<1x32xi1> to vector<8x32xi1>
    %111 = vector.broadcast %cst_42 : f32 to vector<8x32xf32>
    %112 = arith.select %110, %46, %111 : vector<8x32xi1>, vector<8x32xf32>
    %113 = arith.truncf %108 : vector<8x8xf32> to vector<8x8xbf16>
    %114 = arith.truncf %112 : vector<8x32xf32> to vector<8x32xbf16>
    %cst_43 = arith.constant dense<0.000000e+00> : vector<8x32xf32>
    %115 = tpu.matmul %113, %114, %cst_43 {dimension_numbers = #tpu.dot_dimension_numbers<[1], [0], [0], [1], [0, 0, 1, 1], [], []>} : vector<8x8xbf16>, vector<8x32xbf16>, vector<8x32xf32> -> vector<8x32xf32>
    %116 = arith.addf %83, %115 : vector<8x32xf32>
    %c16_i32_44 = arith.constant 16 : i32
    %117 = vector.broadcast %c16_i32_44 : i32 to vector<1x32xi32>
    %118 = arith.cmpi sge, %49, %117 : vector<1x32xi32>
    %c24_i32 = arith.constant 24 : i32
    %119 = vector.broadcast %c24_i32 : i32 to vector<1x32xi32>
    %120 = arith.cmpi slt, %49, %119 : vector<1x32xi32>
    %121 = arith.andi %118, %120 : vector<1x32xi1>
    %cst_45 = arith.constant 0.000000e+00 : f32
    %122 = vector.shape_cast %121 : vector<1x32xi1> to vector<1x32xi1>
    %123 = vector.broadcast %122 : vector<1x32xi1> to vector<8x32xi1>
    %124 = vector.broadcast %cst_45 : f32 to vector<8x32xf32>
    %125 = arith.select %123, %32, %124 : vector<8x32xi1>, vector<8x32xf32>
    %126 = arith.truncf %125 : vector<8x32xf32> to vector<8x32xbf16>
    %127 = arith.truncf %39 : vector<8x32xf32> to vector<8x32xbf16>
    %cst_46 = arith.constant dense<0.000000e+00> : vector<8x8xf32>
    %128 = tpu.matmul %126, %127, %cst_46 {dimension_numbers = #tpu.dot_dimension_numbers<[1], [1], [0], [0], [0, 0, 1, 0], [], []>} : vector<8x32xbf16>, vector<8x32xbf16>, vector<8x8xf32> -> vector<8x8xf32>
    %cst_47 = arith.constant 0.353553385 : f32
    %129 = vector.broadcast %cst_47 : f32 to vector<8x8xf32>
    %130 = arith.mulf %128, %129 : vector<8x8xf32>
    %131 = arith.addf %130, %48 : vector<8x8xf32>
    %cst_48 = arith.constant dense<0xFF800000> : vector<8xf32>
    %132 = vector.multi_reduction <maximumf>, %131, %cst_48 [1] : vector<8x8xf32> to vector<8xf32>
    %133 = vector.shape_cast %132 : vector<8xf32> to vector<8x1xf32>
    %134 = vector.broadcast %133 : vector<8x1xf32> to vector<8x8xf32>
    %135 = arith.subf %131, %134 : vector<8x8xf32>
    %136 = math.exp %135 : vector<8x8xf32>
    %cst_49 = arith.constant dense<0.000000e+00> : vector<8xf32>
    %137 = vector.multi_reduction <add>, %136, %cst_49 [1] : vector<8x8xf32> to vector<8xf32>
    %138 = vector.shape_cast %137 : vector<8xf32> to vector<8x1xf32>
    %139 = tpu.reciprocal %138 {approx = true} : vector<8x1xf32> -> vector<8x1xf32>
    %140 = vector.broadcast %139 : vector<8x1xf32> to vector<8x8xf32>
    %141 = arith.mulf %136, %140 : vector<8x8xf32>
    %cst_50 = arith.constant 0.000000e+00 : f32
    %142 = vector.shape_cast %121 : vector<1x32xi1> to vector<1x32xi1>
    %143 = vector.broadcast %142 : vector<1x32xi1> to vector<8x32xi1>
    %144 = vector.broadcast %cst_50 : f32 to vector<8x32xf32>
    %145 = arith.select %143, %46, %144 : vector<8x32xi1>, vector<8x32xf32>
    %146 = arith.truncf %141 : vector<8x8xf32> to vector<8x8xbf16>
    %147 = arith.truncf %145 : vector<8x32xf32> to vector<8x32xbf16>
    %cst_51 = arith.constant dense<0.000000e+00> : vector<8x32xf32>
    %148 = tpu.matmul %146, %147, %cst_51 {dimension_numbers = #tpu.dot_dimension_numbers<[1], [0], [0], [1], [0, 0, 1, 1], [], []>} : vector<8x8xbf16>, vector<8x32xbf16>, vector<8x32xf32> -> vector<8x32xf32>
    %149 = arith.addf %116, %148 : vector<8x32xf32>
    %c24_i32_52 = arith.constant 24 : i32
    %150 = vector.broadcast %c24_i32_52 : i32 to vector<1x32xi32>
    %151 = arith.cmpi sge, %49, %150 : vector<1x32xi32>
    %c32_i32 = arith.constant 32 : i32
    %152 = vector.broadcast %c32_i32 : i32 to vector<1x32xi32>
    %153 = arith.cmpi slt, %49, %152 : vector<1x32xi32>
    %154 = arith.andi %151, %153 : vector<1x32xi1>
    %cst_53 = arith.constant 0.000000e+00 : f32
    %155 = vector.shape_cast %154 : vector<1x32xi1> to vector<1x32xi1>
    %156 = vector.broadcast %155 : vector<1x32xi1> to vector<8x32xi1>
    %157 = vector.broadcast %cst_53 : f32 to vector<8x32xf32>
    %158 = arith.select %156, %32, %157 : vector<8x32xi1>, vector<8x32xf32>
    %159 = arith.truncf %158 : vector<8x32xf32> to vector<8x32xbf16>
    %160 = arith.truncf %39 : vector<8x32xf32> to vector<8x32xbf16>
    %cst_54 = arith.constant dense<0.000000e+00> : vector<8x8xf32>
    %161 = tpu.matmul %159, %160, %cst_54 {dimension_numbers = #tpu.dot_dimension_numbers<[1], [1], [0], [0], [0, 0, 1, 0], [], []>} : vector<8x32xbf16>, vector<8x32xbf16>, vector<8x8xf32> -> vector<8x8xf32>
    %cst_55 = arith.constant 0.353553385 : f32
    %162 = vector.broadcast %cst_55 : f32 to vector<8x8xf32>
    %163 = arith.mulf %161, %162 : vector<8x8xf32>
    %164 = arith.addf %163, %48 : vector<8x8xf32>
    %cst_56 = arith.constant dense<0xFF800000> : vector<8xf32>
    %165 = vector.multi_reduction <maximumf>, %164, %cst_56 [1] : vector<8x8xf32> to vector<8xf32>
    %166 = vector.shape_cast %165 : vector<8xf32> to vector<8x1xf32>
    %167 = vector.broadcast %166 : vector<8x1xf32> to vector<8x8xf32>
    %168 = arith.subf %164, %167 : vector<8x8xf32>
    %169 = math.exp %168 : vector<8x8xf32>
    %cst_57 = arith.constant dense<0.000000e+00> : vector<8xf32>
    %170 = vector.multi_reduction <add>, %169, %cst_57 [1] : vector<8x8xf32> to vector<8xf32>
    %171 = vector.shape_cast %170 : vector<8xf32> to vector<8x1xf32>
    %172 = tpu.reciprocal %171 {approx = true} : vector<8x1xf32> -> vector<8x1xf32>
    %173 = vector.broadcast %172 : vector<8x1xf32> to vector<8x8xf32>
    %174 = arith.mulf %169, %173 : vector<8x8xf32>
    %cst_58 = arith.constant 0.000000e+00 : f32
    %175 = vector.shape_cast %154 : vector<1x32xi1> to vector<1x32xi1>
    %176 = vector.broadcast %175 : vector<1x32xi1> to vector<8x32xi1>
    %177 = vector.broadcast %cst_58 : f32 to vector<8x32xf32>
    %178 = arith.select %176, %46, %177 : vector<8x32xi1>, vector<8x32xf32>
    %179 = arith.truncf %174 : vector<8x8xf32> to vector<8x8xbf16>
    %180 = arith.truncf %178 : vector<8x32xf32> to vector<8x32xbf16>
    %cst_59 = arith.constant dense<0.000000e+00> : vector<8x32xf32>
    %181 = tpu.matmul %179, %180, %cst_59 {dimension_numbers = #tpu.dot_dimension_numbers<[1], [0], [0], [1], [0, 0, 1, 1], [], []>} : vector<8x8xbf16>, vector<8x32xbf16>, vector<8x32xf32> -> vector<8x32xf32>
    %182 = arith.addf %149, %181 : vector<8x32xf32>
    %c0_60 = arith.constant 0 : index
    %c0_61 = arith.constant 0 : index
    %183 = vector.load %arg11[%c0_60, %c0_61] : memref<32x32xf32, #tpu.memory_space<vmem>>, vector<32x32xf32>
    %184 = arith.truncf %182 : vector<8x32xf32> to vector<8x32xbf16>
    %185 = arith.truncf %183 : vector<32x32xf32> to vector<32x32xbf16>
    %cst_62 = arith.constant dense<0.000000e+00> : vector<8x32xf32>
    %186 = tpu.matmul %184, %185, %cst_62 {dimension_numbers = #tpu.dot_dimension_numbers<[1], [0], [0], [1], [0, 0, 1, 1], [], []>} : vector<8x32xbf16>, vector<32x32xbf16>, vector<8x32xf32> -> vector<8x32xf32>
    %187 = arith.addf %1, %186 : vector<8x32xf32>
    %c0_63 = arith.constant 0 : index
    %c0_64 = arith.constant 0 : index
    %188 = vector.load %arg12[%c0_63, %c0_64] : memref<1x32xf32, #tpu.memory_space<vmem>>, vector<1x32xf32>
    %189 = vector.broadcast %188 : vector<1x32xf32> to vector<8x32xf32>
    %190 = arith.addf %187, %189 : vector<8x32xf32>
    %c0_65 = arith.constant 0 : index
    %c0_66 = arith.constant 0 : index
    %191 = vector.load %arg13[%c0_65, %c0_66] : memref<1x32xf32, #tpu.memory_space<vmem>>, vector<1x32xf32>
    %c0_67 = arith.constant 0 : index
    %c0_68 = arith.constant 0 : index
    %192 = vector.load %arg14[%c0_67, %c0_68] : memref<1x32xf32, #tpu.memory_space<vmem>>, vector<1x32xf32>
    %cst_69 = arith.constant dense<0.000000e+00> : vector<8xf32>
    %193 = vector.multi_reduction <add>, %190, %cst_69 [1] : vector<8x32xf32> to vector<8xf32>
    %194 = vector.shape_cast %193 : vector<8xf32> to vector<8x1xf32>
    %cst_70 = arith.constant 3.200000e+01 : f32
    %195 = vector.broadcast %cst_70 : f32 to vector<8x1xf32>
    %196 = arith.divf %194, %195 : vector<8x1xf32>
    %197 = vector.broadcast %196 : vector<8x1xf32> to vector<8x32xf32>
    %198 = arith.subf %190, %197 : vector<8x32xf32>
    %199 = arith.mulf %198, %198 : vector<8x32xf32>
    %cst_71 = arith.constant dense<0.000000e+00> : vector<8xf32>
    %200 = vector.multi_reduction <add>, %199, %cst_71 [1] : vector<8x32xf32> to vector<8xf32>
    %201 = vector.shape_cast %200 : vector<8xf32> to vector<8x1xf32>
    %cst_72 = arith.constant 3.200000e+01 : f32
    %202 = vector.broadcast %cst_72 : f32 to vector<8x1xf32>
    %203 = arith.divf %201, %202 : vector<8x1xf32>
    %204 = vector.broadcast %196 : vector<8x1xf32> to vector<8x32xf32>
    %205 = arith.subf %190, %204 : vector<8x32xf32>
    %cst_73 = arith.constant 9.99999974E-6 : f32
    %206 = vector.broadcast %cst_73 : f32 to vector<8x1xf32>
    %207 = arith.addf %203, %206 : vector<8x1xf32>
    %208 = math.rsqrt %207 : vector<8x1xf32>
    %209 = vector.broadcast %208 : vector<8x1xf32> to vector<8x32xf32>
    %210 = arith.mulf %205, %209 : vector<8x32xf32>
    %211 = vector.broadcast %191 : vector<1x32xf32> to vector<8x32xf32>
    %212 = arith.mulf %210, %211 : vector<8x32xf32>
    %213 = vector.broadcast %192 : vector<1x32xf32> to vector<8x32xf32>
    %214 = arith.addf %212, %213 : vector<8x32xf32>
    %c0_74 = arith.constant 0 : index
    %c0_75 = arith.constant 0 : index
    %215 = vector.load %arg15[%c0_74, %c0_75] : memref<32x64xf32, #tpu.memory_space<vmem>>, vector<32x64xf32>
    %216 = arith.truncf %214 : vector<8x32xf32> to vector<8x32xbf16>
    %217 = arith.truncf %215 : vector<32x64xf32> to vector<32x64xbf16>
    %cst_76 = arith.constant dense<0.000000e+00> : vector<8x64xf32>
    %218 = tpu.matmul %216, %217, %cst_76 {dimension_numbers = #tpu.dot_dimension_numbers<[1], [0], [0], [1], [0, 0, 1, 1], [], []>} : vector<8x32xbf16>, vector<32x64xbf16>, vector<8x64xf32> -> vector<8x64xf32>
    %c0_77 = arith.constant 0 : index
    %c0_78 = arith.constant 0 : index
    %219 = vector.load %arg16[%c0_77, %c0_78] : memref<1x64xf32, #tpu.memory_space<vmem>>, vector<1x64xf32>
    %220 = vector.broadcast %219 : vector<1x64xf32> to vector<8x64xf32>
    %221 = arith.addf %218, %220 : vector<8x64xf32>
    %222 = arith.mulf %221, %221 : vector<8x64xf32>
    %223 = arith.mulf %221, %222 : vector<8x64xf32>
    %cst_79 = arith.constant 4.471500e-02 : f32
    %224 = vector.broadcast %cst_79 : f32 to vector<8x64xf32>
    %225 = arith.mulf %224, %223 : vector<8x64xf32>
    %226 = arith.addf %221, %225 : vector<8x64xf32>
    %cst_80 = arith.constant 0.797884583 : f32
    %227 = vector.broadcast %cst_80 : f32 to vector<8x64xf32>
    %228 = arith.mulf %227, %226 : vector<8x64xf32>
    %229 = math.tanh %228 : vector<8x64xf32>
    %cst_81 = arith.constant 1.000000e+00 : f32
    %230 = vector.broadcast %cst_81 : f32 to vector<8x64xf32>
    %231 = arith.addf %230, %229 : vector<8x64xf32>
    %cst_82 = arith.constant 5.000000e-01 : f32
    %232 = vector.broadcast %cst_82 : f32 to vector<8x64xf32>
    %233 = arith.mulf %232, %231 : vector<8x64xf32>
    %234 = arith.mulf %221, %233 : vector<8x64xf32>
    %c0_83 = arith.constant 0 : index
    %c0_84 = arith.constant 0 : index
    %235 = vector.load %arg17[%c0_83, %c0_84] : memref<64x32xf32, #tpu.memory_space<vmem>>, vector<64x32xf32>
    %236 = arith.truncf %234 : vector<8x64xf32> to vector<8x64xbf16>
    %237 = arith.truncf %235 : vector<64x32xf32> to vector<64x32xbf16>
    %cst_85 = arith.constant dense<0.000000e+00> : vector<8x32xf32>
    %238 = tpu.matmul %236, %237, %cst_85 {dimension_numbers = #tpu.dot_dimension_numbers<[1], [0], [0], [1], [0, 0, 1, 1], [], []>} : vector<8x64xbf16>, vector<64x32xbf16>, vector<8x32xf32> -> vector<8x32xf32>
    %239 = arith.addf %190, %238 : vector<8x32xf32>
    %c0_86 = arith.constant 0 : index
    %c0_87 = arith.constant 0 : index
    %240 = vector.load %arg18[%c0_86, %c0_87] : memref<1x32xf32, #tpu.memory_space<vmem>>, vector<1x32xf32>
    %241 = vector.broadcast %240 : vector<1x32xf32> to vector<8x32xf32>
    %242 = arith.addf %239, %241 : vector<8x32xf32>
    %c0_88 = arith.constant 0 : index
    %c0_89 = arith.constant 0 : index
    %c0_90 = arith.constant 0 : index
    %243 = vector.load %arg19[%c0_88, %c0_89, %c0_90] : memref<1x8x32xf32, #tpu.memory_space<vmem>>, vector<1x8x32xf32>
    %244 = vector.shape_cast %243 : vector<1x8x32xf32> to vector<8x32xf32>
    %245 = vector.shape_cast %242 : vector<8x32xf32> to vector<1x8x32xf32>
    tpu.vector_store %arg19[%c0_88, %c0_89, %c0_90], %245 {strides = array<i32>} : memref<1x8x32xf32, #tpu.memory_space<vmem>>, vector<1x8x32xf32>,
    return
  }
  func.func @transform_0(%arg0: i32) -> (i32, i32, i32) {
    %c0_i32 = arith.constant 0 : i32
    %c0_i32_0 = arith.constant 0 : i32
    %c0_i32_1 = arith.constant 0 : i32
    return %arg0, %c0_i32, %c0_i32_0 : i32, i32, i32
  }
  func.func @transform_1(%arg0: i32) -> (i32, i32, i32) {
    %c0_i32 = arith.constant 0 : i32
    %c0_i32_0 = arith.constant 0 : i32
    %c0_i32_1 = arith.constant 0 : i32
    return %arg0, %c0_i32, %c0_i32_0 : i32, i32, i32
  }
  func.func @transform_2(%arg0: i32) -> (i32, i32) {
    %c0_i32 = arith.constant 0 : i32
    %c0_i32_0 = arith.constant 0 : i32
    %c0_i32_1 = arith.constant 0 : i32
    return %c0_i32, %c0_i32_0 : i32, i32
  }
  func.func @transform_3(%arg0: i32) -> (i32, i32) {
    %c0_i32 = arith.constant 0 : i32
    %c0_i32_0 = arith.constant 0 : i32
    %c0_i32_1 = arith.constant 0 : i32
    return %c0_i32, %c0_i32_0 : i32, i32
  }
  func.func @transform_4(%arg0: i32) -> (i32, i32) {
    %c0_i32 = arith.constant 0 : i32
    %c0_i32_0 = arith.constant 0 : i32
    %c0_i32_1 = arith.constant 0 : i32
    return %c0_i32, %c0_i32_0 : i32, i32
  }
  func.func @transform_5(%arg0: i32) -> (i32, i32) {
    %c0_i32 = arith.constant 0 : i32
    %c0_i32_0 = arith.constant 0 : i32
    %c0_i32_1 = arith.constant 0 : i32
    return %c0_i32, %c0_i32_0 : i32, i32
  }
  func.func @transform_6(%arg0: i32) -> (i32, i32) {
    %c0_i32 = arith.constant 0 : i32
    %c0_i32_0 = arith.constant 0 : i32
    %c0_i32_1 = arith.constant 0 : i32
    return %c0_i32, %c0_i32_0 : i32, i32
  }
  func.func @transform_7(%arg0: i32) -> (i32, i32) {
    %c0_i32 = arith.constant 0 : i32
    %c0_i32_0 = arith.constant 0 : i32
    %c0_i32_1 = arith.constant 0 : i32
    return %c0_i32, %c0_i32_0 : i32, i32
  }
  func.func @transform_8(%arg0: i32) -> (i32, i32) {
    %c0_i32 = arith.constant 0 : i32
    %c0_i32_0 = arith.constant 0 : i32
    %c0_i32_1 = arith.constant 0 : i32
    return %c0_i32, %c0_i32_0 : i32, i32
  }
  func.func @transform_9(%arg0: i32) -> (i32, i32) {
    %c0_i32 = arith.constant 0 : i32
    %c0_i32_0 = arith.constant 0 : i32
    %c0_i32_1 = arith.constant 0 : i32
    return %c0_i32, %c0_i32_0 : i32, i32
  }
  func.func @transform_10(%arg0: i32) -> (i32, i32) {
    %c0_i32 = arith.constant 0 : i32
    %c0_i32_0 = arith.constant 0 : i32
    %c0_i32_1 = arith.constant 0 : i32
    return %c0_i32, %c0_i32_0 : i32, i32
  }
  func.func @transform_11(%arg0: i32) -> (i32, i32) {
    %c0_i32 = arith.constant 0 : i32
    %c0_i32_0 = arith.constant 0 : i32
    %c0_i32_1 = arith.constant 0 : i32
    return %c0_i32, %c0_i32_0 : i32, i32
  }
  func.func @transform_12(%arg0: i32) -> (i32, i32) {
    %c0_i32 = arith.constant 0 : i32
    %c0_i32_0 = arith.constant 0 : i32
    %c0_i32_1 = arith.constant 0 : i32
    return %c0_i32, %c0_i32_0 : i32, i32
  }
  func.func @transform_13(%arg0: i32) -> (i32, i32) {
    %c0_i32 = arith.constant 0 : i32
    %c0_i32_0 = arith.constant 0 : i32
    %c0_i32_1 = arith.constant 0 : i32
    return %c0_i32, %c0_i32_0 : i32, i32
  }
  func.func @transform_14(%arg0: i32) -> (i32, i32) {
    %c0_i32 = arith.constant 0 : i32
    %c0_i32_0 = arith.constant 0 : i32
    %c0_i32_1 = arith.constant 0 : i32
    return %c0_i32, %c0_i32_0 : i32, i32
  }
  func.func @transform_15(%arg0: i32) -> (i32, i32) {
    %c0_i32 = arith.constant 0 : i32
    %c0_i32_0 = arith.constant 0 : i32
    %c0_i32_1 = arith.constant 0 : i32
    return %c0_i32, %c0_i32_0 : i32, i32
  }
  func.func @transform_16(%arg0: i32) -> (i32, i32) {
    %c0_i32 = arith.constant 0 : i32
    %c0_i32_0 = arith.constant 0 : i32
    %c0_i32_1 = arith.constant 0 : i32
    return %c0_i32, %c0_i32_0 : i32, i32
  }
  func.func @transform_17(%arg0: i32) -> (i32, i32) {
    %c0_i32 = arith.constant 0 : i32
    %c0_i32_0 = arith.constant 0 : i32
    %c0_i32_1 = arith.constant 0 : i32
    return %c0_i32, %c0_i32_0 : i32, i32
  }
  func.func @transform_18(%arg0: i32) -> (i32, i32, i32) {
    %c0_i32 = arith.constant 0 : i32
    %c0_i32_0 = arith.constant 0 : i32
    %c0_i32_1 = arith.constant 0 : i32
    return %arg0, %c0_i32, %c0_i32_0 : i32, i32, i32
  }
}

module attributes {stable_mosaic.version = 11 : i64} {
  func.func @_ln_head_kernel(%arg0: i32, %arg1: memref<16x32xf32, #tpu.memory_space<vmem>>, %arg2: memref<1x32xf32, #tpu.memory_space<vmem>>, %arg3: memref<1x32xf32, #tpu.memory_space<vmem>>, %arg4: memref<32x128xf32, #tpu.memory_space<vmem>>, %arg5: memref<1x128xf32, #tpu.memory_space<vmem>>, %arg6: memref<16x128xf32, #tpu.memory_space<vmem>>) attributes {dimension_semantics = [#tpu.dimension_semantics<arbitrary>], iteration_bounds = array<i64: 1>, scalar_prefetch = 0 : i64, scratch_operands = 0 : i64, tpu.core_type = #tpu.core_type<tc>, window_params = [{pipeline_mode = #tpu.pipeline_mode<synchronous>, transform_indices = @transform_0, window_bounds = array<i64: 16, 32>}, {pipeline_mode = #tpu.pipeline_mode<synchronous>, transform_indices = @transform_1, window_bounds = array<i64: 1, 32>}, {pipeline_mode = #tpu.pipeline_mode<synchronous>, transform_indices = @transform_2, window_bounds = array<i64: 1, 32>}, {pipeline_mode = #tpu.pipeline_mode<synchronous>, transform_indices = @transform_3, window_bounds = array<i64: 32, 128>}, {pipeline_mode = #tpu.pipeline_mode<synchronous>, transform_indices = @transform_4, window_bounds = array<i64: 1, 128>}, {pipeline_mode = #tpu.pipeline_mode<synchronous>, transform_indices = @transform_5, window_bounds = array<i64: 16, 128>}]} {
    %c0 = arith.constant 0 : index
    %c0_0 = arith.constant 0 : index
    %0 = vector.load %arg1[%c0, %c0_0] : memref<16x32xf32, #tpu.memory_space<vmem>>, vector<16x32xf32>
    %c0_1 = arith.constant 0 : index
    %c0_2 = arith.constant 0 : index
    %1 = vector.load %arg2[%c0_1, %c0_2] : memref<1x32xf32, #tpu.memory_space<vmem>>, vector<1x32xf32>
    %c0_3 = arith.constant 0 : index
    %c0_4 = arith.constant 0 : index
    %2 = vector.load %arg3[%c0_3, %c0_4] : memref<1x32xf32, #tpu.memory_space<vmem>>, vector<1x32xf32>
    %cst = arith.constant dense<0.000000e+00> : vector<16xf32>
    %3 = vector.multi_reduction <add>, %0, %cst [1] : vector<16x32xf32> to vector<16xf32>
    %4 = vector.shape_cast %3 : vector<16xf32> to vector<16x1xf32>
    %cst_5 = arith.constant 3.200000e+01 : f32
    %5 = vector.broadcast %cst_5 : f32 to vector<16x1xf32>
    %6 = arith.divf %4, %5 : vector<16x1xf32>
    %7 = vector.broadcast %6 : vector<16x1xf32> to vector<16x32xf32>
    %8 = arith.subf %0, %7 : vector<16x32xf32>
    %9 = arith.mulf %8, %8 : vector<16x32xf32>
    %cst_6 = arith.constant dense<0.000000e+00> : vector<16xf32>
    %10 = vector.multi_reduction <add>, %9, %cst_6 [1] : vector<16x32xf32> to vector<16xf32>
    %11 = vector.shape_cast %10 : vector<16xf32> to vector<16x1xf32>
    %cst_7 = arith.constant 3.200000e+01 : f32
    %12 = vector.broadcast %cst_7 : f32 to vector<16x1xf32>
    %13 = arith.divf %11, %12 : vector<16x1xf32>
    %14 = vector.broadcast %6 : vector<16x1xf32> to vector<16x32xf32>
    %15 = arith.subf %0, %14 : vector<16x32xf32>
    %cst_8 = arith.constant 9.99999974E-6 : f32
    %16 = vector.broadcast %cst_8 : f32 to vector<16x1xf32>
    %17 = arith.addf %13, %16 : vector<16x1xf32>
    %18 = math.rsqrt %17 : vector<16x1xf32>
    %19 = vector.broadcast %18 : vector<16x1xf32> to vector<16x32xf32>
    %20 = arith.mulf %15, %19 : vector<16x32xf32>
    %21 = vector.broadcast %1 : vector<1x32xf32> to vector<16x32xf32>
    %22 = arith.mulf %20, %21 : vector<16x32xf32>
    %23 = vector.broadcast %2 : vector<1x32xf32> to vector<16x32xf32>
    %24 = arith.addf %22, %23 : vector<16x32xf32>
    %c0_9 = arith.constant 0 : index
    %c0_10 = arith.constant 0 : index
    %25 = vector.load %arg4[%c0_9, %c0_10] : memref<32x128xf32, #tpu.memory_space<vmem>>, vector<32x128xf32>
    %26 = arith.truncf %24 : vector<16x32xf32> to vector<16x32xbf16>
    %27 = arith.truncf %25 : vector<32x128xf32> to vector<32x128xbf16>
    %cst_11 = arith.constant dense<0.000000e+00> : vector<16x128xf32>
    %28 = tpu.matmul %26, %27, %cst_11 {dimension_numbers = #tpu.dot_dimension_numbers<[1], [0], [0], [1], [0, 0, 1, 1], [], []>} : vector<16x32xbf16>, vector<32x128xbf16>, vector<16x128xf32> -> vector<16x128xf32>
    %c0_12 = arith.constant 0 : index
    %c0_13 = arith.constant 0 : index
    %29 = vector.load %arg5[%c0_12, %c0_13] : memref<1x128xf32, #tpu.memory_space<vmem>>, vector<1x128xf32>
    %30 = vector.broadcast %29 : vector<1x128xf32> to vector<16x128xf32>
    %31 = arith.addf %28, %30 : vector<16x128xf32>
    %c0_14 = arith.constant 0 : index
    %c0_15 = arith.constant 0 : index
    %32 = vector.load %arg6[%c0_14, %c0_15] : memref<16x128xf32, #tpu.memory_space<vmem>>, vector<16x128xf32>
    tpu.vector_store %arg6[%c0_14, %c0_15], %31 {strides = array<i32>} : memref<16x128xf32, #tpu.memory_space<vmem>>, vector<16x128xf32>,
    return
  }
  func.func @transform_0(%arg0: i32) -> (i32, i32) {
    %c0_i32 = arith.constant 0 : i32
    %c0_i32_0 = arith.constant 0 : i32
    %c0_i32_1 = arith.constant 0 : i32
    return %c0_i32, %c0_i32_0 : i32, i32
  }
  func.func @transform_1(%arg0: i32) -> (i32, i32) {
    %c0_i32 = arith.constant 0 : i32
    %c0_i32_0 = arith.constant 0 : i32
    %c0_i32_1 = arith.constant 0 : i32
    return %c0_i32, %c0_i32_0 : i32, i32
  }
  func.func @transform_2(%arg0: i32) -> (i32, i32) {
    %c0_i32 = arith.constant 0 : i32
    %c0_i32_0 = arith.constant 0 : i32
    %c0_i32_1 = arith.constant 0 : i32
    return %c0_i32, %c0_i32_0 : i32, i32
  }
  func.func @transform_3(%arg0: i32) -> (i32, i32) {
    %c0_i32 = arith.constant 0 : i32
    %c0_i32_0 = arith.constant 0 : i32
    %c0_i32_1 = arith.constant 0 : i32
    return %c0_i32, %c0_i32_0 : i32, i32
  }
  func.func @transform_4(%arg0: i32) -> (i32, i32) {
    %c0_i32 = arith.constant 0 : i32
    %c0_i32_0 = arith.constant 0 : i32
    %c0_i32_1 = arith.constant 0 : i32
    return %c0_i32, %c0_i32_0 : i32, i32
  }
  func.func @transform_5(%arg0: i32) -> (i32, i32) {
    %c0_i32 = arith.constant 0 : i32
    %c0_i32_0 = arith.constant 0 : i32
    %c0_i32_1 = arith.constant 0 : i32
    return %c0_i32, %c0_i32_0 : i32, i32
  }
}

</mosaic_0001>

<llo_original>
// kernel: flamingo_forward.8
$region0: #{flamingo_forward.8}
  #allocation0 [shape = 'u32[]', space=smem, size = 0x4, offset = 0x4, fixed_abs, tag = 'smem constant byte address 0x4 - core index']
  #allocation1 [shape = 'u32[144,128]{1,0:T(1,128)}', space=vmem, size = 0x12000, scoped, tag = 'internal scratch']
  %s0 = inlined_call_operand.vmem [shape: f32[2,8,32], index: 0, kind: input, shape index: {}]
  %s1 = inlined_call_operand.vmem [shape: f32[2,12,32], index: 1, kind: input, shape index: {}]
  %s2 = inlined_call_operand.vmem [shape: f32[2,8,12], index: 2, kind: input, shape index: {}]
  %s3 = inlined_call_operand.vmem [shape: f32[2,8,32], index: 3, kind: input, shape index: {}]
  %s4 = inlined_call_operand.vmem [shape: f32[1,32], index: 4, kind: input, shape index: {}]
  %s5 = inlined_call_operand.vmem [shape: f32[1,32], index: 5, kind: input, shape index: {}]
  %s6 = inlined_call_operand.vmem [shape: f32[1,32], index: 6, kind: input, shape index: {}]
  %s7 = inlined_call_operand.vmem [shape: f32[1,32], index: 7, kind: input, shape index: {}]
  %s8 = inlined_call_operand.vmem [shape: f32[1,32], index: 8, kind: input, shape index: {}]
  %s9 = inlined_call_operand.vmem [shape: f32[32,32], index: 9, kind: input, shape index: {}]
  %s10 = inlined_call_operand.vmem [shape: f32[1,32], index: 10, kind: input, shape index: {}]
  %s11 = inlined_call_operand.vmem [shape: f32[32,32], index: 11, kind: input, shape index: {}]
  %s12 = inlined_call_operand.vmem [shape: f32[1,32], index: 12, kind: input, shape index: {}]
  %s13 = inlined_call_operand.vmem [shape: f32[32,32], index: 13, kind: input, shape index: {}]
  %s14 = inlined_call_operand.vmem [shape: f32[1,32], index: 14, kind: input, shape index: {}]
  %s15 = inlined_call_operand.vmem [shape: f32[32,32], index: 15, kind: input, shape index: {}]
  %s16 = inlined_call_operand.vmem [shape: f32[1,32], index: 16, kind: input, shape index: {}]
  %s17 = inlined_call_operand.vmem [shape: f32[1,32], index: 17, kind: input, shape index: {}]
  %s18 = inlined_call_operand.vmem [shape: f32[1,32], index: 18, kind: input, shape index: {}]
  %s19 = inlined_call_operand.vmem [shape: f32[32,64], index: 19, kind: input, shape index: {}]
  %s20 = inlined_call_operand.vmem [shape: f32[1,64], index: 20, kind: input, shape index: {}]
  %s21 = inlined_call_operand.vmem [shape: f32[64,32], index: 21, kind: input, shape index: {}]
  %s22 = inlined_call_operand.vmem [shape: f32[1,32], index: 22, kind: input, shape index: {}]
  %s23 = inlined_call_operand.vmem [shape: f32[1,32], index: 23, kind: input, shape index: {}]
  %s24 = inlined_call_operand.vmem [shape: f32[1,32], index: 24, kind: input, shape index: {}]
  %s25 = inlined_call_operand.vmem [shape: f32[2,8,32], index: 25, kind: output, shape index: {}]
  %s26 = sld [smem:[#allocation0]]
  $region133: #{flamingo_forward.8} parent=0
    _
  %s28 = ssub.s32 1, %s26
  %s29 = scalar_select 0, %s28, %s26
  loop: start=0, step=1, limit=4
  $region2: #{flamingo_forward.8} parent=0 // loop_pre_header
    _
  $region3: #{flamingo_forward.8} parent=0 // loop_header
    %s31 = sphi 0, %s35
    %p32 = scmp.ge.s32.totalorder %s31, 4
    %s41 = sphi 0, %s43
    %s44 = sphi 0, %s41
    %s45 = sphi 0, %s44
    %s61 = sphi 0, %s45
    %s67 = sphi 0, %s69
    %s70 = sphi 0, %s67
    %s71 = sphi 0, %s70
    %s87 = sphi 0, %s71
    %s93 = sphi 0, %s95
    %s96 = sphi 0, %s93
    %s97 = sphi 0, %s96
    %s113 = sphi 0, %s97
    %s119 = sphi 0, %s121
    %s122 = sphi 0, %s119
    %s123 = sphi 0, %s122
    %s139 = sphi 0, %s123
    %s143 = sphi 0, %s143
    %s145 = sphi 0, %s143
    %s146 = sphi 0, %s145
    %s160 = sphi 0, %s146
    %s164 = sphi 0, %s164
    %s166 = sphi 0, %s164
    %s167 = sphi 0, %s166
    %s181 = sphi 0, %s167
    %s185 = sphi 0, %s185
    %s187 = sphi 0, %s185
    %s188 = sphi 0, %s187
    %s202 = sphi 0, %s188
    %s206 = sphi 0, %s206
    %s208 = sphi 0, %s206
    %s209 = sphi 0, %s208
    %s223 = sphi 0, %s209
    %s227 = sphi 0, %s227
    %s229 = sphi 0, %s227
    %s230 = sphi 0, %s229
    %s244 = sphi 0, %s230
    %s248 = sphi 0, %s248
    %s250 = sphi 0, %s248
    %s251 = sphi 0, %s250
    %s265 = sphi 0, %s251
    %s269 = sphi 0, %s269
    %s271 = sphi 0, %s269
    %s272 = sphi 0, %s271
    %s286 = sphi 0, %s272
    %s290 = sphi 0, %s290
    %s292 = sphi 0, %s290
    %s293 = sphi 0, %s292
    %s307 = sphi 0, %s293
    %s311 = sphi 0, %s311
    %s313 = sphi 0, %s311
    %s314 = sphi 0, %s313
    %s328 = sphi 0, %s314
    %s332 = sphi 0, %s332
    %s334 = sphi 0, %s332
    %s335 = sphi 0, %s334
    %s349 = sphi 0, %s335
    %s353 = sphi 0, %s353
    %s355 = sphi 0, %s353
    %s356 = sphi 0, %s355
    %s370 = sphi 0, %s356
    %s374 = sphi 0, %s374
    %s376 = sphi 0, %s374
    %s377 = sphi 0, %s376
    %s391 = sphi 0, %s377
    %s395 = sphi 0, %s395
    %s397 = sphi 0, %s395
    %s398 = sphi 0, %s397
    %s412 = sphi 0, %s398
    %s416 = sphi 0, %s416
    %s418 = sphi 0, %s416
    %s419 = sphi 0, %s418
    %s433 = sphi 0, %s419
    %s437 = sphi 0, %s437
    %s439 = sphi 0, %s437
    %s440 = sphi 0, %s439
    %s454 = sphi 0, %s440
    %s458 = sphi 0, %s458
    %s460 = sphi 0, %s458
    %s461 = sphi 0, %s460
    %s475 = sphi 0, %s461
    %s479 = sphi 0, %s479
    %s481 = sphi 0, %s479
    %s482 = sphi 0, %s481
    %s496 = sphi 0, %s482
    %s500 = sphi 0, %s500
    %s502 = sphi 0, %s500
    %s503 = sphi 0, %s502
    %s517 = sphi 0, %s503
    %s521 = sphi 0, %s521
    %s523 = sphi 0, %s521
    %s524 = sphi 0, %s523
    %s538 = sphi 0, %s524
    %s542 = sphi 0, %s542
    %s544 = sphi 0, %s542
    %s545 = sphi 0, %s544
    %s559 = sphi 0, %s545
    %s563 = sphi 0, %s563
    %s565 = sphi 0, %s563
    %s566 = sphi 0, %s565
    %s580 = sphi 0, %s566
    %s586 = sphi 0, %s588
    %s589 = sphi 0, %s586
    %s590 = sphi 0, %s589
    %s606 = sphi 0, %s590
  $region4: #{flamingo_forward.8} parent=0 // loop_header_branch
    %34 = sbr.rel (%p32) target = $region8
  $region5: #{flamingo_forward.8} parent=0 // loop_body
    %s36 = ssub.s32 %s31, 1
    %s37 = ssub.s32 %s31, 2
    %s38 = sadd.s32 %s31, 1
    %s39 = ssub.s32 %s31, %s38
    %p40 = scmp.eq.s32.totalorder %s39, 0
    %s42 = sadd.s32 %s41, 1
    %s43 = scalar_select %p40, %s41, %s42
    %p46 = pneg %p40
    %p47 = scmp.eq.s32.totalorder %s31, 1
    %p48 = por %p46, %p47
    %p49 = scmp.ne.s32.totalorder %s41, %s44
    %p50 = scmp.eq.s32.totalorder %s31, 0
    %p51 = por %p49, %p50
    %p52 = scmp.ne.s32.totalorder %s41, %s44
    %p53 = scmp.eq.s32.totalorder %s36, 1
    %p54 = por %p52, %p53
    %p55 = scmp.ne.s32.totalorder %s44, %s45
    %p56 = scmp.eq.s32.totalorder %s36, 0
    %p57 = por %p55, %p56
    %p58 = scmp.ne.s32.totalorder %s44, %s45
    %p59 = scmp.eq.s32.totalorder %s37, 1
    %p60 = por %p58, %p59
    %p62 = scmp.ne.s32.totalorder %s45, %s61
    %p63 = scmp.eq.s32.totalorder %s37, 0
    %p64 = por %p62, %p63
    %s65 = ssub.s32 %s31, %s38
    %p66 = scmp.eq.s32.totalorder %s65, 0
    %s68 = sadd.s32 %s67, 1
    %s69 = scalar_select %p66, %s67, %s68
    %p72 = pneg %p66
    %p73 = scmp.eq.s32.totalorder %s31, 1
    %p74 = por %p72, %p73
    %p75 = scmp.ne.s32.totalorder %s67, %s70
    %p76 = scmp.eq.s32.totalorder %s31, 0
    %p77 = por %p75, %p76
    %p78 = scmp.ne.s32.totalorder %s67, %s70
    %p79 = scmp.eq.s32.totalorder %s36, 1
    %p80 = por %p78, %p79
    %p81 = scmp.ne.s32.totalorder %s70, %s71
    %p82 = scmp.eq.s32.totalorder %s36, 0
    %p83 = por %p81, %p82
    %p84 = scmp.ne.s32.totalorder %s70, %s71
    %p85 = scmp.eq.s32.totalorder %s37, 1
    %p86 = por %p84, %p85
    %p88 = scmp.ne.s32.totalorder %s71, %s87
    %p89 = scmp.eq.s32.totalorder %s37, 0
    %p90 = por %p88, %p89
    %s91 = ssub.s32 %s31, %s38
    %p92 = scmp.eq.s32.totalorder %s91, 0
    %s94 = sadd.s32 %s93, 1
    %s95 = scalar_select %p92, %s93, %s94
    %p98 = pneg %p92
    %p99 = scmp.eq.s32.totalorder %s31, 1
    %p100 = por %p98, %p99
    %p101 = scmp.ne.s32.totalorder %s93, %s96
    %p102 = scmp.eq.s32.totalorder %s31, 0
    %p103 = por %p101, %p102
    %p104 = scmp.ne.s32.totalorder %s93, %s96
    %p105 = scmp.eq.s32.totalorder %s36, 1
    %p106 = por %p104, %p105
    %p107 = scmp.ne.s32.totalorder %s96, %s97
    %p108 = scmp.eq.s32.totalorder %s36, 0
    %p109 = por %p107, %p108
    %p110 = scmp.ne.s32.totalorder %s96, %s97
    %p111 = scmp.eq.s32.totalorder %s37, 1
    %p112 = por %p110, %p111
    %p114 = scmp.ne.s32.totalorder %s97, %s113
    %p115 = scmp.eq.s32.totalorder %s37, 0
    %p116 = por %p114, %p115
    %s117 = ssub.s32 %s31, %s38
    %p118 = scmp.eq.s32.totalorder %s117, 0
    %s120 = sadd.s32 %s119, 1
    %s121 = scalar_select %p118, %s119, %s120
    %p124 = pneg %p118
    %p125 = scmp.eq.s32.totalorder %s31, 1
    %p126 = por %p124, %p125
    %p127 = scmp.ne.s32.totalorder %s119, %s122
    %p128 = scmp.eq.s32.totalorder %s31, 0
    %p129 = por %p127, %p128
    %p130 = scmp.ne.s32.totalorder %s119, %s122
    %p131 = scmp.eq.s32.totalorder %s36, 1
    %p132 = por %p130, %p131
    %p133 = scmp.ne.s32.totalorder %s122, %s123
    %p134 = scmp.eq.s32.totalorder %s36, 0
    %p135 = por %p133, %p134
    %p136 = scmp.ne.s32.totalorder %s122, %s123
    %p137 = scmp.eq.s32.totalorder %s37, 1
    %p138 = por %p136, %p137
    %p140 = scmp.ne.s32.totalorder %s123, %s139
    %p141 = scmp.eq.s32.totalorder %s37, 0
    %p142 = por %p140, %p141
    %s144 = sadd.s32 %s143, 1
    %p147 = scmp.eq.s32.totalorder %s31, 1
    %p148 = scmp.ne.s32.totalorder %s143, %s145
    %p149 = scmp.eq.s32.totalorder %s31, 0
    %p150 = por %p148, %p149
    %p151 = scmp.ne.s32.totalorder %s143, %s145
    %p152 = scmp.eq.s32.totalorder %s36, 1
    %p153 = por %p151, %p152
    %p154 = scmp.ne.s32.totalorder %s145, %s146
    %p155 = scmp.eq.s32.totalorder %s36, 0
    %p156 = por %p154, %p155
    %p157 = scmp.ne.s32.totalorder %s145, %s146
    %p158 = scmp.eq.s32.totalorder %s37, 1
    %p159 = por %p157, %p158
    %p161 = scmp.ne.s32.totalorder %s146, %s160
    %p162 = scmp.eq.s32.totalorder %s37, 0
    %p163 = por %p161, %p162
    %s165 = sadd.s32 %s164, 1
    %p168 = scmp.eq.s32.totalorder %s31, 1
    %p169 = scmp.ne.s32.totalorder %s164, %s166
    %p170 = scmp.eq.s32.totalorder %s31, 0
    %p171 = por %p169, %p170
    %p172 = scmp.ne.s32.totalorder %s164, %s166
    %p173 = scmp.eq.s32.totalorder %s36, 1
    %p174 = por %p172, %p173
    %p175 = scmp.ne.s32.totalorder %s166, %s167
    %p176 = scmp.eq.s32.totalorder %s36, 0
    %p177 = por %p175, %p176
    %p178 = scmp.ne.s32.totalorder %s166, %s167
    %p179 = scmp.eq.s32.totalorder %s37, 1
    %p180 = por %p178, %p179
    %p182 = scmp.ne.s32.totalorder %s167, %s181
    %p183 = scmp.eq.s32.totalorder %s37, 0
    %p184 = por %p182, %p183
    %s186 = sadd.s32 %s185, 1
    %p189 = scmp.eq.s32.totalorder %s31, 1
    %p190 = scmp.ne.s32.totalorder %s185, %s187
    %p191 = scmp.eq.s32.totalorder %s31, 0
    %p192 = por %p190, %p191
    %p193 = scmp.ne.s32.totalorder %s185, %s187
    %p194 = scmp.eq.s32.totalorder %s36, 1
    %p195 = por %p193, %p194
    %p196 = scmp.ne.s32.totalorder %s187, %s188
    %p197 = scmp.eq.s32.totalorder %s36, 0
    %p198 = por %p196, %p197
    %p199 = scmp.ne.s32.totalorder %s187, %s188
    %p200 = scmp.eq.s32.totalorder %s37, 1
    %p201 = por %p199, %p200
    %p203 = scmp.ne.s32.totalorder %s188, %s202
    %p204 = scmp.eq.s32.totalorder %s37, 0
    %p205 = por %p203, %p204
    %s207 = sadd.s32 %s206, 1
    %p210 = scmp.eq.s32.totalorder %s31, 1
    %p211 = scmp.ne.s32.totalorder %s206, %s208
    %p212 = scmp.eq.s32.totalorder %s31, 0
    %p213 = por %p211, %p212
    %p214 = scmp.ne.s32.totalorder %s206, %s208
    %p215 = scmp.eq.s32.totalorder %s36, 1
    %p216 = por %p214, %p215
    %p217 = scmp.ne.s32.totalorder %s208, %s209
    %p218 = scmp.eq.s32.totalorder %s36, 0
    %p219 = por %p217, %p218
    %p220 = scmp.ne.s32.totalorder %s208, %s209
    %p221 = scmp.eq.s32.totalorder %s37, 1
    %p222 = por %p220, %p221
    %p224 = scmp.ne.s32.totalorder %s209, %s223
    %p225 = scmp.eq.s32.totalorder %s37, 0
    %p226 = por %p224, %p225
    %s228 = sadd.s32 %s227, 1
    %p231 = scmp.eq.s32.totalorder %s31, 1
    %p232 = scmp.ne.s32.totalorder %s227, %s229
    %p233 = scmp.eq.s32.totalorder %s31, 0
    %p234 = por %p232, %p233
    %p235 = scmp.ne.s32.totalorder %s227, %s229
    %p236 = scmp.eq.s32.totalorder %s36, 1
    %p237 = por %p235, %p236
    %p238 = scmp.ne.s32.totalorder %s229, %s230
    %p239 = scmp.eq.s32.totalorder %s36, 0
    %p240 = por %p238, %p239
    %p241 = scmp.ne.s32.totalorder %s229, %s230
    %p242 = scmp.eq.s32.totalorder %s37, 1
    %p243 = por %p241, %p242
    %p245 = scmp.ne.s32.totalorder %s230, %s244
    %p246 = scmp.eq.s32.totalorder %s37, 0
    %p247 = por %p245, %p246
    %s249 = sadd.s32 %s248, 1
    %p252 = scmp.eq.s32.totalorder %s31, 1
    %p253 = scmp.ne.s32.totalorder %s248, %s250
    %p254 = scmp.eq.s32.totalorder %s31, 0
    %p255 = por %p253, %p254
    %p256 = scmp.ne.s32.totalorder %s248, %s250
    %p257 = scmp.eq.s32.totalorder %s36, 1
    %p258 = por %p256, %p257
    %p259 = scmp.ne.s32.totalorder %s250, %s251
    %p260 = scmp.eq.s32.totalorder %s36, 0
    %p261 = por %p259, %p260
    %p262 = scmp.ne.s32.totalorder %s250, %s251
    %p263 = scmp.eq.s32.totalorder %s37, 1
    %p264 = por %p262, %p263
    %p266 = scmp.ne.s32.totalorder %s251, %s265
    %p267 = scmp.eq.s32.totalorder %s37, 0
    %p268 = por %p266, %p267
    %s270 = sadd.s32 %s269, 1
    %p273 = scmp.eq.s32.totalorder %s31, 1
    %p274 = scmp.ne.s32.totalorder %s269, %s271
    %p275 = scmp.eq.s32.totalorder %s31, 0
    %p276 = por %p274, %p275
    %p277 = scmp.ne.s32.totalorder %s269, %s271
    %p278 = scmp.eq.s32.totalorder %s36, 1
    %p279 = por %p277, %p278
    %p280 = scmp.ne.s32.totalorder %s271, %s272
    %p281 = scmp.eq.s32.totalorder %s36, 0
    %p282 = por %p280, %p281
    %p283 = scmp.ne.s32.totalorder %s271, %s272
    %p284 = scmp.eq.s32.totalorder %s37, 1
    %p285 = por %p283, %p284
    %p287 = scmp.ne.s32.totalorder %s272, %s286
    %p288 = scmp.eq.s32.totalorder %s37, 0
    %p289 = por %p287, %p288
    %s291 = sadd.s32 %s290, 1
    %p294 = scmp.eq.s32.totalorder %s31, 1
    %p295 = scmp.ne.s32.totalorder %s290, %s292
    %p296 = scmp.eq.s32.totalorder %s31, 0
    %p297 = por %p295, %p296
    %p298 = scmp.ne.s32.totalorder %s290, %s292
    %p299 = scmp.eq.s32.totalorder %s36, 1
    %p300 = por %p298, %p299
    %p301 = scmp.ne.s32.totalorder %s292, %s293
    %p302 = scmp.eq.s32.totalorder %s36, 0
    %p303 = por %p301, %p302
    %p304 = scmp.ne.s32.totalorder %s292, %s293
    %p305 = scmp.eq.s32.totalorder %s37, 1
    %p306 = por %p304, %p305
    %p308 = scmp.ne.s32.totalorder %s293, %s307
    %p309 = scmp.eq.s32.totalorder %s37, 0
    %p310 = por %p308, %p309
    %s312 = sadd.s32 %s311, 1
    %p315 = scmp.eq.s32.totalorder %s31, 1
    %p316 = scmp.ne.s32.totalorder %s311, %s313
    %p317 = scmp.eq.s32.totalorder %s31, 0
    %p318 = por %p316, %p317
    %p319 = scmp.ne.s32.totalorder %s311, %s313
    %p320 = scmp.eq.s32.totalorder %s36, 1
    %p321 = por %p319, %p320
    %p322 = scmp.ne.s32.totalorder %s313, %s314
    %p323 = scmp.eq.s32.totalorder %s36, 0
    %p324 = por %p322, %p323
    %p325 = scmp.ne.s32.totalorder %s313, %s314
    %p326 = scmp.eq.s32.totalorder %s37, 1
    %p327 = por %p325, %p326
    %p329 = scmp.ne.s32.totalorder %s314, %s328
    %p330 = scmp.eq.s32.totalorder %s37, 0
    %p331 = por %p329, %p330
    %s333 = sadd.s32 %s332, 1
    %p336 = scmp.eq.s32.totalorder %s31, 1
    %p337 = scmp.ne.s32.totalorder %s332, %s334
    %p338 = scmp.eq.s32.totalorder %s31, 0
    %p339 = por %p337, %p338
    %p340 = scmp.ne.s32.totalorder %s332, %s334
    %p341 = scmp.eq.s32.totalorder %s36, 1
    %p342 = por %p340, %p341
    %p343 = scmp.ne.s32.totalorder %s334, %s335
    %p344 = scmp.eq.s32.totalorder %s36, 0
    %p345 = por %p343, %p344
    %p346 = scmp.ne.s32.totalorder %s334, %s335
    %p347 = scmp.eq.s32.totalorder %s37, 1
    %p348 = por %p346, %p347
    %p350 = scmp.ne.s32.totalorder %s335, %s349
    %p351 = scmp.eq.s32.totalorder %s37, 0
    %p352 = por %p350, %p351
    %s354 = sadd.s32 %s353, 1
    %p357 = scmp.eq.s32.totalorder %s31, 1
    %p358 = scmp.ne.s32.totalorder %s353, %s355
    %p359 = scmp.eq.s32.totalorder %s31, 0
    %p360 = por %p358, %p359
    %p361 = scmp.ne.s32.totalorder %s353, %s355
    %p362 = scmp.eq.s32.totalorder %s36, 1
    %p363 = por %p361, %p362
    %p364 = scmp.ne.s32.totalorder %s355, %s356
    %p365 = scmp.eq.s32.totalorder %s36, 0
    %p366 = por %p364, %p365
    %p367 = scmp.ne.s32.totalorder %s355, %s356
    %p368 = scmp.eq.s32.totalorder %s37, 1
    %p369 = por %p367, %p368
    %p371 = scmp.ne.s32.totalorder %s356, %s370
    %p372 = scmp.eq.s32.totalorder %s37, 0
    %p373 = por %p371, %p372
    %s375 = sadd.s32 %s374, 1
    %p378 = scmp.eq.s32.totalorder %s31, 1
    %p379 = scmp.ne.s32.totalorder %s374, %s376
    %p380 = scmp.eq.s32.totalorder %s31, 0
    %p381 = por %p379, %p380
    %p382 = scmp.ne.s32.totalorder %s374, %s376
    %p383 = scmp.eq.s32.totalorder %s36, 1
    %p384 = por %p382, %p383
    %p385 = scmp.ne.s32.totalorder %s376, %s377
    %p386 = scmp.eq.s32.totalorder %s36, 0
    %p387 = por %p385, %p386
    %p388 = scmp.ne.s32.totalorder %s376, %s377
    %p389 = scmp.eq.s32.totalorder %s37, 1
    %p390 = por %p388, %p389
    %p392 = scmp.ne.s32.totalorder %s377, %s391
    %p393 = scmp.eq.s32.totalorder %s37, 0
    %p394 = por %p392, %p393
    %s396 = sadd.s32 %s395, 1
    %p399 = scmp.eq.s32.totalorder %s31, 1
    %p400 = scmp.ne.s32.totalorder %s395, %s397
    %p401 = scmp.eq.s32.totalorder %s31, 0
    %p402 = por %p400, %p401
    %p403 = scmp.ne.s32.totalorder %s395, %s397
    %p404 = scmp.eq.s32.totalorder %s36, 1
    %p405 = por %p403, %p404
    %p406 = scmp.ne.s32.totalorder %s397, %s398
    %p407 = scmp.eq.s32.totalorder %s36, 0
    %p408 = por %p406, %p407
    %p409 = scmp.ne.s32.totalorder %s397, %s398
    %p410 = scmp.eq.s32.totalorder %s37, 1
    %p411 = por %p409, %p410
    %p413 = scmp.ne.s32.totalorder %s398, %s412
    %p414 = scmp.eq.s32.totalorder %s37, 0
    %p415 = por %p413, %p414
    %s417 = sadd.s32 %s416, 1
    %p420 = scmp.eq.s32.totalorder %s31, 1
    %p421 = scmp.ne.s32.totalorder %s416, %s418
    %p422 = scmp.eq.s32.totalorder %s31, 0
    %p423 = por %p421, %p422
    %p424 = scmp.ne.s32.totalorder %s416, %s418
    %p425 = scmp.eq.s32.totalorder %s36, 1
    %p426 = por %p424, %p425
    %p427 = scmp.ne.s32.totalorder %s418, %s419
    %p428 = scmp.eq.s32.totalorder %s36, 0
    %p429 = por %p427, %p428
    %p430 = scmp.ne.s32.totalorder %s418, %s419
    %p431 = scmp.eq.s32.totalorder %s37, 1
    %p432 = por %p430, %p431
    %p434 = scmp.ne.s32.totalorder %s419, %s433
    %p435 = scmp.eq.s32.totalorder %s37, 0
    %p436 = por %p434, %p435
    %s438 = sadd.s32 %s437, 1
    %p441 = scmp.eq.s32.totalorder %s31, 1
    %p442 = scmp.ne.s32.totalorder %s437, %s439
    %p443 = scmp.eq.s32.totalorder %s31, 0
    %p444 = por %p442, %p443
    %p445 = scmp.ne.s32.totalorder %s437, %s439
    %p446 = scmp.eq.s32.totalorder %s36, 1
    %p447 = por %p445, %p446
    %p448 = scmp.ne.s32.totalorder %s439, %s440
    %p449 = scmp.eq.s32.totalorder %s36, 0
    %p450 = por %p448, %p449
    %p451 = scmp.ne.s32.totalorder %s439, %s440
    %p452 = scmp.eq.s32.totalorder %s37, 1
    %p453 = por %p451, %p452
    %p455 = scmp.ne.s32.totalorder %s440, %s454
    %p456 = scmp.eq.s32.totalorder %s37, 0
    %p457 = por %p455, %p456
    %s459 = sadd.s32 %s458, 1
    %p462 = scmp.eq.s32.totalorder %s31, 1
    %p463 = scmp.ne.s32.totalorder %s458, %s460
    %p464 = scmp.eq.s32.totalorder %s31, 0
    %p465 = por %p463, %p464
    %p466 = scmp.ne.s32.totalorder %s458, %s460
    %p467 = scmp.eq.s32.totalorder %s36, 1
    %p468 = por %p466, %p467
    %p469 = scmp.ne.s32.totalorder %s460, %s461
    %p470 = scmp.eq.s32.totalorder %s36, 0
    %p471 = por %p469, %p470
    %p472 = scmp.ne.s32.totalorder %s460, %s461
    %p473 = scmp.eq.s32.totalorder %s37, 1
    %p474 = por %p472, %p473
    %p476 = scmp.ne.s32.totalorder %s461, %s475
    %p477 = scmp.eq.s32.totalorder %s37, 0
    %p478 = por %p476, %p477
    %s480 = sadd.s32 %s479, 1
    %p483 = scmp.eq.s32.totalorder %s31, 1
    %p484 = scmp.ne.s32.totalorder %s479, %s481
    %p485 = scmp.eq.s32.totalorder %s31, 0
    %p486 = por %p484, %p485
    %p487 = scmp.ne.s32.totalorder %s479, %s481
    %p488 = scmp.eq.s32.totalorder %s36, 1
    %p489 = por %p487, %p488
    %p490 = scmp.ne.s32.totalorder %s481, %s482
    %p491 = scmp.eq.s32.totalorder %s36, 0
    %p492 = por %p490, %p491
    %p493 = scmp.ne.s32.totalorder %s481, %s482
    %p494 = scmp.eq.s32.totalorder %s37, 1
    %p495 = por %p493, %p494
    %p497 = scmp.ne.s32.totalorder %s482, %s496
    %p498 = scmp.eq.s32.totalorder %s37, 0
    %p499 = por %p497, %p498
    %s501 = sadd.s32 %s500, 1
    %p504 = scmp.eq.s32.totalorder %s31, 1
    %p505 = scmp.ne.s32.totalorder %s500, %s502
    %p506 = scmp.eq.s32.totalorder %s31, 0
    %p507 = por %p505, %p506
    %p508 = scmp.ne.s32.totalorder %s500, %s502
    %p509 = scmp.eq.s32.totalorder %s36, 1
    %p510 = por %p508, %p509
    %p511 = scmp.ne.s32.totalorder %s502, %s503
    %p512 = scmp.eq.s32.totalorder %s36, 0
    %p513 = por %p511, %p512
    %p514 = scmp.ne.s32.totalorder %s502, %s503
    %p515 = scmp.eq.s32.totalorder %s37, 1
    %p516 = por %p514, %p515
    %p518 = scmp.ne.s32.totalorder %s503, %s517
    %p519 = scmp.eq.s32.totalorder %s37, 0
    %p520 = por %p518, %p519
    %s522 = sadd.s32 %s521, 1
    %p525 = scmp.eq.s32.totalorder %s31, 1
    %p526 = scmp.ne.s32.totalorder %s521, %s523
    %p527 = scmp.eq.s32.totalorder %s31, 0
    %p528 = por %p526, %p527
    %p529 = scmp.ne.s32.totalorder %s521, %s523
    %p530 = scmp.eq.s32.totalorder %s36, 1
    %p531 = por %p529, %p530
    %p532 = scmp.ne.s32.totalorder %s523, %s524
    %p533 = scmp.eq.s32.totalorder %s36, 0
    %p534 = por %p532, %p533
    %p535 = scmp.ne.s32.totalorder %s523, %s524
    %p536 = scmp.eq.s32.totalorder %s37, 1
    %p537 = por %p535, %p536
    %p539 = scmp.ne.s32.totalorder %s524, %s538
    %p540 = scmp.eq.s32.totalorder %s37, 0
    %p541 = por %p539, %p540
    %s543 = sadd.s32 %s542, 1
    %p546 = scmp.eq.s32.totalorder %s31, 1
    %p547 = scmp.ne.s32.totalorder %s542, %s544
    %p548 = scmp.eq.s32.totalorder %s31, 0
    %p549 = por %p547, %p548
    %p550 = scmp.ne.s32.totalorder %s542, %s544
    %p551 = scmp.eq.s32.totalorder %s36, 1
    %p552 = por %p550, %p551
    %p553 = scmp.ne.s32.totalorder %s544, %s545
    %p554 = scmp.eq.s32.totalorder %s36, 0
    %p555 = por %p553, %p554
    %p556 = scmp.ne.s32.totalorder %s544, %s545
    %p557 = scmp.eq.s32.totalorder %s37, 1
    %p558 = por %p556, %p557
    %p560 = scmp.ne.s32.totalorder %s545, %s559
    %p561 = scmp.eq.s32.totalorder %s37, 0
    %p562 = por %p560, %p561
    %s564 = sadd.s32 %s563, 1
    %p567 = scmp.eq.s32.totalorder %s31, 1
    %p568 = scmp.ne.s32.totalorder %s563, %s565
    %p569 = scmp.eq.s32.totalorder %s31, 0
    %p570 = por %p568, %p569
    %p571 = scmp.ne.s32.totalorder %s563, %s565
    %p572 = scmp.eq.s32.totalorder %s36, 1
    %p573 = por %p571, %p572
    %p574 = scmp.ne.s32.totalorder %s565, %s566
    %p575 = scmp.eq.s32.totalorder %s36, 0
    %p576 = por %p574, %p575
    %p577 = scmp.ne.s32.totalorder %s565, %s566
    %p578 = scmp.eq.s32.totalorder %s37, 1
    %p579 = por %p577, %p578
    %p581 = scmp.ne.s32.totalorder %s566, %s580
    %p582 = scmp.eq.s32.totalorder %s37, 0
    %p583 = por %p581, %p582
    %s584 = ssub.s32 %s31, %s38
    %p585 = scmp.eq.s32.totalorder %s584, 0
    %s587 = sadd.s32 %s586, 1
    %s588 = scalar_select %p585, %s586, %s587
    %p591 = pneg %p585
    %p592 = scmp.eq.s32.totalorder %s31, 1
    %p593 = por %p591, %p592
    %p594 = scmp.ne.s32.totalorder %s586, %s589
    %p595 = scmp.eq.s32.totalorder %s31, 0
    %p596 = por %p594, %p595
    %p597 = scmp.ne.s32.totalorder %s586, %s589
    %p598 = scmp.eq.s32.totalorder %s36, 1
    %p599 = por %p597, %p598
    %p600 = scmp.ne.s32.totalorder %s589, %s590
    %p601 = scmp.eq.s32.totalorder %s36, 0
    %p602 = por %p600, %p601
    %p603 = scmp.ne.s32.totalorder %s589, %s590
    %p604 = scmp.eq.s32.totalorder %s37, 1
    %p605 = por %p603, %p604
    %p607 = scmp.ne.s32.totalorder %s590, %s606
    %p608 = scmp.eq.s32.totalorder %s37, 0
    %p609 = por %p607, %p608
    %p610 = scmp.le.s32.totalorder 1, %s31
    %p611 = scmp.lt.s32.totalorder %s31, 3
    %p612 = pnand %p610, %p611
    %p613 = pneg %p612
    // Predicated region
    $region9: #{flamingo_forward.8} parent=5 // pred_check
      _
    $region10: #{flamingo_forward.8} parent=5 // pred_check_branch
      %615 = sbr.rel (%p612) target = $region12
    $region11: #{flamingo_forward.8} parent=5 // pred_region
      %s616 = ssub.s32 %s31, 1
      // Predicated region
      $region13: #{flamingo_forward.8} parent=11 // pred_check
        %p617 = pneg %p156
      $region14: #{flamingo_forward.8} parent=11 // pred_check_branch
        %619 = sbr.rel (%p617) target = $region16
      $region15: #{flamingo_forward.8} parent=11 // pred_region
        _
      $region16: #{flamingo_forward.8} parent=11 // pred_fallthru
        _
      // Predicated region
      $region17: #{flamingo_forward.8} parent=11 // pred_check
        %p620 = pneg %p177
      $region18: #{flamingo_forward.8} parent=11 // pred_check_branch
        %622 = sbr.rel (%p620) target = $region20
      $region19: #{flamingo_forward.8} parent=11 // pred_region
        _
      $region20: #{flamingo_forward.8} parent=11 // pred_fallthru
        _
      // Predicated region
      $region21: #{flamingo_forward.8} parent=11 // pred_check
        %p623 = pneg %p198
      $region22: #{flamingo_forward.8} parent=11 // pred_check_branch
        %625 = sbr.rel (%p623) target = $region24
      $region23: #{flamingo_forward.8} parent=11 // pred_region
        _
      $region24: #{flamingo_forward.8} parent=11 // pred_fallthru
        _
      // Predicated region
      $region25: #{flamingo_forward.8} parent=11 // pred_check
        %p626 = pneg %p219
      $region26: #{flamingo_forward.8} parent=11 // pred_check_branch
        %628 = sbr.rel (%p626) target = $region28
      $region27: #{flamingo_forward.8} parent=11 // pred_region
        _
      $region28: #{flamingo_forward.8} parent=11 // pred_fallthru
        _
      // Predicated region
      $region29: #{flamingo_forward.8} parent=11 // pred_check
        %p629 = pneg %p240
      $region30: #{flamingo_forward.8} parent=11 // pred_check_branch
        %631 = sbr.rel (%p629) target = $region32
      $region31: #{flamingo_forward.8} parent=11 // pred_region
        _
      $region32: #{flamingo_forward.8} parent=11 // pred_fallthru
        _
      // Predicated region
      $region33: #{flamingo_forward.8} parent=11 // pred_check
        %p632 = pneg %p261
      $region34: #{flamingo_forward.8} parent=11 // pred_check_branch
        %634 = sbr.rel (%p632) target = $region36
      $region35: #{flamingo_forward.8} parent=11 // pred_region
        _
      $region36: #{flamingo_forward.8} parent=11 // pred_fallthru
        _
      // Predicated region
      $region37: #{flamingo_forward.8} parent=11 // pred_check
        %p635 = pneg %p282
      $region38: #{flamingo_forward.8} parent=11 // pred_check_branch
        %637 = sbr.rel (%p635) target = $region40
      $region39: #{flamingo_forward.8} parent=11 // pred_region
        _
      $region40: #{flamingo_forward.8} parent=11 // pred_fallthru
        _
      // Predicated region
      $region41: #{flamingo_forward.8} parent=11 // pred_check
        %p638 = pneg %p303
      $region42: #{flamingo_forward.8} parent=11 // pred_check_branch
        %640 = sbr.rel (%p638) target = $region44
      $region43: #{flamingo_forward.8} parent=11 // pred_region
        _
      $region44: #{flamingo_forward.8} parent=11 // pred_fallthru
        _
      // Predicated region
      $region45: #{flamingo_forward.8} parent=11 // pred_check
        %p641 = pneg %p324
      $region46: #{flamingo_forward.8} parent=11 // pred_check_branch
        %643 = sbr.rel (%p641) target = $region48
      $region47: #{flamingo_forward.8} parent=11 // pred_region
        _
      $region48: #{flamingo_forward.8} parent=11 // pred_fallthru
        _
      // Predicated region
      $region49: #{flamingo_forward.8} parent=11 // pred_check
        %p644 = pneg %p345
      $region50: #{flamingo_forward.8} parent=11 // pred_check_branch
        %646 = sbr.rel (%p644) target = $region52
      $region51: #{flamingo_forward.8} parent=11 // pred_region
        _
      $region52: #{flamingo_forward.8} parent=11 // pred_fallthru
        _
      // Predicated region
      $region53: #{flamingo_forward.8} parent=11 // pred_check
        %p647 = pneg %p366
      $region54: #{flamingo_forward.8} parent=11 // pred_check_branch
        %649 = sbr.rel (%p647) target = $region56
      $region55: #{flamingo_forward.8} parent=11 // pred_region
        _
      $region56: #{flamingo_forward.8} parent=11 // pred_fallthru
        _
      // Predicated region
      $region57: #{flamingo_forward.8} parent=11 // pred_check
        %p650 = pneg %p387
      $region58: #{flamingo_forward.8} parent=11 // pred_check_branch
        %652 = sbr.rel (%p650) target = $region60
      $region59: #{flamingo_forward.8} parent=11 // pred_region
        _
      $region60: #{flamingo_forward.8} parent=11 // pred_fallthru
        _
      // Predicated region
      $region61: #{flamingo_forward.8} parent=11 // pred_check
        %p653 = pneg %p408
      $region62: #{flamingo_forward.8} parent=11 // pred_check_branch
        %655 = sbr.rel (%p653) target = $region64
      $region63: #{flamingo_forward.8} parent=11 // pred_region
        _
      $region64: #{flamingo_forward.8} parent=11 // pred_fallthru
        _
      // Predicated region
      $region65: #{flamingo_forward.8} parent=11 // pred_check
        %p656 = pneg %p429
      $region66: #{flamingo_forward.8} parent=11 // pred_check_branch
        %658 = sbr.rel (%p656) target = $region68
      $region67: #{flamingo_forward.8} parent=11 // pred_region
        _
      $region68: #{flamingo_forward.8} parent=11 // pred_fallthru
        _
      // Predicated region
      $region69: #{flamingo_forward.8} parent=11 // pred_check
        %p659 = pneg %p450
      $region70: #{flamingo_forward.8} parent=11 // pred_check_branch
        %661 = sbr.rel (%p659) target = $region72
      $region71: #{flamingo_forward.8} parent=11 // pred_region
        _
      $region72: #{flamingo_forward.8} parent=11 // pred_fallthru
        _
      // Predicated region
      $region73: #{flamingo_forward.8} parent=11 // pred_check
        %p662 = pneg %p471
      $region74: #{flamingo_forward.8} parent=11 // pred_check_branch
        %664 = sbr.rel (%p662) target = $region76
      $region75: #{flamingo_forward.8} parent=11 // pred_region
        _
      $region76: #{flamingo_forward.8} parent=11 // pred_fallthru
        _
      // Predicated region
      $region77: #{flamingo_forward.8} parent=11 // pred_check
        %p665 = pneg %p492
      $region78: #{flamingo_forward.8} parent=11 // pred_check_branch
        %667 = sbr.rel (%p665) target = $region80
      $region79: #{flamingo_forward.8} parent=11 // pred_region
        _
      $region80: #{flamingo_forward.8} parent=11 // pred_fallthru
        _
      // Predicated region
      $region81: #{flamingo_forward.8} parent=11 // pred_check
        %p668 = pneg %p513
      $region82: #{flamingo_forward.8} parent=11 // pred_check_branch
        %670 = sbr.rel (%p668) target = $region84
      $region83: #{flamingo_forward.8} parent=11 // pred_region
        _
      $region84: #{flamingo_forward.8} parent=11 // pred_fallthru
        _
      // Predicated region
      $region85: #{flamingo_forward.8} parent=11 // pred_check
        %p671 = pneg %p534
      $region86: #{flamingo_forward.8} parent=11 // pred_check_branch
        %673 = sbr.rel (%p671) target = $region88
      $region87: #{flamingo_forward.8} parent=11 // pred_region
        _
      $region88: #{flamingo_forward.8} parent=11 // pred_fallthru
        _
      // Predicated region
      $region89: #{flamingo_forward.8} parent=11 // pred_check
        %p674 = pneg %p555
      $region90: #{flamingo_forward.8} parent=11 // pred_check_branch
        %676 = sbr.rel (%p674) target = $region92
      $region91: #{flamingo_forward.8} parent=11 // pred_region
        _
      $region92: #{flamingo_forward.8} parent=11 // pred_fallthru
        _
      // Predicated region
      $region93: #{flamingo_forward.8} parent=11 // pred_check
        %p677 = pneg %p576
      $region94: #{flamingo_forward.8} parent=11 // pred_check_branch
        %679 = sbr.rel (%p677) target = $region96
      $region95: #{flamingo_forward.8} parent=11 // pred_region
        _
      $region96: #{flamingo_forward.8} parent=11 // pred_fallthru
        _
    $region12: #{flamingo_forward.8} parent=5 // pred_fallthru
      _
    %p680 = scmp.lt.s32.totalorder %s31, 2
    // Predicated region
    $region97: #{flamingo_forward.8} parent=5 // pred_check
      %p681 = pneg %p680
    $region98: #{flamingo_forward.8} parent=5 // pred_check_branch
      %683 = sbr.rel (%p681) target = $region100
    $region99: #{flamingo_forward.8} parent=5 // pred_region
      // Predicated region
      $region101: #{flamingo_forward.8} parent=99 // pred_check
        %p684 = pneg %p51
      $region102: #{flamingo_forward.8} parent=99 // pred_check_branch
        %686 = sbr.rel (%p684) target = $region104
      $region103: #{flamingo_forward.8} parent=99 // pred_region
        %p687 = scmp.lt.s32.totalorder %s31, 1
        %s688 = scalar_select %p687, %s31, 1
        %s689 = smul.addr %s688, 8
        %s690 = scalar_lea.vmem %s0, %s689
      $region104: #{flamingo_forward.8} parent=99 // pred_fallthru
        _
      // Predicated region
      $region105: #{flamingo_forward.8} parent=99 // pred_check
        %p691 = pneg %p77
      $region106: #{flamingo_forward.8} parent=99 // pred_check_branch
        %693 = sbr.rel (%p691) target = $region108
      $region107: #{flamingo_forward.8} parent=99 // pred_region
        %p694 = scmp.lt.s32.totalorder %s31, 1
        %s695 = scalar_select %p694, %s31, 1
        %s696 = smul.addr %s695, 2
        %s697 = smul.addr %s696, 8
        %s698 = scalar_lea.vmem %s1, %s697
      $region108: #{flamingo_forward.8} parent=99 // pred_fallthru
        _
      // Predicated region
      $region109: #{flamingo_forward.8} parent=99 // pred_check
        %p699 = pneg %p103
      $region110: #{flamingo_forward.8} parent=99 // pred_check_branch
        %701 = sbr.rel (%p699) target = $region112
      $region111: #{flamingo_forward.8} parent=99 // pred_region
        %p702 = scmp.lt.s32.totalorder %s31, 1
        %s703 = scalar_select %p702, %s31, 1
        %s704 = smul.addr %s703, 8
        %s705 = scalar_lea.vmem %s2, %s704
      $region112: #{flamingo_forward.8} parent=99 // pred_fallthru
        _
      // Predicated region
      $region113: #{flamingo_forward.8} parent=99 // pred_check
        %p706 = pneg %p129
      $region114: #{flamingo_forward.8} parent=99 // pred_check_branch
        %708 = sbr.rel (%p706) target = $region116
      $region115: #{flamingo_forward.8} parent=99 // pred_region
        %p709 = scmp.lt.s32.totalorder %s31, 1
        %s710 = scalar_select %p709, %s31, 1
        %s711 = smul.addr %s710, 8
        %s712 = scalar_lea.vmem %s3, %s711
      $region116: #{flamingo_forward.8} parent=99 // pred_fallthru
        _
    $region100: #{flamingo_forward.8} parent=5 // pred_fallthru
      _
    %p713 = scmp.le.s32.totalorder 1, %s31
    %p714 = scmp.lt.s32.totalorder %s31, 3
    %p715 = pnand %p713, %p714
    %p716 = pneg %p715
    // Predicated region
    $region117: #{flamingo_forward.8} parent=5 // pred_check
      _
    $region118: #{flamingo_forward.8} parent=5 // pred_check_branch
      %718 = sbr.rel (%p715) target = $region120
    $region119: #{flamingo_forward.8} parent=5 // pred_region
      %s719 = ssub.s32 %s31, 1
      %p720 = scmp.lt.s32.totalorder %s36, 1
      %s721 = scalar_select %p720, %s36, 1
      %s722 = smul.addr %s721, 8
      %s723 = scalar_lea.vmem %s0, %s722
      %p724 = pneg %p57
      %p725 = pneg %p54
      %p726 = scmp.lt.s32.totalorder %s36, 1
      %s727 = scalar_select %p726, %s36, 1
      %s728 = smul.addr %s727, 2
      %s729 = smul.addr %s728, 8
      %s730 = scalar_lea.vmem %s1, %s729
      %p731 = pneg %p83
      %p732 = pneg %p80
      %p733 = scmp.lt.s32.totalorder %s36, 1
      %s734 = scalar_select %p733, %s36, 1
      %s735 = smul.addr %s734, 8
      %s736 = scalar_lea.vmem %s2, %s735
      %p737 = pneg %p109
      %p738 = pneg %p106
      %p739 = scmp.lt.s32.totalorder %s36, 1
      %s740 = scalar_select %p739, %s36, 1
      %s741 = smul.addr %s740, 8
      %s742 = scalar_lea.vmem %s3, %s741
      %p743 = pneg %p135
      %p744 = pneg %p132
      %p745 = pneg %p156
      %p746 = pneg %p153
      %p747 = pneg %p177
      %p748 = pneg %p174
      %p749 = pneg %p198
      %p750 = pneg %p195
      %p751 = pneg %p219
      %p752 = pneg %p216
      %p753 = pneg %p240
      %p754 = pneg %p237
      %p755 = pneg %p261
      %p756 = pneg %p258
      %p757 = pneg %p282
      %p758 = pneg %p279
      %p759 = pneg %p303
      %p760 = pneg %p300
      %p761 = pneg %p324
      %p762 = pneg %p321
      %p763 = pneg %p345
      %p764 = pneg %p342
      %p765 = pneg %p366
      %p766 = pneg %p363
      %p767 = pneg %p387
      %p768 = pneg %p384
      %p769 = pneg %p408
      %p770 = pneg %p405
      %p771 = pneg %p429
      %p772 = pneg %p426
      %p773 = pneg %p450
      %p774 = pneg %p447
      %p775 = pneg %p471
      %p776 = pneg %p468
      %p777 = pneg %p492
      %p778 = pneg %p489
      %p779 = pneg %p513
      %p780 = pneg %p510
      %p781 = pneg %p534
      %p782 = pneg %p531
      %p783 = pneg %p555
      %p784 = pneg %p552
      %p785 = pneg %p576
      %p786 = pneg %p573
      %p787 = pneg %p602
      %p788 = pneg %p599
      %p789 = scmp.lt.s32.totalorder %s36, 1
      %s790 = scalar_select %p789, %s36, 1
      %s791 = smul.addr %s790, 8
      %s792 = scalar_lea.vmem %s25, %s791
      %p793 = scmp.lt.s32.totalorder %s36, 1
      %s794 = scalar_select %p793, %s36, 1
      %s795 = smul.addr %s794, 8
      %s796 = scalar_lea.vmem %s0, %s795
      %p797 = scmp.lt.s32.totalorder %s36, 1
      %s798 = scalar_select %p797, %s36, 1
      %s799 = smul.addr %s798, 2
      %s800 = smul.addr %s799, 8
      %s801 = scalar_lea.vmem %s1, %s800
      %p802 = scmp.lt.s32.totalorder %s36, 1
      %s803 = scalar_select %p802, %s36, 1
      %s804 = smul.addr %s803, 8
      %s805 = scalar_lea.vmem %s2, %s804
      %p806 = scmp.lt.s32.totalorder %s36, 1
      %s807 = scalar_select %p806, %s36, 1
      %s808 = smul.addr %s807, 8
      %s809 = scalar_lea.vmem %s3, %s808
      %p810 = scmp.lt.s32.totalorder %s36, 1
      %s811 = scalar_select %p810, %s36, 1
      %s812 = smul.addr %s811, 8
      %s813 = scalar_lea.vmem %s25, %s812
      %v815 = vld [vmem:[%s796] sm:$0xff]
      %v816 = vld [vmem:[%s5] sm:$0x1]
      %v817 = vld [vmem:[%s6] sm:$0x1]
      %vm818 = vcmask 261120
      %v819 = vsel %vm818, %v815, 0.0
      %820 = vadd.xlane.f32.xlu0 %v819
      %v821 = vpop.xlane.xlu0 %820
      %v822 = vrcp.pop 32.0
      %v823 = vmul.f32 %v821, %v822
      %v824 = vsub.f32 %v815, %v823
      %v825 = vmul.f32 %v824, %v824
      %v826 = vsel %vm818, %v825, 0.0
      %827 = vadd.xlane.f32.xlu0 %v826
      %v828 = vpop.xlane.xlu0 %827
      %v829 = vmul.f32 %v828, %v822
      %v830 = vadd.f32 %v829, 1e-05
      %v831 = vrsqrt.pop %v830
      %v832 = vmul.f32 %v824, %v831
      %v834 = vlaneseq
      %v835 = vshrl.u32 %v834, 7
      %v836 = vsub.s32 0, %v835
      %v837 = vrot.slane %v816, %v836
      %v839 = vmul.f32 %v832, %v837
      %v841 = vlaneseq
      %v842 = vshrl.u32 %v841, 7
      %v843 = vsub.s32 0, %v842
      %v844 = vrot.slane %v817, %v843
      %v846 = vadd.f32 %v839, %v844
      %v847 = vld [vmem:[%s801] sm:$0xff]
      %v848 = vld [vmem:[%s801 + $0x8] sm:$0xf]
      %v849 = vld [vmem:[%s7] sm:$0x1]
      %v850 = vld [vmem:[%s8] sm:$0x1]
      %v851 = vsel %vm818, %v847, 0.0
      %852 = vadd.xlane.f32.xlu0 %v851
      %v853 = vpop.xlane.xlu0 %852
      %vm854 = vcmask 257024
      %v855 = vsel %vm854, %v848, 0.0
      %856 = vadd.xlane.f32.xlu0 %v855
      %v857 = vpop.xlane.xlu0 %856
      %v858 = vmul.f32 %v853, %v822
      %v859 = vmul.f32 %v857, %v822
      %v860 = vsub.f32 %v847, %v858
      %v861 = vsub.f32 %v848, %v859
      %v862 = vmul.f32 %v860, %v860
      %v863 = vmul.f32 %v861, %v861
      %v864 = vsel %vm818, %v862, 0.0
      %865 = vadd.xlane.f32.xlu0 %v864
      %v866 = vpop.xlane.xlu0 %865
      %v867 = vsel %vm854, %v863, 0.0
      %868 = vadd.xlane.f32.xlu0 %v867
      %v869 = vpop.xlane.xlu0 %868
      %v870 = vmul.f32 %v866, %v822
      %v871 = vmul.f32 %v869, %v822
      %v872 = vadd.f32 %v870, 1e-05
      %v873 = vadd.f32 %v871, 1e-05
      %v874 = vrsqrt.pop %v872
      %v875 = vrsqrt.pop %v873
      %v876 = vmul.f32 %v860, %v874
      %v877 = vmul.f32 %v861, %v875
      %v879 = vlaneseq
      %v880 = vshrl.u32 %v879, 7
      %v881 = vsub.s32 0, %v880
      %v882 = vrot.slane %v849, %v881
      %v884 = vmul.f32 %v876, %v882
      %v885 = vmul.f32 %v877, %v882
      %v887 = vlaneseq
      %v888 = vshrl.u32 %v887, 7
      %v889 = vsub.s32 0, %v888
      %v890 = vrot.slane %v850, %v889
      %v892 = vadd.f32 %v884, %v890
      %v893 = vadd.f32 %v885, %v890
      %v894 = vld [vmem:[%s9] sm:$0xff]
      %v895 = vld [vmem:[%s9 + $0x8] sm:$0xff]
      %v896 = vld [vmem:[%s9 + $0x10] sm:$0xff]
      %v897 = vld [vmem:[%s9 + $0x18] sm:$0xff]
      %v898 = vpack.c.bf16 %v846, %v846
      %v899 = vpack.c.bf16 %v895, %v894
      %v900 = vpack.c.bf16 %v897, %v896
      %v901 = vld [vmem:[%s10] sm:$0x1]
      %v903 = vlaneseq
      %v904 = vshrl.u32 %v903, 7
      %v905 = vsub.s32 0, %v904
      %v906 = vrot.slane %v901, %v905
      %v909 = vsel %vm818, %v898, 0
      %911 = vmatprep.subr.bf16.mxu0 0
      %912 = vmatpush1.bf16.msra.mxu0 0
      %913 = vmatprep.subr.bf16.mxu0 0
      %914 = vmatpush1.bf16.msra.mxu0 0
      %915 = vmatprep.subr.bf16.mxu0 0
      %916 = vmatpush1.bf16.msra.mxu0 0
      %917 = vmatprep.subr.bf16.mxu0 0
      %918 = vmatpush1.bf16.msra.mxu0 0
      %919 = vmatprep.subr.bf16.mxu0 0
      %920 = vmatpush1.bf16.msra.mxu0 0
      %921 = vmatprep.subr.bf16.mxu0 0
      %922 = vmatpush1.bf16.msra.mxu0 0
      %923 = vmatprep.subr.bf16.mxu0 0
      %924 = vmatpush1.bf16.msra.mxu0 %v900
      %925 = vmatprep.subr.bf16.mxu0 0
      %926 = vmatpush1.bf16.msra.mxu0 %v899
      %927 = vmatprep.subr.bf16.mxu0 0
      %928 = vmatpush2.bf16.msra.mxu0 0
      %929 = vmatprep.subr.bf16.mxu0 0
      %930 = vmatpush2.bf16.msra.mxu0 0
      %931 = vmatprep.subr.bf16.mxu0 0
      %932 = vmatpush2.bf16.msra.mxu0 0
      %933 = vmatprep.subr.bf16.mxu0 0
      %934 = vmatpush2.bf16.msra.mxu0 0
      %935 = vmatprep.subr.bf16.mxu0 0
      %936 = vmatpush2.bf16.msra.mxu0 0
      %937 = vmatprep.subr.bf16.mxu0 0
      %938 = vmatpush2.bf16.msra.mxu0 0
      %939 = vmatprep.subr.bf16.mxu0 0
      %940 = vmatpush2.bf16.msra.mxu0 0
      %941 = vmatprep.subr.bf16.mxu0 0
      %942 = vmatpush2.bf16.msra.mxu0 0
      %943 = vmatprep.mubr.bf16.mxu0 0
      %944 = vmatmul.mubr.bf16.gmra.mxu0 %v909
      %v945 = vpop.f32.mrf.mxu0
      %v946 = vadd.f32 %v906, %v945
      %v947 = vpop.f32.mrf.mxu0
      %v948 = vpop.f32.mrf.mxu0
      %v949 = vpop.f32.mrf.mxu0
      %950 = vdwg.mxu0
      %v951 = vld [vmem:[%s11] sm:$0xff]
      %v952 = vld [vmem:[%s11 + $0x8] sm:$0xff]
      %v953 = vld [vmem:[%s11 + $0x10] sm:$0xff]
      %v954 = vld [vmem:[%s11 + $0x18] sm:$0xff]
      %v955 = vpack.c.bf16 %v893, %v892
      %v956 = vpack.c.bf16 %v952, %v951
      %v957 = vpack.c.bf16 %v954, %v953
      %v958 = vld [vmem:[%s12] sm:$0x1]
      %v960 = vlaneseq
      %v961 = vshrl.u32 %v960, 7
      %v962 = vsub.s32 0, %v961
      %v963 = vrot.slane %v958, %v962
      %v966 = vsel %vm818, %v955, 0
      %968 = vmatprep.subr.bf16.mxu0 0
      %969 = vmatpush1.bf16.msra.mxu0 0
      %970 = vmatprep.subr.bf16.mxu0 0
      %971 = vmatpush1.bf16.msra.mxu0 0
      %972 = vmatprep.subr.bf16.mxu0 0
      %973 = vmatpush1.bf16.msra.mxu0 0
      %974 = vmatprep.subr.bf16.mxu0 0
      %975 = vmatpush1.bf16.msra.mxu0 0
      %976 = vmatprep.subr.bf16.mxu0 0
      %977 = vmatpush1.bf16.msra.mxu0 0
      %978 = vmatprep.subr.bf16.mxu0 0
      %979 = vmatpush1.bf16.msra.mxu0 0
      %980 = vmatprep.subr.bf16.mxu0 0
      %981 = vmatpush1.bf16.msra.mxu0 %v957
      %982 = vmatprep.subr.bf16.mxu0 0
      %983 = vmatpush1.bf16.msra.mxu0 %v956
      %984 = vmatprep.subr.bf16.mxu0 0
      %985 = vmatpush2.bf16.msra.mxu0 0
      %986 = vmatprep.subr.bf16.mxu0 0
      %987 = vmatpush2.bf16.msra.mxu0 0
      %988 = vmatprep.subr.bf16.mxu0 0
      %989 = vmatpush2.bf16.msra.mxu0 0
      %990 = vmatprep.subr.bf16.mxu0 0
      %991 = vmatpush2.bf16.msra.mxu0 0
      %992 = vmatprep.subr.bf16.mxu0 0
      %993 = vmatpush2.bf16.msra.mxu0 0
      %994 = vmatprep.subr.bf16.mxu0 0
      %995 = vmatpush2.bf16.msra.mxu0 0
      %996 = vmatprep.subr.bf16.mxu0 0
      %997 = vmatpush2.bf16.msra.mxu0 0
      %998 = vmatprep.subr.bf16.mxu0 0
      %999 = vmatpush2.bf16.msra.mxu0 0
      %1000 = vmatprep.mubr.bf16.mxu0 0
      %1001 = vmatmul.mubr.bf16.gmra.mxu0 %v966
      %v1002 = vpop.f32.mrf.mxu0
      %v1003 = vadd.f32 %v963, %v1002
      %v1004 = vpop.f32.mrf.mxu0
      %v1005 = vpop.f32.mrf.mxu0
      %v1006 = vadd.f32 %v963, %v1005
      %v1007 = vpop.f32.mrf.mxu0
      %1008 = vdwg.mxu0
      %v1009 = vld [vmem:[%s13] sm:$0xff]
      %v1010 = vld [vmem:[%s13 + $0x8] sm:$0xff]
      %v1011 = vld [vmem:[%s13 + $0x10] sm:$0xff]
      %v1012 = vld [vmem:[%s13 + $0x18] sm:$0xff]
      %v1013 = vpack.c.bf16 %v1010, %v1009
      %v1014 = vpack.c.bf16 %v1012, %v1011
      %v1015 = vld [vmem:[%s14] sm:$0x1]
      %v1017 = vlaneseq
      %v1018 = vshrl.u32 %v1017, 7
      %v1019 = vsub.s32 0, %v1018
      %v1020 = vrot.slane %v1015, %v1019
      %1022 = vmatprep.subr.bf16.mxu0 0
      %1023 = vmatpush1.bf16.msra.mxu0 0
      %1024 = vmatprep.subr.bf16.mxu0 0
      %1025 = vmatpush1.bf16.msra.mxu0 0
      %1026 = vmatprep.subr.bf16.mxu0 0
      %1027 = vmatpush1.bf16.msra.mxu0 0
      %1028 = vmatprep.subr.bf16.mxu0 0
      %1029 = vmatpush1.bf16.msra.mxu0 0
      %1030 = vmatprep.subr.bf16.mxu0 0
      %1031 = vmatpush1.bf16.msra.mxu0 0
      %1032 = vmatprep.subr.bf16.mxu0 0
      %1033 = vmatpush1.bf16.msra.mxu0 0
      %1034 = vmatprep.subr.bf16.mxu0 0
      %1035 = vmatpush1.bf16.msra.mxu0 %v1014
      %1036 = vmatprep.subr.bf16.mxu0 0
      %1037 = vmatpush1.bf16.msra.mxu0 %v1013
      %1038 = vmatprep.subr.bf16.mxu0 0
      %1039 = vmatpush2.bf16.msra.mxu0 0
      %1040 = vmatprep.subr.bf16.mxu0 0
      %1041 = vmatpush2.bf16.msra.mxu0 0
      %1042 = vmatprep.subr.bf16.mxu0 0
      %1043 = vmatpush2.bf16.msra.mxu0 0
      %1044 = vmatprep.subr.bf16.mxu0 0
      %1045 = vmatpush2.bf16.msra.mxu0 0
      %1046 = vmatprep.subr.bf16.mxu0 0
      %1047 = vmatpush2.bf16.msra.mxu0 0
      %1048 = vmatprep.subr.bf16.mxu0 0
      %1049 = vmatpush2.bf16.msra.mxu0 0
      %1050 = vmatprep.subr.bf16.mxu0 0
      %1051 = vmatpush2.bf16.msra.mxu0 0
      %1052 = vmatprep.subr.bf16.mxu0 0
      %1053 = vmatpush2.bf16.msra.mxu0 0
      %1054 = vmatprep.mubr.bf16.mxu0 0
      %1055 = vmatmul.mubr.bf16.gmra.mxu0 %v966
      %v1056 = vpop.f32.mrf.mxu0
      %v1057 = vadd.f32 %v1020, %v1056
      %v1058 = vpop.f32.mrf.mxu0
      %v1059 = vpop.f32.mrf.mxu0
      %v1060 = vadd.f32 %v1020, %v1059
      %v1061 = vpop.f32.mrf.mxu0
      %1062 = vdwg.mxu0
      %v1063 = vld [vmem:[%s805] sm:$0xff]
      %v1064 = vlaneseq
      %v1065 = vand.u32 %v1064, 127
      %vm1066 = vcmp.ge.s32.totalorder %v1065, 0
      %vm1067 = vcmp.lt.s32.totalorder %v1065, 8
      %vm1068 = vmand %vm1066, %vm1067
      %v1069 = vsel %vm1068, 1, 0
      %vm1070 = vcmp.eq.s32.totalorder %v1069, 1
      %v1071 = vsel %vm1070, %v946, 0.0
      %v1072 = vpack.c.bf16 %v1071, %v1071
      %v1073 = vpack.c.bf16 %v1006, %v1003
      %v1075 = vsel %vm818, %v1072, 0
      %v1078 = vsel %vm818, %v1073, 0
      %1080 = vmatprep.subr.bf16.mxu0 0
      %1081 = vmatpush1.bf16.xpose.msra.mxu0 0
      %1082 = vmatprep.subr.bf16.mxu0 0
      %1083 = vmatpush1.bf16.xpose.msra.mxu0 0
      %1084 = vmatprep.subr.bf16.mxu0 0
      %1085 = vmatpush1.bf16.xpose.msra.mxu0 0
      %1086 = vmatprep.subr.bf16.mxu0 0
      %1087 = vmatpush1.bf16.xpose.msra.mxu0 0
      %1088 = vmatprep.subr.bf16.mxu0 0
      %1089 = vmatpush1.bf16.xpose.msra.mxu0 0
      %1090 = vmatprep.subr.bf16.mxu0 0
      %1091 = vmatpush1.bf16.xpose.msra.mxu0 0
      %1092 = vmatprep.subr.bf16.mxu0 0
      %1093 = vmatpush1.bf16.xpose.msra.mxu0 0
      %1094 = vmatprep.subr.bf16.mxu0 0
      %1095 = vmatpush1.bf16.xpose.msra.mxu0 %v1078
      %1096 = vmatprep.subr.bf16.mxu0 0
      %1097 = vmatpush2.bf16.xpose.msra.mxu0 0
      %1098 = vmatprep.subr.bf16.mxu0 0
      %1099 = vmatpush2.bf16.xpose.msra.mxu0 0
      %1100 = vmatprep.subr.bf16.mxu0 0
      %1101 = vmatpush2.bf16.xpose.msra.mxu0 0
      %1102 = vmatprep.subr.bf16.mxu0 0
      %1103 = vmatpush2.bf16.xpose.msra.mxu0 0
      %1104 = vmatprep.subr.bf16.mxu0 0
      %1105 = vmatpush2.bf16.xpose.msra.mxu0 0
      %1106 = vmatprep.subr.bf16.mxu0 0
      %1107 = vmatpush2.bf16.xpose.msra.mxu0 0
      %1108 = vmatprep.subr.bf16.mxu0 0
      %1109 = vmatpush2.bf16.xpose.msra.mxu0 0
      %1110 = vmatprep.subr.bf16.mxu0 0
      %1111 = vmatpush2.bf16.xpose.msra.mxu0 0
      %1112 = vmatprep.mubr.bf16.mxu0 0
      %1113 = vmatmul.mubr.bf16.gmra.mxu0 %v1075
      %v1114 = vpop.f32.mrf.mxu0
      %v1115 = vadd.f32 0.0, %v1114
      %v1116 = vpop.f32.mrf.mxu0
      %v1117 = vpop.f32.mrf.mxu0
      %v1118 = vpop.f32.mrf.mxu0
      %1119 = vdwg.mxu0
      %v1120 = vmul.f32 %v1115, 0.35355338
      %v1121 = vadd.f32 %v1120, %v1063
      %vm1122 = vcmask 97280
      %v1123 = vsel %vm1122, %v1121, -inf
      %1124 = vmax.xlane.f32.xlu0 %v1123
      %v1125 = vpop.xlane.xlu0 %1124
      %v1126 = vsub.f32 %v1121, %v1125
      %v1127 = vmul.f32 %v1126, 1.442695
      %v1128 = vpow.pop %v1127
      %v1129 = vsel %vm1122, %v1128, 0.0
      %1130 = vadd.xlane.f32.xlu0 %v1129
      %v1131 = vpop.xlane.xlu0 %1130
      %v1132 = vrcp.pop %v1131
      %v1133 = vmul.f32 %v1128, %v1132
      %v1134 = vsel %vm1070, %v1057, 0.0
      %v1135 = vsel %vm1070, %v1060, 0.0
      %v1136 = vpack.c.bf16 %v1133, %v1133
      %v1137 = vpack.c.bf16 %v1135, %v1134
      %vm1138 = vcmp.ge.s32.totalorder %v1065, 8
      %vm1139 = vcmp.lt.s32.totalorder %v1065, 16
      %vm1140 = vmand %vm1138, %vm1139
      %v1141 = vsel %vm1140, 1, 0
      %vm1142 = vcmp.eq.s32.totalorder %v1141, 1
      %v1143 = vsel %vm1142, %v946, 0.0
      %v1144 = vpack.c.bf16 %v1143, %v1143
      %v1146 = vsel %vm818, %v1144, 0
      %1148 = vmatprep.subr.bf16.mxu0 0
      %1149 = vmatpush1.bf16.xpose.msra.mxu0 0
      %1150 = vmatprep.subr.bf16.mxu0 0
      %1151 = vmatpush1.bf16.xpose.msra.mxu0 0
      %1152 = vmatprep.subr.bf16.mxu0 0
      %1153 = vmatpush1.bf16.xpose.msra.mxu0 0
      %1154 = vmatprep.subr.bf16.mxu0 0
      %1155 = vmatpush1.bf16.xpose.msra.mxu0 0
      %1156 = vmatprep.subr.bf16.mxu0 0
      %1157 = vmatpush1.bf16.xpose.msra.mxu0 0
      %1158 = vmatprep.subr.bf16.mxu0 0
      %1159 = vmatpush1.bf16.xpose.msra.mxu0 0
      %1160 = vmatprep.subr.bf16.mxu0 0
      %1161 = vmatpush1.bf16.xpose.msra.mxu0 0
      %1162 = vmatprep.subr.bf16.mxu0 0
      %1163 = vmatpush1.bf16.xpose.msra.mxu0 %v1078
      %1164 = vmatprep.subr.bf16.mxu0 0
      %1165 = vmatpush2.bf16.xpose.msra.mxu0 0
      %1166 = vmatprep.subr.bf16.mxu0 0
      %1167 = vmatpush2.bf16.xpose.msra.mxu0 0
      %1168 = vmatprep.subr.bf16.mxu0 0
      %1169 = vmatpush2.bf16.xpose.msra.mxu0 0
      %1170 = vmatprep.subr.bf16.mxu0 0
      %1171 = vmatpush2.bf16.xpose.msra.mxu0 0
      %1172 = vmatprep.subr.bf16.mxu0 0
      %1173 = vmatpush2.bf16.xpose.msra.mxu0 0
      %1174 = vmatprep.subr.bf16.mxu0 0
      %1175 = vmatpush2.bf16.xpose.msra.mxu0 0
      %1176 = vmatprep.subr.bf16.mxu0 0
      %1177 = vmatpush2.bf16.xpose.msra.mxu0 0
      %1178 = vmatprep.subr.bf16.mxu0 0
      %1179 = vmatpush2.bf16.xpose.msra.mxu0 0
      %1180 = vmatprep.mubr.bf16.mxu0 0
      %1181 = vmatmul.mubr.bf16.gmra.mxu0 %v1146
      %v1182 = vpop.f32.mrf.mxu0
      %v1183 = vadd.f32 0.0, %v1182
      %v1184 = vpop.f32.mrf.mxu0
      %v1185 = vpop.f32.mrf.mxu0
      %v1186 = vpop.f32.mrf.mxu0
      %1187 = vdwg.mxu0
      %v1188 = vmul.f32 %v1183, 0.35355338
      %v1189 = vadd.f32 %v1188, %v1063
      %v1190 = vsel %vm1122, %v1189, -inf
      %1191 = vmax.xlane.f32.xlu0 %v1190
      %v1192 = vpop.xlane.xlu0 %1191
      %v1193 = vsub.f32 %v1189, %v1192
      %v1194 = vmul.f32 %v1193, 1.442695
      %v1195 = vpow.pop %v1194
      %v1196 = vsel %vm1122, %v1195, 0.0
      %1197 = vadd.xlane.f32.xlu0 %v1196
      %v1198 = vpop.xlane.xlu0 %1197
      %v1199 = vrcp.pop %v1198
      %v1200 = vmul.f32 %v1195, %v1199
      %v1201 = vsel %vm1142, %v1057, 0.0
      %v1202 = vsel %vm1142, %v1060, 0.0
      %v1203 = vpack.c.bf16 %v1200, %v1200
      %v1204 = vpack.c.bf16 %v1202, %v1201
      %v1206 = vsel %vm1122, %v1203, 0
      %vm1208 = vcmask 1045504
      %v1210 = vsel %vm1208, %v1204, 0
      %1212 = vmatprep.subr.bf16.mxu0 0
      %1213 = vmatpush1.bf16.msra.mxu0 0
      %1214 = vmatprep.subr.bf16.mxu0 0
      %1215 = vmatpush1.bf16.msra.mxu0 0
      %1216 = vmatprep.subr.bf16.mxu0 0
      %1217 = vmatpush1.bf16.msra.mxu0 0
      %1218 = vmatprep.subr.bf16.mxu0 0
      %1219 = vmatpush1.bf16.msra.mxu0 0
      %1220 = vmatprep.subr.bf16.mxu0 0
      %1221 = vmatpush1.bf16.msra.mxu0 0
      %1222 = vmatprep.subr.bf16.mxu0 0
      %1223 = vmatpush1.bf16.msra.mxu0 0
      %1224 = vmatprep.subr.bf16.mxu0 0
      %1225 = vmatpush1.bf16.msra.mxu0 0
      %1226 = vmatprep.subr.bf16.mxu0 0
      %1227 = vmatpush1.bf16.msra.mxu0 %v1210
      %1228 = vmatprep.subr.bf16.mxu0 0
      %1229 = vmatpush2.bf16.msra.mxu0 0
      %1230 = vmatprep.subr.bf16.mxu0 0
      %1231 = vmatpush2.bf16.msra.mxu0 0
      %1232 = vmatprep.subr.bf16.mxu0 0
      %1233 = vmatpush2.bf16.msra.mxu0 0
      %1234 = vmatprep.subr.bf16.mxu0 0
      %1235 = vmatpush2.bf16.msra.mxu0 0
      %1236 = vmatprep.subr.bf16.mxu0 0
      %1237 = vmatpush2.bf16.msra.mxu0 0
      %1238 = vmatprep.subr.bf16.mxu0 0
      %1239 = vmatpush2.bf16.msra.mxu0 0
      %1240 = vmatprep.subr.bf16.mxu0 0
      %1241 = vmatpush2.bf16.msra.mxu0 0
      %1242 = vmatprep.subr.bf16.mxu0 0
      %1243 = vmatpush2.bf16.msra.mxu0 0
      %1244 = vmatprep.mubr.bf16.mxu0 0
      %1245 = vmatmul.mubr.bf16.gmra.mxu0 %v1206
      %v1246 = vpop.f32.mrf.mxu0
      %v1247 = vadd.f32 0.0, %v1246
      %v1248 = vpop.f32.mrf.mxu0
      %v1249 = vpop.f32.mrf.mxu0
      %v1250 = vpop.f32.mrf.mxu0
      %1251 = vdwg.mxu0
      %v1253 = vsel %vm1122, %v1136, 0
      %v1256 = vsel %vm1208, %v1137, 0
      %1258 = vmatprep.subr.bf16.mxu0 0
      %1259 = vmatpush1.bf16.msra.mxu0 0
      %1260 = vmatprep.subr.bf16.mxu0 0
      %1261 = vmatpush1.bf16.msra.mxu0 0
      %1262 = vmatprep.subr.bf16.mxu0 0
      %1263 = vmatpush1.bf16.msra.mxu0 0
      %1264 = vmatprep.subr.bf16.mxu0 0
      %1265 = vmatpush1.bf16.msra.mxu0 0
      %1266 = vmatprep.subr.bf16.mxu0 0
      %1267 = vmatpush1.bf16.msra.mxu0 0
      %1268 = vmatprep.subr.bf16.mxu0 0
      %1269 = vmatpush1.bf16.msra.mxu0 0
      %1270 = vmatprep.subr.bf16.mxu0 0
      %1271 = vmatpush1.bf16.msra.mxu0 0
      %1272 = vmatprep.subr.bf16.mxu0 0
      %1273 = vmatpush1.bf16.msra.mxu0 %v1256
      %1274 = vmatprep.subr.bf16.mxu0 0
      %1275 = vmatpush2.bf16.msra.mxu0 0
      %1276 = vmatprep.subr.bf16.mxu0 0
      %1277 = vmatpush2.bf16.msra.mxu0 0
      %1278 = vmatprep.subr.bf16.mxu0 0
      %1279 = vmatpush2.bf16.msra.mxu0 0
      %1280 = vmatprep.subr.bf16.mxu0 0
      %1281 = vmatpush2.bf16.msra.mxu0 0
      %1282 = vmatprep.subr.bf16.mxu0 0
      %1283 = vmatpush2.bf16.msra.mxu0 0
      %1284 = vmatprep.subr.bf16.mxu0 0
      %1285 = vmatpush2.bf16.msra.mxu0 0
      %1286 = vmatprep.subr.bf16.mxu0 0
      %1287 = vmatpush2.bf16.msra.mxu0 0
      %1288 = vmatprep.subr.bf16.mxu0 0
      %1289 = vmatpush2.bf16.msra.mxu0 0
      %1290 = vmatprep.mubr.bf16.mxu0 0
      %1291 = vmatmul.mubr.bf16.gmra.mxu0 %v1253
      %v1292 = vpop.f32.mrf.mxu0
      %v1293 = vadd.f32 %v1247, %v1292
      %v1294 = vpop.f32.mrf.mxu0
      %v1295 = vpop.f32.mrf.mxu0
      %v1296 = vpop.f32.mrf.mxu0
      %1297 = vdwg.mxu0
      %vm1298 = vcmp.ge.s32.totalorder %v1065, 16
      %vm1299 = vcmp.lt.s32.totalorder %v1065, 24
      %vm1300 = vmand %vm1298, %vm1299
      %v1301 = vsel %vm1300, 1, 0
      %vm1302 = vcmp.eq.s32.totalorder %v1301, 1
      %v1303 = vsel %vm1302, %v946, 0.0
      %v1304 = vpack.c.bf16 %v1303, %v1303
      %v1306 = vsel %vm818, %v1304, 0
      %1308 = vmatprep.subr.bf16.mxu0 0
      %1309 = vmatpush1.bf16.xpose.msra.mxu0 0
      %1310 = vmatprep.subr.bf16.mxu0 0
      %1311 = vmatpush1.bf16.xpose.msra.mxu0 0
      %1312 = vmatprep.subr.bf16.mxu0 0
      %1313 = vmatpush1.bf16.xpose.msra.mxu0 0
      %1314 = vmatprep.subr.bf16.mxu0 0
      %1315 = vmatpush1.bf16.xpose.msra.mxu0 0
      %1316 = vmatprep.subr.bf16.mxu0 0
      %1317 = vmatpush1.bf16.xpose.msra.mxu0 0
      %1318 = vmatprep.subr.bf16.mxu0 0
      %1319 = vmatpush1.bf16.xpose.msra.mxu0 0
      %1320 = vmatprep.subr.bf16.mxu0 0
      %1321 = vmatpush1.bf16.xpose.msra.mxu0 0
      %1322 = vmatprep.subr.bf16.mxu0 0
      %1323 = vmatpush1.bf16.xpose.msra.mxu0 %v1078
      %1324 = vmatprep.subr.bf16.mxu0 0
      %1325 = vmatpush2.bf16.xpose.msra.mxu0 0
      %1326 = vmatprep.subr.bf16.mxu0 0
      %1327 = vmatpush2.bf16.xpose.msra.mxu0 0
      %1328 = vmatprep.subr.bf16.mxu0 0
      %1329 = vmatpush2.bf16.xpose.msra.mxu0 0
      %1330 = vmatprep.subr.bf16.mxu0 0
      %1331 = vmatpush2.bf16.xpose.msra.mxu0 0
      %1332 = vmatprep.subr.bf16.mxu0 0
      %1333 = vmatpush2.bf16.xpose.msra.mxu0 0
      %1334 = vmatprep.subr.bf16.mxu0 0
      %1335 = vmatpush2.bf16.xpose.msra.mxu0 0
      %1336 = vmatprep.subr.bf16.mxu0 0
      %1337 = vmatpush2.bf16.xpose.msra.mxu0 0
      %1338 = vmatprep.subr.bf16.mxu0 0
      %1339 = vmatpush2.bf16.xpose.msra.mxu0 0
      %1340 = vmatprep.mubr.bf16.mxu0 0
      %1341 = vmatmul.mubr.bf16.gmra.mxu0 %v1306
      %v1342 = vpop.f32.mrf.mxu0
      %v1343 = vadd.f32 0.0, %v1342
      %v1344 = vpop.f32.mrf.mxu0
      %v1345 = vpop.f32.mrf.mxu0
      %v1346 = vpop.f32.mrf.mxu0
      %1347 = vdwg.mxu0
      %v1348 = vmul.f32 %v1343, 0.35355338
      %v1349 = vadd.f32 %v1348, %v1063
      %v1350 = vsel %vm1122, %v1349, -inf
      %1351 = vmax.xlane.f32.xlu0 %v1350
      %v1352 = vpop.xlane.xlu0 %1351
      %v1353 = vsub.f32 %v1349, %v1352
      %v1354 = vmul.f32 %v1353, 1.442695
      %v1355 = vpow.pop %v1354
      %v1356 = vsel %vm1122, %v1355, 0.0
      %1357 = vadd.xlane.f32.xlu0 %v1356
      %v1358 = vpop.xlane.xlu0 %1357
      %v1359 = vrcp.pop %v1358
      %v1360 = vmul.f32 %v1355, %v1359
      %v1361 = vsel %vm1302, %v1057, 0.0
      %v1362 = vsel %vm1302, %v1060, 0.0
      %v1363 = vpack.c.bf16 %v1360, %v1360
      %v1364 = vpack.c.bf16 %v1362, %v1361
      %v1366 = vsel %vm1122, %v1363, 0
      %v1369 = vsel %vm1208, %v1364, 0
      %1371 = vmatprep.subr.bf16.mxu0 0
      %1372 = vmatpush1.bf16.msra.mxu0 0
      %1373 = vmatprep.subr.bf16.mxu0 0
      %1374 = vmatpush1.bf16.msra.mxu0 0
      %1375 = vmatprep.subr.bf16.mxu0 0
      %1376 = vmatpush1.bf16.msra.mxu0 0
      %1377 = vmatprep.subr.bf16.mxu0 0
      %1378 = vmatpush1.bf16.msra.mxu0 0
      %1379 = vmatprep.subr.bf16.mxu0 0
      %1380 = vmatpush1.bf16.msra.mxu0 0
      %1381 = vmatprep.subr.bf16.mxu0 0
      %1382 = vmatpush1.bf16.msra.mxu0 0
      %1383 = vmatprep.subr.bf16.mxu0 0
      %1384 = vmatpush1.bf16.msra.mxu0 0
      %1385 = vmatprep.subr.bf16.mxu0 0
      %1386 = vmatpush1.bf16.msra.mxu0 %v1369
      %1387 = vmatprep.subr.bf16.mxu0 0
      %1388 = vmatpush2.bf16.msra.mxu0 0
      %1389 = vmatprep.subr.bf16.mxu0 0
      %1390 = vmatpush2.bf16.msra.mxu0 0
      %1391 = vmatprep.subr.bf16.mxu0 0
      %1392 = vmatpush2.bf16.msra.mxu0 0
      %1393 = vmatprep.subr.bf16.mxu0 0
      %1394 = vmatpush2.bf16.msra.mxu0 0
      %1395 = vmatprep.subr.bf16.mxu0 0
      %1396 = vmatpush2.bf16.msra.mxu0 0
      %1397 = vmatprep.subr.bf16.mxu0 0
      %1398 = vmatpush2.bf16.msra.mxu0 0
      %1399 = vmatprep.subr.bf16.mxu0 0
      %1400 = vmatpush2.bf16.msra.mxu0 0
      %1401 = vmatprep.subr.bf16.mxu0 0
      %1402 = vmatpush2.bf16.msra.mxu0 0
      %1403 = vmatprep.mubr.bf16.mxu0 0
      %1404 = vmatmul.mubr.bf16.gmra.mxu0 %v1366
      %v1405 = vpop.f32.mrf.mxu0
      %v1406 = vadd.f32 0.0, %v1405
      %v1407 = vpop.f32.mrf.mxu0
      %v1408 = vpop.f32.mrf.mxu0
      %v1409 = vpop.f32.mrf.mxu0
      %1410 = vdwg.mxu0
      %v1411 = vadd.f32 %v1293, %v1406
      %vm1412 = vcmp.ge.s32.totalorder %v1065, 24
      %vm1413 = vcmp.lt.s32.totalorder %v1065, 32
      %vm1414 = vmand %vm1412, %vm1413
      %v1415 = vsel %vm1414, 1, 0
      %vm1416 = vcmp.eq.s32.totalorder %v1415, 1
      %v1417 = vsel %vm1416, %v946, 0.0
      %v1418 = vpack.c.bf16 %v1417, %v1417
      %v1420 = vsel %vm818, %v1418, 0
      %1422 = vmatprep.subr.bf16.mxu0 0
      %1423 = vmatpush1.bf16.xpose.msra.mxu0 0
      %1424 = vmatprep.subr.bf16.mxu0 0
      %1425 = vmatpush1.bf16.xpose.msra.mxu0 0
      %1426 = vmatprep.subr.bf16.mxu0 0
      %1427 = vmatpush1.bf16.xpose.msra.mxu0 0
      %1428 = vmatprep.subr.bf16.mxu0 0
      %1429 = vmatpush1.bf16.xpose.msra.mxu0 0
      %1430 = vmatprep.subr.bf16.mxu0 0
      %1431 = vmatpush1.bf16.xpose.msra.mxu0 0
      %1432 = vmatprep.subr.bf16.mxu0 0
      %1433 = vmatpush1.bf16.xpose.msra.mxu0 0
      %1434 = vmatprep.subr.bf16.mxu0 0
      %1435 = vmatpush1.bf16.xpose.msra.mxu0 0
      %1436 = vmatprep.subr.bf16.mxu0 0
      %1437 = vmatpush1.bf16.xpose.msra.mxu0 %v1078
      %1438 = vmatprep.subr.bf16.mxu0 0
      %1439 = vmatpush2.bf16.xpose.msra.mxu0 0
      %1440 = vmatprep.subr.bf16.mxu0 0
      %1441 = vmatpush2.bf16.xpose.msra.mxu0 0
      %1442 = vmatprep.subr.bf16.mxu0 0
      %1443 = vmatpush2.bf16.xpose.msra.mxu0 0
      %1444 = vmatprep.subr.bf16.mxu0 0
      %1445 = vmatpush2.bf16.xpose.msra.mxu0 0
      %1446 = vmatprep.subr.bf16.mxu0 0
      %1447 = vmatpush2.bf16.xpose.msra.mxu0 0
      %1448 = vmatprep.subr.bf16.mxu0 0
      %1449 = vmatpush2.bf16.xpose.msra.mxu0 0
      %1450 = vmatprep.subr.bf16.mxu0 0
      %1451 = vmatpush2.bf16.xpose.msra.mxu0 0
      %1452 = vmatprep.subr.bf16.mxu0 0
      %1453 = vmatpush2.bf16.xpose.msra.mxu0 0
      %1454 = vmatprep.mubr.bf16.mxu0 0
      %1455 = vmatmul.mubr.bf16.gmra.mxu0 %v1420
      %v1456 = vpop.f32.mrf.mxu0
      %v1457 = vadd.f32 0.0, %v1456
      %v1458 = vpop.f32.mrf.mxu0
      %v1459 = vpop.f32.mrf.mxu0
      %v1460 = vpop.f32.mrf.mxu0
      %1461 = vdwg.mxu0
      %v1462 = vmul.f32 %v1457, 0.35355338
      %v1463 = vadd.f32 %v1462, %v1063
      %v1464 = vsel %vm1122, %v1463, -inf
      %1465 = vmax.xlane.f32.xlu0 %v1464
      %v1466 = vpop.xlane.xlu0 %1465
      %v1467 = vsub.f32 %v1463, %v1466
      %v1468 = vmul.f32 %v1467, 1.442695
      %v1469 = vpow.pop %v1468
      %v1470 = vsel %vm1122, %v1469, 0.0
      %1471 = vadd.xlane.f32.xlu0 %v1470
      %v1472 = vpop.xlane.xlu0 %1471
      %v1473 = vrcp.pop %v1472
      %v1474 = vmul.f32 %v1469, %v1473
      %v1475 = vsel %vm1416, %v1057, 0.0
      %v1476 = vsel %vm1416, %v1060, 0.0
      %v1477 = vpack.c.bf16 %v1474, %v1474
      %v1478 = vpack.c.bf16 %v1476, %v1475
      %v1480 = vsel %vm1122, %v1477, 0
      %v1483 = vsel %vm1208, %v1478, 0
      %1485 = vmatprep.subr.bf16.mxu0 0
      %1486 = vmatpush1.bf16.msra.mxu0 0
      %1487 = vmatprep.subr.bf16.mxu0 0
      %1488 = vmatpush1.bf16.msra.mxu0 0
      %1489 = vmatprep.subr.bf16.mxu0 0
      %1490 = vmatpush1.bf16.msra.mxu0 0
      %1491 = vmatprep.subr.bf16.mxu0 0
      %1492 = vmatpush1.bf16.msra.mxu0 0
      %1493 = vmatprep.subr.bf16.mxu0 0
      %1494 = vmatpush1.bf16.msra.mxu0 0
      %1495 = vmatprep.subr.bf16.mxu0 0
      %1496 = vmatpush1.bf16.msra.mxu0 0
      %1497 = vmatprep.subr.bf16.mxu0 0
      %1498 = vmatpush1.bf16.msra.mxu0 0
      %1499 = vmatprep.subr.bf16.mxu0 0
      %1500 = vmatpush1.bf16.msra.mxu0 %v1483
      %1501 = vmatprep.subr.bf16.mxu0 0
      %1502 = vmatpush2.bf16.msra.mxu0 0
      %1503 = vmatprep.subr.bf16.mxu0 0
      %1504 = vmatpush2.bf16.msra.mxu0 0
      %1505 = vmatprep.subr.bf16.mxu0 0
      %1506 = vmatpush2.bf16.msra.mxu0 0
      %1507 = vmatprep.subr.bf16.mxu0 0
      %1508 = vmatpush2.bf16.msra.mxu0 0
      %1509 = vmatprep.subr.bf16.mxu0 0
      %1510 = vmatpush2.bf16.msra.mxu0 0
      %1511 = vmatprep.subr.bf16.mxu0 0
      %1512 = vmatpush2.bf16.msra.mxu0 0
      %1513 = vmatprep.subr.bf16.mxu0 0
      %1514 = vmatpush2.bf16.msra.mxu0 0
      %1515 = vmatprep.subr.bf16.mxu0 0
      %1516 = vmatpush2.bf16.msra.mxu0 0
      %1517 = vmatprep.mubr.bf16.mxu0 0
      %1518 = vmatmul.mubr.bf16.gmra.mxu0 %v1480
      %v1519 = vpop.f32.mrf.mxu0
      %v1520 = vadd.f32 0.0, %v1519
      %v1521 = vpop.f32.mrf.mxu0
      %v1522 = vpop.f32.mrf.mxu0
      %v1523 = vpop.f32.mrf.mxu0
      %1524 = vdwg.mxu0
      %v1525 = vadd.f32 %v1411, %v1520
      %v1526 = vld [vmem:[%s809] sm:$0xff]
      %v1527 = vld [vmem:[%s15] sm:$0xff]
      %v1528 = vld [vmem:[%s15 + $0x8] sm:$0xff]
      %v1529 = vld [vmem:[%s15 + $0x10] sm:$0xff]
      %v1530 = vld [vmem:[%s15 + $0x18] sm:$0xff]
      %v1531 = vpack.c.bf16 %v1525, %v1525
      %v1532 = vpack.c.bf16 %v1528, %v1527
      %v1533 = vpack.c.bf16 %v1530, %v1529
      %v1534 = vld [vmem:[%s16] sm:$0x1]
      %v1536 = vlaneseq
      %v1537 = vshrl.u32 %v1536, 7
      %v1538 = vsub.s32 0, %v1537
      %v1539 = vrot.slane %v1534, %v1538
      %v1542 = vsel %vm818, %v1531, 0
      %1544 = vmatprep.subr.bf16.mxu0 0
      %1545 = vmatpush1.bf16.msra.mxu0 0
      %1546 = vmatprep.subr.bf16.mxu0 0
      %1547 = vmatpush1.bf16.msra.mxu0 0
      %1548 = vmatprep.subr.bf16.mxu0 0
      %1549 = vmatpush1.bf16.msra.mxu0 0
      %1550 = vmatprep.subr.bf16.mxu0 0
      %1551 = vmatpush1.bf16.msra.mxu0 0
      %1552 = vmatprep.subr.bf16.mxu0 0
      %1553 = vmatpush1.bf16.msra.mxu0 0
      %1554 = vmatprep.subr.bf16.mxu0 0
      %1555 = vmatpush1.bf16.msra.mxu0 0
      %1556 = vmatprep.subr.bf16.mxu0 0
      %1557 = vmatpush1.bf16.msra.mxu0 %v1533
      %1558 = vmatprep.subr.bf16.mxu0 0
      %1559 = vmatpush1.bf16.msra.mxu0 %v1532
      %1560 = vmatprep.subr.bf16.mxu0 0
      %1561 = vmatpush2.bf16.msra.mxu0 0
      %1562 = vmatprep.subr.bf16.mxu0 0
      %1563 = vmatpush2.bf16.msra.mxu0 0
      %1564 = vmatprep.subr.bf16.mxu0 0
      %1565 = vmatpush2.bf16.msra.mxu0 0
      %1566 = vmatprep.subr.bf16.mxu0 0
      %1567 = vmatpush2.bf16.msra.mxu0 0
      %1568 = vmatprep.subr.bf16.mxu0 0
      %1569 = vmatpush2.bf16.msra.mxu0 0
      %1570 = vmatprep.subr.bf16.mxu0 0
      %1571 = vmatpush2.bf16.msra.mxu0 0
      %1572 = vmatprep.subr.bf16.mxu0 0
      %1573 = vmatpush2.bf16.msra.mxu0 0
      %1574 = vmatprep.subr.bf16.mxu0 0
      %1575 = vmatpush2.bf16.msra.mxu0 0
      %1576 = vmatprep.mubr.bf16.mxu0 0
      %1577 = vmatmul.mubr.bf16.gmra.mxu0 %v1542
      %v1578 = vpop.f32.mrf.mxu0
      %v1579 = vadd.f32 %v1539, %v1578
      %v1580 = vpop.f32.mrf.mxu0
      %v1581 = vpop.f32.mrf.mxu0
      %v1582 = vpop.f32.mrf.mxu0
      %1583 = vdwg.mxu0
      %v1584 = vmul.f32 %v1526, %v1579
      %v1585 = vadd.f32 %v815, %v1584
      %v1586 = vld [vmem:[%s17] sm:$0x1]
      %v1587 = vld [vmem:[%s18] sm:$0x1]
      %v1588 = vsel %vm818, %v1585, 0.0
      %1589 = vadd.xlane.f32.xlu0 %v1588
      %v1590 = vpop.xlane.xlu0 %1589
      %v1591 = vmul.f32 %v1590, %v822
      %v1592 = vsub.f32 %v1585, %v1591
      %v1593 = vmul.f32 %v1592, %v1592
      %v1594 = vsel %vm818, %v1593, 0.0
      %1595 = vadd.xlane.f32.xlu0 %v1594
      %v1596 = vpop.xlane.xlu0 %1595
      %v1597 = vmul.f32 %v1596, %v822
      %v1598 = vadd.f32 %v1597, 1e-05
      %v1599 = vrsqrt.pop %v1598
      %v1600 = vmul.f32 %v1592, %v1599
      %v1602 = vlaneseq
      %v1603 = vshrl.u32 %v1602, 7
      %v1604 = vsub.s32 0, %v1603
      %v1605 = vrot.slane %v1586, %v1604
      %v1607 = vmul.f32 %v1600, %v1605
      %v1609 = vlaneseq
      %v1610 = vshrl.u32 %v1609, 7
      %v1611 = vsub.s32 0, %v1610
      %v1612 = vrot.slane %v1587, %v1611
      %v1614 = vadd.f32 %v1607, %v1612
      %v1615 = vld [vmem:[%s19] sm:$0xff]
      %v1616 = vld [vmem:[%s19 + $0x8] sm:$0xff]
      %v1617 = vld [vmem:[%s19 + $0x10] sm:$0xff]
      %v1618 = vld [vmem:[%s19 + $0x18] sm:$0xff]
      %v1619 = vpack.c.bf16 %v1614, %v1614
      %v1620 = vpack.c.bf16 %v1616, %v1615
      %v1621 = vpack.c.bf16 %v1618, %v1617
      %v1622 = vld [vmem:[%s20] sm:$0x1]
      %v1624 = vlaneseq
      %v1625 = vshrl.u32 %v1624, 7
      %v1626 = vsub.s32 0, %v1625
      %v1627 = vrot.slane %v1622, %v1626
      %v1630 = vsel %vm818, %v1619, 0
      %1632 = vmatprep.subr.bf16.mxu0 0
      %1633 = vmatpush1.bf16.msra.mxu0 0
      %1634 = vmatprep.subr.bf16.mxu0 0
      %1635 = vmatpush1.bf16.msra.mxu0 0
      %1636 = vmatprep.subr.bf16.mxu0 0
      %1637 = vmatpush1.bf16.msra.mxu0 0
      %1638 = vmatprep.subr.bf16.mxu0 0
      %1639 = vmatpush1.bf16.msra.mxu0 0
      %1640 = vmatprep.subr.bf16.mxu0 0
      %1641 = vmatpush1.bf16.msra.mxu0 0
      %1642 = vmatprep.subr.bf16.mxu0 0
      %1643 = vmatpush1.bf16.msra.mxu0 0
      %1644 = vmatprep.subr.bf16.mxu0 0
      %1645 = vmatpush1.bf16.msra.mxu0 %v1621
      %1646 = vmatprep.subr.bf16.mxu0 0
      %1647 = vmatpush1.bf16.msra.mxu0 %v1620
      %1648 = vmatprep.subr.bf16.mxu0 0
      %1649 = vmatpush2.bf16.msra.mxu0 0
      %1650 = vmatprep.subr.bf16.mxu0 0
      %1651 = vmatpush2.bf16.msra.mxu0 0
      %1652 = vmatprep.subr.bf16.mxu0 0
      %1653 = vmatpush2.bf16.msra.mxu0 0
      %1654 = vmatprep.subr.bf16.mxu0 0
      %1655 = vmatpush2.bf16.msra.mxu0 0
      %1656 = vmatprep.subr.bf16.mxu0 0
      %1657 = vmatpush2.bf16.msra.mxu0 0
      %1658 = vmatprep.subr.bf16.mxu0 0
      %1659 = vmatpush2.bf16.msra.mxu0 0
      %1660 = vmatprep.subr.bf16.mxu0 0
      %1661 = vmatpush2.bf16.msra.mxu0 0
      %1662 = vmatprep.subr.bf16.mxu0 0
      %1663 = vmatpush2.bf16.msra.mxu0 0
      %1664 = vmatprep.mubr.bf16.mxu0 0
      %1665 = vmatmul.mubr.bf16.gmra.mxu0 %v1630
      %v1666 = vpop.f32.mrf.mxu0
      %v1667 = vadd.f32 %v1627, %v1666
      %v1668 = vpop.f32.mrf.mxu0
      %v1669 = vpop.f32.mrf.mxu0
      %v1670 = vpop.f32.mrf.mxu0
      %1671 = vdwg.mxu0
      %v1672 = vmul.f32 %v1667, %v1667
      %v1673 = vmul.f32 %v1667, %v1672
      %v1674 = vmul.f32 %v1673, 0.044715
      %v1675 = vadd.f32 %v1667, %v1674
      %v1676 = vmul.f32 %v1675, 0.7978846
      %v1677 = vtanh.pop %v1676
      %v1678 = vadd.f32 %v1677, 1.0
      %v1679 = vmul.f32 %v1678, 0.5
      %v1680 = vmul.f32 %v1667, %v1679
      %v1681 = vld [vmem:[%s4] sm:$0x1]
      %v1682 = vld [vmem:[%s21] sm:$0xff]
      %v1683 = vld [vmem:[%s21 + $0x8] sm:$0xff]
      %v1684 = vld [vmem:[%s21 + $0x10] sm:$0xff]
      %v1685 = vld [vmem:[%s21 + $0x18] sm:$0xff]
      %v1686 = vld [vmem:[%s21 + $0x20] sm:$0xff]
      %v1687 = vld [vmem:[%s21 + $0x28] sm:$0xff]
      %v1688 = vld [vmem:[%s21 + $0x30] sm:$0xff]
      %v1689 = vld [vmem:[%s21 + $0x38] sm:$0xff]
      %v1690 = vpack.c.bf16 %v1680, %v1680
      %v1691 = vpack.c.bf16 %v1683, %v1682
      %v1692 = vpack.c.bf16 %v1685, %v1684
      %v1693 = vpack.c.bf16 %v1687, %v1686
      %v1694 = vpack.c.bf16 %v1689, %v1688
      %v1695 = vld [vmem:[%s22] sm:$0x1]
      %v1697 = vlaneseq
      %v1698 = vshrl.u32 %v1697, 7
      %v1699 = vsub.s32 0, %v1698
      %v1700 = vrot.slane %v1695, %v1699
      %vm1702 = vcmask 523264
      %v1704 = vsel %vm1702, %v1690, 0
      %1706 = vmatprep.subr.bf16.mxu0 0
      %1707 = vmatpush1.bf16.msra.mxu0 0
      %1708 = vmatprep.subr.bf16.mxu0 0
      %1709 = vmatpush1.bf16.msra.mxu0 0
      %1710 = vmatprep.subr.bf16.mxu0 0
      %1711 = vmatpush1.bf16.msra.mxu0 0
      %1712 = vmatprep.subr.bf16.mxu0 0
      %1713 = vmatpush1.bf16.msra.mxu0 0
      %1714 = vmatprep.subr.bf16.mxu0 0
      %1715 = vmatpush1.bf16.msra.mxu0 %v1694
      %1716 = vmatprep.subr.bf16.mxu0 0
      %1717 = vmatpush1.bf16.msra.mxu0 %v1693
      %1718 = vmatprep.subr.bf16.mxu0 0
      %1719 = vmatpush1.bf16.msra.mxu0 %v1692
      %1720 = vmatprep.subr.bf16.mxu0 0
      %1721 = vmatpush1.bf16.msra.mxu0 %v1691
      %1722 = vmatprep.subr.bf16.mxu0 0
      %1723 = vmatpush2.bf16.msra.mxu0 0
      %1724 = vmatprep.subr.bf16.mxu0 0
      %1725 = vmatpush2.bf16.msra.mxu0 0
      %1726 = vmatprep.subr.bf16.mxu0 0
      %1727 = vmatpush2.bf16.msra.mxu0 0
      %1728 = vmatprep.subr.bf16.mxu0 0
      %1729 = vmatpush2.bf16.msra.mxu0 0
      %1730 = vmatprep.subr.bf16.mxu0 0
      %1731 = vmatpush2.bf16.msra.mxu0 0
      %1732 = vmatprep.subr.bf16.mxu0 0
      %1733 = vmatpush2.bf16.msra.mxu0 0
      %1734 = vmatprep.subr.bf16.mxu0 0
      %1735 = vmatpush2.bf16.msra.mxu0 0
      %1736 = vmatprep.subr.bf16.mxu0 0
      %1737 = vmatpush2.bf16.msra.mxu0 0
      %1738 = vmatprep.mubr.bf16.mxu0 0
      %1739 = vmatmul.mubr.bf16.gmra.mxu0 %v1704
      %v1740 = vpop.f32.mrf.mxu0
      %v1741 = vadd.f32 %v1700, %v1740
      %v1742 = vpop.f32.mrf.mxu0
      %v1743 = vpop.f32.mrf.mxu0
      %v1744 = vpop.f32.mrf.mxu0
      %1745 = vdwg.mxu0
      %v1747 = vlaneseq
      %v1748 = vshrl.u32 %v1747, 7
      %v1749 = vsub.s32 0, %v1748
      %v1750 = vrot.slane %v1681, %v1749
      %v1752 = vmul.f32 %v1750, %v1741
      %v1753 = vadd.f32 %v1585, %v1752
      %v1754 = vld [vmem:[%s23] sm:$0x1]
      %v1755 = vld [vmem:[%s24] sm:$0x1]
      %v1756 = vsel %vm818, %v1753, 0.0
      %1757 = vadd.xlane.f32.xlu0 %v1756
      %v1758 = vpop.xlane.xlu0 %1757
      %v1759 = vmul.f32 %v1758, %v822
      %v1760 = vsub.f32 %v1753, %v1759
      %v1761 = vmul.f32 %v1760, %v1760
      %v1762 = vsel %vm818, %v1761, 0.0
      %1763 = vadd.xlane.f32.xlu0 %v1762
      %v1764 = vpop.xlane.xlu0 %1763
      %v1765 = vmul.f32 %v1764, %v822
      %v1766 = vadd.f32 %v1765, 1e-05
      %v1767 = vrsqrt.pop %v1766
      %v1768 = vmul.f32 %v1760, %v1767
      %v1770 = vlaneseq
      %v1771 = vshrl.u32 %v1770, 7
      %v1772 = vsub.s32 0, %v1771
      %v1773 = vrot.slane %v1754, %v1772
      %v1775 = vmul.f32 %v1768, %v1773
      %v1777 = vlaneseq
      %v1778 = vshrl.u32 %v1777, 7
      %v1779 = vsub.s32 0, %v1778
      %v1780 = vrot.slane %v1755, %v1779
      %v1782 = vadd.f32 %v1775, %v1780
      %1783 = vst.msk [vmem:[%s813] sm:$0xff] %vm818, %v1782
      %p1784 = scmp.lt.s32.totalorder %s36, 1
      %s1785 = scalar_select %p1784, %s36, 1
      %s1786 = smul.addr %s1785, 8
      %s1787 = scalar_lea.vmem %s25, %s1786
      // Predicated region
      $region121: #{flamingo_forward.8} parent=119 // pred_check
        %p1788 = pneg %p599
      $region122: #{flamingo_forward.8} parent=119 // pred_check_branch
        %1790 = sbr.rel (%p1788) target = $region124
      $region123: #{flamingo_forward.8} parent=119 // pred_region
        _
      $region124: #{flamingo_forward.8} parent=119 // pred_fallthru
        _
    $region120: #{flamingo_forward.8} parent=5 // pred_fallthru
      _
    %p1791 = scmp.le.s32.totalorder 2, %s31
    // Predicated region
    $region125: #{flamingo_forward.8} parent=5 // pred_check
      %p1792 = pneg %p1791
    $region126: #{flamingo_forward.8} parent=5 // pred_check_branch
      %1794 = sbr.rel (%p1792) target = $region128
    $region127: #{flamingo_forward.8} parent=5 // pred_region
      %s1795 = ssub.s32 %s31, 2
      // Predicated region
      $region129: #{flamingo_forward.8} parent=127 // pred_check
        %p1796 = pneg %p605
      $region130: #{flamingo_forward.8} parent=127 // pred_check_branch
        %1798 = sbr.rel (%p1796) target = $region132
      $region131: #{flamingo_forward.8} parent=127 // pred_region
        %p1799 = scmp.lt.s32.totalorder %s37, 1
        %s1800 = scalar_select %p1799, %s37, 1
        %s1801 = smul.addr %s1800, 8
        %s1802 = scalar_lea.vmem %s25, %s1801
      $region132: #{flamingo_forward.8} parent=127 // pred_fallthru
        _
    $region128: #{flamingo_forward.8} parent=5 // pred_fallthru
      _
  $region6: #{flamingo_forward.8} parent=0 // loop_footer
    %s35 = sadd.s32 1, %s31
  $region7: #{flamingo_forward.8} parent=0 // loop_footer_branch
    %30 = sbr.rel target = $region3
  $region8: #{flamingo_forward.8} parent=0 // loop_exit
    _

// kernel: flamingo_forward.7
$region0: #{flamingo_forward.7}
  #allocation0 [shape = 'u32[]', space=smem, size = 0x4, offset = 0x4, fixed_abs, tag = 'smem constant byte address 0x4 - core index']
  #allocation1 [shape = 'u32[144,128]{1,0:T(1,128)}', space=vmem, size = 0x12000, scoped, tag = 'internal scratch']
  %s0 = inlined_call_operand.vmem [shape: f32[2,4,192], index: 0, kind: input, shape index: {}]
  %s1 = inlined_call_operand.vmem [shape: f32[192,32], index: 1, kind: input, shape index: {}]
  %s2 = inlined_call_operand.vmem [shape: f32[1,32], index: 2, kind: input, shape index: {}]
  %s3 = inlined_call_operand.vmem [shape: f32[4,32], index: 3, kind: input, shape index: {}]
  %s4 = inlined_call_operand.vmem [shape: f32[1,32], index: 4, kind: input, shape index: {}]
  %s5 = inlined_call_operand.vmem [shape: f32[1,32], index: 5, kind: input, shape index: {}]
  %s6 = inlined_call_operand.vmem [shape: f32[32,32], index: 6, kind: input, shape index: {}]
  %s7 = inlined_call_operand.vmem [shape: f32[1,32], index: 7, kind: input, shape index: {}]
  %s8 = inlined_call_operand.vmem [shape: f32[32,32], index: 8, kind: input, shape index: {}]
  %s9 = inlined_call_operand.vmem [shape: f32[1,32], index: 9, kind: input, shape index: {}]
  %s10 = inlined_call_operand.vmem [shape: f32[32,32], index: 10, kind: input, shape index: {}]
  %s11 = inlined_call_operand.vmem [shape: f32[1,32], index: 11, kind: input, shape index: {}]
  %s12 = inlined_call_operand.vmem [shape: f32[32,32], index: 12, kind: input, shape index: {}]
  %s13 = inlined_call_operand.vmem [shape: f32[1,32], index: 13, kind: input, shape index: {}]
  %s14 = inlined_call_operand.vmem [shape: f32[1,32], index: 14, kind: input, shape index: {}]
  %s15 = inlined_call_operand.vmem [shape: f32[1,32], index: 15, kind: input, shape index: {}]
  %s16 = inlined_call_operand.vmem [shape: f32[32,64], index: 16, kind: input, shape index: {}]
  %s17 = inlined_call_operand.vmem [shape: f32[1,64], index: 17, kind: input, shape index: {}]
  %s18 = inlined_call_operand.vmem [shape: f32[64,32], index: 18, kind: input, shape index: {}]
  %s19 = inlined_call_operand.vmem [shape: f32[1,32], index: 19, kind: input, shape index: {}]
  %s20 = inlined_call_operand.vmem [shape: f32[1,32], index: 20, kind: input, shape index: {}]
  %s21 = inlined_call_operand.vmem [shape: f32[1,32], index: 21, kind: input, shape index: {}]
  %s22 = inlined_call_operand.vmem [shape: f32[2,4,32], index: 22, kind: output, shape index: {}]
  %s23 = sld [smem:[#allocation0]]
  $region121: #{flamingo_forward.7} parent=0
    _
  %s25 = ssub.s32 1, %s23
  %s26 = scalar_select 0, %s25, %s23
  loop: start=0, step=1, limit=4
  $region2: #{flamingo_forward.7} parent=0 // loop_pre_header
    _
  $region3: #{flamingo_forward.7} parent=0 // loop_header
    %s28 = sphi 0, %s32
    %p29 = scmp.ge.s32.totalorder %s28, 4
    %s38 = sphi 0, %s40
    %s41 = sphi 0, %s38
    %s42 = sphi 0, %s41
    %s58 = sphi 0, %s42
    %s62 = sphi 0, %s62
    %s64 = sphi 0, %s62
    %s65 = sphi 0, %s64
    %s79 = sphi 0, %s65
    %s83 = sphi 0, %s83
    %s85 = sphi 0, %s83
    %s86 = sphi 0, %s85
    %s100 = sphi 0, %s86
    %s104 = sphi 0, %s104
    %s106 = sphi 0, %s104
    %s107 = sphi 0, %s106
    %s121 = sphi 0, %s107
    %s125 = sphi 0, %s125
    %s127 = sphi 0, %s125
    %s128 = sphi 0, %s127
    %s142 = sphi 0, %s128
    %s146 = sphi 0, %s146
    %s148 = sphi 0, %s146
    %s149 = sphi 0, %s148
    %s163 = sphi 0, %s149
    %s167 = sphi 0, %s167
    %s169 = sphi 0, %s167
    %s170 = sphi 0, %s169
    %s184 = sphi 0, %s170
    %s188 = sphi 0, %s188
    %s190 = sphi 0, %s188
    %s191 = sphi 0, %s190
    %s205 = sphi 0, %s191
    %s209 = sphi 0, %s209
    %s211 = sphi 0, %s209
    %s212 = sphi 0, %s211
    %s226 = sphi 0, %s212
    %s230 = sphi 0, %s230
    %s232 = sphi 0, %s230
    %s233 = sphi 0, %s232
    %s247 = sphi 0, %s233
    %s251 = sphi 0, %s251
    %s253 = sphi 0, %s251
    %s254 = sphi 0, %s253
    %s268 = sphi 0, %s254
    %s272 = sphi 0, %s272
    %s274 = sphi 0, %s272
    %s275 = sphi 0, %s274
    %s289 = sphi 0, %s275
    %s293 = sphi 0, %s293
    %s295 = sphi 0, %s293
    %s296 = sphi 0, %s295
    %s310 = sphi 0, %s296
    %s314 = sphi 0, %s314
    %s316 = sphi 0, %s314
    %s317 = sphi 0, %s316
    %s331 = sphi 0, %s317
    %s335 = sphi 0, %s335
    %s337 = sphi 0, %s335
    %s338 = sphi 0, %s337
    %s352 = sphi 0, %s338
    %s356 = sphi 0, %s356
    %s358 = sphi 0, %s356
    %s359 = sphi 0, %s358
    %s373 = sphi 0, %s359
    %s377 = sphi 0, %s377
    %s379 = sphi 0, %s377
    %s380 = sphi 0, %s379
    %s394 = sphi 0, %s380
    %s398 = sphi 0, %s398
    %s400 = sphi 0, %s398
    %s401 = sphi 0, %s400
    %s415 = sphi 0, %s401
    %s419 = sphi 0, %s419
    %s421 = sphi 0, %s419
    %s422 = sphi 0, %s421
    %s436 = sphi 0, %s422
    %s440 = sphi 0, %s440
    %s442 = sphi 0, %s440
    %s443 = sphi 0, %s442
    %s457 = sphi 0, %s443
    %s461 = sphi 0, %s461
    %s463 = sphi 0, %s461
    %s464 = sphi 0, %s463
    %s478 = sphi 0, %s464
    %s482 = sphi 0, %s482
    %s484 = sphi 0, %s482
    %s485 = sphi 0, %s484
    %s499 = sphi 0, %s485
    %s505 = sphi 0, %s507
    %s508 = sphi 0, %s505
    %s509 = sphi 0, %s508
    %s525 = sphi 0, %s509
  $region4: #{flamingo_forward.7} parent=0 // loop_header_branch
    %31 = sbr.rel (%p29) target = $region8
  $region5: #{flamingo_forward.7} parent=0 // loop_body
    %s33 = ssub.s32 %s28, 1
    %s34 = ssub.s32 %s28, 2
    %s35 = sadd.s32 %s28, 1
    %s36 = ssub.s32 %s28, %s35
    %p37 = scmp.eq.s32.totalorder %s36, 0
    %s39 = sadd.s32 %s38, 1
    %s40 = scalar_select %p37, %s38, %s39
    %p43 = pneg %p37
    %p44 = scmp.eq.s32.totalorder %s28, 1
    %p45 = por %p43, %p44
    %p46 = scmp.ne.s32.totalorder %s38, %s41
    %p47 = scmp.eq.s32.totalorder %s28, 0
    %p48 = por %p46, %p47
    %p49 = scmp.ne.s32.totalorder %s38, %s41
    %p50 = scmp.eq.s32.totalorder %s33, 1
    %p51 = por %p49, %p50
    %p52 = scmp.ne.s32.totalorder %s41, %s42
    %p53 = scmp.eq.s32.totalorder %s33, 0
    %p54 = por %p52, %p53
    %p55 = scmp.ne.s32.totalorder %s41, %s42
    %p56 = scmp.eq.s32.totalorder %s34, 1
    %p57 = por %p55, %p56
    %p59 = scmp.ne.s32.totalorder %s42, %s58
    %p60 = scmp.eq.s32.totalorder %s34, 0
    %p61 = por %p59, %p60
    %s63 = sadd.s32 %s62, 1
    %p66 = scmp.eq.s32.totalorder %s28, 1
    %p67 = scmp.ne.s32.totalorder %s62, %s64
    %p68 = scmp.eq.s32.totalorder %s28, 0
    %p69 = por %p67, %p68
    %p70 = scmp.ne.s32.totalorder %s62, %s64
    %p71 = scmp.eq.s32.totalorder %s33, 1
    %p72 = por %p70, %p71
    %p73 = scmp.ne.s32.totalorder %s64, %s65
    %p74 = scmp.eq.s32.totalorder %s33, 0
    %p75 = por %p73, %p74
    %p76 = scmp.ne.s32.totalorder %s64, %s65
    %p77 = scmp.eq.s32.totalorder %s34, 1
    %p78 = por %p76, %p77
    %p80 = scmp.ne.s32.totalorder %s65, %s79
    %p81 = scmp.eq.s32.totalorder %s34, 0
    %p82 = por %p80, %p81
    %s84 = sadd.s32 %s83, 1
    %p87 = scmp.eq.s32.totalorder %s28, 1
    %p88 = scmp.ne.s32.totalorder %s83, %s85
    %p89 = scmp.eq.s32.totalorder %s28, 0
    %p90 = por %p88, %p89
    %p91 = scmp.ne.s32.totalorder %s83, %s85
    %p92 = scmp.eq.s32.totalorder %s33, 1
    %p93 = por %p91, %p92
    %p94 = scmp.ne.s32.totalorder %s85, %s86
    %p95 = scmp.eq.s32.totalorder %s33, 0
    %p96 = por %p94, %p95
    %p97 = scmp.ne.s32.totalorder %s85, %s86
    %p98 = scmp.eq.s32.totalorder %s34, 1
    %p99 = por %p97, %p98
    %p101 = scmp.ne.s32.totalorder %s86, %s100
    %p102 = scmp.eq.s32.totalorder %s34, 0
    %p103 = por %p101, %p102
    %s105 = sadd.s32 %s104, 1
    %p108 = scmp.eq.s32.totalorder %s28, 1
    %p109 = scmp.ne.s32.totalorder %s104, %s106
    %p110 = scmp.eq.s32.totalorder %s28, 0
    %p111 = por %p109, %p110
    %p112 = scmp.ne.s32.totalorder %s104, %s106
    %p113 = scmp.eq.s32.totalorder %s33, 1
    %p114 = por %p112, %p113
    %p115 = scmp.ne.s32.totalorder %s106, %s107
    %p116 = scmp.eq.s32.totalorder %s33, 0
    %p117 = por %p115, %p116
    %p118 = scmp.ne.s32.totalorder %s106, %s107
    %p119 = scmp.eq.s32.totalorder %s34, 1
    %p120 = por %p118, %p119
    %p122 = scmp.ne.s32.totalorder %s107, %s121
    %p123 = scmp.eq.s32.totalorder %s34, 0
    %p124 = por %p122, %p123
    %s126 = sadd.s32 %s125, 1
    %p129 = scmp.eq.s32.totalorder %s28, 1
    %p130 = scmp.ne.s32.totalorder %s125, %s127
    %p131 = scmp.eq.s32.totalorder %s28, 0
    %p132 = por %p130, %p131
    %p133 = scmp.ne.s32.totalorder %s125, %s127
    %p134 = scmp.eq.s32.totalorder %s33, 1
    %p135 = por %p133, %p134
    %p136 = scmp.ne.s32.totalorder %s127, %s128
    %p137 = scmp.eq.s32.totalorder %s33, 0
    %p138 = por %p136, %p137
    %p139 = scmp.ne.s32.totalorder %s127, %s128
    %p140 = scmp.eq.s32.totalorder %s34, 1
    %p141 = por %p139, %p140
    %p143 = scmp.ne.s32.totalorder %s128, %s142
    %p144 = scmp.eq.s32.totalorder %s34, 0
    %p145 = por %p143, %p144
    %s147 = sadd.s32 %s146, 1
    %p150 = scmp.eq.s32.totalorder %s28, 1
    %p151 = scmp.ne.s32.totalorder %s146, %s148
    %p152 = scmp.eq.s32.totalorder %s28, 0
    %p153 = por %p151, %p152
    %p154 = scmp.ne.s32.totalorder %s146, %s148
    %p155 = scmp.eq.s32.totalorder %s33, 1
    %p156 = por %p154, %p155
    %p157 = scmp.ne.s32.totalorder %s148, %s149
    %p158 = scmp.eq.s32.totalorder %s33, 0
    %p159 = por %p157, %p158
    %p160 = scmp.ne.s32.totalorder %s148, %s149
    %p161 = scmp.eq.s32.totalorder %s34, 1
    %p162 = por %p160, %p161
    %p164 = scmp.ne.s32.totalorder %s149, %s163
    %p165 = scmp.eq.s32.totalorder %s34, 0
    %p166 = por %p164, %p165
    %s168 = sadd.s32 %s167, 1
    %p171 = scmp.eq.s32.totalorder %s28, 1
    %p172 = scmp.ne.s32.totalorder %s167, %s169
    %p173 = scmp.eq.s32.totalorder %s28, 0
    %p174 = por %p172, %p173
    %p175 = scmp.ne.s32.totalorder %s167, %s169
    %p176 = scmp.eq.s32.totalorder %s33, 1
    %p177 = por %p175, %p176
    %p178 = scmp.ne.s32.totalorder %s169, %s170
    %p179 = scmp.eq.s32.totalorder %s33, 0
    %p180 = por %p178, %p179
    %p181 = scmp.ne.s32.totalorder %s169, %s170
    %p182 = scmp.eq.s32.totalorder %s34, 1
    %p183 = por %p181, %p182
    %p185 = scmp.ne.s32.totalorder %s170, %s184
    %p186 = scmp.eq.s32.totalorder %s34, 0
    %p187 = por %p185, %p186
    %s189 = sadd.s32 %s188, 1
    %p192 = scmp.eq.s32.totalorder %s28, 1
    %p193 = scmp.ne.s32.totalorder %s188, %s190
    %p194 = scmp.eq.s32.totalorder %s28, 0
    %p195 = por %p193, %p194
    %p196 = scmp.ne.s32.totalorder %s188, %s190
    %p197 = scmp.eq.s32.totalorder %s33, 1
    %p198 = por %p196, %p197
    %p199 = scmp.ne.s32.totalorder %s190, %s191
    %p200 = scmp.eq.s32.totalorder %s33, 0
    %p201 = por %p199, %p200
    %p202 = scmp.ne.s32.totalorder %s190, %s191
    %p203 = scmp.eq.s32.totalorder %s34, 1
    %p204 = por %p202, %p203
    %p206 = scmp.ne.s32.totalorder %s191, %s205
    %p207 = scmp.eq.s32.totalorder %s34, 0
    %p208 = por %p206, %p207
    %s210 = sadd.s32 %s209, 1
    %p213 = scmp.eq.s32.totalorder %s28, 1
    %p214 = scmp.ne.s32.totalorder %s209, %s211
    %p215 = scmp.eq.s32.totalorder %s28, 0
    %p216 = por %p214, %p215
    %p217 = scmp.ne.s32.totalorder %s209, %s211
    %p218 = scmp.eq.s32.totalorder %s33, 1
    %p219 = por %p217, %p218
    %p220 = scmp.ne.s32.totalorder %s211, %s212
    %p221 = scmp.eq.s32.totalorder %s33, 0
    %p222 = por %p220, %p221
    %p223 = scmp.ne.s32.totalorder %s211, %s212
    %p224 = scmp.eq.s32.totalorder %s34, 1
    %p225 = por %p223, %p224
    %p227 = scmp.ne.s32.totalorder %s212, %s226
    %p228 = scmp.eq.s32.totalorder %s34, 0
    %p229 = por %p227, %p228
    %s231 = sadd.s32 %s230, 1
    %p234 = scmp.eq.s32.totalorder %s28, 1
    %p235 = scmp.ne.s32.totalorder %s230, %s232
    %p236 = scmp.eq.s32.totalorder %s28, 0
    %p237 = por %p235, %p236
    %p238 = scmp.ne.s32.totalorder %s230, %s232
    %p239 = scmp.eq.s32.totalorder %s33, 1
    %p240 = por %p238, %p239
    %p241 = scmp.ne.s32.totalorder %s232, %s233
    %p242 = scmp.eq.s32.totalorder %s33, 0
    %p243 = por %p241, %p242
    %p244 = scmp.ne.s32.totalorder %s232, %s233
    %p245 = scmp.eq.s32.totalorder %s34, 1
    %p246 = por %p244, %p245
    %p248 = scmp.ne.s32.totalorder %s233, %s247
    %p249 = scmp.eq.s32.totalorder %s34, 0
    %p250 = por %p248, %p249
    %s252 = sadd.s32 %s251, 1
    %p255 = scmp.eq.s32.totalorder %s28, 1
    %p256 = scmp.ne.s32.totalorder %s251, %s253
    %p257 = scmp.eq.s32.totalorder %s28, 0
    %p258 = por %p256, %p257
    %p259 = scmp.ne.s32.totalorder %s251, %s253
    %p260 = scmp.eq.s32.totalorder %s33, 1
    %p261 = por %p259, %p260
    %p262 = scmp.ne.s32.totalorder %s253, %s254
    %p263 = scmp.eq.s32.totalorder %s33, 0
    %p264 = por %p262, %p263
    %p265 = scmp.ne.s32.totalorder %s253, %s254
    %p266 = scmp.eq.s32.totalorder %s34, 1
    %p267 = por %p265, %p266
    %p269 = scmp.ne.s32.totalorder %s254, %s268
    %p270 = scmp.eq.s32.totalorder %s34, 0
    %p271 = por %p269, %p270
    %s273 = sadd.s32 %s272, 1
    %p276 = scmp.eq.s32.totalorder %s28, 1
    %p277 = scmp.ne.s32.totalorder %s272, %s274
    %p278 = scmp.eq.s32.totalorder %s28, 0
    %p279 = por %p277, %p278
    %p280 = scmp.ne.s32.totalorder %s272, %s274
    %p281 = scmp.eq.s32.totalorder %s33, 1
    %p282 = por %p280, %p281
    %p283 = scmp.ne.s32.totalorder %s274, %s275
    %p284 = scmp.eq.s32.totalorder %s33, 0
    %p285 = por %p283, %p284
    %p286 = scmp.ne.s32.totalorder %s274, %s275
    %p287 = scmp.eq.s32.totalorder %s34, 1
    %p288 = por %p286, %p287
    %p290 = scmp.ne.s32.totalorder %s275, %s289
    %p291 = scmp.eq.s32.totalorder %s34, 0
    %p292 = por %p290, %p291
    %s294 = sadd.s32 %s293, 1
    %p297 = scmp.eq.s32.totalorder %s28, 1
    %p298 = scmp.ne.s32.totalorder %s293, %s295
    %p299 = scmp.eq.s32.totalorder %s28, 0
    %p300 = por %p298, %p299
    %p301 = scmp.ne.s32.totalorder %s293, %s295
    %p302 = scmp.eq.s32.totalorder %s33, 1
    %p303 = por %p301, %p302
    %p304 = scmp.ne.s32.totalorder %s295, %s296
    %p305 = scmp.eq.s32.totalorder %s33, 0
    %p306 = por %p304, %p305
    %p307 = scmp.ne.s32.totalorder %s295, %s296
    %p308 = scmp.eq.s32.totalorder %s34, 1
    %p309 = por %p307, %p308
    %p311 = scmp.ne.s32.totalorder %s296, %s310
    %p312 = scmp.eq.s32.totalorder %s34, 0
    %p313 = por %p311, %p312
    %s315 = sadd.s32 %s314, 1
    %p318 = scmp.eq.s32.totalorder %s28, 1
    %p319 = scmp.ne.s32.totalorder %s314, %s316
    %p320 = scmp.eq.s32.totalorder %s28, 0
    %p321 = por %p319, %p320
    %p322 = scmp.ne.s32.totalorder %s314, %s316
    %p323 = scmp.eq.s32.totalorder %s33, 1
    %p324 = por %p322, %p323
    %p325 = scmp.ne.s32.totalorder %s316, %s317
    %p326 = scmp.eq.s32.totalorder %s33, 0
    %p327 = por %p325, %p326
    %p328 = scmp.ne.s32.totalorder %s316, %s317
    %p329 = scmp.eq.s32.totalorder %s34, 1
    %p330 = por %p328, %p329
    %p332 = scmp.ne.s32.totalorder %s317, %s331
    %p333 = scmp.eq.s32.totalorder %s34, 0
    %p334 = por %p332, %p333
    %s336 = sadd.s32 %s335, 1
    %p339 = scmp.eq.s32.totalorder %s28, 1
    %p340 = scmp.ne.s32.totalorder %s335, %s337
    %p341 = scmp.eq.s32.totalorder %s28, 0
    %p342 = por %p340, %p341
    %p343 = scmp.ne.s32.totalorder %s335, %s337
    %p344 = scmp.eq.s32.totalorder %s33, 1
    %p345 = por %p343, %p344
    %p346 = scmp.ne.s32.totalorder %s337, %s338
    %p347 = scmp.eq.s32.totalorder %s33, 0
    %p348 = por %p346, %p347
    %p349 = scmp.ne.s32.totalorder %s337, %s338
    %p350 = scmp.eq.s32.totalorder %s34, 1
    %p351 = por %p349, %p350
    %p353 = scmp.ne.s32.totalorder %s338, %s352
    %p354 = scmp.eq.s32.totalorder %s34, 0
    %p355 = por %p353, %p354
    %s357 = sadd.s32 %s356, 1
    %p360 = scmp.eq.s32.totalorder %s28, 1
    %p361 = scmp.ne.s32.totalorder %s356, %s358
    %p362 = scmp.eq.s32.totalorder %s28, 0
    %p363 = por %p361, %p362
    %p364 = scmp.ne.s32.totalorder %s356, %s358
    %p365 = scmp.eq.s32.totalorder %s33, 1
    %p366 = por %p364, %p365
    %p367 = scmp.ne.s32.totalorder %s358, %s359
    %p368 = scmp.eq.s32.totalorder %s33, 0
    %p369 = por %p367, %p368
    %p370 = scmp.ne.s32.totalorder %s358, %s359
    %p371 = scmp.eq.s32.totalorder %s34, 1
    %p372 = por %p370, %p371
    %p374 = scmp.ne.s32.totalorder %s359, %s373
    %p375 = scmp.eq.s32.totalorder %s34, 0
    %p376 = por %p374, %p375
    %s378 = sadd.s32 %s377, 1
    %p381 = scmp.eq.s32.totalorder %s28, 1
    %p382 = scmp.ne.s32.totalorder %s377, %s379
    %p383 = scmp.eq.s32.totalorder %s28, 0
    %p384 = por %p382, %p383
    %p385 = scmp.ne.s32.totalorder %s377, %s379
    %p386 = scmp.eq.s32.totalorder %s33, 1
    %p387 = por %p385, %p386
    %p388 = scmp.ne.s32.totalorder %s379, %s380
    %p389 = scmp.eq.s32.totalorder %s33, 0
    %p390 = por %p388, %p389
    %p391 = scmp.ne.s32.totalorder %s379, %s380
    %p392 = scmp.eq.s32.totalorder %s34, 1
    %p393 = por %p391, %p392
    %p395 = scmp.ne.s32.totalorder %s380, %s394
    %p396 = scmp.eq.s32.totalorder %s34, 0
    %p397 = por %p395, %p396
    %s399 = sadd.s32 %s398, 1
    %p402 = scmp.eq.s32.totalorder %s28, 1
    %p403 = scmp.ne.s32.totalorder %s398, %s400
    %p404 = scmp.eq.s32.totalorder %s28, 0
    %p405 = por %p403, %p404
    %p406 = scmp.ne.s32.totalorder %s398, %s400
    %p407 = scmp.eq.s32.totalorder %s33, 1
    %p408 = por %p406, %p407
    %p409 = scmp.ne.s32.totalorder %s400, %s401
    %p410 = scmp.eq.s32.totalorder %s33, 0
    %p411 = por %p409, %p410
    %p412 = scmp.ne.s32.totalorder %s400, %s401
    %p413 = scmp.eq.s32.totalorder %s34, 1
    %p414 = por %p412, %p413
    %p416 = scmp.ne.s32.totalorder %s401, %s415
    %p417 = scmp.eq.s32.totalorder %s34, 0
    %p418 = por %p416, %p417
    %s420 = sadd.s32 %s419, 1
    %p423 = scmp.eq.s32.totalorder %s28, 1
    %p424 = scmp.ne.s32.totalorder %s419, %s421
    %p425 = scmp.eq.s32.totalorder %s28, 0
    %p426 = por %p424, %p425
    %p427 = scmp.ne.s32.totalorder %s419, %s421
    %p428 = scmp.eq.s32.totalorder %s33, 1
    %p429 = por %p427, %p428
    %p430 = scmp.ne.s32.totalorder %s421, %s422
    %p431 = scmp.eq.s32.totalorder %s33, 0
    %p432 = por %p430, %p431
    %p433 = scmp.ne.s32.totalorder %s421, %s422
    %p434 = scmp.eq.s32.totalorder %s34, 1
    %p435 = por %p433, %p434
    %p437 = scmp.ne.s32.totalorder %s422, %s436
    %p438 = scmp.eq.s32.totalorder %s34, 0
    %p439 = por %p437, %p438
    %s441 = sadd.s32 %s440, 1
    %p444 = scmp.eq.s32.totalorder %s28, 1
    %p445 = scmp.ne.s32.totalorder %s440, %s442
    %p446 = scmp.eq.s32.totalorder %s28, 0
    %p447 = por %p445, %p446
    %p448 = scmp.ne.s32.totalorder %s440, %s442
    %p449 = scmp.eq.s32.totalorder %s33, 1
    %p450 = por %p448, %p449
    %p451 = scmp.ne.s32.totalorder %s442, %s443
    %p452 = scmp.eq.s32.totalorder %s33, 0
    %p453 = por %p451, %p452
    %p454 = scmp.ne.s32.totalorder %s442, %s443
    %p455 = scmp.eq.s32.totalorder %s34, 1
    %p456 = por %p454, %p455
    %p458 = scmp.ne.s32.totalorder %s443, %s457
    %p459 = scmp.eq.s32.totalorder %s34, 0
    %p460 = por %p458, %p459
    %s462 = sadd.s32 %s461, 1
    %p465 = scmp.eq.s32.totalorder %s28, 1
    %p466 = scmp.ne.s32.totalorder %s461, %s463
    %p467 = scmp.eq.s32.totalorder %s28, 0
    %p468 = por %p466, %p467
    %p469 = scmp.ne.s32.totalorder %s461, %s463
    %p470 = scmp.eq.s32.totalorder %s33, 1
    %p471 = por %p469, %p470
    %p472 = scmp.ne.s32.totalorder %s463, %s464
    %p473 = scmp.eq.s32.totalorder %s33, 0
    %p474 = por %p472, %p473
    %p475 = scmp.ne.s32.totalorder %s463, %s464
    %p476 = scmp.eq.s32.totalorder %s34, 1
    %p477 = por %p475, %p476
    %p479 = scmp.ne.s32.totalorder %s464, %s478
    %p480 = scmp.eq.s32.totalorder %s34, 0
    %p481 = por %p479, %p480
    %s483 = sadd.s32 %s482, 1
    %p486 = scmp.eq.s32.totalorder %s28, 1
    %p487 = scmp.ne.s32.totalorder %s482, %s484
    %p488 = scmp.eq.s32.totalorder %s28, 0
    %p489 = por %p487, %p488
    %p490 = scmp.ne.s32.totalorder %s482, %s484
    %p491 = scmp.eq.s32.totalorder %s33, 1
    %p492 = por %p490, %p491
    %p493 = scmp.ne.s32.totalorder %s484, %s485
    %p494 = scmp.eq.s32.totalorder %s33, 0
    %p495 = por %p493, %p494
    %p496 = scmp.ne.s32.totalorder %s484, %s485
    %p497 = scmp.eq.s32.totalorder %s34, 1
    %p498 = por %p496, %p497
    %p500 = scmp.ne.s32.totalorder %s485, %s499
    %p501 = scmp.eq.s32.totalorder %s34, 0
    %p502 = por %p500, %p501
    %s503 = ssub.s32 %s28, %s35
    %p504 = scmp.eq.s32.totalorder %s503, 0
    %s506 = sadd.s32 %s505, 1
    %s507 = scalar_select %p504, %s505, %s506
    %p510 = pneg %p504
    %p511 = scmp.eq.s32.totalorder %s28, 1
    %p512 = por %p510, %p511
    %p513 = scmp.ne.s32.totalorder %s505, %s508
    %p514 = scmp.eq.s32.totalorder %s28, 0
    %p515 = por %p513, %p514
    %p516 = scmp.ne.s32.totalorder %s505, %s508
    %p517 = scmp.eq.s32.totalorder %s33, 1
    %p518 = por %p516, %p517
    %p519 = scmp.ne.s32.totalorder %s508, %s509
    %p520 = scmp.eq.s32.totalorder %s33, 0
    %p521 = por %p519, %p520
    %p522 = scmp.ne.s32.totalorder %s508, %s509
    %p523 = scmp.eq.s32.totalorder %s34, 1
    %p524 = por %p522, %p523
    %p526 = scmp.ne.s32.totalorder %s509, %s525
    %p527 = scmp.eq.s32.totalorder %s34, 0
    %p528 = por %p526, %p527
    %p529 = scmp.le.s32.totalorder 1, %s28
    %p530 = scmp.lt.s32.totalorder %s28, 3
    %p531 = pnand %p529, %p530
    %p532 = pneg %p531
    // Predicated region
    $region9: #{flamingo_forward.7} parent=5 // pred_check
      _
    $region10: #{flamingo_forward.7} parent=5 // pred_check_branch
      %534 = sbr.rel (%p531) target = $region12
    $region11: #{flamingo_forward.7} parent=5 // pred_region
      %s535 = ssub.s32 %s28, 1
      // Predicated region
      $region13: #{flamingo_forward.7} parent=11 // pred_check
        %p536 = pneg %p75
      $region14: #{flamingo_forward.7} parent=11 // pred_check_branch
        %538 = sbr.rel (%p536) target = $region16
      $region15: #{flamingo_forward.7} parent=11 // pred_region
        _
      $region16: #{flamingo_forward.7} parent=11 // pred_fallthru
        _
      // Predicated region
      $region17: #{flamingo_forward.7} parent=11 // pred_check
        %p539 = pneg %p96
      $region18: #{flamingo_forward.7} parent=11 // pred_check_branch
        %541 = sbr.rel (%p539) target = $region20
      $region19: #{flamingo_forward.7} parent=11 // pred_region
        _
      $region20: #{flamingo_forward.7} parent=11 // pred_fallthru
        _
      // Predicated region
      $region21: #{flamingo_forward.7} parent=11 // pred_check
        %p542 = pneg %p117
      $region22: #{flamingo_forward.7} parent=11 // pred_check_branch
        %544 = sbr.rel (%p542) target = $region24
      $region23: #{flamingo_forward.7} parent=11 // pred_region
        _
      $region24: #{flamingo_forward.7} parent=11 // pred_fallthru
        _
      // Predicated region
      $region25: #{flamingo_forward.7} parent=11 // pred_check
        %p545 = pneg %p138
      $region26: #{flamingo_forward.7} parent=11 // pred_check_branch
        %547 = sbr.rel (%p545) target = $region28
      $region27: #{flamingo_forward.7} parent=11 // pred_region
        _
      $region28: #{flamingo_forward.7} parent=11 // pred_fallthru
        _
      // Predicated region
      $region29: #{flamingo_forward.7} parent=11 // pred_check
        %p548 = pneg %p159
      $region30: #{flamingo_forward.7} parent=11 // pred_check_branch
        %550 = sbr.rel (%p548) target = $region32
      $region31: #{flamingo_forward.7} parent=11 // pred_region
        _
      $region32: #{flamingo_forward.7} parent=11 // pred_fallthru
        _
      // Predicated region
      $region33: #{flamingo_forward.7} parent=11 // pred_check
        %p551 = pneg %p180
      $region34: #{flamingo_forward.7} parent=11 // pred_check_branch
        %553 = sbr.rel (%p551) target = $region36
      $region35: #{flamingo_forward.7} parent=11 // pred_region
        _
      $region36: #{flamingo_forward.7} parent=11 // pred_fallthru
        _
      // Predicated region
      $region37: #{flamingo_forward.7} parent=11 // pred_check
        %p554 = pneg %p201
      $region38: #{flamingo_forward.7} parent=11 // pred_check_branch
        %556 = sbr.rel (%p554) target = $region40
      $region39: #{flamingo_forward.7} parent=11 // pred_region
        _
      $region40: #{flamingo_forward.7} parent=11 // pred_fallthru
        _
      // Predicated region
      $region41: #{flamingo_forward.7} parent=11 // pred_check
        %p557 = pneg %p222
      $region42: #{flamingo_forward.7} parent=11 // pred_check_branch
        %559 = sbr.rel (%p557) target = $region44
      $region43: #{flamingo_forward.7} parent=11 // pred_region
        _
      $region44: #{flamingo_forward.7} parent=11 // pred_fallthru
        _
      // Predicated region
      $region45: #{flamingo_forward.7} parent=11 // pred_check
        %p560 = pneg %p243
      $region46: #{flamingo_forward.7} parent=11 // pred_check_branch
        %562 = sbr.rel (%p560) target = $region48
      $region47: #{flamingo_forward.7} parent=11 // pred_region
        _
      $region48: #{flamingo_forward.7} parent=11 // pred_fallthru
        _
      // Predicated region
      $region49: #{flamingo_forward.7} parent=11 // pred_check
        %p563 = pneg %p264
      $region50: #{flamingo_forward.7} parent=11 // pred_check_branch
        %565 = sbr.rel (%p563) target = $region52
      $region51: #{flamingo_forward.7} parent=11 // pred_region
        _
      $region52: #{flamingo_forward.7} parent=11 // pred_fallthru
        _
      // Predicated region
      $region53: #{flamingo_forward.7} parent=11 // pred_check
        %p566 = pneg %p285
      $region54: #{flamingo_forward.7} parent=11 // pred_check_branch
        %568 = sbr.rel (%p566) target = $region56
      $region55: #{flamingo_forward.7} parent=11 // pred_region
        _
      $region56: #{flamingo_forward.7} parent=11 // pred_fallthru
        _
      // Predicated region
      $region57: #{flamingo_forward.7} parent=11 // pred_check
        %p569 = pneg %p306
      $region58: #{flamingo_forward.7} parent=11 // pred_check_branch
        %571 = sbr.rel (%p569) target = $region60
      $region59: #{flamingo_forward.7} parent=11 // pred_region
        _
      $region60: #{flamingo_forward.7} parent=11 // pred_fallthru
        _
      // Predicated region
      $region61: #{flamingo_forward.7} parent=11 // pred_check
        %p572 = pneg %p327
      $region62: #{flamingo_forward.7} parent=11 // pred_check_branch
        %574 = sbr.rel (%p572) target = $region64
      $region63: #{flamingo_forward.7} parent=11 // pred_region
        _
      $region64: #{flamingo_forward.7} parent=11 // pred_fallthru
        _
      // Predicated region
      $region65: #{flamingo_forward.7} parent=11 // pred_check
        %p575 = pneg %p348
      $region66: #{flamingo_forward.7} parent=11 // pred_check_branch
        %577 = sbr.rel (%p575) target = $region68
      $region67: #{flamingo_forward.7} parent=11 // pred_region
        _
      $region68: #{flamingo_forward.7} parent=11 // pred_fallthru
        _
      // Predicated region
      $region69: #{flamingo_forward.7} parent=11 // pred_check
        %p578 = pneg %p369
      $region70: #{flamingo_forward.7} parent=11 // pred_check_branch
        %580 = sbr.rel (%p578) target = $region72
      $region71: #{flamingo_forward.7} parent=11 // pred_region
        _
      $region72: #{flamingo_forward.7} parent=11 // pred_fallthru
        _
      // Predicated region
      $region73: #{flamingo_forward.7} parent=11 // pred_check
        %p581 = pneg %p390
      $region74: #{flamingo_forward.7} parent=11 // pred_check_branch
        %583 = sbr.rel (%p581) target = $region76
      $region75: #{flamingo_forward.7} parent=11 // pred_region
        _
      $region76: #{flamingo_forward.7} parent=11 // pred_fallthru
        _
      // Predicated region
      $region77: #{flamingo_forward.7} parent=11 // pred_check
        %p584 = pneg %p411
      $region78: #{flamingo_forward.7} parent=11 // pred_check_branch
        %586 = sbr.rel (%p584) target = $region80
      $region79: #{flamingo_forward.7} parent=11 // pred_region
        _
      $region80: #{flamingo_forward.7} parent=11 // pred_fallthru
        _
      // Predicated region
      $region81: #{flamingo_forward.7} parent=11 // pred_check
        %p587 = pneg %p432
      $region82: #{flamingo_forward.7} parent=11 // pred_check_branch
        %589 = sbr.rel (%p587) target = $region84
      $region83: #{flamingo_forward.7} parent=11 // pred_region
        _
      $region84: #{flamingo_forward.7} parent=11 // pred_fallthru
        _
      // Predicated region
      $region85: #{flamingo_forward.7} parent=11 // pred_check
        %p590 = pneg %p453
      $region86: #{flamingo_forward.7} parent=11 // pred_check_branch
        %592 = sbr.rel (%p590) target = $region88
      $region87: #{flamingo_forward.7} parent=11 // pred_region
        _
      $region88: #{flamingo_forward.7} parent=11 // pred_fallthru
        _
      // Predicated region
      $region89: #{flamingo_forward.7} parent=11 // pred_check
        %p593 = pneg %p474
      $region90: #{flamingo_forward.7} parent=11 // pred_check_branch
        %595 = sbr.rel (%p593) target = $region92
      $region91: #{flamingo_forward.7} parent=11 // pred_region
        _
      $region92: #{flamingo_forward.7} parent=11 // pred_fallthru
        _
      // Predicated region
      $region93: #{flamingo_forward.7} parent=11 // pred_check
        %p596 = pneg %p495
      $region94: #{flamingo_forward.7} parent=11 // pred_check_branch
        %598 = sbr.rel (%p596) target = $region96
      $region95: #{flamingo_forward.7} parent=11 // pred_region
        _
      $region96: #{flamingo_forward.7} parent=11 // pred_fallthru
        _
    $region12: #{flamingo_forward.7} parent=5 // pred_fallthru
      _
    %p599 = scmp.lt.s32.totalorder %s28, 2
    // Predicated region
    $region97: #{flamingo_forward.7} parent=5 // pred_check
      %p600 = pneg %p599
    $region98: #{flamingo_forward.7} parent=5 // pred_check_branch
      %602 = sbr.rel (%p600) target = $region100
    $region99: #{flamingo_forward.7} parent=5 // pred_region
      // Predicated region
      $region101: #{flamingo_forward.7} parent=99 // pred_check
        %p603 = pneg %p48
      $region102: #{flamingo_forward.7} parent=99 // pred_check_branch
        %605 = sbr.rel (%p603) target = $region104
      $region103: #{flamingo_forward.7} parent=99 // pred_region
        %p606 = scmp.lt.s32.totalorder %s28, 1
        %s607 = scalar_select %p606, %s28, 1
        %s608 = smul.addr %s607, 2
        %s609 = smul.addr %s608, 4
        %s610 = scalar_lea.vmem %s0, %s609
      $region104: #{flamingo_forward.7} parent=99 // pred_fallthru
        _
    $region100: #{flamingo_forward.7} parent=5 // pred_fallthru
      _
    %p611 = scmp.le.s32.totalorder 1, %s28
    %p612 = scmp.lt.s32.totalorder %s28, 3
    %p613 = pnand %p611, %p612
    %p614 = pneg %p613
    // Predicated region
    $region105: #{flamingo_forward.7} parent=5 // pred_check
      _
    $region106: #{flamingo_forward.7} parent=5 // pred_check_branch
      %616 = sbr.rel (%p613) target = $region108
    $region107: #{flamingo_forward.7} parent=5 // pred_region
      %s617 = ssub.s32 %s28, 1
      %p618 = scmp.lt.s32.totalorder %s33, 1
      %s619 = scalar_select %p618, %s33, 1
      %s620 = smul.addr %s619, 2
      %s621 = smul.addr %s620, 4
      %s622 = scalar_lea.vmem %s0, %s621
      %p623 = pneg %p54
      %p624 = pneg %p51
      %p625 = pneg %p75
      %p626 = pneg %p72
      %p627 = pneg %p96
      %p628 = pneg %p93
      %p629 = pneg %p117
      %p630 = pneg %p114
      %p631 = pneg %p138
      %p632 = pneg %p135
      %p633 = pneg %p159
      %p634 = pneg %p156
      %p635 = pneg %p180
      %p636 = pneg %p177
      %p637 = pneg %p201
      %p638 = pneg %p198
      %p639 = pneg %p222
      %p640 = pneg %p219
      %p641 = pneg %p243
      %p642 = pneg %p240
      %p643 = pneg %p264
      %p644 = pneg %p261
      %p645 = pneg %p285
      %p646 = pneg %p282
      %p647 = pneg %p306
      %p648 = pneg %p303
      %p649 = pneg %p327
      %p650 = pneg %p324
      %p651 = pneg %p348
      %p652 = pneg %p345
      %p653 = pneg %p369
      %p654 = pneg %p366
      %p655 = pneg %p390
      %p656 = pneg %p387
      %p657 = pneg %p411
      %p658 = pneg %p408
      %p659 = pneg %p432
      %p660 = pneg %p429
      %p661 = pneg %p453
      %p662 = pneg %p450
      %p663 = pneg %p474
      %p664 = pneg %p471
      %p665 = pneg %p495
      %p666 = pneg %p492
      %p667 = pneg %p521
      %p668 = pneg %p518
      %p669 = scmp.lt.s32.totalorder %s33, 1
      %s670 = scalar_select %p669, %s33, 1
      %s671 = smul.addr %s670, 4
      %s672 = scalar_lea.vmem %s22, %s671
      %p673 = scmp.lt.s32.totalorder %s33, 1
      %s674 = scalar_select %p673, %s33, 1
      %s675 = smul.addr %s674, 2
      %s676 = smul.addr %s675, 4
      %s677 = scalar_lea.vmem %s0, %s676
      %p678 = scmp.lt.s32.totalorder %s33, 1
      %s679 = scalar_select %p678, %s33, 1
      %s680 = smul.addr %s679, 4
      %s681 = scalar_lea.vmem %s22, %s680
      %v683 = vld [vmem:[%s677] sm:$0xff]
      %v684 = vld [vmem:[%s1] sm:$0xff]
      %v685 = vld [vmem:[%s1 + $0x8] sm:$0xff]
      %v686 = vld [vmem:[%s1 + $0x10] sm:$0xff]
      %v687 = vld [vmem:[%s1 + $0x18] sm:$0xff]
      %v688 = vld [vmem:[%s1 + $0x20] sm:$0xff]
      %v689 = vld [vmem:[%s1 + $0x28] sm:$0xff]
      %v690 = vld [vmem:[%s1 + $0x30] sm:$0xff]
      %v691 = vld [vmem:[%s1 + $0x38] sm:$0xff]
      %v692 = vld [vmem:[%s1 + $0x40] sm:$0xff]
      %v693 = vld [vmem:[%s1 + $0x48] sm:$0xff]
      %v694 = vld [vmem:[%s1 + $0x50] sm:$0xff]
      %v695 = vld [vmem:[%s1 + $0x58] sm:$0xff]
      %v696 = vld [vmem:[%s1 + $0x60] sm:$0xff]
      %v697 = vld [vmem:[%s1 + $0x68] sm:$0xff]
      %v698 = vld [vmem:[%s1 + $0x70] sm:$0xff]
      %v699 = vld [vmem:[%s1 + $0x78] sm:$0xff]
      %v700 = vld [vmem:[%s1 + $0x80] sm:$0xff]
      %v701 = vld [vmem:[%s1 + $0x88] sm:$0xff]
      %v702 = vld [vmem:[%s1 + $0x90] sm:$0xff]
      %v703 = vld [vmem:[%s1 + $0x98] sm:$0xff]
      %v704 = vld [vmem:[%s1 + $0xa0] sm:$0xff]
      %v705 = vld [vmem:[%s1 + $0xa8] sm:$0xff]
      %v706 = vld [vmem:[%s1 + $0xb0] sm:$0xff]
      %v707 = vld [vmem:[%s1 + $0xb8] sm:$0xff]
      %v709 = vcombine.high %v683, %v683
      %v711 = vpack.c.bf16 %v683, %v683
      %v712 = vpack.c.bf16 %v709, %v709
      %v713 = vpack.c.bf16 %v685, %v684
      %v714 = vpack.c.bf16 %v687, %v686
      %v715 = vpack.c.bf16 %v689, %v688
      %v716 = vpack.c.bf16 %v691, %v690
      %v717 = vpack.c.bf16 %v693, %v692
      %v718 = vpack.c.bf16 %v695, %v694
      %v719 = vpack.c.bf16 %v697, %v696
      %v720 = vpack.c.bf16 %v699, %v698
      %v721 = vpack.c.bf16 %v701, %v700
      %v722 = vpack.c.bf16 %v703, %v702
      %v723 = vpack.c.bf16 %v705, %v704
      %v724 = vpack.c.bf16 %v707, %v706
      %v725 = vld [vmem:[%s2] sm:$0x1]
      %v727 = vlaneseq
      %v728 = vshrl.u32 %v727, 7
      %v729 = vsub.s32 0, %v728
      %v730 = vrot.slane %v725, %v729
      %vm732 = vcmask 523264
      %v734 = vsel %vm732, %v712, 0
      %736 = vmatprep.subr.bf16.mxu0 0
      %737 = vmatpush1.bf16.msra.mxu0 %v720
      %738 = vmatprep.subr.bf16.mxu0 0
      %739 = vmatpush1.bf16.msra.mxu0 %v719
      %740 = vmatprep.subr.bf16.mxu0 0
      %741 = vmatpush1.bf16.msra.mxu0 %v718
      %742 = vmatprep.subr.bf16.mxu0 0
      %743 = vmatpush1.bf16.msra.mxu0 %v717
      %744 = vmatprep.subr.bf16.mxu0 0
      %745 = vmatpush1.bf16.msra.mxu0 %v716
      %746 = vmatprep.subr.bf16.mxu0 0
      %747 = vmatpush1.bf16.msra.mxu0 %v715
      %748 = vmatprep.subr.bf16.mxu0 0
      %749 = vmatpush1.bf16.msra.mxu0 %v714
      %750 = vmatprep.subr.bf16.mxu0 0
      %751 = vmatpush1.bf16.msra.mxu0 %v713
      %752 = vmatprep.subr.bf16.mxu0 0
      %753 = vmatpush2.bf16.msra.mxu0 0
      %754 = vmatprep.subr.bf16.mxu0 0
      %755 = vmatpush2.bf16.msra.mxu0 0
      %756 = vmatprep.subr.bf16.mxu0 0
      %757 = vmatpush2.bf16.msra.mxu0 0
      %758 = vmatprep.subr.bf16.mxu0 0
      %759 = vmatpush2.bf16.msra.mxu0 0
      %760 = vmatprep.subr.bf16.mxu0 0
      %761 = vmatpush2.bf16.msra.mxu0 %v724
      %762 = vmatprep.subr.bf16.mxu0 0
      %763 = vmatpush2.bf16.msra.mxu0 %v723
      %764 = vmatprep.subr.bf16.mxu0 0
      %765 = vmatpush2.bf16.msra.mxu0 %v722
      %766 = vmatprep.subr.bf16.mxu0 0
      %767 = vmatpush2.bf16.msra.mxu0 %v721
      %768 = vmatprep.mubr.bf16.mxu0 %v734
      %769 = vmatmul.mubr.bf16.gmra.mxu0 %v711
      %v770 = vpop.f32.mrf.mxu0
      %v771 = vadd.f32 %v730, %v770
      %v772 = vpop.f32.mrf.mxu0
      %v773 = vpop.f32.mrf.mxu0
      %v774 = vpop.f32.mrf.mxu0
      %775 = vdwg.mxu0
      %v776 = vld [vmem:[%s3] sm:$0xf]
      %v777 = vadd.f32 %v771, %v776
      %v778 = vld [vmem:[%s4] sm:$0x1]
      %v779 = vld [vmem:[%s5] sm:$0x1]
      %vm780 = vcmask 257024
      %v781 = vsel %vm780, %v777, 0.0
      %782 = vadd.xlane.f32.xlu0 %v781
      %v783 = vpop.xlane.xlu0 %782
      %v784 = vrcp.pop 32.0
      %v785 = vmul.f32 %v783, %v784
      %v786 = vsub.f32 %v777, %v785
      %v787 = vmul.f32 %v786, %v786
      %v788 = vsel %vm780, %v787, 0.0
      %789 = vadd.xlane.f32.xlu0 %v788
      %v790 = vpop.xlane.xlu0 %789
      %v791 = vmul.f32 %v790, %v784
      %v792 = vadd.f32 %v791, 1e-05
      %v793 = vrsqrt.pop %v792
      %v794 = vmul.f32 %v786, %v793
      %v796 = vlaneseq
      %v797 = vshrl.u32 %v796, 7
      %v798 = vsub.s32 0, %v797
      %v799 = vrot.slane %v778, %v798
      %v801 = vmul.f32 %v794, %v799
      %v803 = vlaneseq
      %v804 = vshrl.u32 %v803, 7
      %v805 = vsub.s32 0, %v804
      %v806 = vrot.slane %v779, %v805
      %v808 = vadd.f32 %v801, %v806
      %v809 = vld [vmem:[%s6] sm:$0xff]
      %v810 = vld [vmem:[%s6 + $0x8] sm:$0xff]
      %v811 = vld [vmem:[%s6 + $0x10] sm:$0xff]
      %v812 = vld [vmem:[%s6 + $0x18] sm:$0xff]
      %v813 = vpack.c.bf16 %v808, %v808
      %v814 = vpack.c.bf16 %v810, %v809
      %v815 = vpack.c.bf16 %v812, %v811
      %v816 = vld [vmem:[%s7] sm:$0x1]
      %v818 = vlaneseq
      %v819 = vshrl.u32 %v818, 7
      %v820 = vsub.s32 0, %v819
      %v821 = vrot.slane %v816, %v820
      %vm823 = vcmask 261120
      %v825 = vsel %vm823, %v813, 0
      %827 = vmatprep.subr.bf16.mxu0 0
      %828 = vmatpush1.bf16.msra.mxu0 0
      %829 = vmatprep.subr.bf16.mxu0 0
      %830 = vmatpush1.bf16.msra.mxu0 0
      %831 = vmatprep.subr.bf16.mxu0 0
      %832 = vmatpush1.bf16.msra.mxu0 0
      %833 = vmatprep.subr.bf16.mxu0 0
      %834 = vmatpush1.bf16.msra.mxu0 0
      %835 = vmatprep.subr.bf16.mxu0 0
      %836 = vmatpush1.bf16.msra.mxu0 0
      %837 = vmatprep.subr.bf16.mxu0 0
      %838 = vmatpush1.bf16.msra.mxu0 0
      %839 = vmatprep.subr.bf16.mxu0 0
      %840 = vmatpush1.bf16.msra.mxu0 %v815
      %841 = vmatprep.subr.bf16.mxu0 0
      %842 = vmatpush1.bf16.msra.mxu0 %v814
      %843 = vmatprep.subr.bf16.mxu0 0
      %844 = vmatpush2.bf16.msra.mxu0 0
      %845 = vmatprep.subr.bf16.mxu0 0
      %846 = vmatpush2.bf16.msra.mxu0 0
      %847 = vmatprep.subr.bf16.mxu0 0
      %848 = vmatpush2.bf16.msra.mxu0 0
      %849 = vmatprep.subr.bf16.mxu0 0
      %850 = vmatpush2.bf16.msra.mxu0 0
      %851 = vmatprep.subr.bf16.mxu0 0
      %852 = vmatpush2.bf16.msra.mxu0 0
      %853 = vmatprep.subr.bf16.mxu0 0
      %854 = vmatpush2.bf16.msra.mxu0 0
      %855 = vmatprep.subr.bf16.mxu0 0
      %856 = vmatpush2.bf16.msra.mxu0 0
      %857 = vmatprep.subr.bf16.mxu0 0
      %858 = vmatpush2.bf16.msra.mxu0 0
      %859 = vmatprep.mubr.bf16.mxu0 0
      %860 = vmatmul.mubr.bf16.gmra.mxu0 %v825
      %v861 = vpop.f32.mrf.mxu0
      %v862 = vadd.f32 %v821, %v861
      %v863 = vpop.f32.mrf.mxu0
      %v864 = vpop.f32.mrf.mxu0
      %v865 = vpop.f32.mrf.mxu0
      %866 = vdwg.mxu0
      %v867 = vld [vmem:[%s8] sm:$0xff]
      %v868 = vld [vmem:[%s8 + $0x8] sm:$0xff]
      %v869 = vld [vmem:[%s8 + $0x10] sm:$0xff]
      %v870 = vld [vmem:[%s8 + $0x18] sm:$0xff]
      %v871 = vpack.c.bf16 %v868, %v867
      %v872 = vpack.c.bf16 %v870, %v869
      %v873 = vld [vmem:[%s9] sm:$0x1]
      %v875 = vlaneseq
      %v876 = vshrl.u32 %v875, 7
      %v877 = vsub.s32 0, %v876
      %v878 = vrot.slane %v873, %v877
      %880 = vmatprep.subr.bf16.mxu0 0
      %881 = vmatpush1.bf16.msra.mxu0 0
      %882 = vmatprep.subr.bf16.mxu0 0
      %883 = vmatpush1.bf16.msra.mxu0 0
      %884 = vmatprep.subr.bf16.mxu0 0
      %885 = vmatpush1.bf16.msra.mxu0 0
      %886 = vmatprep.subr.bf16.mxu0 0
      %887 = vmatpush1.bf16.msra.mxu0 0
      %888 = vmatprep.subr.bf16.mxu0 0
      %889 = vmatpush1.bf16.msra.mxu0 0
      %890 = vmatprep.subr.bf16.mxu0 0
      %891 = vmatpush1.bf16.msra.mxu0 0
      %892 = vmatprep.subr.bf16.mxu0 0
      %893 = vmatpush1.bf16.msra.mxu0 %v872
      %894 = vmatprep.subr.bf16.mxu0 0
      %895 = vmatpush1.bf16.msra.mxu0 %v871
      %896 = vmatprep.subr.bf16.mxu0 0
      %897 = vmatpush2.bf16.msra.mxu0 0
      %898 = vmatprep.subr.bf16.mxu0 0
      %899 = vmatpush2.bf16.msra.mxu0 0
      %900 = vmatprep.subr.bf16.mxu0 0
      %901 = vmatpush2.bf16.msra.mxu0 0
      %902 = vmatprep.subr.bf16.mxu0 0
      %903 = vmatpush2.bf16.msra.mxu0 0
      %904 = vmatprep.subr.bf16.mxu0 0
      %905 = vmatpush2.bf16.msra.mxu0 0
      %906 = vmatprep.subr.bf16.mxu0 0
      %907 = vmatpush2.bf16.msra.mxu0 0
      %908 = vmatprep.subr.bf16.mxu0 0
      %909 = vmatpush2.bf16.msra.mxu0 0
      %910 = vmatprep.subr.bf16.mxu0 0
      %911 = vmatpush2.bf16.msra.mxu0 0
      %912 = vmatprep.mubr.bf16.mxu0 0
      %913 = vmatmul.mubr.bf16.gmra.mxu0 %v825
      %v914 = vpop.f32.mrf.mxu0
      %v915 = vadd.f32 %v878, %v914
      %v916 = vpop.f32.mrf.mxu0
      %v917 = vpop.f32.mrf.mxu0
      %v918 = vpop.f32.mrf.mxu0
      %919 = vdwg.mxu0
      %v920 = vld [vmem:[%s10] sm:$0xff]
      %v921 = vld [vmem:[%s10 + $0x8] sm:$0xff]
      %v922 = vld [vmem:[%s10 + $0x10] sm:$0xff]
      %v923 = vld [vmem:[%s10 + $0x18] sm:$0xff]
      %v924 = vpack.c.bf16 %v921, %v920
      %v925 = vpack.c.bf16 %v923, %v922
      %v926 = vld [vmem:[%s11] sm:$0x1]
      %v928 = vlaneseq
      %v929 = vshrl.u32 %v928, 7
      %v930 = vsub.s32 0, %v929
      %v931 = vrot.slane %v926, %v930
      %933 = vmatprep.subr.bf16.mxu0 0
      %934 = vmatpush1.bf16.msra.mxu0 0
      %935 = vmatprep.subr.bf16.mxu0 0
      %936 = vmatpush1.bf16.msra.mxu0 0
      %937 = vmatprep.subr.bf16.mxu0 0
      %938 = vmatpush1.bf16.msra.mxu0 0
      %939 = vmatprep.subr.bf16.mxu0 0
      %940 = vmatpush1.bf16.msra.mxu0 0
      %941 = vmatprep.subr.bf16.mxu0 0
      %942 = vmatpush1.bf16.msra.mxu0 0
      %943 = vmatprep.subr.bf16.mxu0 0
      %944 = vmatpush1.bf16.msra.mxu0 0
      %945 = vmatprep.subr.bf16.mxu0 0
      %946 = vmatpush1.bf16.msra.mxu0 %v925
      %947 = vmatprep.subr.bf16.mxu0 0
      %948 = vmatpush1.bf16.msra.mxu0 %v924
      %949 = vmatprep.subr.bf16.mxu0 0
      %950 = vmatpush2.bf16.msra.mxu0 0
      %951 = vmatprep.subr.bf16.mxu0 0
      %952 = vmatpush2.bf16.msra.mxu0 0
      %953 = vmatprep.subr.bf16.mxu0 0
      %954 = vmatpush2.bf16.msra.mxu0 0
      %955 = vmatprep.subr.bf16.mxu0 0
      %956 = vmatpush2.bf16.msra.mxu0 0
      %957 = vmatprep.subr.bf16.mxu0 0
      %958 = vmatpush2.bf16.msra.mxu0 0
      %959 = vmatprep.subr.bf16.mxu0 0
      %960 = vmatpush2.bf16.msra.mxu0 0
      %961 = vmatprep.subr.bf16.mxu0 0
      %962 = vmatpush2.bf16.msra.mxu0 0
      %963 = vmatprep.subr.bf16.mxu0 0
      %964 = vmatpush2.bf16.msra.mxu0 0
      %965 = vmatprep.mubr.bf16.mxu0 0
      %966 = vmatmul.mubr.bf16.gmra.mxu0 %v825
      %v967 = vpop.f32.mrf.mxu0
      %v968 = vadd.f32 %v931, %v967
      %v969 = vpop.f32.mrf.mxu0
      %v970 = vpop.f32.mrf.mxu0
      %v971 = vpop.f32.mrf.mxu0
      %972 = vdwg.mxu0
      %v973 = vlaneseq
      %v974 = vand.u32 %v973, 127
      %vm975 = vcmp.ge.s32.totalorder %v974, 0
      %vm976 = vcmp.lt.s32.totalorder %v974, 8
      %vm977 = vmand %vm975, %vm976
      %v978 = vsel %vm977, 1, 0
      %vm979 = vcmp.eq.s32.totalorder %v978, 1
      %v980 = vsel %vm979, %v862, 0.0
      %v981 = vpack.c.bf16 %v980, %v980
      %v982 = vpack.c.bf16 %v915, %v915
      %v984 = vsel %vm823, %v981, 0
      %v987 = vsel %vm823, %v982, 0
      %989 = vmatprep.subr.bf16.mxu0 0
      %990 = vmatpush1.bf16.xpose.msra.mxu0 0
      %991 = vmatprep.subr.bf16.mxu0 0
      %992 = vmatpush1.bf16.xpose.msra.mxu0 0
      %993 = vmatprep.subr.bf16.mxu0 0
      %994 = vmatpush1.bf16.xpose.msra.mxu0 0
      %995 = vmatprep.subr.bf16.mxu0 0
      %996 = vmatpush1.bf16.xpose.msra.mxu0 0
      %997 = vmatprep.subr.bf16.mxu0 0
      %998 = vmatpush1.bf16.xpose.msra.mxu0 0
      %999 = vmatprep.subr.bf16.mxu0 0
      %1000 = vmatpush1.bf16.xpose.msra.mxu0 0
      %1001 = vmatprep.subr.bf16.mxu0 0
      %1002 = vmatpush1.bf16.xpose.msra.mxu0 0
      %1003 = vmatprep.subr.bf16.mxu0 0
      %1004 = vmatpush1.bf16.xpose.msra.mxu0 %v987
      %1005 = vmatprep.subr.bf16.mxu0 0
      %1006 = vmatpush2.bf16.xpose.msra.mxu0 0
      %1007 = vmatprep.subr.bf16.mxu0 0
      %1008 = vmatpush2.bf16.xpose.msra.mxu0 0
      %1009 = vmatprep.subr.bf16.mxu0 0
      %1010 = vmatpush2.bf16.xpose.msra.mxu0 0
      %1011 = vmatprep.subr.bf16.mxu0 0
      %1012 = vmatpush2.bf16.xpose.msra.mxu0 0
      %1013 = vmatprep.subr.bf16.mxu0 0
      %1014 = vmatpush2.bf16.xpose.msra.mxu0 0
      %1015 = vmatprep.subr.bf16.mxu0 0
      %1016 = vmatpush2.bf16.xpose.msra.mxu0 0
      %1017 = vmatprep.subr.bf16.mxu0 0
      %1018 = vmatpush2.bf16.xpose.msra.mxu0 0
      %1019 = vmatprep.subr.bf16.mxu0 0
      %1020 = vmatpush2.bf16.xpose.msra.mxu0 0
      %1021 = vmatprep.mubr.bf16.mxu0 0
      %1022 = vmatmul.mubr.bf16.gmra.mxu0 %v984
      %v1023 = vpop.f32.mrf.mxu0
      %v1024 = vadd.f32 0.0, %v1023
      %v1025 = vpop.f32.mrf.mxu0
      %v1026 = vpop.f32.mrf.mxu0
      %v1027 = vpop.f32.mrf.mxu0
      %1028 = vdwg.mxu0
      %v1029 = vmul.f32 %v1024, 0.35355338
      %v1030 = vadd.f32 %v1029, 0.0
      %vm1031 = vcmask 27648
      %v1032 = vsel %vm1031, %v1030, -inf
      %1033 = vmax.xlane.f32.xlu0 %v1032
      %v1034 = vpop.xlane.xlu0 %1033
      %v1035 = vsub.f32 %v1030, %v1034
      %v1036 = vmul.f32 %v1035, 1.442695
      %v1037 = vpow.pop %v1036
      %v1038 = vsel %vm1031, %v1037, 0.0
      %1039 = vadd.xlane.f32.xlu0 %v1038
      %v1040 = vpop.xlane.xlu0 %1039
      %v1041 = vrcp.pop %v1040
      %v1042 = vmul.f32 %v1037, %v1041
      %v1043 = vsel %vm979, %v968, 0.0
      %v1044 = vpack.c.bf16 %v1042, %v1042
      %v1045 = vpack.c.bf16 %v1043, %v1043
      %vm1046 = vcmp.ge.s32.totalorder %v974, 8
      %vm1047 = vcmp.lt.s32.totalorder %v974, 16
      %vm1048 = vmand %vm1046, %vm1047
      %v1049 = vsel %vm1048, 1, 0
      %vm1050 = vcmp.eq.s32.totalorder %v1049, 1
      %v1051 = vsel %vm1050, %v862, 0.0
      %v1052 = vpack.c.bf16 %v1051, %v1051
      %v1054 = vsel %vm823, %v1052, 0
      %1056 = vmatprep.subr.bf16.mxu0 0
      %1057 = vmatpush1.bf16.xpose.msra.mxu0 0
      %1058 = vmatprep.subr.bf16.mxu0 0
      %1059 = vmatpush1.bf16.xpose.msra.mxu0 0
      %1060 = vmatprep.subr.bf16.mxu0 0
      %1061 = vmatpush1.bf16.xpose.msra.mxu0 0
      %1062 = vmatprep.subr.bf16.mxu0 0
      %1063 = vmatpush1.bf16.xpose.msra.mxu0 0
      %1064 = vmatprep.subr.bf16.mxu0 0
      %1065 = vmatpush1.bf16.xpose.msra.mxu0 0
      %1066 = vmatprep.subr.bf16.mxu0 0
      %1067 = vmatpush1.bf16.xpose.msra.mxu0 0
      %1068 = vmatprep.subr.bf16.mxu0 0
      %1069 = vmatpush1.bf16.xpose.msra.mxu0 0
      %1070 = vmatprep.subr.bf16.mxu0 0
      %1071 = vmatpush1.bf16.xpose.msra.mxu0 %v987
      %1072 = vmatprep.subr.bf16.mxu0 0
      %1073 = vmatpush2.bf16.xpose.msra.mxu0 0
      %1074 = vmatprep.subr.bf16.mxu0 0
      %1075 = vmatpush2.bf16.xpose.msra.mxu0 0
      %1076 = vmatprep.subr.bf16.mxu0 0
      %1077 = vmatpush2.bf16.xpose.msra.mxu0 0
      %1078 = vmatprep.subr.bf16.mxu0 0
      %1079 = vmatpush2.bf16.xpose.msra.mxu0 0
      %1080 = vmatprep.subr.bf16.mxu0 0
      %1081 = vmatpush2.bf16.xpose.msra.mxu0 0
      %1082 = vmatprep.subr.bf16.mxu0 0
      %1083 = vmatpush2.bf16.xpose.msra.mxu0 0
      %1084 = vmatprep.subr.bf16.mxu0 0
      %1085 = vmatpush2.bf16.xpose.msra.mxu0 0
      %1086 = vmatprep.subr.bf16.mxu0 0
      %1087 = vmatpush2.bf16.xpose.msra.mxu0 0
      %1088 = vmatprep.mubr.bf16.mxu0 0
      %1089 = vmatmul.mubr.bf16.gmra.mxu0 %v1054
      %v1090 = vpop.f32.mrf.mxu0
      %v1091 = vadd.f32 0.0, %v1090
      %v1092 = vpop.f32.mrf.mxu0
      %v1093 = vpop.f32.mrf.mxu0
      %v1094 = vpop.f32.mrf.mxu0
      %1095 = vdwg.mxu0
      %v1096 = vmul.f32 %v1091, 0.35355338
      %v1097 = vadd.f32 %v1096, 0.0
      %v1098 = vsel %vm1031, %v1097, -inf
      %1099 = vmax.xlane.f32.xlu0 %v1098
      %v1100 = vpop.xlane.xlu0 %1099
      %v1101 = vsub.f32 %v1097, %v1100
      %v1102 = vmul.f32 %v1101, 1.442695
      %v1103 = vpow.pop %v1102
      %v1104 = vsel %vm1031, %v1103, 0.0
      %1105 = vadd.xlane.f32.xlu0 %v1104
      %v1106 = vpop.xlane.xlu0 %1105
      %v1107 = vrcp.pop %v1106
      %v1108 = vmul.f32 %v1103, %v1107
      %v1109 = vsel %vm1050, %v968, 0.0
      %v1110 = vpack.c.bf16 %v1108, %v1108
      %v1111 = vpack.c.bf16 %v1109, %v1109
      %vm1112 = vcmask 31744
      %v1114 = vsel %vm1112, %v1110, 0
      %vm1116 = vcmask 1041408
      %v1118 = vsel %vm1116, %v1111, 0
      %1120 = vmatprep.subr.bf16.mxu0 0
      %1121 = vmatpush1.bf16.msra.mxu0 0
      %1122 = vmatprep.subr.bf16.mxu0 0
      %1123 = vmatpush1.bf16.msra.mxu0 0
      %1124 = vmatprep.subr.bf16.mxu0 0
      %1125 = vmatpush1.bf16.msra.mxu0 0
      %1126 = vmatprep.subr.bf16.mxu0 0
      %1127 = vmatpush1.bf16.msra.mxu0 0
      %1128 = vmatprep.subr.bf16.mxu0 0
      %1129 = vmatpush1.bf16.msra.mxu0 0
      %1130 = vmatprep.subr.bf16.mxu0 0
      %1131 = vmatpush1.bf16.msra.mxu0 0
      %1132 = vmatprep.subr.bf16.mxu0 0
      %1133 = vmatpush1.bf16.msra.mxu0 0
      %1134 = vmatprep.subr.bf16.mxu0 0
      %1135 = vmatpush1.bf16.msra.mxu0 %v1118
      %1136 = vmatprep.subr.bf16.mxu0 0
      %1137 = vmatpush2.bf16.msra.mxu0 0
      %1138 = vmatprep.subr.bf16.mxu0 0
      %1139 = vmatpush2.bf16.msra.mxu0 0
      %1140 = vmatprep.subr.bf16.mxu0 0
      %1141 = vmatpush2.bf16.msra.mxu0 0
      %1142 = vmatprep.subr.bf16.mxu0 0
      %1143 = vmatpush2.bf16.msra.mxu0 0
      %1144 = vmatprep.subr.bf16.mxu0 0
      %1145 = vmatpush2.bf16.msra.mxu0 0
      %1146 = vmatprep.subr.bf16.mxu0 0
      %1147 = vmatpush2.bf16.msra.mxu0 0
      %1148 = vmatprep.subr.bf16.mxu0 0
      %1149 = vmatpush2.bf16.msra.mxu0 0
      %1150 = vmatprep.subr.bf16.mxu0 0
      %1151 = vmatpush2.bf16.msra.mxu0 0
      %1152 = vmatprep.mubr.bf16.mxu0 0
      %1153 = vmatmul.mubr.bf16.gmra.mxu0 %v1114
      %v1154 = vpop.f32.mrf.mxu0
      %v1155 = vadd.f32 0.0, %v1154
      %v1156 = vpop.f32.mrf.mxu0
      %v1157 = vpop.f32.mrf.mxu0
      %v1158 = vpop.f32.mrf.mxu0
      %1159 = vdwg.mxu0
      %v1161 = vsel %vm1112, %v1044, 0
      %v1164 = vsel %vm1116, %v1045, 0
      %1166 = vmatprep.subr.bf16.mxu0 0
      %1167 = vmatpush1.bf16.msra.mxu0 0
      %1168 = vmatprep.subr.bf16.mxu0 0
      %1169 = vmatpush1.bf16.msra.mxu0 0
      %1170 = vmatprep.subr.bf16.mxu0 0
      %1171 = vmatpush1.bf16.msra.mxu0 0
      %1172 = vmatprep.subr.bf16.mxu0 0
      %1173 = vmatpush1.bf16.msra.mxu0 0
      %1174 = vmatprep.subr.bf16.mxu0 0
      %1175 = vmatpush1.bf16.msra.mxu0 0
      %1176 = vmatprep.subr.bf16.mxu0 0
      %1177 = vmatpush1.bf16.msra.mxu0 0
      %1178 = vmatprep.subr.bf16.mxu0 0
      %1179 = vmatpush1.bf16.msra.mxu0 0
      %1180 = vmatprep.subr.bf16.mxu0 0
      %1181 = vmatpush1.bf16.msra.mxu0 %v1164
      %1182 = vmatprep.subr.bf16.mxu0 0
      %1183 = vmatpush2.bf16.msra.mxu0 0
      %1184 = vmatprep.subr.bf16.mxu0 0
      %1185 = vmatpush2.bf16.msra.mxu0 0
      %1186 = vmatprep.subr.bf16.mxu0 0
      %1187 = vmatpush2.bf16.msra.mxu0 0
      %1188 = vmatprep.subr.bf16.mxu0 0
      %1189 = vmatpush2.bf16.msra.mxu0 0
      %1190 = vmatprep.subr.bf16.mxu0 0
      %1191 = vmatpush2.bf16.msra.mxu0 0
      %1192 = vmatprep.subr.bf16.mxu0 0
      %1193 = vmatpush2.bf16.msra.mxu0 0
      %1194 = vmatprep.subr.bf16.mxu0 0
      %1195 = vmatpush2.bf16.msra.mxu0 0
      %1196 = vmatprep.subr.bf16.mxu0 0
      %1197 = vmatpush2.bf16.msra.mxu0 0
      %1198 = vmatprep.mubr.bf16.mxu0 0
      %1199 = vmatmul.mubr.bf16.gmra.mxu0 %v1161
      %v1200 = vpop.f32.mrf.mxu0
      %v1201 = vadd.f32 %v1155, %v1200
      %v1202 = vpop.f32.mrf.mxu0
      %v1203 = vpop.f32.mrf.mxu0
      %v1204 = vpop.f32.mrf.mxu0
      %1205 = vdwg.mxu0
      %vm1206 = vcmp.ge.s32.totalorder %v974, 16
      %vm1207 = vcmp.lt.s32.totalorder %v974, 24
      %vm1208 = vmand %vm1206, %vm1207
      %v1209 = vsel %vm1208, 1, 0
      %vm1210 = vcmp.eq.s32.totalorder %v1209, 1
      %v1211 = vsel %vm1210, %v862, 0.0
      %v1212 = vpack.c.bf16 %v1211, %v1211
      %v1214 = vsel %vm823, %v1212, 0
      %1216 = vmatprep.subr.bf16.mxu0 0
      %1217 = vmatpush1.bf16.xpose.msra.mxu0 0
      %1218 = vmatprep.subr.bf16.mxu0 0
      %1219 = vmatpush1.bf16.xpose.msra.mxu0 0
      %1220 = vmatprep.subr.bf16.mxu0 0
      %1221 = vmatpush1.bf16.xpose.msra.mxu0 0
      %1222 = vmatprep.subr.bf16.mxu0 0
      %1223 = vmatpush1.bf16.xpose.msra.mxu0 0
      %1224 = vmatprep.subr.bf16.mxu0 0
      %1225 = vmatpush1.bf16.xpose.msra.mxu0 0
      %1226 = vmatprep.subr.bf16.mxu0 0
      %1227 = vmatpush1.bf16.xpose.msra.mxu0 0
      %1228 = vmatprep.subr.bf16.mxu0 0
      %1229 = vmatpush1.bf16.xpose.msra.mxu0 0
      %1230 = vmatprep.subr.bf16.mxu0 0
      %1231 = vmatpush1.bf16.xpose.msra.mxu0 %v987
      %1232 = vmatprep.subr.bf16.mxu0 0
      %1233 = vmatpush2.bf16.xpose.msra.mxu0 0
      %1234 = vmatprep.subr.bf16.mxu0 0
      %1235 = vmatpush2.bf16.xpose.msra.mxu0 0
      %1236 = vmatprep.subr.bf16.mxu0 0
      %1237 = vmatpush2.bf16.xpose.msra.mxu0 0
      %1238 = vmatprep.subr.bf16.mxu0 0
      %1239 = vmatpush2.bf16.xpose.msra.mxu0 0
      %1240 = vmatprep.subr.bf16.mxu0 0
      %1241 = vmatpush2.bf16.xpose.msra.mxu0 0
      %1242 = vmatprep.subr.bf16.mxu0 0
      %1243 = vmatpush2.bf16.xpose.msra.mxu0 0
      %1244 = vmatprep.subr.bf16.mxu0 0
      %1245 = vmatpush2.bf16.xpose.msra.mxu0 0
      %1246 = vmatprep.subr.bf16.mxu0 0
      %1247 = vmatpush2.bf16.xpose.msra.mxu0 0
      %1248 = vmatprep.mubr.bf16.mxu0 0
      %1249 = vmatmul.mubr.bf16.gmra.mxu0 %v1214
      %v1250 = vpop.f32.mrf.mxu0
      %v1251 = vadd.f32 0.0, %v1250
      %v1252 = vpop.f32.mrf.mxu0
      %v1253 = vpop.f32.mrf.mxu0
      %v1254 = vpop.f32.mrf.mxu0
      %1255 = vdwg.mxu0
      %v1256 = vmul.f32 %v1251, 0.35355338
      %v1257 = vadd.f32 %v1256, 0.0
      %v1258 = vsel %vm1031, %v1257, -inf
      %1259 = vmax.xlane.f32.xlu0 %v1258
      %v1260 = vpop.xlane.xlu0 %1259
      %v1261 = vsub.f32 %v1257, %v1260
      %v1262 = vmul.f32 %v1261, 1.442695
      %v1263 = vpow.pop %v1262
      %v1264 = vsel %vm1031, %v1263, 0.0
      %1265 = vadd.xlane.f32.xlu0 %v1264
      %v1266 = vpop.xlane.xlu0 %1265
      %v1267 = vrcp.pop %v1266
      %v1268 = vmul.f32 %v1263, %v1267
      %v1269 = vsel %vm1210, %v968, 0.0
      %v1270 = vpack.c.bf16 %v1268, %v1268
      %v1271 = vpack.c.bf16 %v1269, %v1269
      %v1273 = vsel %vm1112, %v1270, 0
      %v1276 = vsel %vm1116, %v1271, 0
      %1278 = vmatprep.subr.bf16.mxu0 0
      %1279 = vmatpush1.bf16.msra.mxu0 0
      %1280 = vmatprep.subr.bf16.mxu0 0
      %1281 = vmatpush1.bf16.msra.mxu0 0
      %1282 = vmatprep.subr.bf16.mxu0 0
      %1283 = vmatpush1.bf16.msra.mxu0 0
      %1284 = vmatprep.subr.bf16.mxu0 0
      %1285 = vmatpush1.bf16.msra.mxu0 0
      %1286 = vmatprep.subr.bf16.mxu0 0
      %1287 = vmatpush1.bf16.msra.mxu0 0
      %1288 = vmatprep.subr.bf16.mxu0 0
      %1289 = vmatpush1.bf16.msra.mxu0 0
      %1290 = vmatprep.subr.bf16.mxu0 0
      %1291 = vmatpush1.bf16.msra.mxu0 0
      %1292 = vmatprep.subr.bf16.mxu0 0
      %1293 = vmatpush1.bf16.msra.mxu0 %v1276
      %1294 = vmatprep.subr.bf16.mxu0 0
      %1295 = vmatpush2.bf16.msra.mxu0 0
      %1296 = vmatprep.subr.bf16.mxu0 0
      %1297 = vmatpush2.bf16.msra.mxu0 0
      %1298 = vmatprep.subr.bf16.mxu0 0
      %1299 = vmatpush2.bf16.msra.mxu0 0
      %1300 = vmatprep.subr.bf16.mxu0 0
      %1301 = vmatpush2.bf16.msra.mxu0 0
      %1302 = vmatprep.subr.bf16.mxu0 0
      %1303 = vmatpush2.bf16.msra.mxu0 0
      %1304 = vmatprep.subr.bf16.mxu0 0
      %1305 = vmatpush2.bf16.msra.mxu0 0
      %1306 = vmatprep.subr.bf16.mxu0 0
      %1307 = vmatpush2.bf16.msra.mxu0 0
      %1308 = vmatprep.subr.bf16.mxu0 0
      %1309 = vmatpush2.bf16.msra.mxu0 0
      %1310 = vmatprep.mubr.bf16.mxu0 0
      %1311 = vmatmul.mubr.bf16.gmra.mxu0 %v1273
      %v1312 = vpop.f32.mrf.mxu0
      %v1313 = vadd.f32 0.0, %v1312
      %v1314 = vpop.f32.mrf.mxu0
      %v1315 = vpop.f32.mrf.mxu0
      %v1316 = vpop.f32.mrf.mxu0
      %1317 = vdwg.mxu0
      %v1318 = vadd.f32 %v1201, %v1313
      %vm1319 = vcmp.ge.s32.totalorder %v974, 24
      %vm1320 = vcmp.lt.s32.totalorder %v974, 32
      %vm1321 = vmand %vm1319, %vm1320
      %v1322 = vsel %vm1321, 1, 0
      %vm1323 = vcmp.eq.s32.totalorder %v1322, 1
      %v1324 = vsel %vm1323, %v862, 0.0
      %v1325 = vpack.c.bf16 %v1324, %v1324
      %v1327 = vsel %vm823, %v1325, 0
      %1329 = vmatprep.subr.bf16.mxu0 0
      %1330 = vmatpush1.bf16.xpose.msra.mxu0 0
      %1331 = vmatprep.subr.bf16.mxu0 0
      %1332 = vmatpush1.bf16.xpose.msra.mxu0 0
      %1333 = vmatprep.subr.bf16.mxu0 0
      %1334 = vmatpush1.bf16.xpose.msra.mxu0 0
      %1335 = vmatprep.subr.bf16.mxu0 0
      %1336 = vmatpush1.bf16.xpose.msra.mxu0 0
      %1337 = vmatprep.subr.bf16.mxu0 0
      %1338 = vmatpush1.bf16.xpose.msra.mxu0 0
      %1339 = vmatprep.subr.bf16.mxu0 0
      %1340 = vmatpush1.bf16.xpose.msra.mxu0 0
      %1341 = vmatprep.subr.bf16.mxu0 0
      %1342 = vmatpush1.bf16.xpose.msra.mxu0 0
      %1343 = vmatprep.subr.bf16.mxu0 0
      %1344 = vmatpush1.bf16.xpose.msra.mxu0 %v987
      %1345 = vmatprep.subr.bf16.mxu0 0
      %1346 = vmatpush2.bf16.xpose.msra.mxu0 0
      %1347 = vmatprep.subr.bf16.mxu0 0
      %1348 = vmatpush2.bf16.xpose.msra.mxu0 0
      %1349 = vmatprep.subr.bf16.mxu0 0
      %1350 = vmatpush2.bf16.xpose.msra.mxu0 0
      %1351 = vmatprep.subr.bf16.mxu0 0
      %1352 = vmatpush2.bf16.xpose.msra.mxu0 0
      %1353 = vmatprep.subr.bf16.mxu0 0
      %1354 = vmatpush2.bf16.xpose.msra.mxu0 0
      %1355 = vmatprep.subr.bf16.mxu0 0
      %1356 = vmatpush2.bf16.xpose.msra.mxu0 0
      %1357 = vmatprep.subr.bf16.mxu0 0
      %1358 = vmatpush2.bf16.xpose.msra.mxu0 0
      %1359 = vmatprep.subr.bf16.mxu0 0
      %1360 = vmatpush2.bf16.xpose.msra.mxu0 0
      %1361 = vmatprep.mubr.bf16.mxu0 0
      %1362 = vmatmul.mubr.bf16.gmra.mxu0 %v1327
      %v1363 = vpop.f32.mrf.mxu0
      %v1364 = vadd.f32 0.0, %v1363
      %v1365 = vpop.f32.mrf.mxu0
      %v1366 = vpop.f32.mrf.mxu0
      %v1367 = vpop.f32.mrf.mxu0
      %1368 = vdwg.mxu0
      %v1369 = vmul.f32 %v1364, 0.35355338
      %v1370 = vadd.f32 %v1369, 0.0
      %v1371 = vsel %vm1031, %v1370, -inf
      %1372 = vmax.xlane.f32.xlu0 %v1371
      %v1373 = vpop.xlane.xlu0 %1372
      %v1374 = vsub.f32 %v1370, %v1373
      %v1375 = vmul.f32 %v1374, 1.442695
      %v1376 = vpow.pop %v1375
      %v1377 = vsel %vm1031, %v1376, 0.0
      %1378 = vadd.xlane.f32.xlu0 %v1377
      %v1379 = vpop.xlane.xlu0 %1378
      %v1380 = vrcp.pop %v1379
      %v1381 = vmul.f32 %v1376, %v1380
      %v1382 = vsel %vm1323, %v968, 0.0
      %v1383 = vpack.c.bf16 %v1381, %v1381
      %v1384 = vpack.c.bf16 %v1382, %v1382
      %v1386 = vsel %vm1112, %v1383, 0
      %v1389 = vsel %vm1116, %v1384, 0
      %1391 = vmatprep.subr.bf16.mxu0 0
      %1392 = vmatpush1.bf16.msra.mxu0 0
      %1393 = vmatprep.subr.bf16.mxu0 0
      %1394 = vmatpush1.bf16.msra.mxu0 0
      %1395 = vmatprep.subr.bf16.mxu0 0
      %1396 = vmatpush1.bf16.msra.mxu0 0
      %1397 = vmatprep.subr.bf16.mxu0 0
      %1398 = vmatpush1.bf16.msra.mxu0 0
      %1399 = vmatprep.subr.bf16.mxu0 0
      %1400 = vmatpush1.bf16.msra.mxu0 0
      %1401 = vmatprep.subr.bf16.mxu0 0
      %1402 = vmatpush1.bf16.msra.mxu0 0
      %1403 = vmatprep.subr.bf16.mxu0 0
      %1404 = vmatpush1.bf16.msra.mxu0 0
      %1405 = vmatprep.subr.bf16.mxu0 0
      %1406 = vmatpush1.bf16.msra.mxu0 %v1389
      %1407 = vmatprep.subr.bf16.mxu0 0
      %1408 = vmatpush2.bf16.msra.mxu0 0
      %1409 = vmatprep.subr.bf16.mxu0 0
      %1410 = vmatpush2.bf16.msra.mxu0 0
      %1411 = vmatprep.subr.bf16.mxu0 0
      %1412 = vmatpush2.bf16.msra.mxu0 0
      %1413 = vmatprep.subr.bf16.mxu0 0
      %1414 = vmatpush2.bf16.msra.mxu0 0
      %1415 = vmatprep.subr.bf16.mxu0 0
      %1416 = vmatpush2.bf16.msra.mxu0 0
      %1417 = vmatprep.subr.bf16.mxu0 0
      %1418 = vmatpush2.bf16.msra.mxu0 0
      %1419 = vmatprep.subr.bf16.mxu0 0
      %1420 = vmatpush2.bf16.msra.mxu0 0
      %1421 = vmatprep.subr.bf16.mxu0 0
      %1422 = vmatpush2.bf16.msra.mxu0 0
      %1423 = vmatprep.mubr.bf16.mxu0 0
      %1424 = vmatmul.mubr.bf16.gmra.mxu0 %v1386
      %v1425 = vpop.f32.mrf.mxu0
      %v1426 = vadd.f32 0.0, %v1425
      %v1427 = vpop.f32.mrf.mxu0
      %v1428 = vpop.f32.mrf.mxu0
      %v1429 = vpop.f32.mrf.mxu0
      %1430 = vdwg.mxu0
      %v1431 = vadd.f32 %v1318, %v1426
      %v1432 = vld [vmem:[%s12] sm:$0xff]
      %v1433 = vld [vmem:[%s12 + $0x8] sm:$0xff]
      %v1434 = vld [vmem:[%s12 + $0x10] sm:$0xff]
      %v1435 = vld [vmem:[%s12 + $0x18] sm:$0xff]
      %v1436 = vpack.c.bf16 %v1431, %v1431
      %v1437 = vpack.c.bf16 %v1433, %v1432
      %v1438 = vpack.c.bf16 %v1435, %v1434
      %v1440 = vsel %vm823, %v1436, 0
      %1442 = vmatprep.subr.bf16.mxu0 0
      %1443 = vmatpush1.bf16.msra.mxu0 0
      %1444 = vmatprep.subr.bf16.mxu0 0
      %1445 = vmatpush1.bf16.msra.mxu0 0
      %1446 = vmatprep.subr.bf16.mxu0 0
      %1447 = vmatpush1.bf16.msra.mxu0 0
      %1448 = vmatprep.subr.bf16.mxu0 0
      %1449 = vmatpush1.bf16.msra.mxu0 0
      %1450 = vmatprep.subr.bf16.mxu0 0
      %1451 = vmatpush1.bf16.msra.mxu0 0
      %1452 = vmatprep.subr.bf16.mxu0 0
      %1453 = vmatpush1.bf16.msra.mxu0 0
      %1454 = vmatprep.subr.bf16.mxu0 0
      %1455 = vmatpush1.bf16.msra.mxu0 %v1438
      %1456 = vmatprep.subr.bf16.mxu0 0
      %1457 = vmatpush1.bf16.msra.mxu0 %v1437
      %1458 = vmatprep.subr.bf16.mxu0 0
      %1459 = vmatpush2.bf16.msra.mxu0 0
      %1460 = vmatprep.subr.bf16.mxu0 0
      %1461 = vmatpush2.bf16.msra.mxu0 0
      %1462 = vmatprep.subr.bf16.mxu0 0
      %1463 = vmatpush2.bf16.msra.mxu0 0
      %1464 = vmatprep.subr.bf16.mxu0 0
      %1465 = vmatpush2.bf16.msra.mxu0 0
      %1466 = vmatprep.subr.bf16.mxu0 0
      %1467 = vmatpush2.bf16.msra.mxu0 0
      %1468 = vmatprep.subr.bf16.mxu0 0
      %1469 = vmatpush2.bf16.msra.mxu0 0
      %1470 = vmatprep.subr.bf16.mxu0 0
      %1471 = vmatpush2.bf16.msra.mxu0 0
      %1472 = vmatprep.subr.bf16.mxu0 0
      %1473 = vmatpush2.bf16.msra.mxu0 0
      %1474 = vmatprep.mubr.bf16.mxu0 0
      %1475 = vmatmul.mubr.bf16.gmra.mxu0 %v1440
      %v1476 = vpop.f32.mrf.mxu0
      %v1477 = vadd.f32 0.0, %v1476
      %v1478 = vpop.f32.mrf.mxu0
      %v1479 = vpop.f32.mrf.mxu0
      %v1480 = vpop.f32.mrf.mxu0
      %1481 = vdwg.mxu0
      %v1482 = vadd.f32 %v777, %v1477
      %v1483 = vld [vmem:[%s13] sm:$0x1]
      %v1485 = vlaneseq
      %v1486 = vshrl.u32 %v1485, 7
      %v1487 = vsub.s32 0, %v1486
      %v1488 = vrot.slane %v1483, %v1487
      %v1490 = vadd.f32 %v1482, %v1488
      %v1491 = vld [vmem:[%s14] sm:$0x1]
      %v1492 = vld [vmem:[%s15] sm:$0x1]
      %v1493 = vsel %vm780, %v1490, 0.0
      %1494 = vadd.xlane.f32.xlu0 %v1493
      %v1495 = vpop.xlane.xlu0 %1494
      %v1496 = vmul.f32 %v1495, %v784
      %v1497 = vsub.f32 %v1490, %v1496
      %v1498 = vmul.f32 %v1497, %v1497
      %v1499 = vsel %vm780, %v1498, 0.0
      %1500 = vadd.xlane.f32.xlu0 %v1499
      %v1501 = vpop.xlane.xlu0 %1500
      %v1502 = vmul.f32 %v1501, %v784
      %v1503 = vadd.f32 %v1502, 1e-05
      %v1504 = vrsqrt.pop %v1503
      %v1505 = vmul.f32 %v1497, %v1504
      %v1507 = vlaneseq
      %v1508 = vshrl.u32 %v1507, 7
      %v1509 = vsub.s32 0, %v1508
      %v1510 = vrot.slane %v1491, %v1509
      %v1512 = vmul.f32 %v1505, %v1510
      %v1514 = vlaneseq
      %v1515 = vshrl.u32 %v1514, 7
      %v1516 = vsub.s32 0, %v1515
      %v1517 = vrot.slane %v1492, %v1516
      %v1519 = vadd.f32 %v1512, %v1517
      %v1520 = vld [vmem:[%s16] sm:$0xff]
      %v1521 = vld [vmem:[%s16 + $0x8] sm:$0xff]
      %v1522 = vld [vmem:[%s16 + $0x10] sm:$0xff]
      %v1523 = vld [vmem:[%s16 + $0x18] sm:$0xff]
      %v1524 = vpack.c.bf16 %v1519, %v1519
      %v1525 = vpack.c.bf16 %v1521, %v1520
      %v1526 = vpack.c.bf16 %v1523, %v1522
      %v1527 = vld [vmem:[%s17] sm:$0x1]
      %v1529 = vlaneseq
      %v1530 = vshrl.u32 %v1529, 7
      %v1531 = vsub.s32 0, %v1530
      %v1532 = vrot.slane %v1527, %v1531
      %v1535 = vsel %vm823, %v1524, 0
      %1537 = vmatprep.subr.bf16.mxu0 0
      %1538 = vmatpush1.bf16.msra.mxu0 0
      %1539 = vmatprep.subr.bf16.mxu0 0
      %1540 = vmatpush1.bf16.msra.mxu0 0
      %1541 = vmatprep.subr.bf16.mxu0 0
      %1542 = vmatpush1.bf16.msra.mxu0 0
      %1543 = vmatprep.subr.bf16.mxu0 0
      %1544 = vmatpush1.bf16.msra.mxu0 0
      %1545 = vmatprep.subr.bf16.mxu0 0
      %1546 = vmatpush1.bf16.msra.mxu0 0
      %1547 = vmatprep.subr.bf16.mxu0 0
      %1548 = vmatpush1.bf16.msra.mxu0 0
      %1549 = vmatprep.subr.bf16.mxu0 0
      %1550 = vmatpush1.bf16.msra.mxu0 %v1526
      %1551 = vmatprep.subr.bf16.mxu0 0
      %1552 = vmatpush1.bf16.msra.mxu0 %v1525
      %1553 = vmatprep.subr.bf16.mxu0 0
      %1554 = vmatpush2.bf16.msra.mxu0 0
      %1555 = vmatprep.subr.bf16.mxu0 0
      %1556 = vmatpush2.bf16.msra.mxu0 0
      %1557 = vmatprep.subr.bf16.mxu0 0
      %1558 = vmatpush2.bf16.msra.mxu0 0
      %1559 = vmatprep.subr.bf16.mxu0 0
      %1560 = vmatpush2.bf16.msra.mxu0 0
      %1561 = vmatprep.subr.bf16.mxu0 0
      %1562 = vmatpush2.bf16.msra.mxu0 0
      %1563 = vmatprep.subr.bf16.mxu0 0
      %1564 = vmatpush2.bf16.msra.mxu0 0
      %1565 = vmatprep.subr.bf16.mxu0 0
      %1566 = vmatpush2.bf16.msra.mxu0 0
      %1567 = vmatprep.subr.bf16.mxu0 0
      %1568 = vmatpush2.bf16.msra.mxu0 0
      %1569 = vmatprep.mubr.bf16.mxu0 0
      %1570 = vmatmul.mubr.bf16.gmra.mxu0 %v1535
      %v1571 = vpop.f32.mrf.mxu0
      %v1572 = vadd.f32 %v1532, %v1571
      %v1573 = vpop.f32.mrf.mxu0
      %v1574 = vpop.f32.mrf.mxu0
      %v1575 = vpop.f32.mrf.mxu0
      %1576 = vdwg.mxu0
      %v1577 = vmul.f32 %v1572, %v1572
      %v1578 = vmul.f32 %v1572, %v1577
      %v1579 = vmul.f32 %v1578, 0.044715
      %v1580 = vadd.f32 %v1572, %v1579
      %v1581 = vmul.f32 %v1580, 0.7978846
      %v1582 = vtanh.pop %v1581
      %v1583 = vadd.f32 %v1582, 1.0
      %v1584 = vmul.f32 %v1583, 0.5
      %v1585 = vmul.f32 %v1572, %v1584
      %v1586 = vld [vmem:[%s18] sm:$0xff]
      %v1587 = vld [vmem:[%s18 + $0x8] sm:$0xff]
      %v1588 = vld [vmem:[%s18 + $0x10] sm:$0xff]
      %v1589 = vld [vmem:[%s18 + $0x18] sm:$0xff]
      %v1590 = vld [vmem:[%s18 + $0x20] sm:$0xff]
      %v1591 = vld [vmem:[%s18 + $0x28] sm:$0xff]
      %v1592 = vld [vmem:[%s18 + $0x30] sm:$0xff]
      %v1593 = vld [vmem:[%s18 + $0x38] sm:$0xff]
      %v1594 = vpack.c.bf16 %v1585, %v1585
      %v1595 = vpack.c.bf16 %v1587, %v1586
      %v1596 = vpack.c.bf16 %v1589, %v1588
      %v1597 = vpack.c.bf16 %v1591, %v1590
      %v1598 = vpack.c.bf16 %v1593, %v1592
      %v1600 = vsel %vm732, %v1594, 0
      %1602 = vmatprep.subr.bf16.mxu0 0
      %1603 = vmatpush1.bf16.msra.mxu0 0
      %1604 = vmatprep.subr.bf16.mxu0 0
      %1605 = vmatpush1.bf16.msra.mxu0 0
      %1606 = vmatprep.subr.bf16.mxu0 0
      %1607 = vmatpush1.bf16.msra.mxu0 0
      %1608 = vmatprep.subr.bf16.mxu0 0
      %1609 = vmatpush1.bf16.msra.mxu0 0
      %1610 = vmatprep.subr.bf16.mxu0 0
      %1611 = vmatpush1.bf16.msra.mxu0 %v1598
      %1612 = vmatprep.subr.bf16.mxu0 0
      %1613 = vmatpush1.bf16.msra.mxu0 %v1597
      %1614 = vmatprep.subr.bf16.mxu0 0
      %1615 = vmatpush1.bf16.msra.mxu0 %v1596
      %1616 = vmatprep.subr.bf16.mxu0 0
      %1617 = vmatpush1.bf16.msra.mxu0 %v1595
      %1618 = vmatprep.subr.bf16.mxu0 0
      %1619 = vmatpush2.bf16.msra.mxu0 0
      %1620 = vmatprep.subr.bf16.mxu0 0
      %1621 = vmatpush2.bf16.msra.mxu0 0
      %1622 = vmatprep.subr.bf16.mxu0 0
      %1623 = vmatpush2.bf16.msra.mxu0 0
      %1624 = vmatprep.subr.bf16.mxu0 0
      %1625 = vmatpush2.bf16.msra.mxu0 0
      %1626 = vmatprep.subr.bf16.mxu0 0
      %1627 = vmatpush2.bf16.msra.mxu0 0
      %1628 = vmatprep.subr.bf16.mxu0 0
      %1629 = vmatpush2.bf16.msra.mxu0 0
      %1630 = vmatprep.subr.bf16.mxu0 0
      %1631 = vmatpush2.bf16.msra.mxu0 0
      %1632 = vmatprep.subr.bf16.mxu0 0
      %1633 = vmatpush2.bf16.msra.mxu0 0
      %1634 = vmatprep.mubr.bf16.mxu0 0
      %1635 = vmatmul.mubr.bf16.gmra.mxu0 %v1600
      %v1636 = vpop.f32.mrf.mxu0
      %v1637 = vadd.f32 0.0, %v1636
      %v1638 = vpop.f32.mrf.mxu0
      %v1639 = vpop.f32.mrf.mxu0
      %v1640 = vpop.f32.mrf.mxu0
      %1641 = vdwg.mxu0
      %v1642 = vadd.f32 %v1490, %v1637
      %v1643 = vld [vmem:[%s19] sm:$0x1]
      %v1645 = vlaneseq
      %v1646 = vshrl.u32 %v1645, 7
      %v1647 = vsub.s32 0, %v1646
      %v1648 = vrot.slane %v1643, %v1647
      %v1650 = vadd.f32 %v1642, %v1648
      %v1651 = vld [vmem:[%s20] sm:$0x1]
      %v1652 = vld [vmem:[%s21] sm:$0x1]
      %v1653 = vsel %vm780, %v1650, 0.0
      %1654 = vadd.xlane.f32.xlu0 %v1653
      %v1655 = vpop.xlane.xlu0 %1654
      %v1656 = vmul.f32 %v1655, %v784
      %v1657 = vsub.f32 %v1650, %v1656
      %v1658 = vmul.f32 %v1657, %v1657
      %v1659 = vsel %vm780, %v1658, 0.0
      %1660 = vadd.xlane.f32.xlu0 %v1659
      %v1661 = vpop.xlane.xlu0 %1660
      %v1662 = vmul.f32 %v1661, %v784
      %v1663 = vadd.f32 %v1662, 1e-05
      %v1664 = vrsqrt.pop %v1663
      %v1665 = vmul.f32 %v1657, %v1664
      %v1667 = vlaneseq
      %v1668 = vshrl.u32 %v1667, 7
      %v1669 = vsub.s32 0, %v1668
      %v1670 = vrot.slane %v1651, %v1669
      %v1672 = vmul.f32 %v1665, %v1670
      %v1674 = vlaneseq
      %v1675 = vshrl.u32 %v1674, 7
      %v1676 = vsub.s32 0, %v1675
      %v1677 = vrot.slane %v1652, %v1676
      %v1679 = vadd.f32 %v1672, %v1677
      %1680 = vst.msk [vmem:[%s681] sm:$0xf] %vm780, %v1679
      %p1681 = scmp.lt.s32.totalorder %s33, 1
      %s1682 = scalar_select %p1681, %s33, 1
      %s1683 = smul.addr %s1682, 4
      %s1684 = scalar_lea.vmem %s22, %s1683
      // Predicated region
      $region109: #{flamingo_forward.7} parent=107 // pred_check
        %p1685 = pneg %p518
      $region110: #{flamingo_forward.7} parent=107 // pred_check_branch
        %1687 = sbr.rel (%p1685) target = $region112
      $region111: #{flamingo_forward.7} parent=107 // pred_region
        _
      $region112: #{flamingo_forward.7} parent=107 // pred_fallthru
        _
    $region108: #{flamingo_forward.7} parent=5 // pred_fallthru
      _
    %p1688 = scmp.le.s32.totalorder 2, %s28
    // Predicated region
    $region113: #{flamingo_forward.7} parent=5 // pred_check
      %p1689 = pneg %p1688
    $region114: #{flamingo_forward.7} parent=5 // pred_check_branch
      %1691 = sbr.rel (%p1689) target = $region116
    $region115: #{flamingo_forward.7} parent=5 // pred_region
      %s1692 = ssub.s32 %s28, 2
      // Predicated region
      $region117: #{flamingo_forward.7} parent=115 // pred_check
        %p1693 = pneg %p524
      $region118: #{flamingo_forward.7} parent=115 // pred_check_branch
        %1695 = sbr.rel (%p1693) target = $region120
      $region119: #{flamingo_forward.7} parent=115 // pred_region
        %p1696 = scmp.lt.s32.totalorder %s34, 1
        %s1697 = scalar_select %p1696, %s34, 1
        %s1698 = smul.addr %s1697, 4
        %s1699 = scalar_lea.vmem %s22, %s1698
      $region120: #{flamingo_forward.7} parent=115 // pred_fallthru
        _
    $region116: #{flamingo_forward.7} parent=5 // pred_fallthru
      _
  $region6: #{flamingo_forward.7} parent=0 // loop_footer
    %s32 = sadd.s32 1, %s28
  $region7: #{flamingo_forward.7} parent=0 // loop_footer_branch
    %27 = sbr.rel target = $region3
  $region8: #{flamingo_forward.7} parent=0 // loop_exit
    _

// kernel: flamingo_forward.9
$region0: #{flamingo_forward.9}
  #allocation0 [shape = 'u32[]', space=smem, size = 0x4, offset = 0x4, fixed_abs, tag = 'smem constant byte address 0x4 - core index']
  #allocation1 [shape = 'u32[144,128]{1,0:T(1,128)}', space=vmem, size = 0x12000, scoped, tag = 'internal scratch']
  %s0 = inlined_call_operand.vmem [shape: f32[2,8,32], index: 0, kind: input, shape index: {}]
  %s1 = inlined_call_operand.vmem [shape: f32[2,8,32], index: 1, kind: input, shape index: {}]
  %s2 = inlined_call_operand.vmem [shape: f32[2,8,8], index: 2, kind: input, shape index: {}]
  %s3 = inlined_call_operand.vmem [shape: f32[2,8,32], index: 3, kind: input, shape index: {}]
  %s4 = inlined_call_operand.vmem [shape: f32[1,32], index: 4, kind: input, shape index: {}]
  %s5 = inlined_call_operand.vmem [shape: f32[1,32], index: 5, kind: input, shape index: {}]
  %s6 = inlined_call_operand.vmem [shape: f32[1,32], index: 6, kind: input, shape index: {}]
  %s7 = inlined_call_operand.vmem [shape: f32[1,32], index: 7, kind: input, shape index: {}, may-alias: {7,23}]
  %s8 = inlined_call_operand.vmem [shape: f32[1,32], index: 8, kind: input, shape index: {}, may-alias: {8,24}]
  %s9 = inlined_call_operand.vmem [shape: f32[32,32], index: 9, kind: input, shape index: {}]
  %s10 = inlined_call_operand.vmem [shape: f32[1,32], index: 10, kind: input, shape index: {}]
  %s11 = inlined_call_operand.vmem [shape: f32[32,32], index: 11, kind: input, shape index: {}]
  %s12 = inlined_call_operand.vmem [shape: f32[1,32], index: 12, kind: input, shape index: {}]
  %s13 = inlined_call_operand.vmem [shape: f32[32,32], index: 13, kind: input, shape index: {}]
  %s14 = inlined_call_operand.vmem [shape: f32[1,32], index: 14, kind: input, shape index: {}]
  %s15 = inlined_call_operand.vmem [shape: f32[32,32], index: 15, kind: input, shape index: {}]
  %s16 = inlined_call_operand.vmem [shape: f32[1,32], index: 16, kind: input, shape index: {}]
  %s17 = inlined_call_operand.vmem [shape: f32[1,32], index: 17, kind: input, shape index: {}]
  %s18 = inlined_call_operand.vmem [shape: f32[1,32], index: 18, kind: input, shape index: {}]
  %s19 = inlined_call_operand.vmem [shape: f32[32,64], index: 19, kind: input, shape index: {}]
  %s20 = inlined_call_operand.vmem [shape: f32[1,64], index: 20, kind: input, shape index: {}]
  %s21 = inlined_call_operand.vmem [shape: f32[64,32], index: 21, kind: input, shape index: {}]
  %s22 = inlined_call_operand.vmem [shape: f32[1,32], index: 22, kind: input, shape index: {}]
  %s23 = inlined_call_operand.vmem [shape: f32[1,32], index: 23, kind: input, shape index: {}, may-alias: {7,23}]
  %s24 = inlined_call_operand.vmem [shape: f32[1,32], index: 24, kind: input, shape index: {}, may-alias: {8,24}]
  %s25 = inlined_call_operand.vmem [shape: f32[2,8,32], index: 25, kind: output, shape index: {}]
  %s26 = sld [smem:[#allocation0]]
  $region133: #{flamingo_forward.9} parent=0
    _
  %s28 = ssub.s32 1, %s26
  %s29 = scalar_select 0, %s28, %s26
  loop: start=0, step=1, limit=4
  $region2: #{flamingo_forward.9} parent=0 // loop_pre_header
    _
  $region3: #{flamingo_forward.9} parent=0 // loop_header
    %s31 = sphi 0, %s35
    %p32 = scmp.ge.s32.totalorder %s31, 4
    %s41 = sphi 0, %s43
    %s44 = sphi 0, %s41
    %s45 = sphi 0, %s44
    %s61 = sphi 0, %s45
    %s67 = sphi 0, %s69
    %s70 = sphi 0, %s67
    %s71 = sphi 0, %s70
    %s87 = sphi 0, %s71
    %s93 = sphi 0, %s95
    %s96 = sphi 0, %s93
    %s97 = sphi 0, %s96
    %s113 = sphi 0, %s97
    %s119 = sphi 0, %s121
    %s122 = sphi 0, %s119
    %s123 = sphi 0, %s122
    %s139 = sphi 0, %s123
    %s143 = sphi 0, %s143
    %s145 = sphi 0, %s143
    %s146 = sphi 0, %s145
    %s160 = sphi 0, %s146
    %s164 = sphi 0, %s164
    %s166 = sphi 0, %s164
    %s167 = sphi 0, %s166
    %s181 = sphi 0, %s167
    %s185 = sphi 0, %s185
    %s187 = sphi 0, %s185
    %s188 = sphi 0, %s187
    %s202 = sphi 0, %s188
    %s206 = sphi 0, %s206
    %s208 = sphi 0, %s206
    %s209 = sphi 0, %s208
    %s223 = sphi 0, %s209
    %s227 = sphi 0, %s227
    %s229 = sphi 0, %s227
    %s230 = sphi 0, %s229
    %s244 = sphi 0, %s230
    %s248 = sphi 0, %s248
    %s250 = sphi 0, %s248
    %s251 = sphi 0, %s250
    %s265 = sphi 0, %s251
    %s269 = sphi 0, %s269
    %s271 = sphi 0, %s269
    %s272 = sphi 0, %s271
    %s286 = sphi 0, %s272
    %s290 = sphi 0, %s290
    %s292 = sphi 0, %s290
    %s293 = sphi 0, %s292
    %s307 = sphi 0, %s293
    %s311 = sphi 0, %s311
    %s313 = sphi 0, %s311
    %s314 = sphi 0, %s313
    %s328 = sphi 0, %s314
    %s332 = sphi 0, %s332
    %s334 = sphi 0, %s332
    %s335 = sphi 0, %s334
    %s349 = sphi 0, %s335
    %s353 = sphi 0, %s353
    %s355 = sphi 0, %s353
    %s356 = sphi 0, %s355
    %s370 = sphi 0, %s356
    %s374 = sphi 0, %s374
    %s376 = sphi 0, %s374
    %s377 = sphi 0, %s376
    %s391 = sphi 0, %s377
    %s395 = sphi 0, %s395
    %s397 = sphi 0, %s395
    %s398 = sphi 0, %s397
    %s412 = sphi 0, %s398
    %s416 = sphi 0, %s416
    %s418 = sphi 0, %s416
    %s419 = sphi 0, %s418
    %s433 = sphi 0, %s419
    %s437 = sphi 0, %s437
    %s439 = sphi 0, %s437
    %s440 = sphi 0, %s439
    %s454 = sphi 0, %s440
    %s458 = sphi 0, %s458
    %s460 = sphi 0, %s458
    %s461 = sphi 0, %s460
    %s475 = sphi 0, %s461
    %s479 = sphi 0, %s479
    %s481 = sphi 0, %s479
    %s482 = sphi 0, %s481
    %s496 = sphi 0, %s482
    %s500 = sphi 0, %s500
    %s502 = sphi 0, %s500
    %s503 = sphi 0, %s502
    %s517 = sphi 0, %s503
    %s521 = sphi 0, %s521
    %s523 = sphi 0, %s521
    %s524 = sphi 0, %s523
    %s538 = sphi 0, %s524
    %s542 = sphi 0, %s542
    %s544 = sphi 0, %s542
    %s545 = sphi 0, %s544
    %s559 = sphi 0, %s545
    %s563 = sphi 0, %s563
    %s565 = sphi 0, %s563
    %s566 = sphi 0, %s565
    %s580 = sphi 0, %s566
    %s586 = sphi 0, %s588
    %s589 = sphi 0, %s586
    %s590 = sphi 0, %s589
    %s606 = sphi 0, %s590
  $region4: #{flamingo_forward.9} parent=0 // loop_header_branch
    %34 = sbr.rel (%p32) target = $region8
  $region5: #{flamingo_forward.9} parent=0 // loop_body
    %s36 = ssub.s32 %s31, 1
    %s37 = ssub.s32 %s31, 2
    %s38 = sadd.s32 %s31, 1
    %s39 = ssub.s32 %s31, %s38
    %p40 = scmp.eq.s32.totalorder %s39, 0
    %s42 = sadd.s32 %s41, 1
    %s43 = scalar_select %p40, %s41, %s42
    %p46 = pneg %p40
    %p47 = scmp.eq.s32.totalorder %s31, 1
    %p48 = por %p46, %p47
    %p49 = scmp.ne.s32.totalorder %s41, %s44
    %p50 = scmp.eq.s32.totalorder %s31, 0
    %p51 = por %p49, %p50
    %p52 = scmp.ne.s32.totalorder %s41, %s44
    %p53 = scmp.eq.s32.totalorder %s36, 1
    %p54 = por %p52, %p53
    %p55 = scmp.ne.s32.totalorder %s44, %s45
    %p56 = scmp.eq.s32.totalorder %s36, 0
    %p57 = por %p55, %p56
    %p58 = scmp.ne.s32.totalorder %s44, %s45
    %p59 = scmp.eq.s32.totalorder %s37, 1
    %p60 = por %p58, %p59
    %p62 = scmp.ne.s32.totalorder %s45, %s61
    %p63 = scmp.eq.s32.totalorder %s37, 0
    %p64 = por %p62, %p63
    %s65 = ssub.s32 %s31, %s38
    %p66 = scmp.eq.s32.totalorder %s65, 0
    %s68 = sadd.s32 %s67, 1
    %s69 = scalar_select %p66, %s67, %s68
    %p72 = pneg %p66
    %p73 = scmp.eq.s32.totalorder %s31, 1
    %p74 = por %p72, %p73
    %p75 = scmp.ne.s32.totalorder %s67, %s70
    %p76 = scmp.eq.s32.totalorder %s31, 0
    %p77 = por %p75, %p76
    %p78 = scmp.ne.s32.totalorder %s67, %s70
    %p79 = scmp.eq.s32.totalorder %s36, 1
    %p80 = por %p78, %p79
    %p81 = scmp.ne.s32.totalorder %s70, %s71
    %p82 = scmp.eq.s32.totalorder %s36, 0
    %p83 = por %p81, %p82
    %p84 = scmp.ne.s32.totalorder %s70, %s71
    %p85 = scmp.eq.s32.totalorder %s37, 1
    %p86 = por %p84, %p85
    %p88 = scmp.ne.s32.totalorder %s71, %s87
    %p89 = scmp.eq.s32.totalorder %s37, 0
    %p90 = por %p88, %p89
    %s91 = ssub.s32 %s31, %s38
    %p92 = scmp.eq.s32.totalorder %s91, 0
    %s94 = sadd.s32 %s93, 1
    %s95 = scalar_select %p92, %s93, %s94
    %p98 = pneg %p92
    %p99 = scmp.eq.s32.totalorder %s31, 1
    %p100 = por %p98, %p99
    %p101 = scmp.ne.s32.totalorder %s93, %s96
    %p102 = scmp.eq.s32.totalorder %s31, 0
    %p103 = por %p101, %p102
    %p104 = scmp.ne.s32.totalorder %s93, %s96
    %p105 = scmp.eq.s32.totalorder %s36, 1
    %p106 = por %p104, %p105
    %p107 = scmp.ne.s32.totalorder %s96, %s97
    %p108 = scmp.eq.s32.totalorder %s36, 0
    %p109 = por %p107, %p108
    %p110 = scmp.ne.s32.totalorder %s96, %s97
    %p111 = scmp.eq.s32.totalorder %s37, 1
    %p112 = por %p110, %p111
    %p114 = scmp.ne.s32.totalorder %s97, %s113
    %p115 = scmp.eq.s32.totalorder %s37, 0
    %p116 = por %p114, %p115
    %s117 = ssub.s32 %s31, %s38
    %p118 = scmp.eq.s32.totalorder %s117, 0
    %s120 = sadd.s32 %s119, 1
    %s121 = scalar_select %p118, %s119, %s120
    %p124 = pneg %p118
    %p125 = scmp.eq.s32.totalorder %s31, 1
    %p126 = por %p124, %p125
    %p127 = scmp.ne.s32.totalorder %s119, %s122
    %p128 = scmp.eq.s32.totalorder %s31, 0
    %p129 = por %p127, %p128
    %p130 = scmp.ne.s32.totalorder %s119, %s122
    %p131 = scmp.eq.s32.totalorder %s36, 1
    %p132 = por %p130, %p131
    %p133 = scmp.ne.s32.totalorder %s122, %s123
    %p134 = scmp.eq.s32.totalorder %s36, 0
    %p135 = por %p133, %p134
    %p136 = scmp.ne.s32.totalorder %s122, %s123
    %p137 = scmp.eq.s32.totalorder %s37, 1
    %p138 = por %p136, %p137
    %p140 = scmp.ne.s32.totalorder %s123, %s139
    %p141 = scmp.eq.s32.totalorder %s37, 0
    %p142 = por %p140, %p141
    %s144 = sadd.s32 %s143, 1
    %p147 = scmp.eq.s32.totalorder %s31, 1
    %p148 = scmp.ne.s32.totalorder %s143, %s145
    %p149 = scmp.eq.s32.totalorder %s31, 0
    %p150 = por %p148, %p149
    %p151 = scmp.ne.s32.totalorder %s143, %s145
    %p152 = scmp.eq.s32.totalorder %s36, 1
    %p153 = por %p151, %p152
    %p154 = scmp.ne.s32.totalorder %s145, %s146
    %p155 = scmp.eq.s32.totalorder %s36, 0
    %p156 = por %p154, %p155
    %p157 = scmp.ne.s32.totalorder %s145, %s146
    %p158 = scmp.eq.s32.totalorder %s37, 1
    %p159 = por %p157, %p158
    %p161 = scmp.ne.s32.totalorder %s146, %s160
    %p162 = scmp.eq.s32.totalorder %s37, 0
    %p163 = por %p161, %p162
    %s165 = sadd.s32 %s164, 1
    %p168 = scmp.eq.s32.totalorder %s31, 1
    %p169 = scmp.ne.s32.totalorder %s164, %s166
    %p170 = scmp.eq.s32.totalorder %s31, 0
    %p171 = por %p169, %p170
    %p172 = scmp.ne.s32.totalorder %s164, %s166
    %p173 = scmp.eq.s32.totalorder %s36, 1
    %p174 = por %p172, %p173
    %p175 = scmp.ne.s32.totalorder %s166, %s167
    %p176 = scmp.eq.s32.totalorder %s36, 0
    %p177 = por %p175, %p176
    %p178 = scmp.ne.s32.totalorder %s166, %s167
    %p179 = scmp.eq.s32.totalorder %s37, 1
    %p180 = por %p178, %p179
    %p182 = scmp.ne.s32.totalorder %s167, %s181
    %p183 = scmp.eq.s32.totalorder %s37, 0
    %p184 = por %p182, %p183
    %s186 = sadd.s32 %s185, 1
    %p189 = scmp.eq.s32.totalorder %s31, 1
    %p190 = scmp.ne.s32.totalorder %s185, %s187
    %p191 = scmp.eq.s32.totalorder %s31, 0
    %p192 = por %p190, %p191
    %p193 = scmp.ne.s32.totalorder %s185, %s187
    %p194 = scmp.eq.s32.totalorder %s36, 1
    %p195 = por %p193, %p194
    %p196 = scmp.ne.s32.totalorder %s187, %s188
    %p197 = scmp.eq.s32.totalorder %s36, 0
    %p198 = por %p196, %p197
    %p199 = scmp.ne.s32.totalorder %s187, %s188
    %p200 = scmp.eq.s32.totalorder %s37, 1
    %p201 = por %p199, %p200
    %p203 = scmp.ne.s32.totalorder %s188, %s202
    %p204 = scmp.eq.s32.totalorder %s37, 0
    %p205 = por %p203, %p204
    %s207 = sadd.s32 %s206, 1
    %p210 = scmp.eq.s32.totalorder %s31, 1
    %p211 = scmp.ne.s32.totalorder %s206, %s208
    %p212 = scmp.eq.s32.totalorder %s31, 0
    %p213 = por %p211, %p212
    %p214 = scmp.ne.s32.totalorder %s206, %s208
    %p215 = scmp.eq.s32.totalorder %s36, 1
    %p216 = por %p214, %p215
    %p217 = scmp.ne.s32.totalorder %s208, %s209
    %p218 = scmp.eq.s32.totalorder %s36, 0
    %p219 = por %p217, %p218
    %p220 = scmp.ne.s32.totalorder %s208, %s209
    %p221 = scmp.eq.s32.totalorder %s37, 1
    %p222 = por %p220, %p221
    %p224 = scmp.ne.s32.totalorder %s209, %s223
    %p225 = scmp.eq.s32.totalorder %s37, 0
    %p226 = por %p224, %p225
    %s228 = sadd.s32 %s227, 1
    %p231 = scmp.eq.s32.totalorder %s31, 1
    %p232 = scmp.ne.s32.totalorder %s227, %s229
    %p233 = scmp.eq.s32.totalorder %s31, 0
    %p234 = por %p232, %p233
    %p235 = scmp.ne.s32.totalorder %s227, %s229
    %p236 = scmp.eq.s32.totalorder %s36, 1
    %p237 = por %p235, %p236
    %p238 = scmp.ne.s32.totalorder %s229, %s230
    %p239 = scmp.eq.s32.totalorder %s36, 0
    %p240 = por %p238, %p239
    %p241 = scmp.ne.s32.totalorder %s229, %s230
    %p242 = scmp.eq.s32.totalorder %s37, 1
    %p243 = por %p241, %p242
    %p245 = scmp.ne.s32.totalorder %s230, %s244
    %p246 = scmp.eq.s32.totalorder %s37, 0
    %p247 = por %p245, %p246
    %s249 = sadd.s32 %s248, 1
    %p252 = scmp.eq.s32.totalorder %s31, 1
    %p253 = scmp.ne.s32.totalorder %s248, %s250
    %p254 = scmp.eq.s32.totalorder %s31, 0
    %p255 = por %p253, %p254
    %p256 = scmp.ne.s32.totalorder %s248, %s250
    %p257 = scmp.eq.s32.totalorder %s36, 1
    %p258 = por %p256, %p257
    %p259 = scmp.ne.s32.totalorder %s250, %s251
    %p260 = scmp.eq.s32.totalorder %s36, 0
    %p261 = por %p259, %p260
    %p262 = scmp.ne.s32.totalorder %s250, %s251
    %p263 = scmp.eq.s32.totalorder %s37, 1
    %p264 = por %p262, %p263
    %p266 = scmp.ne.s32.totalorder %s251, %s265
    %p267 = scmp.eq.s32.totalorder %s37, 0
    %p268 = por %p266, %p267
    %s270 = sadd.s32 %s269, 1
    %p273 = scmp.eq.s32.totalorder %s31, 1
    %p274 = scmp.ne.s32.totalorder %s269, %s271
    %p275 = scmp.eq.s32.totalorder %s31, 0
    %p276 = por %p274, %p275
    %p277 = scmp.ne.s32.totalorder %s269, %s271
    %p278 = scmp.eq.s32.totalorder %s36, 1
    %p279 = por %p277, %p278
    %p280 = scmp.ne.s32.totalorder %s271, %s272
    %p281 = scmp.eq.s32.totalorder %s36, 0
    %p282 = por %p280, %p281
    %p283 = scmp.ne.s32.totalorder %s271, %s272
    %p284 = scmp.eq.s32.totalorder %s37, 1
    %p285 = por %p283, %p284
    %p287 = scmp.ne.s32.totalorder %s272, %s286
    %p288 = scmp.eq.s32.totalorder %s37, 0
    %p289 = por %p287, %p288
    %s291 = sadd.s32 %s290, 1
    %p294 = scmp.eq.s32.totalorder %s31, 1
    %p295 = scmp.ne.s32.totalorder %s290, %s292
    %p296 = scmp.eq.s32.totalorder %s31, 0
    %p297 = por %p295, %p296
    %p298 = scmp.ne.s32.totalorder %s290, %s292
    %p299 = scmp.eq.s32.totalorder %s36, 1
    %p300 = por %p298, %p299
    %p301 = scmp.ne.s32.totalorder %s292, %s293
    %p302 = scmp.eq.s32.totalorder %s36, 0
    %p303 = por %p301, %p302
    %p304 = scmp.ne.s32.totalorder %s292, %s293
    %p305 = scmp.eq.s32.totalorder %s37, 1
    %p306 = por %p304, %p305
    %p308 = scmp.ne.s32.totalorder %s293, %s307
    %p309 = scmp.eq.s32.totalorder %s37, 0
    %p310 = por %p308, %p309
    %s312 = sadd.s32 %s311, 1
    %p315 = scmp.eq.s32.totalorder %s31, 1
    %p316 = scmp.ne.s32.totalorder %s311, %s313
    %p317 = scmp.eq.s32.totalorder %s31, 0
    %p318 = por %p316, %p317
    %p319 = scmp.ne.s32.totalorder %s311, %s313
    %p320 = scmp.eq.s32.totalorder %s36, 1
    %p321 = por %p319, %p320
    %p322 = scmp.ne.s32.totalorder %s313, %s314
    %p323 = scmp.eq.s32.totalorder %s36, 0
    %p324 = por %p322, %p323
    %p325 = scmp.ne.s32.totalorder %s313, %s314
    %p326 = scmp.eq.s32.totalorder %s37, 1
    %p327 = por %p325, %p326
    %p329 = scmp.ne.s32.totalorder %s314, %s328
    %p330 = scmp.eq.s32.totalorder %s37, 0
    %p331 = por %p329, %p330
    %s333 = sadd.s32 %s332, 1
    %p336 = scmp.eq.s32.totalorder %s31, 1
    %p337 = scmp.ne.s32.totalorder %s332, %s334
    %p338 = scmp.eq.s32.totalorder %s31, 0
    %p339 = por %p337, %p338
    %p340 = scmp.ne.s32.totalorder %s332, %s334
    %p341 = scmp.eq.s32.totalorder %s36, 1
    %p342 = por %p340, %p341
    %p343 = scmp.ne.s32.totalorder %s334, %s335
    %p344 = scmp.eq.s32.totalorder %s36, 0
    %p345 = por %p343, %p344
    %p346 = scmp.ne.s32.totalorder %s334, %s335
    %p347 = scmp.eq.s32.totalorder %s37, 1
    %p348 = por %p346, %p347
    %p350 = scmp.ne.s32.totalorder %s335, %s349
    %p351 = scmp.eq.s32.totalorder %s37, 0
    %p352 = por %p350, %p351
    %s354 = sadd.s32 %s353, 1
    %p357 = scmp.eq.s32.totalorder %s31, 1
    %p358 = scmp.ne.s32.totalorder %s353, %s355
    %p359 = scmp.eq.s32.totalorder %s31, 0
    %p360 = por %p358, %p359
    %p361 = scmp.ne.s32.totalorder %s353, %s355
    %p362 = scmp.eq.s32.totalorder %s36, 1
    %p363 = por %p361, %p362
    %p364 = scmp.ne.s32.totalorder %s355, %s356
    %p365 = scmp.eq.s32.totalorder %s36, 0
    %p366 = por %p364, %p365
    %p367 = scmp.ne.s32.totalorder %s355, %s356
    %p368 = scmp.eq.s32.totalorder %s37, 1
    %p369 = por %p367, %p368
    %p371 = scmp.ne.s32.totalorder %s356, %s370
    %p372 = scmp.eq.s32.totalorder %s37, 0
    %p373 = por %p371, %p372
    %s375 = sadd.s32 %s374, 1
    %p378 = scmp.eq.s32.totalorder %s31, 1
    %p379 = scmp.ne.s32.totalorder %s374, %s376
    %p380 = scmp.eq.s32.totalorder %s31, 0
    %p381 = por %p379, %p380
    %p382 = scmp.ne.s32.totalorder %s374, %s376
    %p383 = scmp.eq.s32.totalorder %s36, 1
    %p384 = por %p382, %p383
    %p385 = scmp.ne.s32.totalorder %s376, %s377
    %p386 = scmp.eq.s32.totalorder %s36, 0
    %p387 = por %p385, %p386
    %p388 = scmp.ne.s32.totalorder %s376, %s377
    %p389 = scmp.eq.s32.totalorder %s37, 1
    %p390 = por %p388, %p389
    %p392 = scmp.ne.s32.totalorder %s377, %s391
    %p393 = scmp.eq.s32.totalorder %s37, 0
    %p394 = por %p392, %p393
    %s396 = sadd.s32 %s395, 1
    %p399 = scmp.eq.s32.totalorder %s31, 1
    %p400 = scmp.ne.s32.totalorder %s395, %s397
    %p401 = scmp.eq.s32.totalorder %s31, 0
    %p402 = por %p400, %p401
    %p403 = scmp.ne.s32.totalorder %s395, %s397
    %p404 = scmp.eq.s32.totalorder %s36, 1
    %p405 = por %p403, %p404
    %p406 = scmp.ne.s32.totalorder %s397, %s398
    %p407 = scmp.eq.s32.totalorder %s36, 0
    %p408 = por %p406, %p407
    %p409 = scmp.ne.s32.totalorder %s397, %s398
    %p410 = scmp.eq.s32.totalorder %s37, 1
    %p411 = por %p409, %p410
    %p413 = scmp.ne.s32.totalorder %s398, %s412
    %p414 = scmp.eq.s32.totalorder %s37, 0
    %p415 = por %p413, %p414
    %s417 = sadd.s32 %s416, 1
    %p420 = scmp.eq.s32.totalorder %s31, 1
    %p421 = scmp.ne.s32.totalorder %s416, %s418
    %p422 = scmp.eq.s32.totalorder %s31, 0
    %p423 = por %p421, %p422
    %p424 = scmp.ne.s32.totalorder %s416, %s418
    %p425 = scmp.eq.s32.totalorder %s36, 1
    %p426 = por %p424, %p425
    %p427 = scmp.ne.s32.totalorder %s418, %s419
    %p428 = scmp.eq.s32.totalorder %s36, 0
    %p429 = por %p427, %p428
    %p430 = scmp.ne.s32.totalorder %s418, %s419
    %p431 = scmp.eq.s32.totalorder %s37, 1
    %p432 = por %p430, %p431
    %p434 = scmp.ne.s32.totalorder %s419, %s433
    %p435 = scmp.eq.s32.totalorder %s37, 0
    %p436 = por %p434, %p435
    %s438 = sadd.s32 %s437, 1
    %p441 = scmp.eq.s32.totalorder %s31, 1
    %p442 = scmp.ne.s32.totalorder %s437, %s439
    %p443 = scmp.eq.s32.totalorder %s31, 0
    %p444 = por %p442, %p443
    %p445 = scmp.ne.s32.totalorder %s437, %s439
    %p446 = scmp.eq.s32.totalorder %s36, 1
    %p447 = por %p445, %p446
    %p448 = scmp.ne.s32.totalorder %s439, %s440
    %p449 = scmp.eq.s32.totalorder %s36, 0
    %p450 = por %p448, %p449
    %p451 = scmp.ne.s32.totalorder %s439, %s440
    %p452 = scmp.eq.s32.totalorder %s37, 1
    %p453 = por %p451, %p452
    %p455 = scmp.ne.s32.totalorder %s440, %s454
    %p456 = scmp.eq.s32.totalorder %s37, 0
    %p457 = por %p455, %p456
    %s459 = sadd.s32 %s458, 1
    %p462 = scmp.eq.s32.totalorder %s31, 1
    %p463 = scmp.ne.s32.totalorder %s458, %s460
    %p464 = scmp.eq.s32.totalorder %s31, 0
    %p465 = por %p463, %p464
    %p466 = scmp.ne.s32.totalorder %s458, %s460
    %p467 = scmp.eq.s32.totalorder %s36, 1
    %p468 = por %p466, %p467
    %p469 = scmp.ne.s32.totalorder %s460, %s461
    %p470 = scmp.eq.s32.totalorder %s36, 0
    %p471 = por %p469, %p470
    %p472 = scmp.ne.s32.totalorder %s460, %s461
    %p473 = scmp.eq.s32.totalorder %s37, 1
    %p474 = por %p472, %p473
    %p476 = scmp.ne.s32.totalorder %s461, %s475
    %p477 = scmp.eq.s32.totalorder %s37, 0
    %p478 = por %p476, %p477
    %s480 = sadd.s32 %s479, 1
    %p483 = scmp.eq.s32.totalorder %s31, 1
    %p484 = scmp.ne.s32.totalorder %s479, %s481
    %p485 = scmp.eq.s32.totalorder %s31, 0
    %p486 = por %p484, %p485
    %p487 = scmp.ne.s32.totalorder %s479, %s481
    %p488 = scmp.eq.s32.totalorder %s36, 1
    %p489 = por %p487, %p488
    %p490 = scmp.ne.s32.totalorder %s481, %s482
    %p491 = scmp.eq.s32.totalorder %s36, 0
    %p492 = por %p490, %p491
    %p493 = scmp.ne.s32.totalorder %s481, %s482
    %p494 = scmp.eq.s32.totalorder %s37, 1
    %p495 = por %p493, %p494
    %p497 = scmp.ne.s32.totalorder %s482, %s496
    %p498 = scmp.eq.s32.totalorder %s37, 0
    %p499 = por %p497, %p498
    %s501 = sadd.s32 %s500, 1
    %p504 = scmp.eq.s32.totalorder %s31, 1
    %p505 = scmp.ne.s32.totalorder %s500, %s502
    %p506 = scmp.eq.s32.totalorder %s31, 0
    %p507 = por %p505, %p506
    %p508 = scmp.ne.s32.totalorder %s500, %s502
    %p509 = scmp.eq.s32.totalorder %s36, 1
    %p510 = por %p508, %p509
    %p511 = scmp.ne.s32.totalorder %s502, %s503
    %p512 = scmp.eq.s32.totalorder %s36, 0
    %p513 = por %p511, %p512
    %p514 = scmp.ne.s32.totalorder %s502, %s503
    %p515 = scmp.eq.s32.totalorder %s37, 1
    %p516 = por %p514, %p515
    %p518 = scmp.ne.s32.totalorder %s503, %s517
    %p519 = scmp.eq.s32.totalorder %s37, 0
    %p520 = por %p518, %p519
    %s522 = sadd.s32 %s521, 1
    %p525 = scmp.eq.s32.totalorder %s31, 1
    %p526 = scmp.ne.s32.totalorder %s521, %s523
    %p527 = scmp.eq.s32.totalorder %s31, 0
    %p528 = por %p526, %p527
    %p529 = scmp.ne.s32.totalorder %s521, %s523
    %p530 = scmp.eq.s32.totalorder %s36, 1
    %p531 = por %p529, %p530
    %p532 = scmp.ne.s32.totalorder %s523, %s524
    %p533 = scmp.eq.s32.totalorder %s36, 0
    %p534 = por %p532, %p533
    %p535 = scmp.ne.s32.totalorder %s523, %s524
    %p536 = scmp.eq.s32.totalorder %s37, 1
    %p537 = por %p535, %p536
    %p539 = scmp.ne.s32.totalorder %s524, %s538
    %p540 = scmp.eq.s32.totalorder %s37, 0
    %p541 = por %p539, %p540
    %s543 = sadd.s32 %s542, 1
    %p546 = scmp.eq.s32.totalorder %s31, 1
    %p547 = scmp.ne.s32.totalorder %s542, %s544
    %p548 = scmp.eq.s32.totalorder %s31, 0
    %p549 = por %p547, %p548
    %p550 = scmp.ne.s32.totalorder %s542, %s544
    %p551 = scmp.eq.s32.totalorder %s36, 1
    %p552 = por %p550, %p551
    %p553 = scmp.ne.s32.totalorder %s544, %s545
    %p554 = scmp.eq.s32.totalorder %s36, 0
    %p555 = por %p553, %p554
    %p556 = scmp.ne.s32.totalorder %s544, %s545
    %p557 = scmp.eq.s32.totalorder %s37, 1
    %p558 = por %p556, %p557
    %p560 = scmp.ne.s32.totalorder %s545, %s559
    %p561 = scmp.eq.s32.totalorder %s37, 0
    %p562 = por %p560, %p561
    %s564 = sadd.s32 %s563, 1
    %p567 = scmp.eq.s32.totalorder %s31, 1
    %p568 = scmp.ne.s32.totalorder %s563, %s565
    %p569 = scmp.eq.s32.totalorder %s31, 0
    %p570 = por %p568, %p569
    %p571 = scmp.ne.s32.totalorder %s563, %s565
    %p572 = scmp.eq.s32.totalorder %s36, 1
    %p573 = por %p571, %p572
    %p574 = scmp.ne.s32.totalorder %s565, %s566
    %p575 = scmp.eq.s32.totalorder %s36, 0
    %p576 = por %p574, %p575
    %p577 = scmp.ne.s32.totalorder %s565, %s566
    %p578 = scmp.eq.s32.totalorder %s37, 1
    %p579 = por %p577, %p578
    %p581 = scmp.ne.s32.totalorder %s566, %s580
    %p582 = scmp.eq.s32.totalorder %s37, 0
    %p583 = por %p581, %p582
    %s584 = ssub.s32 %s31, %s38
    %p585 = scmp.eq.s32.totalorder %s584, 0
    %s587 = sadd.s32 %s586, 1
    %s588 = scalar_select %p585, %s586, %s587
    %p591 = pneg %p585
    %p592 = scmp.eq.s32.totalorder %s31, 1
    %p593 = por %p591, %p592
    %p594 = scmp.ne.s32.totalorder %s586, %s589
    %p595 = scmp.eq.s32.totalorder %s31, 0
    %p596 = por %p594, %p595
    %p597 = scmp.ne.s32.totalorder %s586, %s589
    %p598 = scmp.eq.s32.totalorder %s36, 1
    %p599 = por %p597, %p598
    %p600 = scmp.ne.s32.totalorder %s589, %s590
    %p601 = scmp.eq.s32.totalorder %s36, 0
    %p602 = por %p600, %p601
    %p603 = scmp.ne.s32.totalorder %s589, %s590
    %p604 = scmp.eq.s32.totalorder %s37, 1
    %p605 = por %p603, %p604
    %p607 = scmp.ne.s32.totalorder %s590, %s606
    %p608 = scmp.eq.s32.totalorder %s37, 0
    %p609 = por %p607, %p608
    %p610 = scmp.le.s32.totalorder 1, %s31
    %p611 = scmp.lt.s32.totalorder %s31, 3
    %p612 = pnand %p610, %p611
    %p613 = pneg %p612
    // Predicated region
    $region9: #{flamingo_forward.9} parent=5 // pred_check
      _
    $region10: #{flamingo_forward.9} parent=5 // pred_check_branch
      %615 = sbr.rel (%p612) target = $region12
    $region11: #{flamingo_forward.9} parent=5 // pred_region
      %s616 = ssub.s32 %s31, 1
      // Predicated region
      $region13: #{flamingo_forward.9} parent=11 // pred_check
        %p617 = pneg %p156
      $region14: #{flamingo_forward.9} parent=11 // pred_check_branch
        %619 = sbr.rel (%p617) target = $region16
      $region15: #{flamingo_forward.9} parent=11 // pred_region
        _
      $region16: #{flamingo_forward.9} parent=11 // pred_fallthru
        _
      // Predicated region
      $region17: #{flamingo_forward.9} parent=11 // pred_check
        %p620 = pneg %p177
      $region18: #{flamingo_forward.9} parent=11 // pred_check_branch
        %622 = sbr.rel (%p620) target = $region20
      $region19: #{flamingo_forward.9} parent=11 // pred_region
        _
      $region20: #{flamingo_forward.9} parent=11 // pred_fallthru
        _
      // Predicated region
      $region21: #{flamingo_forward.9} parent=11 // pred_check
        %p623 = pneg %p198
      $region22: #{flamingo_forward.9} parent=11 // pred_check_branch
        %625 = sbr.rel (%p623) target = $region24
      $region23: #{flamingo_forward.9} parent=11 // pred_region
        _
      $region24: #{flamingo_forward.9} parent=11 // pred_fallthru
        _
      // Predicated region
      $region25: #{flamingo_forward.9} parent=11 // pred_check
        %p626 = pneg %p219
      $region26: #{flamingo_forward.9} parent=11 // pred_check_branch
        %628 = sbr.rel (%p626) target = $region28
      $region27: #{flamingo_forward.9} parent=11 // pred_region
        _
      $region28: #{flamingo_forward.9} parent=11 // pred_fallthru
        _
      // Predicated region
      $region29: #{flamingo_forward.9} parent=11 // pred_check
        %p629 = pneg %p240
      $region30: #{flamingo_forward.9} parent=11 // pred_check_branch
        %631 = sbr.rel (%p629) target = $region32
      $region31: #{flamingo_forward.9} parent=11 // pred_region
        _
      $region32: #{flamingo_forward.9} parent=11 // pred_fallthru
        _
      // Predicated region
      $region33: #{flamingo_forward.9} parent=11 // pred_check
        %p632 = pneg %p261
      $region34: #{flamingo_forward.9} parent=11 // pred_check_branch
        %634 = sbr.rel (%p632) target = $region36
      $region35: #{flamingo_forward.9} parent=11 // pred_region
        _
      $region36: #{flamingo_forward.9} parent=11 // pred_fallthru
        _
      // Predicated region
      $region37: #{flamingo_forward.9} parent=11 // pred_check
        %p635 = pneg %p282
      $region38: #{flamingo_forward.9} parent=11 // pred_check_branch
        %637 = sbr.rel (%p635) target = $region40
      $region39: #{flamingo_forward.9} parent=11 // pred_region
        _
      $region40: #{flamingo_forward.9} parent=11 // pred_fallthru
        _
      // Predicated region
      $region41: #{flamingo_forward.9} parent=11 // pred_check
        %p638 = pneg %p303
      $region42: #{flamingo_forward.9} parent=11 // pred_check_branch
        %640 = sbr.rel (%p638) target = $region44
      $region43: #{flamingo_forward.9} parent=11 // pred_region
        _
      $region44: #{flamingo_forward.9} parent=11 // pred_fallthru
        _
      // Predicated region
      $region45: #{flamingo_forward.9} parent=11 // pred_check
        %p641 = pneg %p324
      $region46: #{flamingo_forward.9} parent=11 // pred_check_branch
        %643 = sbr.rel (%p641) target = $region48
      $region47: #{flamingo_forward.9} parent=11 // pred_region
        _
      $region48: #{flamingo_forward.9} parent=11 // pred_fallthru
        _
      // Predicated region
      $region49: #{flamingo_forward.9} parent=11 // pred_check
        %p644 = pneg %p345
      $region50: #{flamingo_forward.9} parent=11 // pred_check_branch
        %646 = sbr.rel (%p644) target = $region52
      $region51: #{flamingo_forward.9} parent=11 // pred_region
        _
      $region52: #{flamingo_forward.9} parent=11 // pred_fallthru
        _
      // Predicated region
      $region53: #{flamingo_forward.9} parent=11 // pred_check
        %p647 = pneg %p366
      $region54: #{flamingo_forward.9} parent=11 // pred_check_branch
        %649 = sbr.rel (%p647) target = $region56
      $region55: #{flamingo_forward.9} parent=11 // pred_region
        _
      $region56: #{flamingo_forward.9} parent=11 // pred_fallthru
        _
      // Predicated region
      $region57: #{flamingo_forward.9} parent=11 // pred_check
        %p650 = pneg %p387
      $region58: #{flamingo_forward.9} parent=11 // pred_check_branch
        %652 = sbr.rel (%p650) target = $region60
      $region59: #{flamingo_forward.9} parent=11 // pred_region
        _
      $region60: #{flamingo_forward.9} parent=11 // pred_fallthru
        _
      // Predicated region
      $region61: #{flamingo_forward.9} parent=11 // pred_check
        %p653 = pneg %p408
      $region62: #{flamingo_forward.9} parent=11 // pred_check_branch
        %655 = sbr.rel (%p653) target = $region64
      $region63: #{flamingo_forward.9} parent=11 // pred_region
        _
      $region64: #{flamingo_forward.9} parent=11 // pred_fallthru
        _
      // Predicated region
      $region65: #{flamingo_forward.9} parent=11 // pred_check
        %p656 = pneg %p429
      $region66: #{flamingo_forward.9} parent=11 // pred_check_branch
        %658 = sbr.rel (%p656) target = $region68
      $region67: #{flamingo_forward.9} parent=11 // pred_region
        _
      $region68: #{flamingo_forward.9} parent=11 // pred_fallthru
        _
      // Predicated region
      $region69: #{flamingo_forward.9} parent=11 // pred_check
        %p659 = pneg %p450
      $region70: #{flamingo_forward.9} parent=11 // pred_check_branch
        %661 = sbr.rel (%p659) target = $region72
      $region71: #{flamingo_forward.9} parent=11 // pred_region
        _
      $region72: #{flamingo_forward.9} parent=11 // pred_fallthru
        _
      // Predicated region
      $region73: #{flamingo_forward.9} parent=11 // pred_check
        %p662 = pneg %p471
      $region74: #{flamingo_forward.9} parent=11 // pred_check_branch
        %664 = sbr.rel (%p662) target = $region76
      $region75: #{flamingo_forward.9} parent=11 // pred_region
        _
      $region76: #{flamingo_forward.9} parent=11 // pred_fallthru
        _
      // Predicated region
      $region77: #{flamingo_forward.9} parent=11 // pred_check
        %p665 = pneg %p492
      $region78: #{flamingo_forward.9} parent=11 // pred_check_branch
        %667 = sbr.rel (%p665) target = $region80
      $region79: #{flamingo_forward.9} parent=11 // pred_region
        _
      $region80: #{flamingo_forward.9} parent=11 // pred_fallthru
        _
      // Predicated region
      $region81: #{flamingo_forward.9} parent=11 // pred_check
        %p668 = pneg %p513
      $region82: #{flamingo_forward.9} parent=11 // pred_check_branch
        %670 = sbr.rel (%p668) target = $region84
      $region83: #{flamingo_forward.9} parent=11 // pred_region
        _
      $region84: #{flamingo_forward.9} parent=11 // pred_fallthru
        _
      // Predicated region
      $region85: #{flamingo_forward.9} parent=11 // pred_check
        %p671 = pneg %p534
      $region86: #{flamingo_forward.9} parent=11 // pred_check_branch
        %673 = sbr.rel (%p671) target = $region88
      $region87: #{flamingo_forward.9} parent=11 // pred_region
        _
      $region88: #{flamingo_forward.9} parent=11 // pred_fallthru
        _
      // Predicated region
      $region89: #{flamingo_forward.9} parent=11 // pred_check
        %p674 = pneg %p555
      $region90: #{flamingo_forward.9} parent=11 // pred_check_branch
        %676 = sbr.rel (%p674) target = $region92
      $region91: #{flamingo_forward.9} parent=11 // pred_region
        _
      $region92: #{flamingo_forward.9} parent=11 // pred_fallthru
        _
      // Predicated region
      $region93: #{flamingo_forward.9} parent=11 // pred_check
        %p677 = pneg %p576
      $region94: #{flamingo_forward.9} parent=11 // pred_check_branch
        %679 = sbr.rel (%p677) target = $region96
      $region95: #{flamingo_forward.9} parent=11 // pred_region
        _
      $region96: #{flamingo_forward.9} parent=11 // pred_fallthru
        _
    $region12: #{flamingo_forward.9} parent=5 // pred_fallthru
      _
    %p680 = scmp.lt.s32.totalorder %s31, 2
    // Predicated region
    $region97: #{flamingo_forward.9} parent=5 // pred_check
      %p681 = pneg %p680
    $region98: #{flamingo_forward.9} parent=5 // pred_check_branch
      %683 = sbr.rel (%p681) target = $region100
    $region99: #{flamingo_forward.9} parent=5 // pred_region
      // Predicated region
      $region101: #{flamingo_forward.9} parent=99 // pred_check
        %p684 = pneg %p51
      $region102: #{flamingo_forward.9} parent=99 // pred_check_branch
        %686 = sbr.rel (%p684) target = $region104
      $region103: #{flamingo_forward.9} parent=99 // pred_region
        %p687 = scmp.lt.s32.totalorder %s31, 1
        %s688 = scalar_select %p687, %s31, 1
        %s689 = smul.addr %s688, 8
        %s690 = scalar_lea.vmem %s0, %s689
      $region104: #{flamingo_forward.9} parent=99 // pred_fallthru
        _
      // Predicated region
      $region105: #{flamingo_forward.9} parent=99 // pred_check
        %p691 = pneg %p77
      $region106: #{flamingo_forward.9} parent=99 // pred_check_branch
        %693 = sbr.rel (%p691) target = $region108
      $region107: #{flamingo_forward.9} parent=99 // pred_region
        %p694 = scmp.lt.s32.totalorder %s31, 1
        %s695 = scalar_select %p694, %s31, 1
        %s696 = smul.addr %s695, 8
        %s697 = scalar_lea.vmem %s1, %s696
      $region108: #{flamingo_forward.9} parent=99 // pred_fallthru
        _
      // Predicated region
      $region109: #{flamingo_forward.9} parent=99 // pred_check
        %p698 = pneg %p103
      $region110: #{flamingo_forward.9} parent=99 // pred_check_branch
        %700 = sbr.rel (%p698) target = $region112
      $region111: #{flamingo_forward.9} parent=99 // pred_region
        %p701 = scmp.lt.s32.totalorder %s31, 1
        %s702 = scalar_select %p701, %s31, 1
        %s703 = smul.addr %s702, 8
        %s704 = scalar_lea.vmem %s2, %s703
      $region112: #{flamingo_forward.9} parent=99 // pred_fallthru
        _
      // Predicated region
      $region113: #{flamingo_forward.9} parent=99 // pred_check
        %p705 = pneg %p129
      $region114: #{flamingo_forward.9} parent=99 // pred_check_branch
        %707 = sbr.rel (%p705) target = $region116
      $region115: #{flamingo_forward.9} parent=99 // pred_region
        %p708 = scmp.lt.s32.totalorder %s31, 1
        %s709 = scalar_select %p708, %s31, 1
        %s710 = smul.addr %s709, 8
        %s711 = scalar_lea.vmem %s3, %s710
      $region116: #{flamingo_forward.9} parent=99 // pred_fallthru
        _
    $region100: #{flamingo_forward.9} parent=5 // pred_fallthru
      _
    %p712 = scmp.le.s32.totalorder 1, %s31
    %p713 = scmp.lt.s32.totalorder %s31, 3
    %p714 = pnand %p712, %p713
    %p715 = pneg %p714
    // Predicated region
    $region117: #{flamingo_forward.9} parent=5 // pred_check
      _
    $region118: #{flamingo_forward.9} parent=5 // pred_check_branch
      %717 = sbr.rel (%p714) target = $region120
    $region119: #{flamingo_forward.9} parent=5 // pred_region
      %s718 = ssub.s32 %s31, 1
      %p719 = scmp.lt.s32.totalorder %s36, 1
      %s720 = scalar_select %p719, %s36, 1
      %s721 = smul.addr %s720, 8
      %s722 = scalar_lea.vmem %s0, %s721
      %p723 = pneg %p57
      %p724 = pneg %p54
      %p725 = scmp.lt.s32.totalorder %s36, 1
      %s726 = scalar_select %p725, %s36, 1
      %s727 = smul.addr %s726, 8
      %s728 = scalar_lea.vmem %s1, %s727
      %p729 = pneg %p83
      %p730 = pneg %p80
      %p731 = scmp.lt.s32.totalorder %s36, 1
      %s732 = scalar_select %p731, %s36, 1
      %s733 = smul.addr %s732, 8
      %s734 = scalar_lea.vmem %s2, %s733
      %p735 = pneg %p109
      %p736 = pneg %p106
      %p737 = scmp.lt.s32.totalorder %s36, 1
      %s738 = scalar_select %p737, %s36, 1
      %s739 = smul.addr %s738, 8
      %s740 = scalar_lea.vmem %s3, %s739
      %p741 = pneg %p135
      %p742 = pneg %p132
      %p743 = pneg %p156
      %p744 = pneg %p153
      %p745 = pneg %p177
      %p746 = pneg %p174
      %p747 = pneg %p198
      %p748 = pneg %p195
      %p749 = pneg %p219
      %p750 = pneg %p216
      %p751 = pneg %p240
      %p752 = pneg %p237
      %p753 = pneg %p261
      %p754 = pneg %p258
      %p755 = pneg %p282
      %p756 = pneg %p279
      %p757 = pneg %p303
      %p758 = pneg %p300
      %p759 = pneg %p324
      %p760 = pneg %p321
      %p761 = pneg %p345
      %p762 = pneg %p342
      %p763 = pneg %p366
      %p764 = pneg %p363
      %p765 = pneg %p387
      %p766 = pneg %p384
      %p767 = pneg %p408
      %p768 = pneg %p405
      %p769 = pneg %p429
      %p770 = pneg %p426
      %p771 = pneg %p450
      %p772 = pneg %p447
      %p773 = pneg %p471
      %p774 = pneg %p468
      %p775 = pneg %p492
      %p776 = pneg %p489
      %p777 = pneg %p513
      %p778 = pneg %p510
      %p779 = pneg %p534
      %p780 = pneg %p531
      %p781 = pneg %p555
      %p782 = pneg %p552
      %p783 = pneg %p576
      %p784 = pneg %p573
      %p785 = pneg %p602
      %p786 = pneg %p599
      %p787 = scmp.lt.s32.totalorder %s36, 1
      %s788 = scalar_select %p787, %s36, 1
      %s789 = smul.addr %s788, 8
      %s790 = scalar_lea.vmem %s25, %s789
      %p791 = scmp.lt.s32.totalorder %s36, 1
      %s792 = scalar_select %p791, %s36, 1
      %s793 = smul.addr %s792, 8
      %s794 = scalar_lea.vmem %s0, %s793
      %p795 = scmp.lt.s32.totalorder %s36, 1
      %s796 = scalar_select %p795, %s36, 1
      %s797 = smul.addr %s796, 8
      %s798 = scalar_lea.vmem %s1, %s797
      %p799 = scmp.lt.s32.totalorder %s36, 1
      %s800 = scalar_select %p799, %s36, 1
      %s801 = smul.addr %s800, 8
      %s802 = scalar_lea.vmem %s2, %s801
      %p803 = scmp.lt.s32.totalorder %s36, 1
      %s804 = scalar_select %p803, %s36, 1
      %s805 = smul.addr %s804, 8
      %s806 = scalar_lea.vmem %s3, %s805
      %p807 = scmp.lt.s32.totalorder %s36, 1
      %s808 = scalar_select %p807, %s36, 1
      %s809 = smul.addr %s808, 8
      %s810 = scalar_lea.vmem %s25, %s809
      %v812 = vld [vmem:[%s794] sm:$0xff]
      %v813 = vld [vmem:[%s5] sm:$0x1]
      %v814 = vld [vmem:[%s6] sm:$0x1]
      %vm815 = vcmask 261120
      %v816 = vsel %vm815, %v812, 0.0
      %817 = vadd.xlane.f32.xlu0 %v816
      %v818 = vpop.xlane.xlu0 %817
      %v819 = vrcp.pop 32.0
      %v820 = vmul.f32 %v818, %v819
      %v821 = vsub.f32 %v812, %v820
      %v822 = vmul.f32 %v821, %v821
      %v823 = vsel %vm815, %v822, 0.0
      %824 = vadd.xlane.f32.xlu0 %v823
      %v825 = vpop.xlane.xlu0 %824
      %v826 = vmul.f32 %v825, %v819
      %v827 = vadd.f32 %v826, 1e-05
      %v828 = vrsqrt.pop %v827
      %v829 = vmul.f32 %v821, %v828
      %v831 = vlaneseq
      %v832 = vshrl.u32 %v831, 7
      %v833 = vsub.s32 0, %v832
      %v834 = vrot.slane %v813, %v833
      %v836 = vmul.f32 %v829, %v834
      %v838 = vlaneseq
      %v839 = vshrl.u32 %v838, 7
      %v840 = vsub.s32 0, %v839
      %v841 = vrot.slane %v814, %v840
      %v843 = vadd.f32 %v836, %v841
      %v844 = vld [vmem:[%s798] sm:$0xff]
      %v845 = vld [vmem:[%s9] sm:$0xff]
      %v846 = vld [vmem:[%s9 + $0x8] sm:$0xff]
      %v847 = vld [vmem:[%s9 + $0x10] sm:$0xff]
      %v848 = vld [vmem:[%s9 + $0x18] sm:$0xff]
      %v849 = vpack.c.bf16 %v843, %v843
      %v850 = vpack.c.bf16 %v846, %v845
      %v851 = vpack.c.bf16 %v848, %v847
      %v852 = vld [vmem:[%s10] sm:$0x1]
      %v854 = vlaneseq
      %v855 = vshrl.u32 %v854, 7
      %v856 = vsub.s32 0, %v855
      %v857 = vrot.slane %v852, %v856
      %v860 = vsel %vm815, %v849, 0
      %862 = vmatprep.subr.bf16.mxu0 0
      %863 = vmatpush1.bf16.msra.mxu0 0
      %864 = vmatprep.subr.bf16.mxu0 0
      %865 = vmatpush1.bf16.msra.mxu0 0
      %866 = vmatprep.subr.bf16.mxu0 0
      %867 = vmatpush1.bf16.msra.mxu0 0
      %868 = vmatprep.subr.bf16.mxu0 0
      %869 = vmatpush1.bf16.msra.mxu0 0
      %870 = vmatprep.subr.bf16.mxu0 0
      %871 = vmatpush1.bf16.msra.mxu0 0
      %872 = vmatprep.subr.bf16.mxu0 0
      %873 = vmatpush1.bf16.msra.mxu0 0
      %874 = vmatprep.subr.bf16.mxu0 0
      %875 = vmatpush1.bf16.msra.mxu0 %v851
      %876 = vmatprep.subr.bf16.mxu0 0
      %877 = vmatpush1.bf16.msra.mxu0 %v850
      %878 = vmatprep.subr.bf16.mxu0 0
      %879 = vmatpush2.bf16.msra.mxu0 0
      %880 = vmatprep.subr.bf16.mxu0 0
      %881 = vmatpush2.bf16.msra.mxu0 0
      %882 = vmatprep.subr.bf16.mxu0 0
      %883 = vmatpush2.bf16.msra.mxu0 0
      %884 = vmatprep.subr.bf16.mxu0 0
      %885 = vmatpush2.bf16.msra.mxu0 0
      %886 = vmatprep.subr.bf16.mxu0 0
      %887 = vmatpush2.bf16.msra.mxu0 0
      %888 = vmatprep.subr.bf16.mxu0 0
      %889 = vmatpush2.bf16.msra.mxu0 0
      %890 = vmatprep.subr.bf16.mxu0 0
      %891 = vmatpush2.bf16.msra.mxu0 0
      %892 = vmatprep.subr.bf16.mxu0 0
      %893 = vmatpush2.bf16.msra.mxu0 0
      %894 = vmatprep.mubr.bf16.mxu0 0
      %895 = vmatmul.mubr.bf16.gmra.mxu0 %v860
      %v896 = vpop.f32.mrf.mxu0
      %v897 = vadd.f32 %v857, %v896
      %v898 = vpop.f32.mrf.mxu0
      %v899 = vpop.f32.mrf.mxu0
      %v900 = vpop.f32.mrf.mxu0
      %901 = vdwg.mxu0
      %v902 = vld [vmem:[%s11] sm:$0xff]
      %v903 = vld [vmem:[%s11 + $0x8] sm:$0xff]
      %v904 = vld [vmem:[%s11 + $0x10] sm:$0xff]
      %v905 = vld [vmem:[%s11 + $0x18] sm:$0xff]
      %v906 = vpack.c.bf16 %v844, %v844
      %v907 = vpack.c.bf16 %v903, %v902
      %v908 = vpack.c.bf16 %v905, %v904
      %v909 = vld [vmem:[%s12] sm:$0x1]
      %v911 = vlaneseq
      %v912 = vshrl.u32 %v911, 7
      %v913 = vsub.s32 0, %v912
      %v914 = vrot.slane %v909, %v913
      %v917 = vsel %vm815, %v906, 0
      %919 = vmatprep.subr.bf16.mxu0 0
      %920 = vmatpush1.bf16.msra.mxu0 0
      %921 = vmatprep.subr.bf16.mxu0 0
      %922 = vmatpush1.bf16.msra.mxu0 0
      %923 = vmatprep.subr.bf16.mxu0 0
      %924 = vmatpush1.bf16.msra.mxu0 0
      %925 = vmatprep.subr.bf16.mxu0 0
      %926 = vmatpush1.bf16.msra.mxu0 0
      %927 = vmatprep.subr.bf16.mxu0 0
      %928 = vmatpush1.bf16.msra.mxu0 0
      %929 = vmatprep.subr.bf16.mxu0 0
      %930 = vmatpush1.bf16.msra.mxu0 0
      %931 = vmatprep.subr.bf16.mxu0 0
      %932 = vmatpush1.bf16.msra.mxu0 %v908
      %933 = vmatprep.subr.bf16.mxu0 0
      %934 = vmatpush1.bf16.msra.mxu0 %v907
      %935 = vmatprep.subr.bf16.mxu0 0
      %936 = vmatpush2.bf16.msra.mxu0 0
      %937 = vmatprep.subr.bf16.mxu0 0
      %938 = vmatpush2.bf16.msra.mxu0 0
      %939 = vmatprep.subr.bf16.mxu0 0
      %940 = vmatpush2.bf16.msra.mxu0 0
      %941 = vmatprep.subr.bf16.mxu0 0
      %942 = vmatpush2.bf16.msra.mxu0 0
      %943 = vmatprep.subr.bf16.mxu0 0
      %944 = vmatpush2.bf16.msra.mxu0 0
      %945 = vmatprep.subr.bf16.mxu0 0
      %946 = vmatpush2.bf16.msra.mxu0 0
      %947 = vmatprep.subr.bf16.mxu0 0
      %948 = vmatpush2.bf16.msra.mxu0 0
      %949 = vmatprep.subr.bf16.mxu0 0
      %950 = vmatpush2.bf16.msra.mxu0 0
      %951 = vmatprep.mubr.bf16.mxu0 0
      %952 = vmatmul.mubr.bf16.gmra.mxu0 %v917
      %v953 = vpop.f32.mrf.mxu0
      %v954 = vadd.f32 %v914, %v953
      %v955 = vpop.f32.mrf.mxu0
      %v956 = vpop.f32.mrf.mxu0
      %v957 = vpop.f32.mrf.mxu0
      %958 = vdwg.mxu0
      %v959 = vld [vmem:[%s13] sm:$0xff]
      %v960 = vld [vmem:[%s13 + $0x8] sm:$0xff]
      %v961 = vld [vmem:[%s13 + $0x10] sm:$0xff]
      %v962 = vld [vmem:[%s13 + $0x18] sm:$0xff]
      %v963 = vpack.c.bf16 %v960, %v959
      %v964 = vpack.c.bf16 %v962, %v961
      %v965 = vld [vmem:[%s14] sm:$0x1]
      %v967 = vlaneseq
      %v968 = vshrl.u32 %v967, 7
      %v969 = vsub.s32 0, %v968
      %v970 = vrot.slane %v965, %v969
      %972 = vmatprep.subr.bf16.mxu0 0
      %973 = vmatpush1.bf16.msra.mxu0 0
      %974 = vmatprep.subr.bf16.mxu0 0
      %975 = vmatpush1.bf16.msra.mxu0 0
      %976 = vmatprep.subr.bf16.mxu0 0
      %977 = vmatpush1.bf16.msra.mxu0 0
      %978 = vmatprep.subr.bf16.mxu0 0
      %979 = vmatpush1.bf16.msra.mxu0 0
      %980 = vmatprep.subr.bf16.mxu0 0
      %981 = vmatpush1.bf16.msra.mxu0 0
      %982 = vmatprep.subr.bf16.mxu0 0
      %983 = vmatpush1.bf16.msra.mxu0 0
      %984 = vmatprep.subr.bf16.mxu0 0
      %985 = vmatpush1.bf16.msra.mxu0 %v964
      %986 = vmatprep.subr.bf16.mxu0 0
      %987 = vmatpush1.bf16.msra.mxu0 %v963
      %988 = vmatprep.subr.bf16.mxu0 0
      %989 = vmatpush2.bf16.msra.mxu0 0
      %990 = vmatprep.subr.bf16.mxu0 0
      %991 = vmatpush2.bf16.msra.mxu0 0
      %992 = vmatprep.subr.bf16.mxu0 0
      %993 = vmatpush2.bf16.msra.mxu0 0
      %994 = vmatprep.subr.bf16.mxu0 0
      %995 = vmatpush2.bf16.msra.mxu0 0
      %996 = vmatprep.subr.bf16.mxu0 0
      %997 = vmatpush2.bf16.msra.mxu0 0
      %998 = vmatprep.subr.bf16.mxu0 0
      %999 = vmatpush2.bf16.msra.mxu0 0
      %1000 = vmatprep.subr.bf16.mxu0 0
      %1001 = vmatpush2.bf16.msra.mxu0 0
      %1002 = vmatprep.subr.bf16.mxu0 0
      %1003 = vmatpush2.bf16.msra.mxu0 0
      %1004 = vmatprep.mubr.bf16.mxu0 0
      %1005 = vmatmul.mubr.bf16.gmra.mxu0 %v917
      %v1006 = vpop.f32.mrf.mxu0
      %v1007 = vadd.f32 %v970, %v1006
      %v1008 = vpop.f32.mrf.mxu0
      %v1009 = vpop.f32.mrf.mxu0
      %v1010 = vpop.f32.mrf.mxu0
      %1011 = vdwg.mxu0
      %v1012 = vld [vmem:[%s802] sm:$0xff]
      %v1013 = vlaneseq
      %v1014 = vand.u32 %v1013, 127
      %vm1015 = vcmp.ge.s32.totalorder %v1014, 0
      %vm1016 = vcmp.lt.s32.totalorder %v1014, 8
      %vm1017 = vmand %vm1015, %vm1016
      %v1018 = vsel %vm1017, 1, 0
      %vm1019 = vcmp.eq.s32.totalorder %v1018, 1
      %v1020 = vsel %vm1019, %v897, 0.0
      %v1021 = vpack.c.bf16 %v1020, %v1020
      %v1022 = vpack.c.bf16 %v954, %v954
      %v1024 = vsel %vm815, %v1021, 0
      %v1027 = vsel %vm815, %v1022, 0
      %1029 = vmatprep.subr.bf16.mxu0 0
      %1030 = vmatpush1.bf16.xpose.msra.mxu0 0
      %1031 = vmatprep.subr.bf16.mxu0 0
      %1032 = vmatpush1.bf16.xpose.msra.mxu0 0
      %1033 = vmatprep.subr.bf16.mxu0 0
      %1034 = vmatpush1.bf16.xpose.msra.mxu0 0
      %1035 = vmatprep.subr.bf16.mxu0 0
      %1036 = vmatpush1.bf16.xpose.msra.mxu0 0
      %1037 = vmatprep.subr.bf16.mxu0 0
      %1038 = vmatpush1.bf16.xpose.msra.mxu0 0
      %1039 = vmatprep.subr.bf16.mxu0 0
      %1040 = vmatpush1.bf16.xpose.msra.mxu0 0
      %1041 = vmatprep.subr.bf16.mxu0 0
      %1042 = vmatpush1.bf16.xpose.msra.mxu0 0
      %1043 = vmatprep.subr.bf16.mxu0 0
      %1044 = vmatpush1.bf16.xpose.msra.mxu0 %v1027
      %1045 = vmatprep.subr.bf16.mxu0 0
      %1046 = vmatpush2.bf16.xpose.msra.mxu0 0
      %1047 = vmatprep.subr.bf16.mxu0 0
      %1048 = vmatpush2.bf16.xpose.msra.mxu0 0
      %1049 = vmatprep.subr.bf16.mxu0 0
      %1050 = vmatpush2.bf16.xpose.msra.mxu0 0
      %1051 = vmatprep.subr.bf16.mxu0 0
      %1052 = vmatpush2.bf16.xpose.msra.mxu0 0
      %1053 = vmatprep.subr.bf16.mxu0 0
      %1054 = vmatpush2.bf16.xpose.msra.mxu0 0
      %1055 = vmatprep.subr.bf16.mxu0 0
      %1056 = vmatpush2.bf16.xpose.msra.mxu0 0
      %1057 = vmatprep.subr.bf16.mxu0 0
      %1058 = vmatpush2.bf16.xpose.msra.mxu0 0
      %1059 = vmatprep.subr.bf16.mxu0 0
      %1060 = vmatpush2.bf16.xpose.msra.mxu0 0
      %1061 = vmatprep.mubr.bf16.mxu0 0
      %1062 = vmatmul.mubr.bf16.gmra.mxu0 %v1024
      %v1063 = vpop.f32.mrf.mxu0
      %v1064 = vadd.f32 0.0, %v1063
      %v1065 = vpop.f32.mrf.mxu0
      %v1066 = vpop.f32.mrf.mxu0
      %v1067 = vpop.f32.mrf.mxu0
      %1068 = vdwg.mxu0
      %v1069 = vmul.f32 %v1064, 0.35355338
      %v1070 = vadd.f32 %v1069, %v1012
      %vm1071 = vcmask 64512
      %v1072 = vsel %vm1071, %v1070, -inf
      %1073 = vmax.xlane.f32.xlu0 %v1072
      %v1074 = vpop.xlane.xlu0 %1073
      %v1075 = vsub.f32 %v1070, %v1074
      %v1076 = vmul.f32 %v1075, 1.442695
      %v1077 = vpow.pop %v1076
      %v1078 = vsel %vm1071, %v1077, 0.0
      %1079 = vadd.xlane.f32.xlu0 %v1078
      %v1080 = vpop.xlane.xlu0 %1079
      %v1081 = vrcp.pop %v1080
      %v1082 = vmul.f32 %v1077, %v1081
      %v1083 = vsel %vm1019, %v1007, 0.0
      %v1084 = vpack.c.bf16 %v1082, %v1082
      %v1085 = vpack.c.bf16 %v1083, %v1083
      %vm1086 = vcmp.ge.s32.totalorder %v1014, 8
      %vm1087 = vcmp.lt.s32.totalorder %v1014, 16
      %vm1088 = vmand %vm1086, %vm1087
      %v1089 = vsel %vm1088, 1, 0
      %vm1090 = vcmp.eq.s32.totalorder %v1089, 1
      %v1091 = vsel %vm1090, %v897, 0.0
      %v1092 = vpack.c.bf16 %v1091, %v1091
      %v1094 = vsel %vm815, %v1092, 0
      %1096 = vmatprep.subr.bf16.mxu0 0
      %1097 = vmatpush1.bf16.xpose.msra.mxu0 0
      %1098 = vmatprep.subr.bf16.mxu0 0
      %1099 = vmatpush1.bf16.xpose.msra.mxu0 0
      %1100 = vmatprep.subr.bf16.mxu0 0
      %1101 = vmatpush1.bf16.xpose.msra.mxu0 0
      %1102 = vmatprep.subr.bf16.mxu0 0
      %1103 = vmatpush1.bf16.xpose.msra.mxu0 0
      %1104 = vmatprep.subr.bf16.mxu0 0
      %1105 = vmatpush1.bf16.xpose.msra.mxu0 0
      %1106 = vmatprep.subr.bf16.mxu0 0
      %1107 = vmatpush1.bf16.xpose.msra.mxu0 0
      %1108 = vmatprep.subr.bf16.mxu0 0
      %1109 = vmatpush1.bf16.xpose.msra.mxu0 0
      %1110 = vmatprep.subr.bf16.mxu0 0
      %1111 = vmatpush1.bf16.xpose.msra.mxu0 %v1027
      %1112 = vmatprep.subr.bf16.mxu0 0
      %1113 = vmatpush2.bf16.xpose.msra.mxu0 0
      %1114 = vmatprep.subr.bf16.mxu0 0
      %1115 = vmatpush2.bf16.xpose.msra.mxu0 0
      %1116 = vmatprep.subr.bf16.mxu0 0
      %1117 = vmatpush2.bf16.xpose.msra.mxu0 0
      %1118 = vmatprep.subr.bf16.mxu0 0
      %1119 = vmatpush2.bf16.xpose.msra.mxu0 0
      %1120 = vmatprep.subr.bf16.mxu0 0
      %1121 = vmatpush2.bf16.xpose.msra.mxu0 0
      %1122 = vmatprep.subr.bf16.mxu0 0
      %1123 = vmatpush2.bf16.xpose.msra.mxu0 0
      %1124 = vmatprep.subr.bf16.mxu0 0
      %1125 = vmatpush2.bf16.xpose.msra.mxu0 0
      %1126 = vmatprep.subr.bf16.mxu0 0
      %1127 = vmatpush2.bf16.xpose.msra.mxu0 0
      %1128 = vmatprep.mubr.bf16.mxu0 0
      %1129 = vmatmul.mubr.bf16.gmra.mxu0 %v1094
      %v1130 = vpop.f32.mrf.mxu0
      %v1131 = vadd.f32 0.0, %v1130
      %v1132 = vpop.f32.mrf.mxu0
      %v1133 = vpop.f32.mrf.mxu0
      %v1134 = vpop.f32.mrf.mxu0
      %1135 = vdwg.mxu0
      %v1136 = vmul.f32 %v1131, 0.35355338
      %v1137 = vadd.f32 %v1136, %v1012
      %v1138 = vsel %vm1071, %v1137, -inf
      %1139 = vmax.xlane.f32.xlu0 %v1138
      %v1140 = vpop.xlane.xlu0 %1139
      %v1141 = vsub.f32 %v1137, %v1140
      %v1142 = vmul.f32 %v1141, 1.442695
      %v1143 = vpow.pop %v1142
      %v1144 = vsel %vm1071, %v1143, 0.0
      %1145 = vadd.xlane.f32.xlu0 %v1144
      %v1146 = vpop.xlane.xlu0 %1145
      %v1147 = vrcp.pop %v1146
      %v1148 = vmul.f32 %v1143, %v1147
      %v1149 = vsel %vm1090, %v1007, 0.0
      %v1150 = vpack.c.bf16 %v1148, %v1148
      %v1151 = vpack.c.bf16 %v1149, %v1149
      %v1153 = vsel %vm1071, %v1150, 0
      %vm1155 = vcmask 1043456
      %v1157 = vsel %vm1155, %v1151, 0
      %1159 = vmatprep.subr.bf16.mxu0 0
      %1160 = vmatpush1.bf16.msra.mxu0 0
      %1161 = vmatprep.subr.bf16.mxu0 0
      %1162 = vmatpush1.bf16.msra.mxu0 0
      %1163 = vmatprep.subr.bf16.mxu0 0
      %1164 = vmatpush1.bf16.msra.mxu0 0
      %1165 = vmatprep.subr.bf16.mxu0 0
      %1166 = vmatpush1.bf16.msra.mxu0 0
      %1167 = vmatprep.subr.bf16.mxu0 0
      %1168 = vmatpush1.bf16.msra.mxu0 0
      %1169 = vmatprep.subr.bf16.mxu0 0
      %1170 = vmatpush1.bf16.msra.mxu0 0
      %1171 = vmatprep.subr.bf16.mxu0 0
      %1172 = vmatpush1.bf16.msra.mxu0 0
      %1173 = vmatprep.subr.bf16.mxu0 0
      %1174 = vmatpush1.bf16.msra.mxu0 %v1157
      %1175 = vmatprep.subr.bf16.mxu0 0
      %1176 = vmatpush2.bf16.msra.mxu0 0
      %1177 = vmatprep.subr.bf16.mxu0 0
      %1178 = vmatpush2.bf16.msra.mxu0 0
      %1179 = vmatprep.subr.bf16.mxu0 0
      %1180 = vmatpush2.bf16.msra.mxu0 0
      %1181 = vmatprep.subr.bf16.mxu0 0
      %1182 = vmatpush2.bf16.msra.mxu0 0
      %1183 = vmatprep.subr.bf16.mxu0 0
      %1184 = vmatpush2.bf16.msra.mxu0 0
      %1185 = vmatprep.subr.bf16.mxu0 0
      %1186 = vmatpush2.bf16.msra.mxu0 0
      %1187 = vmatprep.subr.bf16.mxu0 0
      %1188 = vmatpush2.bf16.msra.mxu0 0
      %1189 = vmatprep.subr.bf16.mxu0 0
      %1190 = vmatpush2.bf16.msra.mxu0 0
      %1191 = vmatprep.mubr.bf16.mxu0 0
      %1192 = vmatmul.mubr.bf16.gmra.mxu0 %v1153
      %v1193 = vpop.f32.mrf.mxu0
      %v1194 = vadd.f32 0.0, %v1193
      %v1195 = vpop.f32.mrf.mxu0
      %v1196 = vpop.f32.mrf.mxu0
      %v1197 = vpop.f32.mrf.mxu0
      %1198 = vdwg.mxu0
      %v1200 = vsel %vm1071, %v1084, 0
      %v1203 = vsel %vm1155, %v1085, 0
      %1205 = vmatprep.subr.bf16.mxu0 0
      %1206 = vmatpush1.bf16.msra.mxu0 0
      %1207 = vmatprep.subr.bf16.mxu0 0
      %1208 = vmatpush1.bf16.msra.mxu0 0
      %1209 = vmatprep.subr.bf16.mxu0 0
      %1210 = vmatpush1.bf16.msra.mxu0 0
      %1211 = vmatprep.subr.bf16.mxu0 0
      %1212 = vmatpush1.bf16.msra.mxu0 0
      %1213 = vmatprep.subr.bf16.mxu0 0
      %1214 = vmatpush1.bf16.msra.mxu0 0
      %1215 = vmatprep.subr.bf16.mxu0 0
      %1216 = vmatpush1.bf16.msra.mxu0 0
      %1217 = vmatprep.subr.bf16.mxu0 0
      %1218 = vmatpush1.bf16.msra.mxu0 0
      %1219 = vmatprep.subr.bf16.mxu0 0
      %1220 = vmatpush1.bf16.msra.mxu0 %v1203
      %1221 = vmatprep.subr.bf16.mxu0 0
      %1222 = vmatpush2.bf16.msra.mxu0 0
      %1223 = vmatprep.subr.bf16.mxu0 0
      %1224 = vmatpush2.bf16.msra.mxu0 0
      %1225 = vmatprep.subr.bf16.mxu0 0
      %1226 = vmatpush2.bf16.msra.mxu0 0
      %1227 = vmatprep.subr.bf16.mxu0 0
      %1228 = vmatpush2.bf16.msra.mxu0 0
      %1229 = vmatprep.subr.bf16.mxu0 0
      %1230 = vmatpush2.bf16.msra.mxu0 0
      %1231 = vmatprep.subr.bf16.mxu0 0
      %1232 = vmatpush2.bf16.msra.mxu0 0
      %1233 = vmatprep.subr.bf16.mxu0 0
      %1234 = vmatpush2.bf16.msra.mxu0 0
      %1235 = vmatprep.subr.bf16.mxu0 0
      %1236 = vmatpush2.bf16.msra.mxu0 0
      %1237 = vmatprep.mubr.bf16.mxu0 0
      %1238 = vmatmul.mubr.bf16.gmra.mxu0 %v1200
      %v1239 = vpop.f32.mrf.mxu0
      %v1240 = vadd.f32 %v1194, %v1239
      %v1241 = vpop.f32.mrf.mxu0
      %v1242 = vpop.f32.mrf.mxu0
      %v1243 = vpop.f32.mrf.mxu0
      %1244 = vdwg.mxu0
      %vm1245 = vcmp.ge.s32.totalorder %v1014, 16
      %vm1246 = vcmp.lt.s32.totalorder %v1014, 24
      %vm1247 = vmand %vm1245, %vm1246
      %v1248 = vsel %vm1247, 1, 0
      %vm1249 = vcmp.eq.s32.totalorder %v1248, 1
      %v1250 = vsel %vm1249, %v897, 0.0
      %v1251 = vpack.c.bf16 %v1250, %v1250
      %v1253 = vsel %vm815, %v1251, 0
      %1255 = vmatprep.subr.bf16.mxu0 0
      %1256 = vmatpush1.bf16.xpose.msra.mxu0 0
      %1257 = vmatprep.subr.bf16.mxu0 0
      %1258 = vmatpush1.bf16.xpose.msra.mxu0 0
      %1259 = vmatprep.subr.bf16.mxu0 0
      %1260 = vmatpush1.bf16.xpose.msra.mxu0 0
      %1261 = vmatprep.subr.bf16.mxu0 0
      %1262 = vmatpush1.bf16.xpose.msra.mxu0 0
      %1263 = vmatprep.subr.bf16.mxu0 0
      %1264 = vmatpush1.bf16.xpose.msra.mxu0 0
      %1265 = vmatprep.subr.bf16.mxu0 0
      %1266 = vmatpush1.bf16.xpose.msra.mxu0 0
      %1267 = vmatprep.subr.bf16.mxu0 0
      %1268 = vmatpush1.bf16.xpose.msra.mxu0 0
      %1269 = vmatprep.subr.bf16.mxu0 0
      %1270 = vmatpush1.bf16.xpose.msra.mxu0 %v1027
      %1271 = vmatprep.subr.bf16.mxu0 0
      %1272 = vmatpush2.bf16.xpose.msra.mxu0 0
      %1273 = vmatprep.subr.bf16.mxu0 0
      %1274 = vmatpush2.bf16.xpose.msra.mxu0 0
      %1275 = vmatprep.subr.bf16.mxu0 0
      %1276 = vmatpush2.bf16.xpose.msra.mxu0 0
      %1277 = vmatprep.subr.bf16.mxu0 0
      %1278 = vmatpush2.bf16.xpose.msra.mxu0 0
      %1279 = vmatprep.subr.bf16.mxu0 0
      %1280 = vmatpush2.bf16.xpose.msra.mxu0 0
      %1281 = vmatprep.subr.bf16.mxu0 0
      %1282 = vmatpush2.bf16.xpose.msra.mxu0 0
      %1283 = vmatprep.subr.bf16.mxu0 0
      %1284 = vmatpush2.bf16.xpose.msra.mxu0 0
      %1285 = vmatprep.subr.bf16.mxu0 0
      %1286 = vmatpush2.bf16.xpose.msra.mxu0 0
      %1287 = vmatprep.mubr.bf16.mxu0 0
      %1288 = vmatmul.mubr.bf16.gmra.mxu0 %v1253
      %v1289 = vpop.f32.mrf.mxu0
      %v1290 = vadd.f32 0.0, %v1289
      %v1291 = vpop.f32.mrf.mxu0
      %v1292 = vpop.f32.mrf.mxu0
      %v1293 = vpop.f32.mrf.mxu0
      %1294 = vdwg.mxu0
      %v1295 = vmul.f32 %v1290, 0.35355338
      %v1296 = vadd.f32 %v1295, %v1012
      %v1297 = vsel %vm1071, %v1296, -inf
      %1298 = vmax.xlane.f32.xlu0 %v1297
      %v1299 = vpop.xlane.xlu0 %1298
      %v1300 = vsub.f32 %v1296, %v1299
      %v1301 = vmul.f32 %v1300, 1.442695
      %v1302 = vpow.pop %v1301
      %v1303 = vsel %vm1071, %v1302, 0.0
      %1304 = vadd.xlane.f32.xlu0 %v1303
      %v1305 = vpop.xlane.xlu0 %1304
      %v1306 = vrcp.pop %v1305
      %v1307 = vmul.f32 %v1302, %v1306
      %v1308 = vsel %vm1249, %v1007, 0.0
      %v1309 = vpack.c.bf16 %v1307, %v1307
      %v1310 = vpack.c.bf16 %v1308, %v1308
      %v1312 = vsel %vm1071, %v1309, 0
      %v1315 = vsel %vm1155, %v1310, 0
      %1317 = vmatprep.subr.bf16.mxu0 0
      %1318 = vmatpush1.bf16.msra.mxu0 0
      %1319 = vmatprep.subr.bf16.mxu0 0
      %1320 = vmatpush1.bf16.msra.mxu0 0
      %1321 = vmatprep.subr.bf16.mxu0 0
      %1322 = vmatpush1.bf16.msra.mxu0 0
      %1323 = vmatprep.subr.bf16.mxu0 0
      %1324 = vmatpush1.bf16.msra.mxu0 0
      %1325 = vmatprep.subr.bf16.mxu0 0
      %1326 = vmatpush1.bf16.msra.mxu0 0
      %1327 = vmatprep.subr.bf16.mxu0 0
      %1328 = vmatpush1.bf16.msra.mxu0 0
      %1329 = vmatprep.subr.bf16.mxu0 0
      %1330 = vmatpush1.bf16.msra.mxu0 0
      %1331 = vmatprep.subr.bf16.mxu0 0
      %1332 = vmatpush1.bf16.msra.mxu0 %v1315
      %1333 = vmatprep.subr.bf16.mxu0 0
      %1334 = vmatpush2.bf16.msra.mxu0 0
      %1335 = vmatprep.subr.bf16.mxu0 0
      %1336 = vmatpush2.bf16.msra.mxu0 0
      %1337 = vmatprep.subr.bf16.mxu0 0
      %1338 = vmatpush2.bf16.msra.mxu0 0
      %1339 = vmatprep.subr.bf16.mxu0 0
      %1340 = vmatpush2.bf16.msra.mxu0 0
      %1341 = vmatprep.subr.bf16.mxu0 0
      %1342 = vmatpush2.bf16.msra.mxu0 0
      %1343 = vmatprep.subr.bf16.mxu0 0
      %1344 = vmatpush2.bf16.msra.mxu0 0
      %1345 = vmatprep.subr.bf16.mxu0 0
      %1346 = vmatpush2.bf16.msra.mxu0 0
      %1347 = vmatprep.subr.bf16.mxu0 0
      %1348 = vmatpush2.bf16.msra.mxu0 0
      %1349 = vmatprep.mubr.bf16.mxu0 0
      %1350 = vmatmul.mubr.bf16.gmra.mxu0 %v1312
      %v1351 = vpop.f32.mrf.mxu0
      %v1352 = vadd.f32 0.0, %v1351
      %v1353 = vpop.f32.mrf.mxu0
      %v1354 = vpop.f32.mrf.mxu0
      %v1355 = vpop.f32.mrf.mxu0
      %1356 = vdwg.mxu0
      %v1357 = vadd.f32 %v1240, %v1352
      %vm1358 = vcmp.ge.s32.totalorder %v1014, 24
      %vm1359 = vcmp.lt.s32.totalorder %v1014, 32
      %vm1360 = vmand %vm1358, %vm1359
      %v1361 = vsel %vm1360, 1, 0
      %vm1362 = vcmp.eq.s32.totalorder %v1361, 1
      %v1363 = vsel %vm1362, %v897, 0.0
      %v1364 = vpack.c.bf16 %v1363, %v1363
      %v1366 = vsel %vm815, %v1364, 0
      %1368 = vmatprep.subr.bf16.mxu0 0
      %1369 = vmatpush1.bf16.xpose.msra.mxu0 0
      %1370 = vmatprep.subr.bf16.mxu0 0
      %1371 = vmatpush1.bf16.xpose.msra.mxu0 0
      %1372 = vmatprep.subr.bf16.mxu0 0
      %1373 = vmatpush1.bf16.xpose.msra.mxu0 0
      %1374 = vmatprep.subr.bf16.mxu0 0
      %1375 = vmatpush1.bf16.xpose.msra.mxu0 0
      %1376 = vmatprep.subr.bf16.mxu0 0
      %1377 = vmatpush1.bf16.xpose.msra.mxu0 0
      %1378 = vmatprep.subr.bf16.mxu0 0
      %1379 = vmatpush1.bf16.xpose.msra.mxu0 0
      %1380 = vmatprep.subr.bf16.mxu0 0
      %1381 = vmatpush1.bf16.xpose.msra.mxu0 0
      %1382 = vmatprep.subr.bf16.mxu0 0
      %1383 = vmatpush1.bf16.xpose.msra.mxu0 %v1027
      %1384 = vmatprep.subr.bf16.mxu0 0
      %1385 = vmatpush2.bf16.xpose.msra.mxu0 0
      %1386 = vmatprep.subr.bf16.mxu0 0
      %1387 = vmatpush2.bf16.xpose.msra.mxu0 0
      %1388 = vmatprep.subr.bf16.mxu0 0
      %1389 = vmatpush2.bf16.xpose.msra.mxu0 0
      %1390 = vmatprep.subr.bf16.mxu0 0
      %1391 = vmatpush2.bf16.xpose.msra.mxu0 0
      %1392 = vmatprep.subr.bf16.mxu0 0
      %1393 = vmatpush2.bf16.xpose.msra.mxu0 0
      %1394 = vmatprep.subr.bf16.mxu0 0
      %1395 = vmatpush2.bf16.xpose.msra.mxu0 0
      %1396 = vmatprep.subr.bf16.mxu0 0
      %1397 = vmatpush2.bf16.xpose.msra.mxu0 0
      %1398 = vmatprep.subr.bf16.mxu0 0
      %1399 = vmatpush2.bf16.xpose.msra.mxu0 0
      %1400 = vmatprep.mubr.bf16.mxu0 0
      %1401 = vmatmul.mubr.bf16.gmra.mxu0 %v1366
      %v1402 = vpop.f32.mrf.mxu0
      %v1403 = vadd.f32 0.0, %v1402
      %v1404 = vpop.f32.mrf.mxu0
      %v1405 = vpop.f32.mrf.mxu0
      %v1406 = vpop.f32.mrf.mxu0
      %1407 = vdwg.mxu0
      %v1408 = vmul.f32 %v1403, 0.35355338
      %v1409 = vadd.f32 %v1408, %v1012
      %v1410 = vsel %vm1071, %v1409, -inf
      %1411 = vmax.xlane.f32.xlu0 %v1410
      %v1412 = vpop.xlane.xlu0 %1411
      %v1413 = vsub.f32 %v1409, %v1412
      %v1414 = vmul.f32 %v1413, 1.442695
      %v1415 = vpow.pop %v1414
      %v1416 = vsel %vm1071, %v1415, 0.0
      %1417 = vadd.xlane.f32.xlu0 %v1416
      %v1418 = vpop.xlane.xlu0 %1417
      %v1419 = vrcp.pop %v1418
      %v1420 = vmul.f32 %v1415, %v1419
      %v1421 = vsel %vm1362, %v1007, 0.0
      %v1422 = vpack.c.bf16 %v1420, %v1420
      %v1423 = vpack.c.bf16 %v1421, %v1421
      %v1425 = vsel %vm1071, %v1422, 0
      %v1428 = vsel %vm1155, %v1423, 0
      %1430 = vmatprep.subr.bf16.mxu0 0
      %1431 = vmatpush1.bf16.msra.mxu0 0
      %1432 = vmatprep.subr.bf16.mxu0 0
      %1433 = vmatpush1.bf16.msra.mxu0 0
      %1434 = vmatprep.subr.bf16.mxu0 0
      %1435 = vmatpush1.bf16.msra.mxu0 0
      %1436 = vmatprep.subr.bf16.mxu0 0
      %1437 = vmatpush1.bf16.msra.mxu0 0
      %1438 = vmatprep.subr.bf16.mxu0 0
      %1439 = vmatpush1.bf16.msra.mxu0 0
      %1440 = vmatprep.subr.bf16.mxu0 0
      %1441 = vmatpush1.bf16.msra.mxu0 0
      %1442 = vmatprep.subr.bf16.mxu0 0
      %1443 = vmatpush1.bf16.msra.mxu0 0
      %1444 = vmatprep.subr.bf16.mxu0 0
      %1445 = vmatpush1.bf16.msra.mxu0 %v1428
      %1446 = vmatprep.subr.bf16.mxu0 0
      %1447 = vmatpush2.bf16.msra.mxu0 0
      %1448 = vmatprep.subr.bf16.mxu0 0
      %1449 = vmatpush2.bf16.msra.mxu0 0
      %1450 = vmatprep.subr.bf16.mxu0 0
      %1451 = vmatpush2.bf16.msra.mxu0 0
      %1452 = vmatprep.subr.bf16.mxu0 0
      %1453 = vmatpush2.bf16.msra.mxu0 0
      %1454 = vmatprep.subr.bf16.mxu0 0
      %1455 = vmatpush2.bf16.msra.mxu0 0
      %1456 = vmatprep.subr.bf16.mxu0 0
      %1457 = vmatpush2.bf16.msra.mxu0 0
      %1458 = vmatprep.subr.bf16.mxu0 0
      %1459 = vmatpush2.bf16.msra.mxu0 0
      %1460 = vmatprep.subr.bf16.mxu0 0
      %1461 = vmatpush2.bf16.msra.mxu0 0
      %1462 = vmatprep.mubr.bf16.mxu0 0
      %1463 = vmatmul.mubr.bf16.gmra.mxu0 %v1425
      %v1464 = vpop.f32.mrf.mxu0
      %v1465 = vadd.f32 0.0, %v1464
      %v1466 = vpop.f32.mrf.mxu0
      %v1467 = vpop.f32.mrf.mxu0
      %v1468 = vpop.f32.mrf.mxu0
      %1469 = vdwg.mxu0
      %v1470 = vadd.f32 %v1357, %v1465
      %v1471 = vld [vmem:[%s806] sm:$0xff]
      %v1472 = vld [vmem:[%s15] sm:$0xff]
      %v1473 = vld [vmem:[%s15 + $0x8] sm:$0xff]
      %v1474 = vld [vmem:[%s15 + $0x10] sm:$0xff]
      %v1475 = vld [vmem:[%s15 + $0x18] sm:$0xff]
      %v1476 = vpack.c.bf16 %v1470, %v1470
      %v1477 = vpack.c.bf16 %v1473, %v1472
      %v1478 = vpack.c.bf16 %v1475, %v1474
      %v1479 = vld [vmem:[%s16] sm:$0x1]
      %v1481 = vlaneseq
      %v1482 = vshrl.u32 %v1481, 7
      %v1483 = vsub.s32 0, %v1482
      %v1484 = vrot.slane %v1479, %v1483
      %v1487 = vsel %vm815, %v1476, 0
      %1489 = vmatprep.subr.bf16.mxu0 0
      %1490 = vmatpush1.bf16.msra.mxu0 0
      %1491 = vmatprep.subr.bf16.mxu0 0
      %1492 = vmatpush1.bf16.msra.mxu0 0
      %1493 = vmatprep.subr.bf16.mxu0 0
      %1494 = vmatpush1.bf16.msra.mxu0 0
      %1495 = vmatprep.subr.bf16.mxu0 0
      %1496 = vmatpush1.bf16.msra.mxu0 0
      %1497 = vmatprep.subr.bf16.mxu0 0
      %1498 = vmatpush1.bf16.msra.mxu0 0
      %1499 = vmatprep.subr.bf16.mxu0 0
      %1500 = vmatpush1.bf16.msra.mxu0 0
      %1501 = vmatprep.subr.bf16.mxu0 0
      %1502 = vmatpush1.bf16.msra.mxu0 %v1478
      %1503 = vmatprep.subr.bf16.mxu0 0
      %1504 = vmatpush1.bf16.msra.mxu0 %v1477
      %1505 = vmatprep.subr.bf16.mxu0 0
      %1506 = vmatpush2.bf16.msra.mxu0 0
      %1507 = vmatprep.subr.bf16.mxu0 0
      %1508 = vmatpush2.bf16.msra.mxu0 0
      %1509 = vmatprep.subr.bf16.mxu0 0
      %1510 = vmatpush2.bf16.msra.mxu0 0
      %1511 = vmatprep.subr.bf16.mxu0 0
      %1512 = vmatpush2.bf16.msra.mxu0 0
      %1513 = vmatprep.subr.bf16.mxu0 0
      %1514 = vmatpush2.bf16.msra.mxu0 0
      %1515 = vmatprep.subr.bf16.mxu0 0
      %1516 = vmatpush2.bf16.msra.mxu0 0
      %1517 = vmatprep.subr.bf16.mxu0 0
      %1518 = vmatpush2.bf16.msra.mxu0 0
      %1519 = vmatprep.subr.bf16.mxu0 0
      %1520 = vmatpush2.bf16.msra.mxu0 0
      %1521 = vmatprep.mubr.bf16.mxu0 0
      %1522 = vmatmul.mubr.bf16.gmra.mxu0 %v1487
      %v1523 = vpop.f32.mrf.mxu0
      %v1524 = vadd.f32 %v1484, %v1523
      %v1525 = vpop.f32.mrf.mxu0
      %v1526 = vpop.f32.mrf.mxu0
      %v1527 = vpop.f32.mrf.mxu0
      %1528 = vdwg.mxu0
      %v1529 = vmul.f32 %v1471, %v1524
      %v1530 = vadd.f32 %v812, %v1529
      %v1531 = vld [vmem:[%s17] sm:$0x1]
      %v1532 = vld [vmem:[%s18] sm:$0x1]
      %v1533 = vsel %vm815, %v1530, 0.0
      %1534 = vadd.xlane.f32.xlu0 %v1533
      %v1535 = vpop.xlane.xlu0 %1534
      %v1536 = vmul.f32 %v1535, %v819
      %v1537 = vsub.f32 %v1530, %v1536
      %v1538 = vmul.f32 %v1537, %v1537
      %v1539 = vsel %vm815, %v1538, 0.0
      %1540 = vadd.xlane.f32.xlu0 %v1539
      %v1541 = vpop.xlane.xlu0 %1540
      %v1542 = vmul.f32 %v1541, %v819
      %v1543 = vadd.f32 %v1542, 1e-05
      %v1544 = vrsqrt.pop %v1543
      %v1545 = vmul.f32 %v1537, %v1544
      %v1547 = vlaneseq
      %v1548 = vshrl.u32 %v1547, 7
      %v1549 = vsub.s32 0, %v1548
      %v1550 = vrot.slane %v1531, %v1549
      %v1552 = vmul.f32 %v1545, %v1550
      %v1554 = vlaneseq
      %v1555 = vshrl.u32 %v1554, 7
      %v1556 = vsub.s32 0, %v1555
      %v1557 = vrot.slane %v1532, %v1556
      %v1559 = vadd.f32 %v1552, %v1557
      %v1560 = vld [vmem:[%s19] sm:$0xff]
      %v1561 = vld [vmem:[%s19 + $0x8] sm:$0xff]
      %v1562 = vld [vmem:[%s19 + $0x10] sm:$0xff]
      %v1563 = vld [vmem:[%s19 + $0x18] sm:$0xff]
      %v1564 = vpack.c.bf16 %v1559, %v1559
      %v1565 = vpack.c.bf16 %v1561, %v1560
      %v1566 = vpack.c.bf16 %v1563, %v1562
      %v1567 = vld [vmem:[%s20] sm:$0x1]
      %v1569 = vlaneseq
      %v1570 = vshrl.u32 %v1569, 7
      %v1571 = vsub.s32 0, %v1570
      %v1572 = vrot.slane %v1567, %v1571
      %v1575 = vsel %vm815, %v1564, 0
      %1577 = vmatprep.subr.bf16.mxu0 0
      %1578 = vmatpush1.bf16.msra.mxu0 0
      %1579 = vmatprep.subr.bf16.mxu0 0
      %1580 = vmatpush1.bf16.msra.mxu0 0
      %1581 = vmatprep.subr.bf16.mxu0 0
      %1582 = vmatpush1.bf16.msra.mxu0 0
      %1583 = vmatprep.subr.bf16.mxu0 0
      %1584 = vmatpush1.bf16.msra.mxu0 0
      %1585 = vmatprep.subr.bf16.mxu0 0
      %1586 = vmatpush1.bf16.msra.mxu0 0
      %1587 = vmatprep.subr.bf16.mxu0 0
      %1588 = vmatpush1.bf16.msra.mxu0 0
      %1589 = vmatprep.subr.bf16.mxu0 0
      %1590 = vmatpush1.bf16.msra.mxu0 %v1566
      %1591 = vmatprep.subr.bf16.mxu0 0
      %1592 = vmatpush1.bf16.msra.mxu0 %v1565
      %1593 = vmatprep.subr.bf16.mxu0 0
      %1594 = vmatpush2.bf16.msra.mxu0 0
      %1595 = vmatprep.subr.bf16.mxu0 0
      %1596 = vmatpush2.bf16.msra.mxu0 0
      %1597 = vmatprep.subr.bf16.mxu0 0
      %1598 = vmatpush2.bf16.msra.mxu0 0
      %1599 = vmatprep.subr.bf16.mxu0 0
      %1600 = vmatpush2.bf16.msra.mxu0 0
      %1601 = vmatprep.subr.bf16.mxu0 0
      %1602 = vmatpush2.bf16.msra.mxu0 0
      %1603 = vmatprep.subr.bf16.mxu0 0
      %1604 = vmatpush2.bf16.msra.mxu0 0
      %1605 = vmatprep.subr.bf16.mxu0 0
      %1606 = vmatpush2.bf16.msra.mxu0 0
      %1607 = vmatprep.subr.bf16.mxu0 0
      %1608 = vmatpush2.bf16.msra.mxu0 0
      %1609 = vmatprep.mubr.bf16.mxu0 0
      %1610 = vmatmul.mubr.bf16.gmra.mxu0 %v1575
      %v1611 = vpop.f32.mrf.mxu0
      %v1612 = vadd.f32 %v1572, %v1611
      %v1613 = vpop.f32.mrf.mxu0
      %v1614 = vpop.f32.mrf.mxu0
      %v1615 = vpop.f32.mrf.mxu0
      %1616 = vdwg.mxu0
      %v1617 = vmul.f32 %v1612, %v1612
      %v1618 = vmul.f32 %v1612, %v1617
      %v1619 = vmul.f32 %v1618, 0.044715
      %v1620 = vadd.f32 %v1612, %v1619
      %v1621 = vmul.f32 %v1620, 0.7978846
      %v1622 = vtanh.pop %v1621
      %v1623 = vadd.f32 %v1622, 1.0
      %v1624 = vmul.f32 %v1623, 0.5
      %v1625 = vmul.f32 %v1612, %v1624
      %v1626 = vld [vmem:[%s4] sm:$0x1]
      %v1627 = vld [vmem:[%s21] sm:$0xff]
      %v1628 = vld [vmem:[%s21 + $0x8] sm:$0xff]
      %v1629 = vld [vmem:[%s21 + $0x10] sm:$0xff]
      %v1630 = vld [vmem:[%s21 + $0x18] sm:$0xff]
      %v1631 = vld [vmem:[%s21 + $0x20] sm:$0xff]
      %v1632 = vld [vmem:[%s21 + $0x28] sm:$0xff]
      %v1633 = vld [vmem:[%s21 + $0x30] sm:$0xff]
      %v1634 = vld [vmem:[%s21 + $0x38] sm:$0xff]
      %v1635 = vpack.c.bf16 %v1625, %v1625
      %v1636 = vpack.c.bf16 %v1628, %v1627
      %v1637 = vpack.c.bf16 %v1630, %v1629
      %v1638 = vpack.c.bf16 %v1632, %v1631
      %v1639 = vpack.c.bf16 %v1634, %v1633
      %v1640 = vld [vmem:[%s22] sm:$0x1]
      %v1642 = vlaneseq
      %v1643 = vshrl.u32 %v1642, 7
      %v1644 = vsub.s32 0, %v1643
      %v1645 = vrot.slane %v1640, %v1644
      %vm1647 = vcmask 523264
      %v1649 = vsel %vm1647, %v1635, 0
      %1651 = vmatprep.subr.bf16.mxu0 0
      %1652 = vmatpush1.bf16.msra.mxu0 0
      %1653 = vmatprep.subr.bf16.mxu0 0
      %1654 = vmatpush1.bf16.msra.mxu0 0
      %1655 = vmatprep.subr.bf16.mxu0 0
      %1656 = vmatpush1.bf16.msra.mxu0 0
      %1657 = vmatprep.subr.bf16.mxu0 0
      %1658 = vmatpush1.bf16.msra.mxu0 0
      %1659 = vmatprep.subr.bf16.mxu0 0
      %1660 = vmatpush1.bf16.msra.mxu0 %v1639
      %1661 = vmatprep.subr.bf16.mxu0 0
      %1662 = vmatpush1.bf16.msra.mxu0 %v1638
      %1663 = vmatprep.subr.bf16.mxu0 0
      %1664 = vmatpush1.bf16.msra.mxu0 %v1637
      %1665 = vmatprep.subr.bf16.mxu0 0
      %1666 = vmatpush1.bf16.msra.mxu0 %v1636
      %1667 = vmatprep.subr.bf16.mxu0 0
      %1668 = vmatpush2.bf16.msra.mxu0 0
      %1669 = vmatprep.subr.bf16.mxu0 0
      %1670 = vmatpush2.bf16.msra.mxu0 0
      %1671 = vmatprep.subr.bf16.mxu0 0
      %1672 = vmatpush2.bf16.msra.mxu0 0
      %1673 = vmatprep.subr.bf16.mxu0 0
      %1674 = vmatpush2.bf16.msra.mxu0 0
      %1675 = vmatprep.subr.bf16.mxu0 0
      %1676 = vmatpush2.bf16.msra.mxu0 0
      %1677 = vmatprep.subr.bf16.mxu0 0
      %1678 = vmatpush2.bf16.msra.mxu0 0
      %1679 = vmatprep.subr.bf16.mxu0 0
      %1680 = vmatpush2.bf16.msra.mxu0 0
      %1681 = vmatprep.subr.bf16.mxu0 0
      %1682 = vmatpush2.bf16.msra.mxu0 0
      %1683 = vmatprep.mubr.bf16.mxu0 0
      %1684 = vmatmul.mubr.bf16.gmra.mxu0 %v1649
      %v1685 = vpop.f32.mrf.mxu0
      %v1686 = vadd.f32 %v1645, %v1685
      %v1687 = vpop.f32.mrf.mxu0
      %v1688 = vpop.f32.mrf.mxu0
      %v1689 = vpop.f32.mrf.mxu0
      %1690 = vdwg.mxu0
      %v1692 = vlaneseq
      %v1693 = vshrl.u32 %v1692, 7
      %v1694 = vsub.s32 0, %v1693
      %v1695 = vrot.slane %v1626, %v1694
      %v1697 = vmul.f32 %v1695, %v1686
      %v1698 = vadd.f32 %v1530, %v1697
      %1699 = vst.msk [vmem:[%s810] sm:$0xff] %vm815, %v1698
      %p1700 = scmp.lt.s32.totalorder %s36, 1
      %s1701 = scalar_select %p1700, %s36, 1
      %s1702 = smul.addr %s1701, 8
      %s1703 = scalar_lea.vmem %s25, %s1702
      // Predicated region
      $region121: #{flamingo_forward.9} parent=119 // pred_check
        %p1704 = pneg %p599
      $region122: #{flamingo_forward.9} parent=119 // pred_check_branch
        %1706 = sbr.rel (%p1704) target = $region124
      $region123: #{flamingo_forward.9} parent=119 // pred_region
        _
      $region124: #{flamingo_forward.9} parent=119 // pred_fallthru
        _
    $region120: #{flamingo_forward.9} parent=5 // pred_fallthru
      _
    %p1707 = scmp.le.s32.totalorder 2, %s31
    // Predicated region
    $region125: #{flamingo_forward.9} parent=5 // pred_check
      %p1708 = pneg %p1707
    $region126: #{flamingo_forward.9} parent=5 // pred_check_branch
      %1710 = sbr.rel (%p1708) target = $region128
    $region127: #{flamingo_forward.9} parent=5 // pred_region
      %s1711 = ssub.s32 %s31, 2
      // Predicated region
      $region129: #{flamingo_forward.9} parent=127 // pred_check
        %p1712 = pneg %p605
      $region130: #{flamingo_forward.9} parent=127 // pred_check_branch
        %1714 = sbr.rel (%p1712) target = $region132
      $region131: #{flamingo_forward.9} parent=127 // pred_region
        %p1715 = scmp.lt.s32.totalorder %s37, 1
        %s1716 = scalar_select %p1715, %s37, 1
        %s1717 = smul.addr %s1716, 8
        %s1718 = scalar_lea.vmem %s25, %s1717
      $region132: #{flamingo_forward.9} parent=127 // pred_fallthru
        _
    $region128: #{flamingo_forward.9} parent=5 // pred_fallthru
      _
  $region6: #{flamingo_forward.9} parent=0 // loop_footer
    %s35 = sadd.s32 1, %s31
  $region7: #{flamingo_forward.9} parent=0 // loop_footer_branch
    %30 = sbr.rel target = $region3
  $region8: #{flamingo_forward.9} parent=0 // loop_exit
    _

// kernel: flamingo_forward.10
$region0: #{flamingo_forward.10}
  #allocation0 [shape = 'u32[]', space=smem, size = 0x4, offset = 0x4, fixed_abs, tag = 'smem constant byte address 0x4 - core index']
  #allocation1 [shape = 'u32[144,128]{1,0:T(1,128)}', space=vmem, size = 0x12000, scoped, tag = 'internal scratch']
  %s0 = inlined_call_operand.vmem [shape: f32[2,8,32], index: 0, kind: input, shape index: {}]
  %s1 = inlined_call_operand.vmem [shape: f32[2,8,8], index: 1, kind: input, shape index: {}]
  %s2 = inlined_call_operand.vmem [shape: f32[1,32], index: 2, kind: input, shape index: {}]
  %s3 = inlined_call_operand.vmem [shape: f32[1,32], index: 3, kind: input, shape index: {}]
  %s4 = inlined_call_operand.vmem [shape: f32[32,32], index: 4, kind: input, shape index: {}]
  %s5 = inlined_call_operand.vmem [shape: f32[1,32], index: 5, kind: input, shape index: {}]
  %s6 = inlined_call_operand.vmem [shape: f32[32,32], index: 6, kind: input, shape index: {}]
  %s7 = inlined_call_operand.vmem [shape: f32[1,32], index: 7, kind: input, shape index: {}]
  %s8 = inlined_call_operand.vmem [shape: f32[32,32], index: 8, kind: input, shape index: {}]
  %s9 = inlined_call_operand.vmem [shape: f32[1,32], index: 9, kind: input, shape index: {}]
  %s10 = inlined_call_operand.vmem [shape: f32[32,32], index: 10, kind: input, shape index: {}]
  %s11 = inlined_call_operand.vmem [shape: f32[1,32], index: 11, kind: input, shape index: {}]
  %s12 = inlined_call_operand.vmem [shape: f32[1,32], index: 12, kind: input, shape index: {}]
  %s13 = inlined_call_operand.vmem [shape: f32[1,32], index: 13, kind: input, shape index: {}]
  %s14 = inlined_call_operand.vmem [shape: f32[32,64], index: 14, kind: input, shape index: {}]
  %s15 = inlined_call_operand.vmem [shape: f32[1,64], index: 15, kind: input, shape index: {}]
  %s16 = inlined_call_operand.vmem [shape: f32[64,32], index: 16, kind: input, shape index: {}]
  %s17 = inlined_call_operand.vmem [shape: f32[1,32], index: 17, kind: input, shape index: {}]
  %s18 = inlined_call_operand.vmem [shape: f32[2,8,32], index: 18, kind: output, shape index: {}]
  %s19 = sld [smem:[#allocation0]]
  $region105: #{flamingo_forward.10} parent=0
    _
  %s21 = ssub.s32 1, %s19
  %s22 = scalar_select 0, %s21, %s19
  loop: start=0, step=1, limit=4
  $region2: #{flamingo_forward.10} parent=0 // loop_pre_header
    _
  $region3: #{flamingo_forward.10} parent=0 // loop_header
    %s24 = sphi 0, %s28
    %p25 = scmp.ge.s32.totalorder %s24, 4
    %s34 = sphi 0, %s36
    %s37 = sphi 0, %s34
    %s38 = sphi 0, %s37
    %s54 = sphi 0, %s38
    %s60 = sphi 0, %s62
    %s63 = sphi 0, %s60
    %s64 = sphi 0, %s63
    %s80 = sphi 0, %s64
    %s84 = sphi 0, %s84
    %s86 = sphi 0, %s84
    %s87 = sphi 0, %s86
    %s101 = sphi 0, %s87
    %s105 = sphi 0, %s105
    %s107 = sphi 0, %s105
    %s108 = sphi 0, %s107
    %s122 = sphi 0, %s108
    %s126 = sphi 0, %s126
    %s128 = sphi 0, %s126
    %s129 = sphi 0, %s128
    %s143 = sphi 0, %s129
    %s147 = sphi 0, %s147
    %s149 = sphi 0, %s147
    %s150 = sphi 0, %s149
    %s164 = sphi 0, %s150
    %s168 = sphi 0, %s168
    %s170 = sphi 0, %s168
    %s171 = sphi 0, %s170
    %s185 = sphi 0, %s171
    %s189 = sphi 0, %s189
    %s191 = sphi 0, %s189
    %s192 = sphi 0, %s191
    %s206 = sphi 0, %s192
    %s210 = sphi 0, %s210
    %s212 = sphi 0, %s210
    %s213 = sphi 0, %s212
    %s227 = sphi 0, %s213
    %s231 = sphi 0, %s231
    %s233 = sphi 0, %s231
    %s234 = sphi 0, %s233
    %s248 = sphi 0, %s234
    %s252 = sphi 0, %s252
    %s254 = sphi 0, %s252
    %s255 = sphi 0, %s254
    %s269 = sphi 0, %s255
    %s273 = sphi 0, %s273
    %s275 = sphi 0, %s273
    %s276 = sphi 0, %s275
    %s290 = sphi 0, %s276
    %s294 = sphi 0, %s294
    %s296 = sphi 0, %s294
    %s297 = sphi 0, %s296
    %s311 = sphi 0, %s297
    %s315 = sphi 0, %s315
    %s317 = sphi 0, %s315
    %s318 = sphi 0, %s317
    %s332 = sphi 0, %s318
    %s336 = sphi 0, %s336
    %s338 = sphi 0, %s336
    %s339 = sphi 0, %s338
    %s353 = sphi 0, %s339
    %s357 = sphi 0, %s357
    %s359 = sphi 0, %s357
    %s360 = sphi 0, %s359
    %s374 = sphi 0, %s360
    %s378 = sphi 0, %s378
    %s380 = sphi 0, %s378
    %s381 = sphi 0, %s380
    %s395 = sphi 0, %s381
    %s399 = sphi 0, %s399
    %s401 = sphi 0, %s399
    %s402 = sphi 0, %s401
    %s416 = sphi 0, %s402
    %s422 = sphi 0, %s424
    %s425 = sphi 0, %s422
    %s426 = sphi 0, %s425
    %s442 = sphi 0, %s426
  $region4: #{flamingo_forward.10} parent=0 // loop_header_branch
    %27 = sbr.rel (%p25) target = $region8
  $region5: #{flamingo_forward.10} parent=0 // loop_body
    %s29 = ssub.s32 %s24, 1
    %s30 = ssub.s32 %s24, 2
    %s31 = sadd.s32 %s24, 1
    %s32 = ssub.s32 %s24, %s31
    %p33 = scmp.eq.s32.totalorder %s32, 0
    %s35 = sadd.s32 %s34, 1
    %s36 = scalar_select %p33, %s34, %s35
    %p39 = pneg %p33
    %p40 = scmp.eq.s32.totalorder %s24, 1
    %p41 = por %p39, %p40
    %p42 = scmp.ne.s32.totalorder %s34, %s37
    %p43 = scmp.eq.s32.totalorder %s24, 0
    %p44 = por %p42, %p43
    %p45 = scmp.ne.s32.totalorder %s34, %s37
    %p46 = scmp.eq.s32.totalorder %s29, 1
    %p47 = por %p45, %p46
    %p48 = scmp.ne.s32.totalorder %s37, %s38
    %p49 = scmp.eq.s32.totalorder %s29, 0
    %p50 = por %p48, %p49
    %p51 = scmp.ne.s32.totalorder %s37, %s38
    %p52 = scmp.eq.s32.totalorder %s30, 1
    %p53 = por %p51, %p52
    %p55 = scmp.ne.s32.totalorder %s38, %s54
    %p56 = scmp.eq.s32.totalorder %s30, 0
    %p57 = por %p55, %p56
    %s58 = ssub.s32 %s24, %s31
    %p59 = scmp.eq.s32.totalorder %s58, 0
    %s61 = sadd.s32 %s60, 1
    %s62 = scalar_select %p59, %s60, %s61
    %p65 = pneg %p59
    %p66 = scmp.eq.s32.totalorder %s24, 1
    %p67 = por %p65, %p66
    %p68 = scmp.ne.s32.totalorder %s60, %s63
    %p69 = scmp.eq.s32.totalorder %s24, 0
    %p70 = por %p68, %p69
    %p71 = scmp.ne.s32.totalorder %s60, %s63
    %p72 = scmp.eq.s32.totalorder %s29, 1
    %p73 = por %p71, %p72
    %p74 = scmp.ne.s32.totalorder %s63, %s64
    %p75 = scmp.eq.s32.totalorder %s29, 0
    %p76 = por %p74, %p75
    %p77 = scmp.ne.s32.totalorder %s63, %s64
    %p78 = scmp.eq.s32.totalorder %s30, 1
    %p79 = por %p77, %p78
    %p81 = scmp.ne.s32.totalorder %s64, %s80
    %p82 = scmp.eq.s32.totalorder %s30, 0
    %p83 = por %p81, %p82
    %s85 = sadd.s32 %s84, 1
    %p88 = scmp.eq.s32.totalorder %s24, 1
    %p89 = scmp.ne.s32.totalorder %s84, %s86
    %p90 = scmp.eq.s32.totalorder %s24, 0
    %p91 = por %p89, %p90
    %p92 = scmp.ne.s32.totalorder %s84, %s86
    %p93 = scmp.eq.s32.totalorder %s29, 1
    %p94 = por %p92, %p93
    %p95 = scmp.ne.s32.totalorder %s86, %s87
    %p96 = scmp.eq.s32.totalorder %s29, 0
    %p97 = por %p95, %p96
    %p98 = scmp.ne.s32.totalorder %s86, %s87
    %p99 = scmp.eq.s32.totalorder %s30, 1
    %p100 = por %p98, %p99
    %p102 = scmp.ne.s32.totalorder %s87, %s101
    %p103 = scmp.eq.s32.totalorder %s30, 0
    %p104 = por %p102, %p103
    %s106 = sadd.s32 %s105, 1
    %p109 = scmp.eq.s32.totalorder %s24, 1
    %p110 = scmp.ne.s32.totalorder %s105, %s107
    %p111 = scmp.eq.s32.totalorder %s24, 0
    %p112 = por %p110, %p111
    %p113 = scmp.ne.s32.totalorder %s105, %s107
    %p114 = scmp.eq.s32.totalorder %s29, 1
    %p115 = por %p113, %p114
    %p116 = scmp.ne.s32.totalorder %s107, %s108
    %p117 = scmp.eq.s32.totalorder %s29, 0
    %p118 = por %p116, %p117
    %p119 = scmp.ne.s32.totalorder %s107, %s108
    %p120 = scmp.eq.s32.totalorder %s30, 1
    %p121 = por %p119, %p120
    %p123 = scmp.ne.s32.totalorder %s108, %s122
    %p124 = scmp.eq.s32.totalorder %s30, 0
    %p125 = por %p123, %p124
    %s127 = sadd.s32 %s126, 1
    %p130 = scmp.eq.s32.totalorder %s24, 1
    %p131 = scmp.ne.s32.totalorder %s126, %s128
    %p132 = scmp.eq.s32.totalorder %s24, 0
    %p133 = por %p131, %p132
    %p134 = scmp.ne.s32.totalorder %s126, %s128
    %p135 = scmp.eq.s32.totalorder %s29, 1
    %p136 = por %p134, %p135
    %p137 = scmp.ne.s32.totalorder %s128, %s129
    %p138 = scmp.eq.s32.totalorder %s29, 0
    %p139 = por %p137, %p138
    %p140 = scmp.ne.s32.totalorder %s128, %s129
    %p141 = scmp.eq.s32.totalorder %s30, 1
    %p142 = por %p140, %p141
    %p144 = scmp.ne.s32.totalorder %s129, %s143
    %p145 = scmp.eq.s32.totalorder %s30, 0
    %p146 = por %p144, %p145
    %s148 = sadd.s32 %s147, 1
    %p151 = scmp.eq.s32.totalorder %s24, 1
    %p152 = scmp.ne.s32.totalorder %s147, %s149
    %p153 = scmp.eq.s32.totalorder %s24, 0
    %p154 = por %p152, %p153
    %p155 = scmp.ne.s32.totalorder %s147, %s149
    %p156 = scmp.eq.s32.totalorder %s29, 1
    %p157 = por %p155, %p156
    %p158 = scmp.ne.s32.totalorder %s149, %s150
    %p159 = scmp.eq.s32.totalorder %s29, 0
    %p160 = por %p158, %p159
    %p161 = scmp.ne.s32.totalorder %s149, %s150
    %p162 = scmp.eq.s32.totalorder %s30, 1
    %p163 = por %p161, %p162
    %p165 = scmp.ne.s32.totalorder %s150, %s164
    %p166 = scmp.eq.s32.totalorder %s30, 0
    %p167 = por %p165, %p166
    %s169 = sadd.s32 %s168, 1
    %p172 = scmp.eq.s32.totalorder %s24, 1
    %p173 = scmp.ne.s32.totalorder %s168, %s170
    %p174 = scmp.eq.s32.totalorder %s24, 0
    %p175 = por %p173, %p174
    %p176 = scmp.ne.s32.totalorder %s168, %s170
    %p177 = scmp.eq.s32.totalorder %s29, 1
    %p178 = por %p176, %p177
    %p179 = scmp.ne.s32.totalorder %s170, %s171
    %p180 = scmp.eq.s32.totalorder %s29, 0
    %p181 = por %p179, %p180
    %p182 = scmp.ne.s32.totalorder %s170, %s171
    %p183 = scmp.eq.s32.totalorder %s30, 1
    %p184 = por %p182, %p183
    %p186 = scmp.ne.s32.totalorder %s171, %s185
    %p187 = scmp.eq.s32.totalorder %s30, 0
    %p188 = por %p186, %p187
    %s190 = sadd.s32 %s189, 1
    %p193 = scmp.eq.s32.totalorder %s24, 1
    %p194 = scmp.ne.s32.totalorder %s189, %s191
    %p195 = scmp.eq.s32.totalorder %s24, 0
    %p196 = por %p194, %p195
    %p197 = scmp.ne.s32.totalorder %s189, %s191
    %p198 = scmp.eq.s32.totalorder %s29, 1
    %p199 = por %p197, %p198
    %p200 = scmp.ne.s32.totalorder %s191, %s192
    %p201 = scmp.eq.s32.totalorder %s29, 0
    %p202 = por %p200, %p201
    %p203 = scmp.ne.s32.totalorder %s191, %s192
    %p204 = scmp.eq.s32.totalorder %s30, 1
    %p205 = por %p203, %p204
    %p207 = scmp.ne.s32.totalorder %s192, %s206
    %p208 = scmp.eq.s32.totalorder %s30, 0
    %p209 = por %p207, %p208
    %s211 = sadd.s32 %s210, 1
    %p214 = scmp.eq.s32.totalorder %s24, 1
    %p215 = scmp.ne.s32.totalorder %s210, %s212
    %p216 = scmp.eq.s32.totalorder %s24, 0
    %p217 = por %p215, %p216
    %p218 = scmp.ne.s32.totalorder %s210, %s212
    %p219 = scmp.eq.s32.totalorder %s29, 1
    %p220 = por %p218, %p219
    %p221 = scmp.ne.s32.totalorder %s212, %s213
    %p222 = scmp.eq.s32.totalorder %s29, 0
    %p223 = por %p221, %p222
    %p224 = scmp.ne.s32.totalorder %s212, %s213
    %p225 = scmp.eq.s32.totalorder %s30, 1
    %p226 = por %p224, %p225
    %p228 = scmp.ne.s32.totalorder %s213, %s227
    %p229 = scmp.eq.s32.totalorder %s30, 0
    %p230 = por %p228, %p229
    %s232 = sadd.s32 %s231, 1
    %p235 = scmp.eq.s32.totalorder %s24, 1
    %p236 = scmp.ne.s32.totalorder %s231, %s233
    %p237 = scmp.eq.s32.totalorder %s24, 0
    %p238 = por %p236, %p237
    %p239 = scmp.ne.s32.totalorder %s231, %s233
    %p240 = scmp.eq.s32.totalorder %s29, 1
    %p241 = por %p239, %p240
    %p242 = scmp.ne.s32.totalorder %s233, %s234
    %p243 = scmp.eq.s32.totalorder %s29, 0
    %p244 = por %p242, %p243
    %p245 = scmp.ne.s32.totalorder %s233, %s234
    %p246 = scmp.eq.s32.totalorder %s30, 1
    %p247 = por %p245, %p246
    %p249 = scmp.ne.s32.totalorder %s234, %s248
    %p250 = scmp.eq.s32.totalorder %s30, 0
    %p251 = por %p249, %p250
    %s253 = sadd.s32 %s252, 1
    %p256 = scmp.eq.s32.totalorder %s24, 1
    %p257 = scmp.ne.s32.totalorder %s252, %s254
    %p258 = scmp.eq.s32.totalorder %s24, 0
    %p259 = por %p257, %p258
    %p260 = scmp.ne.s32.totalorder %s252, %s254
    %p261 = scmp.eq.s32.totalorder %s29, 1
    %p262 = por %p260, %p261
    %p263 = scmp.ne.s32.totalorder %s254, %s255
    %p264 = scmp.eq.s32.totalorder %s29, 0
    %p265 = por %p263, %p264
    %p266 = scmp.ne.s32.totalorder %s254, %s255
    %p267 = scmp.eq.s32.totalorder %s30, 1
    %p268 = por %p266, %p267
    %p270 = scmp.ne.s32.totalorder %s255, %s269
    %p271 = scmp.eq.s32.totalorder %s30, 0
    %p272 = por %p270, %p271
    %s274 = sadd.s32 %s273, 1
    %p277 = scmp.eq.s32.totalorder %s24, 1
    %p278 = scmp.ne.s32.totalorder %s273, %s275
    %p279 = scmp.eq.s32.totalorder %s24, 0
    %p280 = por %p278, %p279
    %p281 = scmp.ne.s32.totalorder %s273, %s275
    %p282 = scmp.eq.s32.totalorder %s29, 1
    %p283 = por %p281, %p282
    %p284 = scmp.ne.s32.totalorder %s275, %s276
    %p285 = scmp.eq.s32.totalorder %s29, 0
    %p286 = por %p284, %p285
    %p287 = scmp.ne.s32.totalorder %s275, %s276
    %p288 = scmp.eq.s32.totalorder %s30, 1
    %p289 = por %p287, %p288
    %p291 = scmp.ne.s32.totalorder %s276, %s290
    %p292 = scmp.eq.s32.totalorder %s30, 0
    %p293 = por %p291, %p292
    %s295 = sadd.s32 %s294, 1
    %p298 = scmp.eq.s32.totalorder %s24, 1
    %p299 = scmp.ne.s32.totalorder %s294, %s296
    %p300 = scmp.eq.s32.totalorder %s24, 0
    %p301 = por %p299, %p300
    %p302 = scmp.ne.s32.totalorder %s294, %s296
    %p303 = scmp.eq.s32.totalorder %s29, 1
    %p304 = por %p302, %p303
    %p305 = scmp.ne.s32.totalorder %s296, %s297
    %p306 = scmp.eq.s32.totalorder %s29, 0
    %p307 = por %p305, %p306
    %p308 = scmp.ne.s32.totalorder %s296, %s297
    %p309 = scmp.eq.s32.totalorder %s30, 1
    %p310 = por %p308, %p309
    %p312 = scmp.ne.s32.totalorder %s297, %s311
    %p313 = scmp.eq.s32.totalorder %s30, 0
    %p314 = por %p312, %p313
    %s316 = sadd.s32 %s315, 1
    %p319 = scmp.eq.s32.totalorder %s24, 1
    %p320 = scmp.ne.s32.totalorder %s315, %s317
    %p321 = scmp.eq.s32.totalorder %s24, 0
    %p322 = por %p320, %p321
    %p323 = scmp.ne.s32.totalorder %s315, %s317
    %p324 = scmp.eq.s32.totalorder %s29, 1
    %p325 = por %p323, %p324
    %p326 = scmp.ne.s32.totalorder %s317, %s318
    %p327 = scmp.eq.s32.totalorder %s29, 0
    %p328 = por %p326, %p327
    %p329 = scmp.ne.s32.totalorder %s317, %s318
    %p330 = scmp.eq.s32.totalorder %s30, 1
    %p331 = por %p329, %p330
    %p333 = scmp.ne.s32.totalorder %s318, %s332
    %p334 = scmp.eq.s32.totalorder %s30, 0
    %p335 = por %p333, %p334
    %s337 = sadd.s32 %s336, 1
    %p340 = scmp.eq.s32.totalorder %s24, 1
    %p341 = scmp.ne.s32.totalorder %s336, %s338
    %p342 = scmp.eq.s32.totalorder %s24, 0
    %p343 = por %p341, %p342
    %p344 = scmp.ne.s32.totalorder %s336, %s338
    %p345 = scmp.eq.s32.totalorder %s29, 1
    %p346 = por %p344, %p345
    %p347 = scmp.ne.s32.totalorder %s338, %s339
    %p348 = scmp.eq.s32.totalorder %s29, 0
    %p349 = por %p347, %p348
    %p350 = scmp.ne.s32.totalorder %s338, %s339
    %p351 = scmp.eq.s32.totalorder %s30, 1
    %p352 = por %p350, %p351
    %p354 = scmp.ne.s32.totalorder %s339, %s353
    %p355 = scmp.eq.s32.totalorder %s30, 0
    %p356 = por %p354, %p355
    %s358 = sadd.s32 %s357, 1
    %p361 = scmp.eq.s32.totalorder %s24, 1
    %p362 = scmp.ne.s32.totalorder %s357, %s359
    %p363 = scmp.eq.s32.totalorder %s24, 0
    %p364 = por %p362, %p363
    %p365 = scmp.ne.s32.totalorder %s357, %s359
    %p366 = scmp.eq.s32.totalorder %s29, 1
    %p367 = por %p365, %p366
    %p368 = scmp.ne.s32.totalorder %s359, %s360
    %p369 = scmp.eq.s32.totalorder %s29, 0
    %p370 = por %p368, %p369
    %p371 = scmp.ne.s32.totalorder %s359, %s360
    %p372 = scmp.eq.s32.totalorder %s30, 1
    %p373 = por %p371, %p372
    %p375 = scmp.ne.s32.totalorder %s360, %s374
    %p376 = scmp.eq.s32.totalorder %s30, 0
    %p377 = por %p375, %p376
    %s379 = sadd.s32 %s378, 1
    %p382 = scmp.eq.s32.totalorder %s24, 1
    %p383 = scmp.ne.s32.totalorder %s378, %s380
    %p384 = scmp.eq.s32.totalorder %s24, 0
    %p385 = por %p383, %p384
    %p386 = scmp.ne.s32.totalorder %s378, %s380
    %p387 = scmp.eq.s32.totalorder %s29, 1
    %p388 = por %p386, %p387
    %p389 = scmp.ne.s32.totalorder %s380, %s381
    %p390 = scmp.eq.s32.totalorder %s29, 0
    %p391 = por %p389, %p390
    %p392 = scmp.ne.s32.totalorder %s380, %s381
    %p393 = scmp.eq.s32.totalorder %s30, 1
    %p394 = por %p392, %p393
    %p396 = scmp.ne.s32.totalorder %s381, %s395
    %p397 = scmp.eq.s32.totalorder %s30, 0
    %p398 = por %p396, %p397
    %s400 = sadd.s32 %s399, 1
    %p403 = scmp.eq.s32.totalorder %s24, 1
    %p404 = scmp.ne.s32.totalorder %s399, %s401
    %p405 = scmp.eq.s32.totalorder %s24, 0
    %p406 = por %p404, %p405
    %p407 = scmp.ne.s32.totalorder %s399, %s401
    %p408 = scmp.eq.s32.totalorder %s29, 1
    %p409 = por %p407, %p408
    %p410 = scmp.ne.s32.totalorder %s401, %s402
    %p411 = scmp.eq.s32.totalorder %s29, 0
    %p412 = por %p410, %p411
    %p413 = scmp.ne.s32.totalorder %s401, %s402
    %p414 = scmp.eq.s32.totalorder %s30, 1
    %p415 = por %p413, %p414
    %p417 = scmp.ne.s32.totalorder %s402, %s416
    %p418 = scmp.eq.s32.totalorder %s30, 0
    %p419 = por %p417, %p418
    %s420 = ssub.s32 %s24, %s31
    %p421 = scmp.eq.s32.totalorder %s420, 0
    %s423 = sadd.s32 %s422, 1
    %s424 = scalar_select %p421, %s422, %s423
    %p427 = pneg %p421
    %p428 = scmp.eq.s32.totalorder %s24, 1
    %p429 = por %p427, %p428
    %p430 = scmp.ne.s32.totalorder %s422, %s425
    %p431 = scmp.eq.s32.totalorder %s24, 0
    %p432 = por %p430, %p431
    %p433 = scmp.ne.s32.totalorder %s422, %s425
    %p434 = scmp.eq.s32.totalorder %s29, 1
    %p435 = por %p433, %p434
    %p436 = scmp.ne.s32.totalorder %s425, %s426
    %p437 = scmp.eq.s32.totalorder %s29, 0
    %p438 = por %p436, %p437
    %p439 = scmp.ne.s32.totalorder %s425, %s426
    %p440 = scmp.eq.s32.totalorder %s30, 1
    %p441 = por %p439, %p440
    %p443 = scmp.ne.s32.totalorder %s426, %s442
    %p444 = scmp.eq.s32.totalorder %s30, 0
    %p445 = por %p443, %p444
    %p446 = scmp.le.s32.totalorder 1, %s24
    %p447 = scmp.lt.s32.totalorder %s24, 3
    %p448 = pnand %p446, %p447
    %p449 = pneg %p448
    // Predicated region
    $region9: #{flamingo_forward.10} parent=5 // pred_check
      _
    $region10: #{flamingo_forward.10} parent=5 // pred_check_branch
      %451 = sbr.rel (%p448) target = $region12
    $region11: #{flamingo_forward.10} parent=5 // pred_region
      %s452 = ssub.s32 %s24, 1
      // Predicated region
      $region13: #{flamingo_forward.10} parent=11 // pred_check
        %p453 = pneg %p97
      $region14: #{flamingo_forward.10} parent=11 // pred_check_branch
        %455 = sbr.rel (%p453) target = $region16
      $region15: #{flamingo_forward.10} parent=11 // pred_region
        _
      $region16: #{flamingo_forward.10} parent=11 // pred_fallthru
        _
      // Predicated region
      $region17: #{flamingo_forward.10} parent=11 // pred_check
        %p456 = pneg %p118
      $region18: #{flamingo_forward.10} parent=11 // pred_check_branch
        %458 = sbr.rel (%p456) target = $region20
      $region19: #{flamingo_forward.10} parent=11 // pred_region
        _
      $region20: #{flamingo_forward.10} parent=11 // pred_fallthru
        _
      // Predicated region
      $region21: #{flamingo_forward.10} parent=11 // pred_check
        %p459 = pneg %p139
      $region22: #{flamingo_forward.10} parent=11 // pred_check_branch
        %461 = sbr.rel (%p459) target = $region24
      $region23: #{flamingo_forward.10} parent=11 // pred_region
        _
      $region24: #{flamingo_forward.10} parent=11 // pred_fallthru
        _
      // Predicated region
      $region25: #{flamingo_forward.10} parent=11 // pred_check
        %p462 = pneg %p160
      $region26: #{flamingo_forward.10} parent=11 // pred_check_branch
        %464 = sbr.rel (%p462) target = $region28
      $region27: #{flamingo_forward.10} parent=11 // pred_region
        _
      $region28: #{flamingo_forward.10} parent=11 // pred_fallthru
        _
      // Predicated region
      $region29: #{flamingo_forward.10} parent=11 // pred_check
        %p465 = pneg %p181
      $region30: #{flamingo_forward.10} parent=11 // pred_check_branch
        %467 = sbr.rel (%p465) target = $region32
      $region31: #{flamingo_forward.10} parent=11 // pred_region
        _
      $region32: #{flamingo_forward.10} parent=11 // pred_fallthru
        _
      // Predicated region
      $region33: #{flamingo_forward.10} parent=11 // pred_check
        %p468 = pneg %p202
      $region34: #{flamingo_forward.10} parent=11 // pred_check_branch
        %470 = sbr.rel (%p468) target = $region36
      $region35: #{flamingo_forward.10} parent=11 // pred_region
        _
      $region36: #{flamingo_forward.10} parent=11 // pred_fallthru
        _
      // Predicated region
      $region37: #{flamingo_forward.10} parent=11 // pred_check
        %p471 = pneg %p223
      $region38: #{flamingo_forward.10} parent=11 // pred_check_branch
        %473 = sbr.rel (%p471) target = $region40
      $region39: #{flamingo_forward.10} parent=11 // pred_region
        _
      $region40: #{flamingo_forward.10} parent=11 // pred_fallthru
        _
      // Predicated region
      $region41: #{flamingo_forward.10} parent=11 // pred_check
        %p474 = pneg %p244
      $region42: #{flamingo_forward.10} parent=11 // pred_check_branch
        %476 = sbr.rel (%p474) target = $region44
      $region43: #{flamingo_forward.10} parent=11 // pred_region
        _
      $region44: #{flamingo_forward.10} parent=11 // pred_fallthru
        _
      // Predicated region
      $region45: #{flamingo_forward.10} parent=11 // pred_check
        %p477 = pneg %p265
      $region46: #{flamingo_forward.10} parent=11 // pred_check_branch
        %479 = sbr.rel (%p477) target = $region48
      $region47: #{flamingo_forward.10} parent=11 // pred_region
        _
      $region48: #{flamingo_forward.10} parent=11 // pred_fallthru
        _
      // Predicated region
      $region49: #{flamingo_forward.10} parent=11 // pred_check
        %p480 = pneg %p286
      $region50: #{flamingo_forward.10} parent=11 // pred_check_branch
        %482 = sbr.rel (%p480) target = $region52
      $region51: #{flamingo_forward.10} parent=11 // pred_region
        _
      $region52: #{flamingo_forward.10} parent=11 // pred_fallthru
        _
      // Predicated region
      $region53: #{flamingo_forward.10} parent=11 // pred_check
        %p483 = pneg %p307
      $region54: #{flamingo_forward.10} parent=11 // pred_check_branch
        %485 = sbr.rel (%p483) target = $region56
      $region55: #{flamingo_forward.10} parent=11 // pred_region
        _
      $region56: #{flamingo_forward.10} parent=11 // pred_fallthru
        _
      // Predicated region
      $region57: #{flamingo_forward.10} parent=11 // pred_check
        %p486 = pneg %p328
      $region58: #{flamingo_forward.10} parent=11 // pred_check_branch
        %488 = sbr.rel (%p486) target = $region60
      $region59: #{flamingo_forward.10} parent=11 // pred_region
        _
      $region60: #{flamingo_forward.10} parent=11 // pred_fallthru
        _
      // Predicated region
      $region61: #{flamingo_forward.10} parent=11 // pred_check
        %p489 = pneg %p349
      $region62: #{flamingo_forward.10} parent=11 // pred_check_branch
        %491 = sbr.rel (%p489) target = $region64
      $region63: #{flamingo_forward.10} parent=11 // pred_region
        _
      $region64: #{flamingo_forward.10} parent=11 // pred_fallthru
        _
      // Predicated region
      $region65: #{flamingo_forward.10} parent=11 // pred_check
        %p492 = pneg %p370
      $region66: #{flamingo_forward.10} parent=11 // pred_check_branch
        %494 = sbr.rel (%p492) target = $region68
      $region67: #{flamingo_forward.10} parent=11 // pred_region
        _
      $region68: #{flamingo_forward.10} parent=11 // pred_fallthru
        _
      // Predicated region
      $region69: #{flamingo_forward.10} parent=11 // pred_check
        %p495 = pneg %p391
      $region70: #{flamingo_forward.10} parent=11 // pred_check_branch
        %497 = sbr.rel (%p495) target = $region72
      $region71: #{flamingo_forward.10} parent=11 // pred_region
        _
      $region72: #{flamingo_forward.10} parent=11 // pred_fallthru
        _
      // Predicated region
      $region73: #{flamingo_forward.10} parent=11 // pred_check
        %p498 = pneg %p412
      $region74: #{flamingo_forward.10} parent=11 // pred_check_branch
        %500 = sbr.rel (%p498) target = $region76
      $region75: #{flamingo_forward.10} parent=11 // pred_region
        _
      $region76: #{flamingo_forward.10} parent=11 // pred_fallthru
        _
    $region12: #{flamingo_forward.10} parent=5 // pred_fallthru
      _
    %p501 = scmp.lt.s32.totalorder %s24, 2
    // Predicated region
    $region77: #{flamingo_forward.10} parent=5 // pred_check
      %p502 = pneg %p501
    $region78: #{flamingo_forward.10} parent=5 // pred_check_branch
      %504 = sbr.rel (%p502) target = $region80
    $region79: #{flamingo_forward.10} parent=5 // pred_region
      // Predicated region
      $region81: #{flamingo_forward.10} parent=79 // pred_check
        %p505 = pneg %p44
      $region82: #{flamingo_forward.10} parent=79 // pred_check_branch
        %507 = sbr.rel (%p505) target = $region84
      $region83: #{flamingo_forward.10} parent=79 // pred_region
        %p508 = scmp.lt.s32.totalorder %s24, 1
        %s509 = scalar_select %p508, %s24, 1
        %s510 = smul.addr %s509, 8
        %s511 = scalar_lea.vmem %s0, %s510
      $region84: #{flamingo_forward.10} parent=79 // pred_fallthru
        _
      // Predicated region
      $region85: #{flamingo_forward.10} parent=79 // pred_check
        %p512 = pneg %p70
      $region86: #{flamingo_forward.10} parent=79 // pred_check_branch
        %514 = sbr.rel (%p512) target = $region88
      $region87: #{flamingo_forward.10} parent=79 // pred_region
        %p515 = scmp.lt.s32.totalorder %s24, 1
        %s516 = scalar_select %p515, %s24, 1
        %s517 = smul.addr %s516, 8
        %s518 = scalar_lea.vmem %s1, %s517
      $region88: #{flamingo_forward.10} parent=79 // pred_fallthru
        _
    $region80: #{flamingo_forward.10} parent=5 // pred_fallthru
      _
    %p519 = scmp.le.s32.totalorder 1, %s24
    %p520 = scmp.lt.s32.totalorder %s24, 3
    %p521 = pnand %p519, %p520
    %p522 = pneg %p521
    // Predicated region
    $region89: #{flamingo_forward.10} parent=5 // pred_check
      _
    $region90: #{flamingo_forward.10} parent=5 // pred_check_branch
      %524 = sbr.rel (%p521) target = $region92
    $region91: #{flamingo_forward.10} parent=5 // pred_region
      %s525 = ssub.s32 %s24, 1
      %p526 = scmp.lt.s32.totalorder %s29, 1
      %s527 = scalar_select %p526, %s29, 1
      %s528 = smul.addr %s527, 8
      %s529 = scalar_lea.vmem %s0, %s528
      %p530 = pneg %p50
      %p531 = pneg %p47
      %p532 = scmp.lt.s32.totalorder %s29, 1
      %s533 = scalar_select %p532, %s29, 1
      %s534 = smul.addr %s533, 8
      %s535 = scalar_lea.vmem %s1, %s534
      %p536 = pneg %p76
      %p537 = pneg %p73
      %p538 = pneg %p97
      %p539 = pneg %p94
      %p540 = pneg %p118
      %p541 = pneg %p115
      %p542 = pneg %p139
      %p543 = pneg %p136
      %p544 = pneg %p160
      %p545 = pneg %p157
      %p546 = pneg %p181
      %p547 = pneg %p178
      %p548 = pneg %p202
      %p549 = pneg %p199
      %p550 = pneg %p223
      %p551 = pneg %p220
      %p552 = pneg %p244
      %p553 = pneg %p241
      %p554 = pneg %p265
      %p555 = pneg %p262
      %p556 = pneg %p286
      %p557 = pneg %p283
      %p558 = pneg %p307
      %p559 = pneg %p304
      %p560 = pneg %p328
      %p561 = pneg %p325
      %p562 = pneg %p349
      %p563 = pneg %p346
      %p564 = pneg %p370
      %p565 = pneg %p367
      %p566 = pneg %p391
      %p567 = pneg %p388
      %p568 = pneg %p412
      %p569 = pneg %p409
      %p570 = pneg %p438
      %p571 = pneg %p435
      %p572 = scmp.lt.s32.totalorder %s29, 1
      %s573 = scalar_select %p572, %s29, 1
      %s574 = smul.addr %s573, 8
      %s575 = scalar_lea.vmem %s18, %s574
      %p576 = scmp.lt.s32.totalorder %s29, 1
      %s577 = scalar_select %p576, %s29, 1
      %s578 = smul.addr %s577, 8
      %s579 = scalar_lea.vmem %s0, %s578
      %p580 = scmp.lt.s32.totalorder %s29, 1
      %s581 = scalar_select %p580, %s29, 1
      %s582 = smul.addr %s581, 8
      %s583 = scalar_lea.vmem %s1, %s582
      %p584 = scmp.lt.s32.totalorder %s29, 1
      %s585 = scalar_select %p584, %s29, 1
      %s586 = smul.addr %s585, 8
      %s587 = scalar_lea.vmem %s18, %s586
      %v589 = vld [vmem:[%s579] sm:$0xff]
      %v590 = vld [vmem:[%s2] sm:$0x1]
      %v591 = vld [vmem:[%s3] sm:$0x1]
      %vm592 = vcmask 261120
      %v593 = vsel %vm592, %v589, 0.0
      %594 = vadd.xlane.f32.xlu0 %v593
      %v595 = vpop.xlane.xlu0 %594
      %v596 = vrcp.pop 32.0
      %v597 = vmul.f32 %v595, %v596
      %v598 = vsub.f32 %v589, %v597
      %v599 = vmul.f32 %v598, %v598
      %v600 = vsel %vm592, %v599, 0.0
      %601 = vadd.xlane.f32.xlu0 %v600
      %v602 = vpop.xlane.xlu0 %601
      %v603 = vmul.f32 %v602, %v596
      %v604 = vadd.f32 %v603, 1e-05
      %v605 = vrsqrt.pop %v604
      %v606 = vmul.f32 %v598, %v605
      %v608 = vlaneseq
      %v609 = vshrl.u32 %v608, 7
      %v610 = vsub.s32 0, %v609
      %v611 = vrot.slane %v590, %v610
      %v613 = vmul.f32 %v606, %v611
      %v615 = vlaneseq
      %v616 = vshrl.u32 %v615, 7
      %v617 = vsub.s32 0, %v616
      %v618 = vrot.slane %v591, %v617
      %v620 = vadd.f32 %v613, %v618
      %v621 = vld [vmem:[%s4] sm:$0xff]
      %v622 = vld [vmem:[%s4 + $0x8] sm:$0xff]
      %v623 = vld [vmem:[%s4 + $0x10] sm:$0xff]
      %v624 = vld [vmem:[%s4 + $0x18] sm:$0xff]
      %v625 = vpack.c.bf16 %v620, %v620
      %v626 = vpack.c.bf16 %v622, %v621
      %v627 = vpack.c.bf16 %v624, %v623
      %v628 = vld [vmem:[%s5] sm:$0x1]
      %v630 = vlaneseq
      %v631 = vshrl.u32 %v630, 7
      %v632 = vsub.s32 0, %v631
      %v633 = vrot.slane %v628, %v632
      %v636 = vsel %vm592, %v625, 0
      %638 = vmatprep.subr.bf16.mxu0 0
      %639 = vmatpush1.bf16.msra.mxu0 0
      %640 = vmatprep.subr.bf16.mxu0 0
      %641 = vmatpush1.bf16.msra.mxu0 0
      %642 = vmatprep.subr.bf16.mxu0 0
      %643 = vmatpush1.bf16.msra.mxu0 0
      %644 = vmatprep.subr.bf16.mxu0 0
      %645 = vmatpush1.bf16.msra.mxu0 0
      %646 = vmatprep.subr.bf16.mxu0 0
      %647 = vmatpush1.bf16.msra.mxu0 0
      %648 = vmatprep.subr.bf16.mxu0 0
      %649 = vmatpush1.bf16.msra.mxu0 0
      %650 = vmatprep.subr.bf16.mxu0 0
      %651 = vmatpush1.bf16.msra.mxu0 %v627
      %652 = vmatprep.subr.bf16.mxu0 0
      %653 = vmatpush1.bf16.msra.mxu0 %v626
      %654 = vmatprep.subr.bf16.mxu0 0
      %655 = vmatpush2.bf16.msra.mxu0 0
      %656 = vmatprep.subr.bf16.mxu0 0
      %657 = vmatpush2.bf16.msra.mxu0 0
      %658 = vmatprep.subr.bf16.mxu0 0
      %659 = vmatpush2.bf16.msra.mxu0 0
      %660 = vmatprep.subr.bf16.mxu0 0
      %661 = vmatpush2.bf16.msra.mxu0 0
      %662 = vmatprep.subr.bf16.mxu0 0
      %663 = vmatpush2.bf16.msra.mxu0 0
      %664 = vmatprep.subr.bf16.mxu0 0
      %665 = vmatpush2.bf16.msra.mxu0 0
      %666 = vmatprep.subr.bf16.mxu0 0
      %667 = vmatpush2.bf16.msra.mxu0 0
      %668 = vmatprep.subr.bf16.mxu0 0
      %669 = vmatpush2.bf16.msra.mxu0 0
      %670 = vmatprep.mubr.bf16.mxu0 0
      %671 = vmatmul.mubr.bf16.gmra.mxu0 %v636
      %v672 = vpop.f32.mrf.mxu0
      %v673 = vadd.f32 %v633, %v672
      %v674 = vpop.f32.mrf.mxu0
      %v675 = vpop.f32.mrf.mxu0
      %v676 = vpop.f32.mrf.mxu0
      %677 = vdwg.mxu0
      %v678 = vld [vmem:[%s6] sm:$0xff]
      %v679 = vld [vmem:[%s6 + $0x8] sm:$0xff]
      %v680 = vld [vmem:[%s6 + $0x10] sm:$0xff]
      %v681 = vld [vmem:[%s6 + $0x18] sm:$0xff]
      %v682 = vpack.c.bf16 %v679, %v678
      %v683 = vpack.c.bf16 %v681, %v680
      %v684 = vld [vmem:[%s7] sm:$0x1]
      %v686 = vlaneseq
      %v687 = vshrl.u32 %v686, 7
      %v688 = vsub.s32 0, %v687
      %v689 = vrot.slane %v684, %v688
      %691 = vmatprep.subr.bf16.mxu0 0
      %692 = vmatpush1.bf16.msra.mxu0 0
      %693 = vmatprep.subr.bf16.mxu0 0
      %694 = vmatpush1.bf16.msra.mxu0 0
      %695 = vmatprep.subr.bf16.mxu0 0
      %696 = vmatpush1.bf16.msra.mxu0 0
      %697 = vmatprep.subr.bf16.mxu0 0
      %698 = vmatpush1.bf16.msra.mxu0 0
      %699 = vmatprep.subr.bf16.mxu0 0
      %700 = vmatpush1.bf16.msra.mxu0 0
      %701 = vmatprep.subr.bf16.mxu0 0
      %702 = vmatpush1.bf16.msra.mxu0 0
      %703 = vmatprep.subr.bf16.mxu0 0
      %704 = vmatpush1.bf16.msra.mxu0 %v683
      %705 = vmatprep.subr.bf16.mxu0 0
      %706 = vmatpush1.bf16.msra.mxu0 %v682
      %707 = vmatprep.subr.bf16.mxu0 0
      %708 = vmatpush2.bf16.msra.mxu0 0
      %709 = vmatprep.subr.bf16.mxu0 0
      %710 = vmatpush2.bf16.msra.mxu0 0
      %711 = vmatprep.subr.bf16.mxu0 0
      %712 = vmatpush2.bf16.msra.mxu0 0
      %713 = vmatprep.subr.bf16.mxu0 0
      %714 = vmatpush2.bf16.msra.mxu0 0
      %715 = vmatprep.subr.bf16.mxu0 0
      %716 = vmatpush2.bf16.msra.mxu0 0
      %717 = vmatprep.subr.bf16.mxu0 0
      %718 = vmatpush2.bf16.msra.mxu0 0
      %719 = vmatprep.subr.bf16.mxu0 0
      %720 = vmatpush2.bf16.msra.mxu0 0
      %721 = vmatprep.subr.bf16.mxu0 0
      %722 = vmatpush2.bf16.msra.mxu0 0
      %723 = vmatprep.mubr.bf16.mxu0 0
      %724 = vmatmul.mubr.bf16.gmra.mxu0 %v636
      %v725 = vpop.f32.mrf.mxu0
      %v726 = vadd.f32 %v689, %v725
      %v727 = vpop.f32.mrf.mxu0
      %v728 = vpop.f32.mrf.mxu0
      %v729 = vpop.f32.mrf.mxu0
      %730 = vdwg.mxu0
      %v731 = vld [vmem:[%s8] sm:$0xff]
      %v732 = vld [vmem:[%s8 + $0x8] sm:$0xff]
      %v733 = vld [vmem:[%s8 + $0x10] sm:$0xff]
      %v734 = vld [vmem:[%s8 + $0x18] sm:$0xff]
      %v735 = vpack.c.bf16 %v732, %v731
      %v736 = vpack.c.bf16 %v734, %v733
      %v737 = vld [vmem:[%s9] sm:$0x1]
      %v739 = vlaneseq
      %v740 = vshrl.u32 %v739, 7
      %v741 = vsub.s32 0, %v740
      %v742 = vrot.slane %v737, %v741
      %744 = vmatprep.subr.bf16.mxu0 0
      %745 = vmatpush1.bf16.msra.mxu0 0
      %746 = vmatprep.subr.bf16.mxu0 0
      %747 = vmatpush1.bf16.msra.mxu0 0
      %748 = vmatprep.subr.bf16.mxu0 0
      %749 = vmatpush1.bf16.msra.mxu0 0
      %750 = vmatprep.subr.bf16.mxu0 0
      %751 = vmatpush1.bf16.msra.mxu0 0
      %752 = vmatprep.subr.bf16.mxu0 0
      %753 = vmatpush1.bf16.msra.mxu0 0
      %754 = vmatprep.subr.bf16.mxu0 0
      %755 = vmatpush1.bf16.msra.mxu0 0
      %756 = vmatprep.subr.bf16.mxu0 0
      %757 = vmatpush1.bf16.msra.mxu0 %v736
      %758 = vmatprep.subr.bf16.mxu0 0
      %759 = vmatpush1.bf16.msra.mxu0 %v735
      %760 = vmatprep.subr.bf16.mxu0 0
      %761 = vmatpush2.bf16.msra.mxu0 0
      %762 = vmatprep.subr.bf16.mxu0 0
      %763 = vmatpush2.bf16.msra.mxu0 0
      %764 = vmatprep.subr.bf16.mxu0 0
      %765 = vmatpush2.bf16.msra.mxu0 0
      %766 = vmatprep.subr.bf16.mxu0 0
      %767 = vmatpush2.bf16.msra.mxu0 0
      %768 = vmatprep.subr.bf16.mxu0 0
      %769 = vmatpush2.bf16.msra.mxu0 0
      %770 = vmatprep.subr.bf16.mxu0 0
      %771 = vmatpush2.bf16.msra.mxu0 0
      %772 = vmatprep.subr.bf16.mxu0 0
      %773 = vmatpush2.bf16.msra.mxu0 0
      %774 = vmatprep.subr.bf16.mxu0 0
      %775 = vmatpush2.bf16.msra.mxu0 0
      %776 = vmatprep.mubr.bf16.mxu0 0
      %777 = vmatmul.mubr.bf16.gmra.mxu0 %v636
      %v778 = vpop.f32.mrf.mxu0
      %v779 = vadd.f32 %v742, %v778
      %v780 = vpop.f32.mrf.mxu0
      %v781 = vpop.f32.mrf.mxu0
      %v782 = vpop.f32.mrf.mxu0
      %783 = vdwg.mxu0
      %v784 = vld [vmem:[%s583] sm:$0xff]
      %v785 = vlaneseq
      %v786 = vand.u32 %v785, 127
      %vm787 = vcmp.ge.s32.totalorder %v786, 0
      %vm788 = vcmp.lt.s32.totalorder %v786, 8
      %vm789 = vmand %vm787, %vm788
      %v790 = vsel %vm789, 1, 0
      %vm791 = vcmp.eq.s32.totalorder %v790, 1
      %v792 = vsel %vm791, %v673, 0.0
      %v793 = vpack.c.bf16 %v792, %v792
      %v794 = vpack.c.bf16 %v726, %v726
      %v796 = vsel %vm592, %v793, 0
      %v799 = vsel %vm592, %v794, 0
      %801 = vmatprep.subr.bf16.mxu0 0
      %802 = vmatpush1.bf16.xpose.msra.mxu0 0
      %803 = vmatprep.subr.bf16.mxu0 0
      %804 = vmatpush1.bf16.xpose.msra.mxu0 0
      %805 = vmatprep.subr.bf16.mxu0 0
      %806 = vmatpush1.bf16.xpose.msra.mxu0 0
      %807 = vmatprep.subr.bf16.mxu0 0
      %808 = vmatpush1.bf16.xpose.msra.mxu0 0
      %809 = vmatprep.subr.bf16.mxu0 0
      %810 = vmatpush1.bf16.xpose.msra.mxu0 0
      %811 = vmatprep.subr.bf16.mxu0 0
      %812 = vmatpush1.bf16.xpose.msra.mxu0 0
      %813 = vmatprep.subr.bf16.mxu0 0
      %814 = vmatpush1.bf16.xpose.msra.mxu0 0
      %815 = vmatprep.subr.bf16.mxu0 0
      %816 = vmatpush1.bf16.xpose.msra.mxu0 %v799
      %817 = vmatprep.subr.bf16.mxu0 0
      %818 = vmatpush2.bf16.xpose.msra.mxu0 0
      %819 = vmatprep.subr.bf16.mxu0 0
      %820 = vmatpush2.bf16.xpose.msra.mxu0 0
      %821 = vmatprep.subr.bf16.mxu0 0
      %822 = vmatpush2.bf16.xpose.msra.mxu0 0
      %823 = vmatprep.subr.bf16.mxu0 0
      %824 = vmatpush2.bf16.xpose.msra.mxu0 0
      %825 = vmatprep.subr.bf16.mxu0 0
      %826 = vmatpush2.bf16.xpose.msra.mxu0 0
      %827 = vmatprep.subr.bf16.mxu0 0
      %828 = vmatpush2.bf16.xpose.msra.mxu0 0
      %829 = vmatprep.subr.bf16.mxu0 0
      %830 = vmatpush2.bf16.xpose.msra.mxu0 0
      %831 = vmatprep.subr.bf16.mxu0 0
      %832 = vmatpush2.bf16.xpose.msra.mxu0 0
      %833 = vmatprep.mubr.bf16.mxu0 0
      %834 = vmatmul.mubr.bf16.gmra.mxu0 %v796
      %v835 = vpop.f32.mrf.mxu0
      %v836 = vadd.f32 0.0, %v835
      %v837 = vpop.f32.mrf.mxu0
      %v838 = vpop.f32.mrf.mxu0
      %v839 = vpop.f32.mrf.mxu0
      %840 = vdwg.mxu0
      %v841 = vmul.f32 %v836, 0.35355338
      %v842 = vadd.f32 %v841, %v784
      %vm843 = vcmask 64512
      %v844 = vsel %vm843, %v842, -inf
      %845 = vmax.xlane.f32.xlu0 %v844
      %v846 = vpop.xlane.xlu0 %845
      %v847 = vsub.f32 %v842, %v846
      %v848 = vmul.f32 %v847, 1.442695
      %v849 = vpow.pop %v848
      %v850 = vsel %vm843, %v849, 0.0
      %851 = vadd.xlane.f32.xlu0 %v850
      %v852 = vpop.xlane.xlu0 %851
      %v853 = vrcp.pop %v852
      %v854 = vmul.f32 %v849, %v853
      %v855 = vsel %vm791, %v779, 0.0
      %v856 = vpack.c.bf16 %v854, %v854
      %v857 = vpack.c.bf16 %v855, %v855
      %vm858 = vcmp.ge.s32.totalorder %v786, 8
      %vm859 = vcmp.lt.s32.totalorder %v786, 16
      %vm860 = vmand %vm858, %vm859
      %v861 = vsel %vm860, 1, 0
      %vm862 = vcmp.eq.s32.totalorder %v861, 1
      %v863 = vsel %vm862, %v673, 0.0
      %v864 = vpack.c.bf16 %v863, %v863
      %v866 = vsel %vm592, %v864, 0
      %868 = vmatprep.subr.bf16.mxu0 0
      %869 = vmatpush1.bf16.xpose.msra.mxu0 0
      %870 = vmatprep.subr.bf16.mxu0 0
      %871 = vmatpush1.bf16.xpose.msra.mxu0 0
      %872 = vmatprep.subr.bf16.mxu0 0
      %873 = vmatpush1.bf16.xpose.msra.mxu0 0
      %874 = vmatprep.subr.bf16.mxu0 0
      %875 = vmatpush1.bf16.xpose.msra.mxu0 0
      %876 = vmatprep.subr.bf16.mxu0 0
      %877 = vmatpush1.bf16.xpose.msra.mxu0 0
      %878 = vmatprep.subr.bf16.mxu0 0
      %879 = vmatpush1.bf16.xpose.msra.mxu0 0
      %880 = vmatprep.subr.bf16.mxu0 0
      %881 = vmatpush1.bf16.xpose.msra.mxu0 0
      %882 = vmatprep.subr.bf16.mxu0 0
      %883 = vmatpush1.bf16.xpose.msra.mxu0 %v799
      %884 = vmatprep.subr.bf16.mxu0 0
      %885 = vmatpush2.bf16.xpose.msra.mxu0 0
      %886 = vmatprep.subr.bf16.mxu0 0
      %887 = vmatpush2.bf16.xpose.msra.mxu0 0
      %888 = vmatprep.subr.bf16.mxu0 0
      %889 = vmatpush2.bf16.xpose.msra.mxu0 0
      %890 = vmatprep.subr.bf16.mxu0 0
      %891 = vmatpush2.bf16.xpose.msra.mxu0 0
      %892 = vmatprep.subr.bf16.mxu0 0
      %893 = vmatpush2.bf16.xpose.msra.mxu0 0
      %894 = vmatprep.subr.bf16.mxu0 0
      %895 = vmatpush2.bf16.xpose.msra.mxu0 0
      %896 = vmatprep.subr.bf16.mxu0 0
      %897 = vmatpush2.bf16.xpose.msra.mxu0 0
      %898 = vmatprep.subr.bf16.mxu0 0
      %899 = vmatpush2.bf16.xpose.msra.mxu0 0
      %900 = vmatprep.mubr.bf16.mxu0 0
      %901 = vmatmul.mubr.bf16.gmra.mxu0 %v866
      %v902 = vpop.f32.mrf.mxu0
      %v903 = vadd.f32 0.0, %v902
      %v904 = vpop.f32.mrf.mxu0
      %v905 = vpop.f32.mrf.mxu0
      %v906 = vpop.f32.mrf.mxu0
      %907 = vdwg.mxu0
      %v908 = vmul.f32 %v903, 0.35355338
      %v909 = vadd.f32 %v908, %v784
      %v910 = vsel %vm843, %v909, -inf
      %911 = vmax.xlane.f32.xlu0 %v910
      %v912 = vpop.xlane.xlu0 %911
      %v913 = vsub.f32 %v909, %v912
      %v914 = vmul.f32 %v913, 1.442695
      %v915 = vpow.pop %v914
      %v916 = vsel %vm843, %v915, 0.0
      %917 = vadd.xlane.f32.xlu0 %v916
      %v918 = vpop.xlane.xlu0 %917
      %v919 = vrcp.pop %v918
      %v920 = vmul.f32 %v915, %v919
      %v921 = vsel %vm862, %v779, 0.0
      %v922 = vpack.c.bf16 %v920, %v920
      %v923 = vpack.c.bf16 %v921, %v921
      %v925 = vsel %vm843, %v922, 0
      %vm927 = vcmask 1043456
      %v929 = vsel %vm927, %v923, 0
      %931 = vmatprep.subr.bf16.mxu0 0
      %932 = vmatpush1.bf16.msra.mxu0 0
      %933 = vmatprep.subr.bf16.mxu0 0
      %934 = vmatpush1.bf16.msra.mxu0 0
      %935 = vmatprep.subr.bf16.mxu0 0
      %936 = vmatpush1.bf16.msra.mxu0 0
      %937 = vmatprep.subr.bf16.mxu0 0
      %938 = vmatpush1.bf16.msra.mxu0 0
      %939 = vmatprep.subr.bf16.mxu0 0
      %940 = vmatpush1.bf16.msra.mxu0 0
      %941 = vmatprep.subr.bf16.mxu0 0
      %942 = vmatpush1.bf16.msra.mxu0 0
      %943 = vmatprep.subr.bf16.mxu0 0
      %944 = vmatpush1.bf16.msra.mxu0 0
      %945 = vmatprep.subr.bf16.mxu0 0
      %946 = vmatpush1.bf16.msra.mxu0 %v929
      %947 = vmatprep.subr.bf16.mxu0 0
      %948 = vmatpush2.bf16.msra.mxu0 0
      %949 = vmatprep.subr.bf16.mxu0 0
      %950 = vmatpush2.bf16.msra.mxu0 0
      %951 = vmatprep.subr.bf16.mxu0 0
      %952 = vmatpush2.bf16.msra.mxu0 0
      %953 = vmatprep.subr.bf16.mxu0 0
      %954 = vmatpush2.bf16.msra.mxu0 0
      %955 = vmatprep.subr.bf16.mxu0 0
      %956 = vmatpush2.bf16.msra.mxu0 0
      %957 = vmatprep.subr.bf16.mxu0 0
      %958 = vmatpush2.bf16.msra.mxu0 0
      %959 = vmatprep.subr.bf16.mxu0 0
      %960 = vmatpush2.bf16.msra.mxu0 0
      %961 = vmatprep.subr.bf16.mxu0 0
      %962 = vmatpush2.bf16.msra.mxu0 0
      %963 = vmatprep.mubr.bf16.mxu0 0
      %964 = vmatmul.mubr.bf16.gmra.mxu0 %v925
      %v965 = vpop.f32.mrf.mxu0
      %v966 = vadd.f32 0.0, %v965
      %v967 = vpop.f32.mrf.mxu0
      %v968 = vpop.f32.mrf.mxu0
      %v969 = vpop.f32.mrf.mxu0
      %970 = vdwg.mxu0
      %v972 = vsel %vm843, %v856, 0
      %v975 = vsel %vm927, %v857, 0
      %977 = vmatprep.subr.bf16.mxu0 0
      %978 = vmatpush1.bf16.msra.mxu0 0
      %979 = vmatprep.subr.bf16.mxu0 0
      %980 = vmatpush1.bf16.msra.mxu0 0
      %981 = vmatprep.subr.bf16.mxu0 0
      %982 = vmatpush1.bf16.msra.mxu0 0
      %983 = vmatprep.subr.bf16.mxu0 0
      %984 = vmatpush1.bf16.msra.mxu0 0
      %985 = vmatprep.subr.bf16.mxu0 0
      %986 = vmatpush1.bf16.msra.mxu0 0
      %987 = vmatprep.subr.bf16.mxu0 0
      %988 = vmatpush1.bf16.msra.mxu0 0
      %989 = vmatprep.subr.bf16.mxu0 0
      %990 = vmatpush1.bf16.msra.mxu0 0
      %991 = vmatprep.subr.bf16.mxu0 0
      %992 = vmatpush1.bf16.msra.mxu0 %v975
      %993 = vmatprep.subr.bf16.mxu0 0
      %994 = vmatpush2.bf16.msra.mxu0 0
      %995 = vmatprep.subr.bf16.mxu0 0
      %996 = vmatpush2.bf16.msra.mxu0 0
      %997 = vmatprep.subr.bf16.mxu0 0
      %998 = vmatpush2.bf16.msra.mxu0 0
      %999 = vmatprep.subr.bf16.mxu0 0
      %1000 = vmatpush2.bf16.msra.mxu0 0
      %1001 = vmatprep.subr.bf16.mxu0 0
      %1002 = vmatpush2.bf16.msra.mxu0 0
      %1003 = vmatprep.subr.bf16.mxu0 0
      %1004 = vmatpush2.bf16.msra.mxu0 0
      %1005 = vmatprep.subr.bf16.mxu0 0
      %1006 = vmatpush2.bf16.msra.mxu0 0
      %1007 = vmatprep.subr.bf16.mxu0 0
      %1008 = vmatpush2.bf16.msra.mxu0 0
      %1009 = vmatprep.mubr.bf16.mxu0 0
      %1010 = vmatmul.mubr.bf16.gmra.mxu0 %v972
      %v1011 = vpop.f32.mrf.mxu0
      %v1012 = vadd.f32 %v966, %v1011
      %v1013 = vpop.f32.mrf.mxu0
      %v1014 = vpop.f32.mrf.mxu0
      %v1015 = vpop.f32.mrf.mxu0
      %1016 = vdwg.mxu0
      %vm1017 = vcmp.ge.s32.totalorder %v786, 16
      %vm1018 = vcmp.lt.s32.totalorder %v786, 24
      %vm1019 = vmand %vm1017, %vm1018
      %v1020 = vsel %vm1019, 1, 0
      %vm1021 = vcmp.eq.s32.totalorder %v1020, 1
      %v1022 = vsel %vm1021, %v673, 0.0
      %v1023 = vpack.c.bf16 %v1022, %v1022
      %v1025 = vsel %vm592, %v1023, 0
      %1027 = vmatprep.subr.bf16.mxu0 0
      %1028 = vmatpush1.bf16.xpose.msra.mxu0 0
      %1029 = vmatprep.subr.bf16.mxu0 0
      %1030 = vmatpush1.bf16.xpose.msra.mxu0 0
      %1031 = vmatprep.subr.bf16.mxu0 0
      %1032 = vmatpush1.bf16.xpose.msra.mxu0 0
      %1033 = vmatprep.subr.bf16.mxu0 0
      %1034 = vmatpush1.bf16.xpose.msra.mxu0 0
      %1035 = vmatprep.subr.bf16.mxu0 0
      %1036 = vmatpush1.bf16.xpose.msra.mxu0 0
      %1037 = vmatprep.subr.bf16.mxu0 0
      %1038 = vmatpush1.bf16.xpose.msra.mxu0 0
      %1039 = vmatprep.subr.bf16.mxu0 0
      %1040 = vmatpush1.bf16.xpose.msra.mxu0 0
      %1041 = vmatprep.subr.bf16.mxu0 0
      %1042 = vmatpush1.bf16.xpose.msra.mxu0 %v799
      %1043 = vmatprep.subr.bf16.mxu0 0
      %1044 = vmatpush2.bf16.xpose.msra.mxu0 0
      %1045 = vmatprep.subr.bf16.mxu0 0
      %1046 = vmatpush2.bf16.xpose.msra.mxu0 0
      %1047 = vmatprep.subr.bf16.mxu0 0
      %1048 = vmatpush2.bf16.xpose.msra.mxu0 0
      %1049 = vmatprep.subr.bf16.mxu0 0
      %1050 = vmatpush2.bf16.xpose.msra.mxu0 0
      %1051 = vmatprep.subr.bf16.mxu0 0
      %1052 = vmatpush2.bf16.xpose.msra.mxu0 0
      %1053 = vmatprep.subr.bf16.mxu0 0
      %1054 = vmatpush2.bf16.xpose.msra.mxu0 0
      %1055 = vmatprep.subr.bf16.mxu0 0
      %1056 = vmatpush2.bf16.xpose.msra.mxu0 0
      %1057 = vmatprep.subr.bf16.mxu0 0
      %1058 = vmatpush2.bf16.xpose.msra.mxu0 0
      %1059 = vmatprep.mubr.bf16.mxu0 0
      %1060 = vmatmul.mubr.bf16.gmra.mxu0 %v1025
      %v1061 = vpop.f32.mrf.mxu0
      %v1062 = vadd.f32 0.0, %v1061
      %v1063 = vpop.f32.mrf.mxu0
      %v1064 = vpop.f32.mrf.mxu0
      %v1065 = vpop.f32.mrf.mxu0
      %1066 = vdwg.mxu0
      %v1067 = vmul.f32 %v1062, 0.35355338
      %v1068 = vadd.f32 %v1067, %v784
      %v1069 = vsel %vm843, %v1068, -inf
      %1070 = vmax.xlane.f32.xlu0 %v1069
      %v1071 = vpop.xlane.xlu0 %1070
      %v1072 = vsub.f32 %v1068, %v1071
      %v1073 = vmul.f32 %v1072, 1.442695
      %v1074 = vpow.pop %v1073
      %v1075 = vsel %vm843, %v1074, 0.0
      %1076 = vadd.xlane.f32.xlu0 %v1075
      %v1077 = vpop.xlane.xlu0 %1076
      %v1078 = vrcp.pop %v1077
      %v1079 = vmul.f32 %v1074, %v1078
      %v1080 = vsel %vm1021, %v779, 0.0
      %v1081 = vpack.c.bf16 %v1079, %v1079
      %v1082 = vpack.c.bf16 %v1080, %v1080
      %v1084 = vsel %vm843, %v1081, 0
      %v1087 = vsel %vm927, %v1082, 0
      %1089 = vmatprep.subr.bf16.mxu0 0
      %1090 = vmatpush1.bf16.msra.mxu0 0
      %1091 = vmatprep.subr.bf16.mxu0 0
      %1092 = vmatpush1.bf16.msra.mxu0 0
      %1093 = vmatprep.subr.bf16.mxu0 0
      %1094 = vmatpush1.bf16.msra.mxu0 0
      %1095 = vmatprep.subr.bf16.mxu0 0
      %1096 = vmatpush1.bf16.msra.mxu0 0
      %1097 = vmatprep.subr.bf16.mxu0 0
      %1098 = vmatpush1.bf16.msra.mxu0 0
      %1099 = vmatprep.subr.bf16.mxu0 0
      %1100 = vmatpush1.bf16.msra.mxu0 0
      %1101 = vmatprep.subr.bf16.mxu0 0
      %1102 = vmatpush1.bf16.msra.mxu0 0
      %1103 = vmatprep.subr.bf16.mxu0 0
      %1104 = vmatpush1.bf16.msra.mxu0 %v1087
      %1105 = vmatprep.subr.bf16.mxu0 0
      %1106 = vmatpush2.bf16.msra.mxu0 0
      %1107 = vmatprep.subr.bf16.mxu0 0
      %1108 = vmatpush2.bf16.msra.mxu0 0
      %1109 = vmatprep.subr.bf16.mxu0 0
      %1110 = vmatpush2.bf16.msra.mxu0 0
      %1111 = vmatprep.subr.bf16.mxu0 0
      %1112 = vmatpush2.bf16.msra.mxu0 0
      %1113 = vmatprep.subr.bf16.mxu0 0
      %1114 = vmatpush2.bf16.msra.mxu0 0
      %1115 = vmatprep.subr.bf16.mxu0 0
      %1116 = vmatpush2.bf16.msra.mxu0 0
      %1117 = vmatprep.subr.bf16.mxu0 0
      %1118 = vmatpush2.bf16.msra.mxu0 0
      %1119 = vmatprep.subr.bf16.mxu0 0
      %1120 = vmatpush2.bf16.msra.mxu0 0
      %1121 = vmatprep.mubr.bf16.mxu0 0
      %1122 = vmatmul.mubr.bf16.gmra.mxu0 %v1084
      %v1123 = vpop.f32.mrf.mxu0
      %v1124 = vadd.f32 0.0, %v1123
      %v1125 = vpop.f32.mrf.mxu0
      %v1126 = vpop.f32.mrf.mxu0
      %v1127 = vpop.f32.mrf.mxu0
      %1128 = vdwg.mxu0
      %v1129 = vadd.f32 %v1012, %v1124
      %vm1130 = vcmp.ge.s32.totalorder %v786, 24
      %vm1131 = vcmp.lt.s32.totalorder %v786, 32
      %vm1132 = vmand %vm1130, %vm1131
      %v1133 = vsel %vm1132, 1, 0
      %vm1134 = vcmp.eq.s32.totalorder %v1133, 1
      %v1135 = vsel %vm1134, %v673, 0.0
      %v1136 = vpack.c.bf16 %v1135, %v1135
      %v1138 = vsel %vm592, %v1136, 0
      %1140 = vmatprep.subr.bf16.mxu0 0
      %1141 = vmatpush1.bf16.xpose.msra.mxu0 0
      %1142 = vmatprep.subr.bf16.mxu0 0
      %1143 = vmatpush1.bf16.xpose.msra.mxu0 0
      %1144 = vmatprep.subr.bf16.mxu0 0
      %1145 = vmatpush1.bf16.xpose.msra.mxu0 0
      %1146 = vmatprep.subr.bf16.mxu0 0
      %1147 = vmatpush1.bf16.xpose.msra.mxu0 0
      %1148 = vmatprep.subr.bf16.mxu0 0
      %1149 = vmatpush1.bf16.xpose.msra.mxu0 0
      %1150 = vmatprep.subr.bf16.mxu0 0
      %1151 = vmatpush1.bf16.xpose.msra.mxu0 0
      %1152 = vmatprep.subr.bf16.mxu0 0
      %1153 = vmatpush1.bf16.xpose.msra.mxu0 0
      %1154 = vmatprep.subr.bf16.mxu0 0
      %1155 = vmatpush1.bf16.xpose.msra.mxu0 %v799
      %1156 = vmatprep.subr.bf16.mxu0 0
      %1157 = vmatpush2.bf16.xpose.msra.mxu0 0
      %1158 = vmatprep.subr.bf16.mxu0 0
      %1159 = vmatpush2.bf16.xpose.msra.mxu0 0
      %1160 = vmatprep.subr.bf16.mxu0 0
      %1161 = vmatpush2.bf16.xpose.msra.mxu0 0
      %1162 = vmatprep.subr.bf16.mxu0 0
      %1163 = vmatpush2.bf16.xpose.msra.mxu0 0
      %1164 = vmatprep.subr.bf16.mxu0 0
      %1165 = vmatpush2.bf16.xpose.msra.mxu0 0
      %1166 = vmatprep.subr.bf16.mxu0 0
      %1167 = vmatpush2.bf16.xpose.msra.mxu0 0
      %1168 = vmatprep.subr.bf16.mxu0 0
      %1169 = vmatpush2.bf16.xpose.msra.mxu0 0
      %1170 = vmatprep.subr.bf16.mxu0 0
      %1171 = vmatpush2.bf16.xpose.msra.mxu0 0
      %1172 = vmatprep.mubr.bf16.mxu0 0
      %1173 = vmatmul.mubr.bf16.gmra.mxu0 %v1138
      %v1174 = vpop.f32.mrf.mxu0
      %v1175 = vadd.f32 0.0, %v1174
      %v1176 = vpop.f32.mrf.mxu0
      %v1177 = vpop.f32.mrf.mxu0
      %v1178 = vpop.f32.mrf.mxu0
      %1179 = vdwg.mxu0
      %v1180 = vmul.f32 %v1175, 0.35355338
      %v1181 = vadd.f32 %v1180, %v784
      %v1182 = vsel %vm843, %v1181, -inf
      %1183 = vmax.xlane.f32.xlu0 %v1182
      %v1184 = vpop.xlane.xlu0 %1183
      %v1185 = vsub.f32 %v1181, %v1184
      %v1186 = vmul.f32 %v1185, 1.442695
      %v1187 = vpow.pop %v1186
      %v1188 = vsel %vm843, %v1187, 0.0
      %1189 = vadd.xlane.f32.xlu0 %v1188
      %v1190 = vpop.xlane.xlu0 %1189
      %v1191 = vrcp.pop %v1190
      %v1192 = vmul.f32 %v1187, %v1191
      %v1193 = vsel %vm1134, %v779, 0.0
      %v1194 = vpack.c.bf16 %v1192, %v1192
      %v1195 = vpack.c.bf16 %v1193, %v1193
      %v1197 = vsel %vm843, %v1194, 0
      %v1200 = vsel %vm927, %v1195, 0
      %1202 = vmatprep.subr.bf16.mxu0 0
      %1203 = vmatpush1.bf16.msra.mxu0 0
      %1204 = vmatprep.subr.bf16.mxu0 0
      %1205 = vmatpush1.bf16.msra.mxu0 0
      %1206 = vmatprep.subr.bf16.mxu0 0
      %1207 = vmatpush1.bf16.msra.mxu0 0
      %1208 = vmatprep.subr.bf16.mxu0 0
      %1209 = vmatpush1.bf16.msra.mxu0 0
      %1210 = vmatprep.subr.bf16.mxu0 0
      %1211 = vmatpush1.bf16.msra.mxu0 0
      %1212 = vmatprep.subr.bf16.mxu0 0
      %1213 = vmatpush1.bf16.msra.mxu0 0
      %1214 = vmatprep.subr.bf16.mxu0 0
      %1215 = vmatpush1.bf16.msra.mxu0 0
      %1216 = vmatprep.subr.bf16.mxu0 0
      %1217 = vmatpush1.bf16.msra.mxu0 %v1200
      %1218 = vmatprep.subr.bf16.mxu0 0
      %1219 = vmatpush2.bf16.msra.mxu0 0
      %1220 = vmatprep.subr.bf16.mxu0 0
      %1221 = vmatpush2.bf16.msra.mxu0 0
      %1222 = vmatprep.subr.bf16.mxu0 0
      %1223 = vmatpush2.bf16.msra.mxu0 0
      %1224 = vmatprep.subr.bf16.mxu0 0
      %1225 = vmatpush2.bf16.msra.mxu0 0
      %1226 = vmatprep.subr.bf16.mxu0 0
      %1227 = vmatpush2.bf16.msra.mxu0 0
      %1228 = vmatprep.subr.bf16.mxu0 0
      %1229 = vmatpush2.bf16.msra.mxu0 0
      %1230 = vmatprep.subr.bf16.mxu0 0
      %1231 = vmatpush2.bf16.msra.mxu0 0
      %1232 = vmatprep.subr.bf16.mxu0 0
      %1233 = vmatpush2.bf16.msra.mxu0 0
      %1234 = vmatprep.mubr.bf16.mxu0 0
      %1235 = vmatmul.mubr.bf16.gmra.mxu0 %v1197
      %v1236 = vpop.f32.mrf.mxu0
      %v1237 = vadd.f32 0.0, %v1236
      %v1238 = vpop.f32.mrf.mxu0
      %v1239 = vpop.f32.mrf.mxu0
      %v1240 = vpop.f32.mrf.mxu0
      %1241 = vdwg.mxu0
      %v1242 = vadd.f32 %v1129, %v1237
      %v1243 = vld [vmem:[%s10] sm:$0xff]
      %v1244 = vld [vmem:[%s10 + $0x8] sm:$0xff]
      %v1245 = vld [vmem:[%s10 + $0x10] sm:$0xff]
      %v1246 = vld [vmem:[%s10 + $0x18] sm:$0xff]
      %v1247 = vpack.c.bf16 %v1242, %v1242
      %v1248 = vpack.c.bf16 %v1244, %v1243
      %v1249 = vpack.c.bf16 %v1246, %v1245
      %v1251 = vsel %vm592, %v1247, 0
      %1253 = vmatprep.subr.bf16.mxu0 0
      %1254 = vmatpush1.bf16.msra.mxu0 0
      %1255 = vmatprep.subr.bf16.mxu0 0
      %1256 = vmatpush1.bf16.msra.mxu0 0
      %1257 = vmatprep.subr.bf16.mxu0 0
      %1258 = vmatpush1.bf16.msra.mxu0 0
      %1259 = vmatprep.subr.bf16.mxu0 0
      %1260 = vmatpush1.bf16.msra.mxu0 0
      %1261 = vmatprep.subr.bf16.mxu0 0
      %1262 = vmatpush1.bf16.msra.mxu0 0
      %1263 = vmatprep.subr.bf16.mxu0 0
      %1264 = vmatpush1.bf16.msra.mxu0 0
      %1265 = vmatprep.subr.bf16.mxu0 0
      %1266 = vmatpush1.bf16.msra.mxu0 %v1249
      %1267 = vmatprep.subr.bf16.mxu0 0
      %1268 = vmatpush1.bf16.msra.mxu0 %v1248
      %1269 = vmatprep.subr.bf16.mxu0 0
      %1270 = vmatpush2.bf16.msra.mxu0 0
      %1271 = vmatprep.subr.bf16.mxu0 0
      %1272 = vmatpush2.bf16.msra.mxu0 0
      %1273 = vmatprep.subr.bf16.mxu0 0
      %1274 = vmatpush2.bf16.msra.mxu0 0
      %1275 = vmatprep.subr.bf16.mxu0 0
      %1276 = vmatpush2.bf16.msra.mxu0 0
      %1277 = vmatprep.subr.bf16.mxu0 0
      %1278 = vmatpush2.bf16.msra.mxu0 0
      %1279 = vmatprep.subr.bf16.mxu0 0
      %1280 = vmatpush2.bf16.msra.mxu0 0
      %1281 = vmatprep.subr.bf16.mxu0 0
      %1282 = vmatpush2.bf16.msra.mxu0 0
      %1283 = vmatprep.subr.bf16.mxu0 0
      %1284 = vmatpush2.bf16.msra.mxu0 0
      %1285 = vmatprep.mubr.bf16.mxu0 0
      %1286 = vmatmul.mubr.bf16.gmra.mxu0 %v1251
      %v1287 = vpop.f32.mrf.mxu0
      %v1288 = vadd.f32 0.0, %v1287
      %v1289 = vpop.f32.mrf.mxu0
      %v1290 = vpop.f32.mrf.mxu0
      %v1291 = vpop.f32.mrf.mxu0
      %1292 = vdwg.mxu0
      %v1293 = vadd.f32 %v589, %v1288
      %v1294 = vld [vmem:[%s11] sm:$0x1]
      %v1296 = vlaneseq
      %v1297 = vshrl.u32 %v1296, 7
      %v1298 = vsub.s32 0, %v1297
      %v1299 = vrot.slane %v1294, %v1298
      %v1301 = vadd.f32 %v1293, %v1299
      %v1302 = vld [vmem:[%s12] sm:$0x1]
      %v1303 = vld [vmem:[%s13] sm:$0x1]
      %v1304 = vsel %vm592, %v1301, 0.0
      %1305 = vadd.xlane.f32.xlu0 %v1304
      %v1306 = vpop.xlane.xlu0 %1305
      %v1307 = vmul.f32 %v1306, %v596
      %v1308 = vsub.f32 %v1301, %v1307
      %v1309 = vmul.f32 %v1308, %v1308
      %v1310 = vsel %vm592, %v1309, 0.0
      %1311 = vadd.xlane.f32.xlu0 %v1310
      %v1312 = vpop.xlane.xlu0 %1311
      %v1313 = vmul.f32 %v1312, %v596
      %v1314 = vadd.f32 %v1313, 1e-05
      %v1315 = vrsqrt.pop %v1314
      %v1316 = vmul.f32 %v1308, %v1315
      %v1318 = vlaneseq
      %v1319 = vshrl.u32 %v1318, 7
      %v1320 = vsub.s32 0, %v1319
      %v1321 = vrot.slane %v1302, %v1320
      %v1323 = vmul.f32 %v1316, %v1321
      %v1325 = vlaneseq
      %v1326 = vshrl.u32 %v1325, 7
      %v1327 = vsub.s32 0, %v1326
      %v1328 = vrot.slane %v1303, %v1327
      %v1330 = vadd.f32 %v1323, %v1328
      %v1331 = vld [vmem:[%s14] sm:$0xff]
      %v1332 = vld [vmem:[%s14 + $0x8] sm:$0xff]
      %v1333 = vld [vmem:[%s14 + $0x10] sm:$0xff]
      %v1334 = vld [vmem:[%s14 + $0x18] sm:$0xff]
      %v1335 = vpack.c.bf16 %v1330, %v1330
      %v1336 = vpack.c.bf16 %v1332, %v1331
      %v1337 = vpack.c.bf16 %v1334, %v1333
      %v1338 = vld [vmem:[%s15] sm:$0x1]
      %v1340 = vlaneseq
      %v1341 = vshrl.u32 %v1340, 7
      %v1342 = vsub.s32 0, %v1341
      %v1343 = vrot.slane %v1338, %v1342
      %v1346 = vsel %vm592, %v1335, 0
      %1348 = vmatprep.subr.bf16.mxu0 0
      %1349 = vmatpush1.bf16.msra.mxu0 0
      %1350 = vmatprep.subr.bf16.mxu0 0
      %1351 = vmatpush1.bf16.msra.mxu0 0
      %1352 = vmatprep.subr.bf16.mxu0 0
      %1353 = vmatpush1.bf16.msra.mxu0 0
      %1354 = vmatprep.subr.bf16.mxu0 0
      %1355 = vmatpush1.bf16.msra.mxu0 0
      %1356 = vmatprep.subr.bf16.mxu0 0
      %1357 = vmatpush1.bf16.msra.mxu0 0
      %1358 = vmatprep.subr.bf16.mxu0 0
      %1359 = vmatpush1.bf16.msra.mxu0 0
      %1360 = vmatprep.subr.bf16.mxu0 0
      %1361 = vmatpush1.bf16.msra.mxu0 %v1337
      %1362 = vmatprep.subr.bf16.mxu0 0
      %1363 = vmatpush1.bf16.msra.mxu0 %v1336
      %1364 = vmatprep.subr.bf16.mxu0 0
      %1365 = vmatpush2.bf16.msra.mxu0 0
      %1366 = vmatprep.subr.bf16.mxu0 0
      %1367 = vmatpush2.bf16.msra.mxu0 0
      %1368 = vmatprep.subr.bf16.mxu0 0
      %1369 = vmatpush2.bf16.msra.mxu0 0
      %1370 = vmatprep.subr.bf16.mxu0 0
      %1371 = vmatpush2.bf16.msra.mxu0 0
      %1372 = vmatprep.subr.bf16.mxu0 0
      %1373 = vmatpush2.bf16.msra.mxu0 0
      %1374 = vmatprep.subr.bf16.mxu0 0
      %1375 = vmatpush2.bf16.msra.mxu0 0
      %1376 = vmatprep.subr.bf16.mxu0 0
      %1377 = vmatpush2.bf16.msra.mxu0 0
      %1378 = vmatprep.subr.bf16.mxu0 0
      %1379 = vmatpush2.bf16.msra.mxu0 0
      %1380 = vmatprep.mubr.bf16.mxu0 0
      %1381 = vmatmul.mubr.bf16.gmra.mxu0 %v1346
      %v1382 = vpop.f32.mrf.mxu0
      %v1383 = vadd.f32 %v1343, %v1382
      %v1384 = vpop.f32.mrf.mxu0
      %v1385 = vpop.f32.mrf.mxu0
      %v1386 = vpop.f32.mrf.mxu0
      %1387 = vdwg.mxu0
      %v1388 = vmul.f32 %v1383, %v1383
      %v1389 = vmul.f32 %v1383, %v1388
      %v1390 = vmul.f32 %v1389, 0.044715
      %v1391 = vadd.f32 %v1383, %v1390
      %v1392 = vmul.f32 %v1391, 0.7978846
      %v1393 = vtanh.pop %v1392
      %v1394 = vadd.f32 %v1393, 1.0
      %v1395 = vmul.f32 %v1394, 0.5
      %v1396 = vmul.f32 %v1383, %v1395
      %v1397 = vld [vmem:[%s16] sm:$0xff]
      %v1398 = vld [vmem:[%s16 + $0x8] sm:$0xff]
      %v1399 = vld [vmem:[%s16 + $0x10] sm:$0xff]
      %v1400 = vld [vmem:[%s16 + $0x18] sm:$0xff]
      %v1401 = vld [vmem:[%s16 + $0x20] sm:$0xff]
      %v1402 = vld [vmem:[%s16 + $0x28] sm:$0xff]
      %v1403 = vld [vmem:[%s16 + $0x30] sm:$0xff]
      %v1404 = vld [vmem:[%s16 + $0x38] sm:$0xff]
      %v1405 = vpack.c.bf16 %v1396, %v1396
      %v1406 = vpack.c.bf16 %v1398, %v1397
      %v1407 = vpack.c.bf16 %v1400, %v1399
      %v1408 = vpack.c.bf16 %v1402, %v1401
      %v1409 = vpack.c.bf16 %v1404, %v1403
      %vm1410 = vcmask 523264
      %v1412 = vsel %vm1410, %v1405, 0
      %1414 = vmatprep.subr.bf16.mxu0 0
      %1415 = vmatpush1.bf16.msra.mxu0 0
      %1416 = vmatprep.subr.bf16.mxu0 0
      %1417 = vmatpush1.bf16.msra.mxu0 0
      %1418 = vmatprep.subr.bf16.mxu0 0
      %1419 = vmatpush1.bf16.msra.mxu0 0
      %1420 = vmatprep.subr.bf16.mxu0 0
      %1421 = vmatpush1.bf16.msra.mxu0 0
      %1422 = vmatprep.subr.bf16.mxu0 0
      %1423 = vmatpush1.bf16.msra.mxu0 %v1409
      %1424 = vmatprep.subr.bf16.mxu0 0
      %1425 = vmatpush1.bf16.msra.mxu0 %v1408
      %1426 = vmatprep.subr.bf16.mxu0 0
      %1427 = vmatpush1.bf16.msra.mxu0 %v1407
      %1428 = vmatprep.subr.bf16.mxu0 0
      %1429 = vmatpush1.bf16.msra.mxu0 %v1406
      %1430 = vmatprep.subr.bf16.mxu0 0
      %1431 = vmatpush2.bf16.msra.mxu0 0
      %1432 = vmatprep.subr.bf16.mxu0 0
      %1433 = vmatpush2.bf16.msra.mxu0 0
      %1434 = vmatprep.subr.bf16.mxu0 0
      %1435 = vmatpush2.bf16.msra.mxu0 0
      %1436 = vmatprep.subr.bf16.mxu0 0
      %1437 = vmatpush2.bf16.msra.mxu0 0
      %1438 = vmatprep.subr.bf16.mxu0 0
      %1439 = vmatpush2.bf16.msra.mxu0 0
      %1440 = vmatprep.subr.bf16.mxu0 0
      %1441 = vmatpush2.bf16.msra.mxu0 0
      %1442 = vmatprep.subr.bf16.mxu0 0
      %1443 = vmatpush2.bf16.msra.mxu0 0
      %1444 = vmatprep.subr.bf16.mxu0 0
      %1445 = vmatpush2.bf16.msra.mxu0 0
      %1446 = vmatprep.mubr.bf16.mxu0 0
      %1447 = vmatmul.mubr.bf16.gmra.mxu0 %v1412
      %v1448 = vpop.f32.mrf.mxu0
      %v1449 = vadd.f32 0.0, %v1448
      %v1450 = vpop.f32.mrf.mxu0
      %v1451 = vpop.f32.mrf.mxu0
      %v1452 = vpop.f32.mrf.mxu0
      %1453 = vdwg.mxu0
      %v1454 = vadd.f32 %v1301, %v1449
      %v1455 = vld [vmem:[%s17] sm:$0x1]
      %v1457 = vlaneseq
      %v1458 = vshrl.u32 %v1457, 7
      %v1459 = vsub.s32 0, %v1458
      %v1460 = vrot.slane %v1455, %v1459
      %v1462 = vadd.f32 %v1454, %v1460
      %1463 = vst.msk [vmem:[%s587] sm:$0xff] %vm592, %v1462
      %p1464 = scmp.lt.s32.totalorder %s29, 1
      %s1465 = scalar_select %p1464, %s29, 1
      %s1466 = smul.addr %s1465, 8
      %s1467 = scalar_lea.vmem %s18, %s1466
      // Predicated region
      $region93: #{flamingo_forward.10} parent=91 // pred_check
        %p1468 = pneg %p435
      $region94: #{flamingo_forward.10} parent=91 // pred_check_branch
        %1470 = sbr.rel (%p1468) target = $region96
      $region95: #{flamingo_forward.10} parent=91 // pred_region
        _
      $region96: #{flamingo_forward.10} parent=91 // pred_fallthru
        _
    $region92: #{flamingo_forward.10} parent=5 // pred_fallthru
      _
    %p1471 = scmp.le.s32.totalorder 2, %s24
    // Predicated region
    $region97: #{flamingo_forward.10} parent=5 // pred_check
      %p1472 = pneg %p1471
    $region98: #{flamingo_forward.10} parent=5 // pred_check_branch
      %1474 = sbr.rel (%p1472) target = $region100
    $region99: #{flamingo_forward.10} parent=5 // pred_region
      %s1475 = ssub.s32 %s24, 2
      // Predicated region
      $region101: #{flamingo_forward.10} parent=99 // pred_check
        %p1476 = pneg %p441
      $region102: #{flamingo_forward.10} parent=99 // pred_check_branch
        %1478 = sbr.rel (%p1476) target = $region104
      $region103: #{flamingo_forward.10} parent=99 // pred_region
        %p1479 = scmp.lt.s32.totalorder %s30, 1
        %s1480 = scalar_select %p1479, %s30, 1
        %s1481 = smul.addr %s1480, 8
        %s1482 = scalar_lea.vmem %s18, %s1481
      $region104: #{flamingo_forward.10} parent=99 // pred_fallthru
        _
    $region100: #{flamingo_forward.10} parent=5 // pred_fallthru
      _
  $region6: #{flamingo_forward.10} parent=0 // loop_footer
    %s28 = sadd.s32 1, %s24
  $region7: #{flamingo_forward.10} parent=0 // loop_footer_branch
    %23 = sbr.rel target = $region3
  $region8: #{flamingo_forward.10} parent=0 // loop_exit
    _

// kernel: flamingo_forward.13
$region0: #{flamingo_forward.13}
  #allocation0 [shape = 'u32[]', space=smem, size = 0x4, offset = 0x4, fixed_abs, tag = 'smem constant byte address 0x4 - core index']
  #allocation1 [shape = 'u32[144,128]{1,0:T(1,128)}', space=vmem, size = 0x12000, scoped, tag = 'internal scratch']
  %s0 = inlined_call_operand.vmem [shape: f32[16,32], index: 0, kind: input, shape index: {}]
  %s1 = inlined_call_operand.vmem [shape: f32[1,32], index: 1, kind: input, shape index: {}]
  %s2 = inlined_call_operand.vmem [shape: f32[1,32], index: 2, kind: input, shape index: {}]
  %s3 = inlined_call_operand.vmem [shape: f32[32,128], index: 3, kind: input, shape index: {}]
  %s4 = inlined_call_operand.vmem [shape: f32[1,128], index: 4, kind: input, shape index: {}]
  %s5 = inlined_call_operand.vmem [shape: f32[16,128], index: 5, kind: output, shape index: {}]
  %s6 = sld [smem:[#allocation0]]
  $region30: #{flamingo_forward.13} parent=0
    _
  %s8 = ssub.s32 1, %s6
  %s9 = scalar_select 0, %s8, %s6
  // Predicated region
  $region2: #{flamingo_forward.13} parent=0 // pred_check
    _
  $region3: #{flamingo_forward.13} parent=0 // pred_check_branch
    %11 = sbr.rel (0) target = $region5
  $region4: #{flamingo_forward.13} parent=0 // pred_region
    _
  $region5: #{flamingo_forward.13} parent=0 // pred_fallthru
    _
  // Predicated region
  $region6: #{flamingo_forward.13} parent=0 // pred_check
    _
  $region7: #{flamingo_forward.13} parent=0 // pred_check_branch
    %13 = sbr.rel (0) target = $region9
  $region8: #{flamingo_forward.13} parent=0 // pred_region
    _
  $region9: #{flamingo_forward.13} parent=0 // pred_fallthru
    _
  // Predicated region
  $region10: #{flamingo_forward.13} parent=0 // pred_check
    _
  $region11: #{flamingo_forward.13} parent=0 // pred_check_branch
    %15 = sbr.rel (0) target = $region13
  $region12: #{flamingo_forward.13} parent=0 // pred_region
    _
  $region13: #{flamingo_forward.13} parent=0 // pred_fallthru
    _
  // Predicated region
  $region14: #{flamingo_forward.13} parent=0 // pred_check
    _
  $region15: #{flamingo_forward.13} parent=0 // pred_check_branch
    %17 = sbr.rel (0) target = $region17
  $region16: #{flamingo_forward.13} parent=0 // pred_region
    _
  $region17: #{flamingo_forward.13} parent=0 // pred_fallthru
    _
  // Predicated region
  $region18: #{flamingo_forward.13} parent=0 // pred_check
    _
  $region19: #{flamingo_forward.13} parent=0 // pred_check_branch
    %19 = sbr.rel (0) target = $region21
  $region20: #{flamingo_forward.13} parent=0 // pred_region
    _
  $region21: #{flamingo_forward.13} parent=0 // pred_fallthru
    _
  %v21 = vld [vmem:[%s0] sm:$0xff]
  %v22 = vld [vmem:[%s0 + $0x8] sm:$0xff]
  %v23 = vld [vmem:[%s1] sm:$0x1]
  %v24 = vld [vmem:[%s2] sm:$0x1]
  %vm25 = vcmask 261120
  %v26 = vsel %vm25, %v21, 0.0
  %27 = vadd.xlane.f32.xlu0 %v26
  %v28 = vpop.xlane.xlu0 %27
  %v29 = vsel %vm25, %v22, 0.0
  %30 = vadd.xlane.f32.xlu0 %v29
  %v31 = vpop.xlane.xlu0 %30
  %v32 = vrcp.pop 32.0
  %v33 = vmul.f32 %v28, %v32
  %v34 = vmul.f32 %v31, %v32
  %v35 = vsub.f32 %v21, %v33
  %v36 = vsub.f32 %v22, %v34
  %v37 = vmul.f32 %v35, %v35
  %v38 = vmul.f32 %v36, %v36
  %v39 = vsel %vm25, %v37, 0.0
  %40 = vadd.xlane.f32.xlu0 %v39
  %v41 = vpop.xlane.xlu0 %40
  %v42 = vsel %vm25, %v38, 0.0
  %43 = vadd.xlane.f32.xlu0 %v42
  %v44 = vpop.xlane.xlu0 %43
  %v45 = vmul.f32 %v41, %v32
  %v46 = vmul.f32 %v44, %v32
  %v47 = vadd.f32 %v45, 1e-05
  %v48 = vadd.f32 %v46, 1e-05
  %v49 = vrsqrt.pop %v47
  %v50 = vrsqrt.pop %v48
  %v51 = vmul.f32 %v35, %v49
  %v52 = vmul.f32 %v36, %v50
  %v54 = vlaneseq
  %v55 = vshrl.u32 %v54, 7
  %v56 = vsub.s32 0, %v55
  %v57 = vrot.slane %v23, %v56
  %v59 = vmul.f32 %v51, %v57
  %v60 = vmul.f32 %v52, %v57
  %v62 = vlaneseq
  %v63 = vshrl.u32 %v62, 7
  %v64 = vsub.s32 0, %v63
  %v65 = vrot.slane %v24, %v64
  %v67 = vadd.f32 %v59, %v65
  %v68 = vadd.f32 %v60, %v65
  %v69 = vld [vmem:[%s3] sm:$0xff]
  %v70 = vld [vmem:[%s3 + $0x8] sm:$0xff]
  %v71 = vld [vmem:[%s3 + $0x10] sm:$0xff]
  %v72 = vld [vmem:[%s3 + $0x18] sm:$0xff]
  %v73 = vpack.c.bf16 %v68, %v67
  %v74 = vpack.c.bf16 %v70, %v69
  %v75 = vpack.c.bf16 %v72, %v71
  %v76 = vld [vmem:[%s4] sm:$0x1]
  %v78 = vlaneseq
  %v79 = vshrl.u32 %v78, 7
  %v80 = vsub.s32 0, %v79
  %v81 = vrot.slane %v76, %v80
  %v84 = vsel %vm25, %v73, 0
  %86 = vmatprep.subr.bf16.mxu0 0
  %87 = vmatpush1.bf16.msra.mxu0 0
  %88 = vmatprep.subr.bf16.mxu0 0
  %89 = vmatpush1.bf16.msra.mxu0 0
  %90 = vmatprep.subr.bf16.mxu0 0
  %91 = vmatpush1.bf16.msra.mxu0 0
  %92 = vmatprep.subr.bf16.mxu0 0
  %93 = vmatpush1.bf16.msra.mxu0 0
  %94 = vmatprep.subr.bf16.mxu0 0
  %95 = vmatpush1.bf16.msra.mxu0 0
  %96 = vmatprep.subr.bf16.mxu0 0
  %97 = vmatpush1.bf16.msra.mxu0 0
  %98 = vmatprep.subr.bf16.mxu0 0
  %99 = vmatpush1.bf16.msra.mxu0 %v75
  %100 = vmatprep.subr.bf16.mxu0 0
  %101 = vmatpush1.bf16.msra.mxu0 %v74
  %102 = vmatprep.subr.bf16.mxu0 0
  %103 = vmatpush2.bf16.msra.mxu0 0
  %104 = vmatprep.subr.bf16.mxu0 0
  %105 = vmatpush2.bf16.msra.mxu0 0
  %106 = vmatprep.subr.bf16.mxu0 0
  %107 = vmatpush2.bf16.msra.mxu0 0
  %108 = vmatprep.subr.bf16.mxu0 0
  %109 = vmatpush2.bf16.msra.mxu0 0
  %110 = vmatprep.subr.bf16.mxu0 0
  %111 = vmatpush2.bf16.msra.mxu0 0
  %112 = vmatprep.subr.bf16.mxu0 0
  %113 = vmatpush2.bf16.msra.mxu0 0
  %114 = vmatprep.subr.bf16.mxu0 0
  %115 = vmatpush2.bf16.msra.mxu0 0
  %116 = vmatprep.subr.bf16.mxu0 0
  %117 = vmatpush2.bf16.msra.mxu0 0
  %118 = vmatprep.mubr.bf16.mxu0 0
  %119 = vmatmul.mubr.bf16.gmra.mxu0 %v84
  %v120 = vpop.f32.mrf.mxu0
  %v121 = vadd.f32 %v81, %v120
  %v122 = vpop.f32.mrf.mxu0
  %v123 = vpop.f32.mrf.mxu0
  %v124 = vadd.f32 %v81, %v123
  %v125 = vpop.f32.mrf.mxu0
  %126 = vdwg.mxu0
  %127 = vst [vmem:[%s5] sm:$0xff] %v121
  %128 = vst [vmem:[%s5 + $0x8] sm:$0xff] %v124
  // Predicated region
  $region22: #{flamingo_forward.13} parent=0 // pred_check
    _
  $region23: #{flamingo_forward.13} parent=0 // pred_check_branch
    %130 = sbr.rel (0) target = $region25
  $region24: #{flamingo_forward.13} parent=0 // pred_region
    _
  $region25: #{flamingo_forward.13} parent=0 // pred_fallthru
    _
  // Predicated region
  $region26: #{flamingo_forward.13} parent=0 // pred_check
    _
  $region27: #{flamingo_forward.13} parent=0 // pred_check_branch
    %132 = sbr.rel (0) target = $region29
  $region28: #{flamingo_forward.13} parent=0 // pred_region
    _
  $region29: #{flamingo_forward.13} parent=0 // pred_fallthru
    _

</llo_original>
